<compile_context>
chip_gen: v5e
topology: v5e:2x2
jax: 0.10.0
libtpu: 0.0.40
codegen_flags: <defaults>
</compile_context>

<pallas_src>
import functools

import jax
import jax.numpy as jnp
import numpy as np
from jax import lax
from jax.experimental import pallas as pl
from jax.experimental.pallas import tpu as pltpu

LANE = 128        # lane width (last dim)
BATCH_TILE = 16   # sublane tile for bf16 (second-minor dim)


def _round_up(x, m):
    return (x + m - 1) // m * m


def _choose_batch_block(Bp):
    # Larger tiles raise MXU row-occupancy of the recurrent (Bb,H)@(H,3H)
    # matmuls; smaller tiles give more "parallel" grid steps (v7x dual-TC)
    # and a smaller per-tile VMEM footprint.
    for bb in (64, 32, 16):
        if Bp % bb == 0:
            return bb
    return Bp


def _vmem_limit(need_bytes):
    try:
        cap = int(pltpu.get_tpu_info().vmem_capacity_bytes)
    except Exception:  # pragma: no cover - conservative fallback
        cap = 64 << 20
    want = int(need_bytes * 1.5) + (2 << 20)
    return int(max(32 << 20, min(want, int(cap * 0.9))))


# ----------------------------- Pallas kernels ------------------------------


def _bigru_mid_kernel(len_ref, x_ref, wih_ref, bi_ref,
                      whh_f_ref, bhn_f_ref, whh_b_ref, bhn_b_ref,
                      y_ref,
                      gi_scr, hf_scr, hb_scr,
                      *, T, B, H, DIN):
    """One bidirectional GRU layer on one batch tile.

    x_ref:   (T, B, DIN) bf16        len_ref: (B, 1) int32
    wih_ref: (DIN, 6H) bf16  fused [fwd r,z,n | bwd r,z,n]
    bi_ref:  (1, 6H) f32  (b_ih, with b_hh folded in for r/z gates)
    whh_*:   (H, 3H) bf16            bhn_*: (1, H) f32  (b_hh of the n gate)
    y_ref:   (T, B, 2H) bf16 out     gi_scr: (T*B, 6H) bf16
    h*_scr:  (B, H) f32
    """
    # Hoisted input projection: ONE big MXU matmul covers both directions.
    x = x_ref[...].reshape(T * B, DIN)
    gi = jnp.dot(x, wih_ref[...], preferred_element_type=jnp.float32)
    gi_scr[...] = (gi + bi_ref[...]).astype(jnp.bfloat16)

    hf_scr[...] = jnp.zeros_like(hf_scr)
    hb_scr[...] = jnp.zeros_like(hb_scr)
    lens = len_ref[...]                                    # (B, 1) int32
    bhn_f = bhn_f_ref[...]
    bhn_b = bhn_b_ref[...]

    def cell(h, gi_blk, gh, bhn):
        gi32 = gi_blk.astype(jnp.float32)                  # gate math stays f32
        r = jax.nn.sigmoid(gi32[:, 0:H] + gh[:, 0:H])
        z = jax.nn.sigmoid(gi32[:, H:2 * H] + gh[:, H:2 * H])
        n = jnp.tanh(gi32[:, 2 * H:3 * H] + r * (gh[:, 2 * H:3 * H] + bhn))
        return (1.0 - z) * n + z * h

    def step(s, carry):
        t_f = s
        t_b = T - 1 - s
        row_f = pl.multiple_of(t_f * B, B)
        row_b = pl.multiple_of(t_b * B, B)

        # forward direction
        hf = hf_scr[...]
        gh_f = jnp.dot(hf.astype(jnp.bfloat16), whh_f_ref[...],
                       preferred_element_type=jnp.float32)
        hf_new = cell(hf, gi_scr[pl.ds(row_f, B), pl.ds(0, 3 * H)], gh_f, bhn_f)
        hf_upd = jnp.where(t_f < lens, hf_new, hf)          # packed-seq masking
        hf_scr[...] = hf_upd
        y_ref[t_f, :, 0:H] = hf_upd.astype(jnp.bfloat16)

        # backward direction (independent carry interleaves in the schedule)
        hb = hb_scr[...]
        gh_b = jnp.dot(hb.astype(jnp.bfloat16), whh_b_ref[...],
                       preferred_element_type=jnp.float32)
        hb_new = cell(hb, gi_scr[pl.ds(row_b, B), pl.ds(3 * H, 3 * H)], gh_b, bhn_b)
        hb_upd = jnp.where(t_b < lens, hb_new, hb)
        hb_scr[...] = hb_upd
        y_ref[t_b, :, H:2 * H] = hb_upd.astype(jnp.bfloat16)
        return carry

    lax.fori_loop(0, T, step, 0, unroll=min(T, 8))


def _gru_last_kernel(len_ref, x_ref, wih_ref, bi_ref, whh_ref, bhn_ref,
                     fcw_ref, fcb_ref,
                     out_ref,
                     gi_scr, hb_scr,
                     *, T, B, H, DIN):
    """Last GRU layer on one batch tile: hidden[-1] is the backward-direction
    final hidden, so the forward direction and the y writeback are skipped and
    fc is fused into the epilogue.  out_ref: (B, Op) f32 logits."""
    x = x_ref[...].reshape(T * B, DIN)
    gi = jnp.dot(x, wih_ref[...], preferred_element_type=jnp.float32)
    gi_scr[...] = (gi + bi_ref[...]).astype(jnp.bfloat16)
    hb_scr[...] = jnp.zeros_like(hb_scr)
    lens = len_ref[...]
    bhn_b = bhn_ref[...]

    def step(s, carry):
        t_b = T - 1 - s
        row_b = pl.multiple_of(t_b * B, B)
        gi_row = gi_scr[pl.ds(row_b, B), :].astype(jnp.float32)
        hb = hb_scr[...]
        gh = jnp.dot(hb.astype(jnp.bfloat16), whh_ref[...],
                     preferred_element_type=jnp.float32)
        r = jax.nn.sigmoid(gi_row[:, 0:H] + gh[:, 0:H])
        z = jax.nn.sigmoid(gi_row[:, H:2 * H] + gh[:, H:2 * H])
        n = jnp.tanh(gi_row[:, 2 * H:3 * H] + r * (gh[:, 2 * H:3 * H] + bhn_b))
        hb_new = (1.0 - z) * n + z * hb
        hb_scr[...] = jnp.where(t_b < lens, hb_new, hb)
        return carry

    lax.fori_loop(0, T, step, 0, unroll=min(T, 8))
    # fused fc on hidden[-1]
    out_ref[...] = (jnp.dot(hb_scr[...], fcw_ref[...],
                            preferred_element_type=jnp.float32) + fcb_ref[...])


# ------------------------------ JAX wrappers -------------------------------


def _bigru_mid_layer(x3, lens2d, lp, *, T, Bp, Bb, Hp, Din):
    kernel = functools.partial(_bigru_mid_kernel, T=T, B=Bb, H=Hp, DIN=Din)
    const2d = lambda i: (0, 0)
    need = (2 * T * Bb * Din * 2          # x block (double-buffered)
            + 2 * T * Bb * 2 * Hp * 2     # y block (double-buffered)
            + T * Bb * 6 * Hp * 2         # gi scratch (bf16)
            + 2 * Bb * Hp * 4             # h carries
            + 2 * (Din * 6 * Hp + 2 * Hp * 3 * Hp) * 2)   # weights, 2x headroom
    return pl.pallas_call(
        kernel,
        out_shape=jax.ShapeDtypeStruct((T, Bp, 2 * Hp), jnp.bfloat16),
        grid_spec=pltpu.PrefetchScalarGridSpec(
            num_scalar_prefetch=0,
            grid=(Bp // Bb,),
            in_specs=[
                pl.BlockSpec((Bb, 1), lambda i: (i, 0)),            # lens
                pl.BlockSpec((T, Bb, Din), lambda i: (0, i, 0)),    # x
                pl.BlockSpec((Din, 6 * Hp), const2d),               # wih fused
                pl.BlockSpec((1, 6 * Hp), const2d),                 # bi fused
                pl.BlockSpec((Hp, 3 * Hp), const2d),                # whh fwd
                pl.BlockSpec((1, Hp), const2d),                     # bhn fwd
                pl.BlockSpec((Hp, 3 * Hp), const2d),                # whh bwd
                pl.BlockSpec((1, Hp), const2d),                     # bhn bwd
            ],
            out_specs=pl.BlockSpec((T, Bb, 2 * Hp), lambda i: (0, i, 0)),
            scratch_shapes=[pltpu.VMEM((T * Bb, 6 * Hp), jnp.bfloat16),
                            pltpu.VMEM((Bb, Hp), jnp.float32),
                            pltpu.VMEM((Bb, Hp), jnp.float32)]),
        compiler_params=pltpu.CompilerParams(
            dimension_semantics=("parallel",),
            vmem_limit_bytes=_vmem_limit(need)),
    )(lens2d, x3, lp["wih_fb"], lp["bi_fb"],
      lp["whh_f"], lp["bhn_f"], lp["whh_b"], lp["bhn_b"])


def _gru_last_layer(x3, lens2d, lp, fc_w, fc_b, *, T, Bp, Bb, Hp, Din):
    Op = fc_w.shape[-1]
    kernel = functools.partial(_gru_last_kernel, T=T, B=Bb, H=Hp, DIN=Din)
    const2d = lambda i: (0, 0)
    need = (2 * T * Bb * Din * 2
            + T * Bb * 3 * Hp * 2
            + Bb * Hp * 4
            + 2 * Bb * Op * 4
            + 2 * (Din * 3 * Hp + Hp * 3 * Hp + Hp * Op) * 2)
    return pl.pallas_call(
        kernel,
        out_shape=jax.ShapeDtypeStruct((Bp, Op), jnp.float32),
        grid_spec=pltpu.PrefetchScalarGridSpec(
            num_scalar_prefetch=0,
            grid=(Bp // Bb,),
            in_specs=[
                pl.BlockSpec((Bb, 1), lambda i: (i, 0)),            # lens
                pl.BlockSpec((T, Bb, Din), lambda i: (0, i, 0)),    # x
                pl.BlockSpec((Din, 3 * Hp), const2d),               # wih bwd
                pl.BlockSpec((1, 3 * Hp), const2d),                 # bi bwd
                pl.BlockSpec((Hp, 3 * Hp), const2d),                # whh bwd
                pl.BlockSpec((1, Hp), const2d),                     # bhn bwd
                pl.BlockSpec((Hp, Op), const2d),                    # fc_w
                pl.BlockSpec((1, Op), const2d),                     # fc_b
            ],
            out_specs=pl.BlockSpec((Bb, Op), lambda i: (i, 0)),
            scratch_shapes=[pltpu.VMEM((T * Bb, 3 * Hp), jnp.bfloat16),
                            pltpu.VMEM((Bb, Hp), jnp.float32)]),
        compiler_params=pltpu.CompilerParams(
            dimension_semantics=("parallel",),
            vmem_limit_bytes=_vmem_limit(need)),
    )(lens2d, x3, lp["wih_b"], lp["bi_b"], lp["whh_b"], lp["bhn_b"], fc_w, fc_b)


# ------------------------------- parameters --------------------------------


def init_params(key, input_size, hidden_size, output_size, n_layers,
                bidirectional=True):
    """PyTorch-layout per-gate parameters (gate order [r, z, n])."""
    assert bidirectional, "only the (default) bidirectional=True config is implemented"
    n_dir = 2
    H = hidden_size
    bound = 1.0 / np.sqrt(H)

    def nxt(k):
        k, sub = jax.random.split(k)
        return k, sub

    key, k_emb = nxt(key)
    params = {"embedding": jax.random.normal(k_emb, (input_size, H), jnp.float32),
              "gru": []}
    for layer in range(n_layers):
        d_in = H if layer == 0 else H * n_dir
        layer_params = []
        for _ in range(n_dir):
            key, k1 = nxt(key)
            key, k2 = nxt(key)
            key, k3 = nxt(key)
            key, k4 = nxt(key)
            wih = jax.random.uniform(k1, (3, d_in, H), jnp.float32, -bound, bound)
            whh = jax.random.uniform(k2, (3, H, H), jnp.float32, -bound, bound)
            bih = jax.random.uniform(k3, (3, 1, H), jnp.float32, -bound, bound)
            bhh = jax.random.uniform(k4, (3, 1, H), jnp.float32, -bound, bound)
            layer_params.append((wih, whh, bih, bhh))
        params["gru"].append(layer_params)
    key, kw = nxt(key)
    key, kb = nxt(key)
    params["fc_w"] = jax.random.uniform(kw, (H, output_size), jnp.float32, -bound, bound)
    params["fc_b"] = jax.random.uniform(kb, (1, output_size), jnp.float32, -bound, bound)
    return params


def prepare_kernel_params(params, hidden_size, output_size):
    """Pad to lane-dense shapes, fuse gates (and both directions' W_ih for
    non-final layers), fold biases, cast MXU inputs to bf16.

    Padding is with zeros, which leaves the valid lanes/rows of every hidden
    state at exactly the unpadded values (padded h dims stay 0)."""
    H = hidden_size
    Hp = _round_up(H, LANE)
    Op = _round_up(output_size, LANE)

    def fuse_direction(wih, whh, bih, bhh, n_in_blocks):
        wih_cols, whh_cols, bi_cols = [], [], []
        for g in range(3):
            # pad each logical H-row block of the input dim separately so the
            # rows line up with the padded [fwd Hp | bwd Hp] activation layout
            blocks = jnp.split(wih[g], n_in_blocks, axis=0)       # each (H, H)
            wih_cols.append(jnp.concatenate(
                [jnp.pad(b, ((0, Hp - H), (0, Hp - H))) for b in blocks], axis=0))
            whh_cols.append(jnp.pad(whh[g], ((0, Hp - H), (0, Hp - H))))
            bi = bih[g] + bhh[g] if g < 2 else bih[g]             # fold b_hh for r,z
            bi_cols.append(jnp.pad(bi, ((0, 0), (0, Hp - H))))
        wih_fused = jnp.concatenate(wih_cols, axis=1).astype(jnp.bfloat16)
        whh_fused = jnp.concatenate(whh_cols, axis=1).astype(jnp.bfloat16)
        bi_fused = jnp.concatenate(bi_cols, axis=1).astype(jnp.float32)
        bhn = jnp.pad(bhh[2], ((0, 0), (0, Hp - H))).astype(jnp.float32)
        return wih_fused, whh_fused, bi_fused, bhn

    n_layers = len(params["gru"])
    gru_mid, gru_last = [], None
    for li, layer_params in enumerate(params["gru"]):
        n_in_blocks = 1 if li == 0 else 2
        wih_f, whh_f, bi_f, bhn_f = fuse_direction(*layer_params[0], n_in_blocks)
        wih_b, whh_b, bi_b, bhn_b = fuse_direction(*layer_params[1], n_in_blocks)
        if li == n_layers - 1:
            # fwd direction of the last layer never reaches fc(hidden[-1])
            gru_last = {"wih_b": wih_b, "whh_b": whh_b, "bi_b": bi_b, "bhn_b": bhn_b}
        else:
            gru_mid.append({
                "wih_fb": jnp.concatenate([wih_f, wih_b], axis=1),   # (Din_p, 6Hp)
                "bi_fb": jnp.concatenate([bi_f, bi_b], axis=1),      # (1, 6Hp)
                "whh_f": whh_f, "bhn_f": bhn_f,
                "whh_b": whh_b, "bhn_b": bhn_b,
            })

    return {
        "embedding": jnp.pad(params["embedding"], ((0, 0), (0, Hp - H))),
        "gru_mid": gru_mid, "gru_last": gru_last,
        "fc_w": jnp.pad(params["fc_w"], ((0, Hp - H), (0, Op - output_size))),
        "fc_b": jnp.pad(params["fc_b"], ((0, 0), (0, Op - output_size))),
        "H": H, "Hp": Hp, "O": output_size, "Op": Op,
    }


def rnn_classifier_forward(kparams, tokens, seq_lengths):
    """tokens: (B, T) int32; seq_lengths: (B,) int32 (descending, as required
    by pack_padded_sequence; must be >= 1).  Returns (B, output_size) logits."""
    B, T = tokens.shape
    Hp = kparams["Hp"]
    Bp = _round_up(B, BATCH_TILE)
    Bb = _choose_batch_block(Bp)
    tok_p = jnp.pad(tokens, ((0, Bp - B), (0, 0)))
    lens_p = jnp.pad(seq_lengths.astype(jnp.int32), (0, Bp - B)).reshape(Bp, 1)

    # embedding lookup, time-major (T, Bp, Hp), bf16 for the MXU
    x = jnp.take(kparams["embedding"], tok_p.T, axis=0).astype(jnp.bfloat16)

    for lp in kparams["gru_mid"]:
        x = _bigru_mid_layer(x, lens_p, lp, T=T, Bp=Bp, Bb=Bb, Hp=Hp,
                             Din=x.shape[-1])
    logits = _gru_last_layer(x, lens_p, kparams["gru_last"],
                             kparams["fc_w"], kparams["fc_b"],
                             T=T, Bp=Bp, Bb=Bb, Hp=Hp, Din=x.shape[-1])
    return logits[:B, :kparams["O"]]


# ------------------------- pure-numpy reference ----------------------------


def _bf16_round(a):
    return np.asarray(jnp.asarray(np.asarray(a, np.float32),
                                  dtype=jnp.bfloat16).astype(jnp.float32))


def _sigmoid(x):
    return 1.0 / (1.0 + np.exp(-x))


def ref_forward(params, tokens, seq_lengths):
    """Independent numpy reference mirroring the kernel's bf16 roundings
    (MXU inputs, stored gi, inter-layer activations)."""
    emb = np.asarray(params["embedding"])
    tok = np.asarray(tokens)
    lens = np.asarray(seq_lengths)
    x = _bf16_round(emb[tok.T])                                  # (T, B, H)
    T, B, H = x.shape
    finals = []
    for layer_params in params["gru"]:
        ys, finals = [], []
        for d, (wih, whh, bih, bhh) in enumerate(layer_params):
            wih16 = _bf16_round(wih)
            whh16 = _bf16_round(whh)
            bih = np.asarray(bih)
            bhh = np.asarray(bhh)
            h = np.zeros((B, H), np.float32)
            y = np.zeros((T, B, H), np.float32)
            order = range(T - 1, -1, -1) if d == 1 else range(T)
            for t in order:
                gi_r = _bf16_round(x[t] @ wih16[0] + bih[0] + bhh[0])
                gi_z = _bf16_round(x[t] @ wih16[1] + bih[1] + bhh[1])
                gi_n = _bf16_round(x[t] @ wih16[2] + bih[2])
                h16 = _bf16_round(h)
                gh_r = h16 @ whh16[0]
                gh_z = h16 @ whh16[1]
                gh_n = h16 @ whh16[2] + bhh[2]
                r = _sigmoid(gi_r + gh_r)
                z = _sigmoid(gi_z + gh_z)
                n = np.tanh(gi_n + r * gh_n)
                h_new = (1.0 - z) * n + z * h
                h = np.where((t < lens)[:, None], h_new, h)
                y[t] = h
            ys.append(y)
            finals.append(h)
        x = _bf16_round(np.concatenate(ys, axis=-1))
    return finals[-1] @ np.asarray(params["fc_w"]) + np.asarray(params["fc_b"])


# ---------------------------------- main -----------------------------------

if __name__ == "__main__":
    key = jax.random.PRNGKey(0)
    B, T = 2, 8
    vocab_size, hidden_size, output_size, n_layers = 16, 32, 4, 2

    k_params, k_tok = jax.random.split(key)
    params = init_params(k_params, vocab_size, hidden_size, output_size,
                         n_layers, bidirectional=True)
    kparams = prepare_kernel_params(params, hidden_size, output_size)

    tokens = jax.random.randint(k_tok, (B, T), 0, vocab_size, dtype=jnp.int32)
    # pack_padded_sequence requires descending, >=1 lengths
    seq_lengths = jnp.array([T, 5], dtype=jnp.int32)

    fwd = jax.jit(lambda tok, sl: rnn_classifier_forward(kparams, tok, sl))
    out = jax.block_until_ready(fwd(tokens, seq_lengths))

    ref = ref_forward(params, tokens, seq_lengths)
    assert out.shape == (B, output_size)
    err = float(np.max(np.abs(np.asarray(out) - ref)))
    assert np.allclose(np.asarray(out), ref, atol=5e-3, rtol=5e-3), f"mismatch: {err}"
    print("KERNEL_OK")
</pallas_src>

<mosaic_0001>
module attributes {stable_mosaic.version = 11 : i64} {
  func.func @_gru_last_kernel(%arg0: i32, %arg1: memref<16x1xi32, #tpu.memory_space<vmem>>, %arg2: memref<8x16x256xbf16, #tpu.memory_space<vmem>>, %arg3: memref<256x384xbf16, #tpu.memory_space<vmem>>, %arg4: memref<1x384xf32, #tpu.memory_space<vmem>>, %arg5: memref<128x384xbf16, #tpu.memory_space<vmem>>, %arg6: memref<1x128xf32, #tpu.memory_space<vmem>>, %arg7: memref<128x128xf32, #tpu.memory_space<vmem>>, %arg8: memref<1x128xf32, #tpu.memory_space<vmem>>, %arg9: memref<16x128xf32, #tpu.memory_space<vmem>>, %arg10: memref<128x384xbf16, #tpu.memory_space<vmem>>, %arg11: memref<16x128xf32, #tpu.memory_space<vmem>>) attributes {dimension_semantics = [#tpu.dimension_semantics<parallel>], iteration_bounds = array<i64: 1>, scalar_prefetch = 0 : i64, scratch_operands = 2 : i64, tpu.core_type = #tpu.core_type<tc>, window_params = [{transform_indices = @transform_0, window_bounds = array<i64: 16, 1>}, {transform_indices = @transform_1, window_bounds = array<i64: 8, 16, 256>}, {pipeline_mode = #tpu.pipeline_mode<synchronous>, transform_indices = @transform_2, window_bounds = array<i64: 256, 384>}, {pipeline_mode = #tpu.pipeline_mode<synchronous>, transform_indices = @transform_3, window_bounds = array<i64: 1, 384>}, {pipeline_mode = #tpu.pipeline_mode<synchronous>, transform_indices = @transform_4, window_bounds = array<i64: 128, 384>}, {pipeline_mode = #tpu.pipeline_mode<synchronous>, transform_indices = @transform_5, window_bounds = array<i64: 1, 128>}, {pipeline_mode = #tpu.pipeline_mode<synchronous>, transform_indices = @transform_6, window_bounds = array<i64: 128, 128>}, {pipeline_mode = #tpu.pipeline_mode<synchronous>, transform_indices = @transform_7, window_bounds = array<i64: 1, 128>}, {transform_indices = @transform_8, window_bounds = array<i64: 16, 128>}]} {
    %c0 = arith.constant 0 : index
    %c0_0 = arith.constant 0 : index
    %c0_1 = arith.constant 0 : index
    %0 = vector.load %arg2[%c0, %c0_0, %c0_1] : memref<8x16x256xbf16, #tpu.memory_space<vmem>>, vector<8x16x256xbf16>
    %1 = vector.shape_cast %0 : vector<8x16x256xbf16> to vector<128x256xbf16>
    %c0_2 = arith.constant 0 : index
    %c0_3 = arith.constant 0 : index
    %2 = vector.load %arg3[%c0_2, %c0_3] : memref<256x384xbf16, #tpu.memory_space<vmem>>, vector<256x384xbf16>
    %cst = arith.constant dense<0.000000e+00> : vector<128x384xf32>
    %3 = tpu.matmul %1, %2, %cst {dimension_numbers = #tpu.dot_dimension_numbers<[1], [0], [0], [1], [0, 0, 1, 1], [], []>} : vector<128x256xbf16>, vector<256x384xbf16>, vector<128x384xf32> -> vector<128x384xf32>
    %c0_4 = arith.constant 0 : index
    %c0_5 = arith.constant 0 : index
    %4 = vector.load %arg4[%c0_4, %c0_5] : memref<1x384xf32, #tpu.memory_space<vmem>>, vector<1x384xf32>
    %5 = vector.broadcast %4 : vector<1x384xf32> to vector<128x384xf32>
    %6 = arith.addf %3, %5 : vector<128x384xf32>
    %7 = arith.truncf %6 : vector<128x384xf32> to vector<128x384xbf16>
    %c0_6 = arith.constant 0 : index
    %c0_7 = arith.constant 0 : index
    %8 = vector.load %arg10[%c0_6, %c0_7] : memref<128x384xbf16, #tpu.memory_space<vmem>>, vector<128x384xbf16>
    tpu.vector_store %arg10[%c0_6, %c0_7], %7 {strides = array<i32>} : memref<128x384xbf16, #tpu.memory_space<vmem>>, vector<128x384xbf16>,
    %cst_8 = arith.constant 0.000000e+00 : f32
    %9 = vector.broadcast %cst_8 : f32 to vector<16x128xf32>
    %c0_9 = arith.constant 0 : index
    %c0_10 = arith.constant 0 : index
    %10 = vector.load %arg11[%c0_9, %c0_10] : memref<16x128xf32, #tpu.memory_space<vmem>>, vector<16x128xf32>
    tpu.vector_store %arg11[%c0_9, %c0_10], %9 {strides = array<i32>} : memref<16x128xf32, #tpu.memory_space<vmem>>, vector<16x128xf32>,
    %c0_11 = arith.constant 0 : index
    %c0_12 = arith.constant 0 : index
    %11 = vector.load %arg1[%c0_11, %c0_12] : memref<16x1xi32, #tpu.memory_space<vmem>>, vector<16x1xi32>
    %c0_13 = arith.constant 0 : index
    %c0_14 = arith.constant 0 : index
    %12 = vector.load %arg6[%c0_13, %c0_14] : memref<1x128xf32, #tpu.memory_space<vmem>>, vector<1x128xf32>
    %c0_i32 = arith.constant 0 : i32
    %c7_i32 = arith.constant 7 : i32
    %13 = arith.subi %c7_i32, %c0_i32 : i32
    %c16_i32 = arith.constant 16 : i32
    %14 = arith.muli %13, %c16_i32 : i32
    %15 = tpu.assume_multiple %14, 16 : i32
    %16 = arith.index_cast %15 : i32 to index
    %c0_15 = arith.constant 0 : index
    %17 = vector.load %arg10[%16, %c0_15] : memref<128x384xbf16, #tpu.memory_space<vmem>>, vector<16x384xbf16>
    %18 = arith.extf %17 : vector<16x384xbf16> to vector<16x384xf32>
    %c0_16 = arith.constant 0 : index
    %c0_17 = arith.constant 0 : index
    %19 = vector.load %arg11[%c0_16, %c0_17] : memref<16x128xf32, #tpu.memory_space<vmem>>, vector<16x128xf32>
    %20 = arith.truncf %19 : vector<16x128xf32> to vector<16x128xbf16>
    %c0_18 = arith.constant 0 : index
    %c0_19 = arith.constant 0 : index
    %21 = vector.load %arg5[%c0_18, %c0_19] : memref<128x384xbf16, #tpu.memory_space<vmem>>, vector<128x384xbf16>
    %cst_20 = arith.constant dense<0.000000e+00> : vector<16x384xf32>
    %22 = tpu.matmul %20, %21, %cst_20 {dimension_numbers = #tpu.dot_dimension_numbers<[1], [0], [0], [1], [0, 0, 1, 1], [], []>} : vector<16x128xbf16>, vector<128x384xbf16>, vector<16x384xf32> -> vector<16x384xf32>
    %23 = vector.extract_strided_slice %18 {offsets = [0, 0], sizes = [16, 128], strides = [1, 1]} : vector<16x384xf32> to vector<16x128xf32>
    %24 = vector.extract_strided_slice %22 {offsets = [0, 0], sizes = [16, 128], strides = [1, 1]} : vector<16x384xf32> to vector<16x128xf32>
    %25 = arith.addf %23, %24 : vector<16x128xf32>
    %26 = arith.negf %25 : vector<16x128xf32>
    %27 = math.exp %26 : vector<16x128xf32>
    %cst_21 = arith.constant 1.000000e+00 : f32
    %28 = vector.broadcast %cst_21 : f32 to vector<16x128xf32>
    %29 = arith.addf %28, %27 : vector<16x128xf32>
    %30 = arith.divf %28, %29 : vector<16x128xf32>
    %31 = vector.extract_strided_slice %18 {offsets = [0, 128], sizes = [16, 128], strides = [1, 1]} : vector<16x384xf32> to vector<16x128xf32>
    %32 = vector.extract_strided_slice %22 {offsets = [0, 128], sizes = [16, 128], strides = [1, 1]} : vector<16x384xf32> to vector<16x128xf32>
    %33 = arith.addf %31, %32 : vector<16x128xf32>
    %34 = arith.negf %33 : vector<16x128xf32>
    %35 = math.exp %34 : vector<16x128xf32>
    %cst_22 = arith.constant 1.000000e+00 : f32
    %36 = vector.broadcast %cst_22 : f32 to vector<16x128xf32>
    %37 = arith.addf %36, %35 : vector<16x128xf32>
    %38 = arith.divf %36, %37 : vector<16x128xf32>
    %39 = vector.extract_strided_slice %18 {offsets = [0, 256], sizes = [16, 128], strides = [1, 1]} : vector<16x384xf32> to vector<16x128xf32>
    %40 = vector.extract_strided_slice %22 {offsets = [0, 256], sizes = [16, 128], strides = [1, 1]} : vector<16x384xf32> to vector<16x128xf32>
    %41 = vector.broadcast %12 : vector<1x128xf32> to vector<16x128xf32>
    %42 = arith.addf %40, %41 : vector<16x128xf32>
    %43 = arith.mulf %30, %42 : vector<16x128xf32>
    %44 = arith.addf %39, %43 : vector<16x128xf32>
    %45 = math.tanh %44 : vector<16x128xf32>
    %cst_23 = arith.constant 1.000000e+00 : f32
    %46 = vector.broadcast %cst_23 : f32 to vector<16x128xf32>
    %47 = arith.subf %46, %38 : vector<16x128xf32>
    %48 = arith.mulf %47, %45 : vector<16x128xf32>
    %49 = arith.mulf %38, %19 : vector<16x128xf32>
    %50 = arith.addf %48, %49 : vector<16x128xf32>
    %51 = vector.broadcast %13 : i32 to vector<16x1xi32>
    %52 = arith.cmpi slt, %51, %11 : vector<16x1xi32>
    %53 = vector.shape_cast %52 : vector<16x1xi1> to vector<16x1xi1>
    %54 = vector.broadcast %53 : vector<16x1xi1> to vector<16x128xi1>
    %55 = arith.select %54, %50, %19 : vector<16x128xi1>, vector<16x128xf32>
    %c0_24 = arith.constant 0 : index
    %c0_25 = arith.constant 0 : index
    %56 = vector.load %arg11[%c0_24, %c0_25] : memref<16x128xf32, #tpu.memory_space<vmem>>, vector<16x128xf32>
    tpu.vector_store %arg11[%c0_24, %c0_25], %55 {strides = array<i32>} : memref<16x128xf32, #tpu.memory_space<vmem>>, vector<16x128xf32>,
    %c1_i32 = arith.constant 1 : i32
    %c7_i32_26 = arith.constant 7 : i32
    %57 = arith.subi %c7_i32_26, %c1_i32 : i32
    %c16_i32_27 = arith.constant 16 : i32
    %58 = arith.muli %57, %c16_i32_27 : i32
    %59 = tpu.assume_multiple %58, 16 : i32
    %60 = arith.index_cast %59 : i32 to index
    %c0_28 = arith.constant 0 : index
    %61 = vector.load %arg10[%60, %c0_28] : memref<128x384xbf16, #tpu.memory_space<vmem>>, vector<16x384xbf16>
    %62 = arith.extf %61 : vector<16x384xbf16> to vector<16x384xf32>
    %c0_29 = arith.constant 0 : index
    %c0_30 = arith.constant 0 : index
    %63 = vector.load %arg11[%c0_29, %c0_30] : memref<16x128xf32, #tpu.memory_space<vmem>>, vector<16x128xf32>
    %64 = arith.truncf %63 : vector<16x128xf32> to vector<16x128xbf16>
    %c0_31 = arith.constant 0 : index
    %c0_32 = arith.constant 0 : index
    %65 = vector.load %arg5[%c0_31, %c0_32] : memref<128x384xbf16, #tpu.memory_space<vmem>>, vector<128x384xbf16>
    %cst_33 = arith.constant dense<0.000000e+00> : vector<16x384xf32>
    %66 = tpu.matmul %64, %65, %cst_33 {dimension_numbers = #tpu.dot_dimension_numbers<[1], [0], [0], [1], [0, 0, 1, 1], [], []>} : vector<16x128xbf16>, vector<128x384xbf16>, vector<16x384xf32> -> vector<16x384xf32>
    %67 = vector.extract_strided_slice %62 {offsets = [0, 0], sizes = [16, 128], strides = [1, 1]} : vector<16x384xf32> to vector<16x128xf32>
    %68 = vector.extract_strided_slice %66 {offsets = [0, 0], sizes = [16, 128], strides = [1, 1]} : vector<16x384xf32> to vector<16x128xf32>
    %69 = arith.addf %67, %68 : vector<16x128xf32>
    %70 = arith.negf %69 : vector<16x128xf32>
    %71 = math.exp %70 : vector<16x128xf32>
    %cst_34 = arith.constant 1.000000e+00 : f32
    %72 = vector.broadcast %cst_34 : f32 to vector<16x128xf32>
    %73 = arith.addf %72, %71 : vector<16x128xf32>
    %74 = arith.divf %72, %73 : vector<16x128xf32>
    %75 = vector.extract_strided_slice %62 {offsets = [0, 128], sizes = [16, 128], strides = [1, 1]} : vector<16x384xf32> to vector<16x128xf32>
    %76 = vector.extract_strided_slice %66 {offsets = [0, 128], sizes = [16, 128], strides = [1, 1]} : vector<16x384xf32> to vector<16x128xf32>
    %77 = arith.addf %75, %76 : vector<16x128xf32>
    %78 = arith.negf %77 : vector<16x128xf32>
    %79 = math.exp %78 : vector<16x128xf32>
    %cst_35 = arith.constant 1.000000e+00 : f32
    %80 = vector.broadcast %cst_35 : f32 to vector<16x128xf32>
    %81 = arith.addf %80, %79 : vector<16x128xf32>
    %82 = arith.divf %80, %81 : vector<16x128xf32>
    %83 = vector.extract_strided_slice %62 {offsets = [0, 256], sizes = [16, 128], strides = [1, 1]} : vector<16x384xf32> to vector<16x128xf32>
    %84 = vector.extract_strided_slice %66 {offsets = [0, 256], sizes = [16, 128], strides = [1, 1]} : vector<16x384xf32> to vector<16x128xf32>
    %85 = vector.broadcast %12 : vector<1x128xf32> to vector<16x128xf32>
    %86 = arith.addf %84, %85 : vector<16x128xf32>
    %87 = arith.mulf %74, %86 : vector<16x128xf32>
    %88 = arith.addf %83, %87 : vector<16x128xf32>
    %89 = math.tanh %88 : vector<16x128xf32>
    %cst_36 = arith.constant 1.000000e+00 : f32
    %90 = vector.broadcast %cst_36 : f32 to vector<16x128xf32>
    %91 = arith.subf %90, %82 : vector<16x128xf32>
    %92 = arith.mulf %91, %89 : vector<16x128xf32>
    %93 = arith.mulf %82, %63 : vector<16x128xf32>
    %94 = arith.addf %92, %93 : vector<16x128xf32>
    %95 = vector.broadcast %57 : i32 to vector<16x1xi32>
    %96 = arith.cmpi slt, %95, %11 : vector<16x1xi32>
    %97 = vector.shape_cast %96 : vector<16x1xi1> to vector<16x1xi1>
    %98 = vector.broadcast %97 : vector<16x1xi1> to vector<16x128xi1>
    %99 = arith.select %98, %94, %63 : vector<16x128xi1>, vector<16x128xf32>
    %c0_37 = arith.constant 0 : index
    %c0_38 = arith.constant 0 : index
    %100 = vector.load %arg11[%c0_37, %c0_38] : memref<16x128xf32, #tpu.memory_space<vmem>>, vector<16x128xf32>
    tpu.vector_store %arg11[%c0_37, %c0_38], %99 {strides = array<i32>} : memref<16x128xf32, #tpu.memory_space<vmem>>, vector<16x128xf32>,
    %c2_i32 = arith.constant 2 : i32
    %c7_i32_39 = arith.constant 7 : i32
    %101 = arith.subi %c7_i32_39, %c2_i32 : i32
    %c16_i32_40 = arith.constant 16 : i32
    %102 = arith.muli %101, %c16_i32_40 : i32
    %103 = tpu.assume_multiple %102, 16 : i32
    %104 = arith.index_cast %103 : i32 to index
    %c0_41 = arith.constant 0 : index
    %105 = vector.load %arg10[%104, %c0_41] : memref<128x384xbf16, #tpu.memory_space<vmem>>, vector<16x384xbf16>
    %106 = arith.extf %105 : vector<16x384xbf16> to vector<16x384xf32>
    %c0_42 = arith.constant 0 : index
    %c0_43 = arith.constant 0 : index
    %107 = vector.load %arg11[%c0_42, %c0_43] : memref<16x128xf32, #tpu.memory_space<vmem>>, vector<16x128xf32>
    %108 = arith.truncf %107 : vector<16x128xf32> to vector<16x128xbf16>
    %c0_44 = arith.constant 0 : index
    %c0_45 = arith.constant 0 : index
    %109 = vector.load %arg5[%c0_44, %c0_45] : memref<128x384xbf16, #tpu.memory_space<vmem>>, vector<128x384xbf16>
    %cst_46 = arith.constant dense<0.000000e+00> : vector<16x384xf32>
    %110 = tpu.matmul %108, %109, %cst_46 {dimension_numbers = #tpu.dot_dimension_numbers<[1], [0], [0], [1], [0, 0, 1, 1], [], []>} : vector<16x128xbf16>, vector<128x384xbf16>, vector<16x384xf32> -> vector<16x384xf32>
    %111 = vector.extract_strided_slice %106 {offsets = [0, 0], sizes = [16, 128], strides = [1, 1]} : vector<16x384xf32> to vector<16x128xf32>
    %112 = vector.extract_strided_slice %110 {offsets = [0, 0], sizes = [16, 128], strides = [1, 1]} : vector<16x384xf32> to vector<16x128xf32>
    %113 = arith.addf %111, %112 : vector<16x128xf32>
    %114 = arith.negf %113 : vector<16x128xf32>
    %115 = math.exp %114 : vector<16x128xf32>
    %cst_47 = arith.constant 1.000000e+00 : f32
    %116 = vector.broadcast %cst_47 : f32 to vector<16x128xf32>
    %117 = arith.addf %116, %115 : vector<16x128xf32>
    %118 = arith.divf %116, %117 : vector<16x128xf32>
    %119 = vector.extract_strided_slice %106 {offsets = [0, 128], sizes = [16, 128], strides = [1, 1]} : vector<16x384xf32> to vector<16x128xf32>
    %120 = vector.extract_strided_slice %110 {offsets = [0, 128], sizes = [16, 128], strides = [1, 1]} : vector<16x384xf32> to vector<16x128xf32>
    %121 = arith.addf %119, %120 : vector<16x128xf32>
    %122 = arith.negf %121 : vector<16x128xf32>
    %123 = math.exp %122 : vector<16x128xf32>
    %cst_48 = arith.constant 1.000000e+00 : f32
    %124 = vector.broadcast %cst_48 : f32 to vector<16x128xf32>
    %125 = arith.addf %124, %123 : vector<16x128xf32>
    %126 = arith.divf %124, %125 : vector<16x128xf32>
    %127 = vector.extract_strided_slice %106 {offsets = [0, 256], sizes = [16, 128], strides = [1, 1]} : vector<16x384xf32> to vector<16x128xf32>
    %128 = vector.extract_strided_slice %110 {offsets = [0, 256], sizes = [16, 128], strides = [1, 1]} : vector<16x384xf32> to vector<16x128xf32>
    %129 = vector.broadcast %12 : vector<1x128xf32> to vector<16x128xf32>
    %130 = arith.addf %128, %129 : vector<16x128xf32>
    %131 = arith.mulf %118, %130 : vector<16x128xf32>
    %132 = arith.addf %127, %131 : vector<16x128xf32>
    %133 = math.tanh %132 : vector<16x128xf32>
    %cst_49 = arith.constant 1.000000e+00 : f32
    %134 = vector.broadcast %cst_49 : f32 to vector<16x128xf32>
    %135 = arith.subf %134, %126 : vector<16x128xf32>
    %136 = arith.mulf %135, %133 : vector<16x128xf32>
    %137 = arith.mulf %126, %107 : vector<16x128xf32>
    %138 = arith.addf %136, %137 : vector<16x128xf32>
    %139 = vector.broadcast %101 : i32 to vector<16x1xi32>
    %140 = arith.cmpi slt, %139, %11 : vector<16x1xi32>
    %141 = vector.shape_cast %140 : vector<16x1xi1> to vector<16x1xi1>
    %142 = vector.broadcast %141 : vector<16x1xi1> to vector<16x128xi1>
    %143 = arith.select %142, %138, %107 : vector<16x128xi1>, vector<16x128xf32>
    %c0_50 = arith.constant 0 : index
    %c0_51 = arith.constant 0 : index
    %144 = vector.load %arg11[%c0_50, %c0_51] : memref<16x128xf32, #tpu.memory_space<vmem>>, vector<16x128xf32>
    tpu.vector_store %arg11[%c0_50, %c0_51], %143 {strides = array<i32>} : memref<16x128xf32, #tpu.memory_space<vmem>>, vector<16x128xf32>,
    %c3_i32 = arith.constant 3 : i32
    %c7_i32_52 = arith.constant 7 : i32
    %145 = arith.subi %c7_i32_52, %c3_i32 : i32
    %c16_i32_53 = arith.constant 16 : i32
    %146 = arith.muli %145, %c16_i32_53 : i32
    %147 = tpu.assume_multiple %146, 16 : i32
    %148 = arith.index_cast %147 : i32 to index
    %c0_54 = arith.constant 0 : index
    %149 = vector.load %arg10[%148, %c0_54] : memref<128x384xbf16, #tpu.memory_space<vmem>>, vector<16x384xbf16>
    %150 = arith.extf %149 : vector<16x384xbf16> to vector<16x384xf32>
    %c0_55 = arith.constant 0 : index
    %c0_56 = arith.constant 0 : index
    %151 = vector.load %arg11[%c0_55, %c0_56] : memref<16x128xf32, #tpu.memory_space<vmem>>, vector<16x128xf32>
    %152 = arith.truncf %151 : vector<16x128xf32> to vector<16x128xbf16>
    %c0_57 = arith.constant 0 : index
    %c0_58 = arith.constant 0 : index
    %153 = vector.load %arg5[%c0_57, %c0_58] : memref<128x384xbf16, #tpu.memory_space<vmem>>, vector<128x384xbf16>
    %cst_59 = arith.constant dense<0.000000e+00> : vector<16x384xf32>
    %154 = tpu.matmul %152, %153, %cst_59 {dimension_numbers = #tpu.dot_dimension_numbers<[1], [0], [0], [1], [0, 0, 1, 1], [], []>} : vector<16x128xbf16>, vector<128x384xbf16>, vector<16x384xf32> -> vector<16x384xf32>
    %155 = vector.extract_strided_slice %150 {offsets = [0, 0], sizes = [16, 128], strides = [1, 1]} : vector<16x384xf32> to vector<16x128xf32>
    %156 = vector.extract_strided_slice %154 {offsets = [0, 0], sizes = [16, 128], strides = [1, 1]} : vector<16x384xf32> to vector<16x128xf32>
    %157 = arith.addf %155, %156 : vector<16x128xf32>
    %158 = arith.negf %157 : vector<16x128xf32>
    %159 = math.exp %158 : vector<16x128xf32>
    %cst_60 = arith.constant 1.000000e+00 : f32
    %160 = vector.broadcast %cst_60 : f32 to vector<16x128xf32>
    %161 = arith.addf %160, %159 : vector<16x128xf32>
    %162 = arith.divf %160, %161 : vector<16x128xf32>
    %163 = vector.extract_strided_slice %150 {offsets = [0, 128], sizes = [16, 128], strides = [1, 1]} : vector<16x384xf32> to vector<16x128xf32>
    %164 = vector.extract_strided_slice %154 {offsets = [0, 128], sizes = [16, 128], strides = [1, 1]} : vector<16x384xf32> to vector<16x128xf32>
    %165 = arith.addf %163, %164 : vector<16x128xf32>
    %166 = arith.negf %165 : vector<16x128xf32>
    %167 = math.exp %166 : vector<16x128xf32>
    %cst_61 = arith.constant 1.000000e+00 : f32
    %168 = vector.broadcast %cst_61 : f32 to vector<16x128xf32>
    %169 = arith.addf %168, %167 : vector<16x128xf32>
    %170 = arith.divf %168, %169 : vector<16x128xf32>
    %171 = vector.extract_strided_slice %150 {offsets = [0, 256], sizes = [16, 128], strides = [1, 1]} : vector<16x384xf32> to vector<16x128xf32>
    %172 = vector.extract_strided_slice %154 {offsets = [0, 256], sizes = [16, 128], strides = [1, 1]} : vector<16x384xf32> to vector<16x128xf32>
    %173 = vector.broadcast %12 : vector<1x128xf32> to vector<16x128xf32>
    %174 = arith.addf %172, %173 : vector<16x128xf32>
    %175 = arith.mulf %162, %174 : vector<16x128xf32>
    %176 = arith.addf %171, %175 : vector<16x128xf32>
    %177 = math.tanh %176 : vector<16x128xf32>
    %cst_62 = arith.constant 1.000000e+00 : f32
    %178 = vector.broadcast %cst_62 : f32 to vector<16x128xf32>
    %179 = arith.subf %178, %170 : vector<16x128xf32>
    %180 = arith.mulf %179, %177 : vector<16x128xf32>
    %181 = arith.mulf %170, %151 : vector<16x128xf32>
    %182 = arith.addf %180, %181 : vector<16x128xf32>
    %183 = vector.broadcast %145 : i32 to vector<16x1xi32>
    %184 = arith.cmpi slt, %183, %11 : vector<16x1xi32>
    %185 = vector.shape_cast %184 : vector<16x1xi1> to vector<16x1xi1>
    %186 = vector.broadcast %185 : vector<16x1xi1> to vector<16x128xi1>
    %187 = arith.select %186, %182, %151 : vector<16x128xi1>, vector<16x128xf32>
    %c0_63 = arith.constant 0 : index
    %c0_64 = arith.constant 0 : index
    %188 = vector.load %arg11[%c0_63, %c0_64] : memref<16x128xf32, #tpu.memory_space<vmem>>, vector<16x128xf32>
    tpu.vector_store %arg11[%c0_63, %c0_64], %187 {strides = array<i32>} : memref<16x128xf32, #tpu.memory_space<vmem>>, vector<16x128xf32>,
    %c4_i32 = arith.constant 4 : i32
    %c7_i32_65 = arith.constant 7 : i32
    %189 = arith.subi %c7_i32_65, %c4_i32 : i32
    %c16_i32_66 = arith.constant 16 : i32
    %190 = arith.muli %189, %c16_i32_66 : i32
    %191 = tpu.assume_multiple %190, 16 : i32
    %192 = arith.index_cast %191 : i32 to index
    %c0_67 = arith.constant 0 : index
    %193 = vector.load %arg10[%192, %c0_67] : memref<128x384xbf16, #tpu.memory_space<vmem>>, vector<16x384xbf16>
    %194 = arith.extf %193 : vector<16x384xbf16> to vector<16x384xf32>
    %c0_68 = arith.constant 0 : index
    %c0_69 = arith.constant 0 : index
    %195 = vector.load %arg11[%c0_68, %c0_69] : memref<16x128xf32, #tpu.memory_space<vmem>>, vector<16x128xf32>
    %196 = arith.truncf %195 : vector<16x128xf32> to vector<16x128xbf16>
    %c0_70 = arith.constant 0 : index
    %c0_71 = arith.constant 0 : index
    %197 = vector.load %arg5[%c0_70, %c0_71] : memref<128x384xbf16, #tpu.memory_space<vmem>>, vector<128x384xbf16>
    %cst_72 = arith.constant dense<0.000000e+00> : vector<16x384xf32>
    %198 = tpu.matmul %196, %197, %cst_72 {dimension_numbers = #tpu.dot_dimension_numbers<[1], [0], [0], [1], [0, 0, 1, 1], [], []>} : vector<16x128xbf16>, vector<128x384xbf16>, vector<16x384xf32> -> vector<16x384xf32>
    %199 = vector.extract_strided_slice %194 {offsets = [0, 0], sizes = [16, 128], strides = [1, 1]} : vector<16x384xf32> to vector<16x128xf32>
    %200 = vector.extract_strided_slice %198 {offsets = [0, 0], sizes = [16, 128], strides = [1, 1]} : vector<16x384xf32> to vector<16x128xf32>
    %201 = arith.addf %199, %200 : vector<16x128xf32>
    %202 = arith.negf %201 : vector<16x128xf32>
    %203 = math.exp %202 : vector<16x128xf32>
    %cst_73 = arith.constant 1.000000e+00 : f32
    %204 = vector.broadcast %cst_73 : f32 to vector<16x128xf32>
    %205 = arith.addf %204, %203 : vector<16x128xf32>
    %206 = arith.divf %204, %205 : vector<16x128xf32>
    %207 = vector.extract_strided_slice %194 {offsets = [0, 128], sizes = [16, 128], strides = [1, 1]} : vector<16x384xf32> to vector<16x128xf32>
    %208 = vector.extract_strided_slice %198 {offsets = [0, 128], sizes = [16, 128], strides = [1, 1]} : vector<16x384xf32> to vector<16x128xf32>
    %209 = arith.addf %207, %208 : vector<16x128xf32>
    %210 = arith.negf %209 : vector<16x128xf32>
    %211 = math.exp %210 : vector<16x128xf32>
    %cst_74 = arith.constant 1.000000e+00 : f32
    %212 = vector.broadcast %cst_74 : f32 to vector<16x128xf32>
    %213 = arith.addf %212, %211 : vector<16x128xf32>
    %214 = arith.divf %212, %213 : vector<16x128xf32>
    %215 = vector.extract_strided_slice %194 {offsets = [0, 256], sizes = [16, 128], strides = [1, 1]} : vector<16x384xf32> to vector<16x128xf32>
    %216 = vector.extract_strided_slice %198 {offsets = [0, 256], sizes = [16, 128], strides = [1, 1]} : vector<16x384xf32> to vector<16x128xf32>
    %217 = vector.broadcast %12 : vector<1x128xf32> to vector<16x128xf32>
    %218 = arith.addf %216, %217 : vector<16x128xf32>
    %219 = arith.mulf %206, %218 : vector<16x128xf32>
    %220 = arith.addf %215, %219 : vector<16x128xf32>
    %221 = math.tanh %220 : vector<16x128xf32>
    %cst_75 = arith.constant 1.000000e+00 : f32
    %222 = vector.broadcast %cst_75 : f32 to vector<16x128xf32>
    %223 = arith.subf %222, %214 : vector<16x128xf32>
    %224 = arith.mulf %223, %221 : vector<16x128xf32>
    %225 = arith.mulf %214, %195 : vector<16x128xf32>
    %226 = arith.addf %224, %225 : vector<16x128xf32>
    %227 = vector.broadcast %189 : i32 to vector<16x1xi32>
    %228 = arith.cmpi slt, %227, %11 : vector<16x1xi32>
    %229 = vector.shape_cast %228 : vector<16x1xi1> to vector<16x1xi1>
    %230 = vector.broadcast %229 : vector<16x1xi1> to vector<16x128xi1>
    %231 = arith.select %230, %226, %195 : vector<16x128xi1>, vector<16x128xf32>
    %c0_76 = arith.constant 0 : index
    %c0_77 = arith.constant 0 : index
    %232 = vector.load %arg11[%c0_76, %c0_77] : memref<16x128xf32, #tpu.memory_space<vmem>>, vector<16x128xf32>
    tpu.vector_store %arg11[%c0_76, %c0_77], %231 {strides = array<i32>} : memref<16x128xf32, #tpu.memory_space<vmem>>, vector<16x128xf32>,
    %c5_i32 = arith.constant 5 : i32
    %c7_i32_78 = arith.constant 7 : i32
    %233 = arith.subi %c7_i32_78, %c5_i32 : i32
    %c16_i32_79 = arith.constant 16 : i32
    %234 = arith.muli %233, %c16_i32_79 : i32
    %235 = tpu.assume_multiple %234, 16 : i32
    %236 = arith.index_cast %235 : i32 to index
    %c0_80 = arith.constant 0 : index
    %237 = vector.load %arg10[%236, %c0_80] : memref<128x384xbf16, #tpu.memory_space<vmem>>, vector<16x384xbf16>
    %238 = arith.extf %237 : vector<16x384xbf16> to vector<16x384xf32>
    %c0_81 = arith.constant 0 : index
    %c0_82 = arith.constant 0 : index
    %239 = vector.load %arg11[%c0_81, %c0_82] : memref<16x128xf32, #tpu.memory_space<vmem>>, vector<16x128xf32>
    %240 = arith.truncf %239 : vector<16x128xf32> to vector<16x128xbf16>
    %c0_83 = arith.constant 0 : index
    %c0_84 = arith.constant 0 : index
    %241 = vector.load %arg5[%c0_83, %c0_84] : memref<128x384xbf16, #tpu.memory_space<vmem>>, vector<128x384xbf16>
    %cst_85 = arith.constant dense<0.000000e+00> : vector<16x384xf32>
    %242 = tpu.matmul %240, %241, %cst_85 {dimension_numbers = #tpu.dot_dimension_numbers<[1], [0], [0], [1], [0, 0, 1, 1], [], []>} : vector<16x128xbf16>, vector<128x384xbf16>, vector<16x384xf32> -> vector<16x384xf32>
    %243 = vector.extract_strided_slice %238 {offsets = [0, 0], sizes = [16, 128], strides = [1, 1]} : vector<16x384xf32> to vector<16x128xf32>
    %244 = vector.extract_strided_slice %242 {offsets = [0, 0], sizes = [16, 128], strides = [1, 1]} : vector<16x384xf32> to vector<16x128xf32>
    %245 = arith.addf %243, %244 : vector<16x128xf32>
    %246 = arith.negf %245 : vector<16x128xf32>
    %247 = math.exp %246 : vector<16x128xf32>
    %cst_86 = arith.constant 1.000000e+00 : f32
    %248 = vector.broadcast %cst_86 : f32 to vector<16x128xf32>
    %249 = arith.addf %248, %247 : vector<16x128xf32>
    %250 = arith.divf %248, %249 : vector<16x128xf32>
    %251 = vector.extract_strided_slice %238 {offsets = [0, 128], sizes = [16, 128], strides = [1, 1]} : vector<16x384xf32> to vector<16x128xf32>
    %252 = vector.extract_strided_slice %242 {offsets = [0, 128], sizes = [16, 128], strides = [1, 1]} : vector<16x384xf32> to vector<16x128xf32>
    %253 = arith.addf %251, %252 : vector<16x128xf32>
    %254 = arith.negf %253 : vector<16x128xf32>
    %255 = math.exp %254 : vector<16x128xf32>
    %cst_87 = arith.constant 1.000000e+00 : f32
    %256 = vector.broadcast %cst_87 : f32 to vector<16x128xf32>
    %257 = arith.addf %256, %255 : vector<16x128xf32>
    %258 = arith.divf %256, %257 : vector<16x128xf32>
    %259 = vector.extract_strided_slice %238 {offsets = [0, 256], sizes = [16, 128], strides = [1, 1]} : vector<16x384xf32> to vector<16x128xf32>
    %260 = vector.extract_strided_slice %242 {offsets = [0, 256], sizes = [16, 128], strides = [1, 1]} : vector<16x384xf32> to vector<16x128xf32>
    %261 = vector.broadcast %12 : vector<1x128xf32> to vector<16x128xf32>
    %262 = arith.addf %260, %261 : vector<16x128xf32>
    %263 = arith.mulf %250, %262 : vector<16x128xf32>
    %264 = arith.addf %259, %263 : vector<16x128xf32>
    %265 = math.tanh %264 : vector<16x128xf32>
    %cst_88 = arith.constant 1.000000e+00 : f32
    %266 = vector.broadcast %cst_88 : f32 to vector<16x128xf32>
    %267 = arith.subf %266, %258 : vector<16x128xf32>
    %268 = arith.mulf %267, %265 : vector<16x128xf32>
    %269 = arith.mulf %258, %239 : vector<16x128xf32>
    %270 = arith.addf %268, %269 : vector<16x128xf32>
    %271 = vector.broadcast %233 : i32 to vector<16x1xi32>
    %272 = arith.cmpi slt, %271, %11 : vector<16x1xi32>
    %273 = vector.shape_cast %272 : vector<16x1xi1> to vector<16x1xi1>
    %274 = vector.broadcast %273 : vector<16x1xi1> to vector<16x128xi1>
    %275 = arith.select %274, %270, %239 : vector<16x128xi1>, vector<16x128xf32>
    %c0_89 = arith.constant 0 : index
    %c0_90 = arith.constant 0 : index
    %276 = vector.load %arg11[%c0_89, %c0_90] : memref<16x128xf32, #tpu.memory_space<vmem>>, vector<16x128xf32>
    tpu.vector_store %arg11[%c0_89, %c0_90], %275 {strides = array<i32>} : memref<16x128xf32, #tpu.memory_space<vmem>>, vector<16x128xf32>,
    %c6_i32 = arith.constant 6 : i32
    %c7_i32_91 = arith.constant 7 : i32
    %277 = arith.subi %c7_i32_91, %c6_i32 : i32
    %c16_i32_92 = arith.constant 16 : i32
    %278 = arith.muli %277, %c16_i32_92 : i32
    %279 = tpu.assume_multiple %278, 16 : i32
    %280 = arith.index_cast %279 : i32 to index
    %c0_93 = arith.constant 0 : index
    %281 = vector.load %arg10[%280, %c0_93] : memref<128x384xbf16, #tpu.memory_space<vmem>>, vector<16x384xbf16>
    %282 = arith.extf %281 : vector<16x384xbf16> to vector<16x384xf32>
    %c0_94 = arith.constant 0 : index
    %c0_95 = arith.constant 0 : index
    %283 = vector.load %arg11[%c0_94, %c0_95] : memref<16x128xf32, #tpu.memory_space<vmem>>, vector<16x128xf32>
    %284 = arith.truncf %283 : vector<16x128xf32> to vector<16x128xbf16>
    %c0_96 = arith.constant 0 : index
    %c0_97 = arith.constant 0 : index
    %285 = vector.load %arg5[%c0_96, %c0_97] : memref<128x384xbf16, #tpu.memory_space<vmem>>, vector<128x384xbf16>
    %cst_98 = arith.constant dense<0.000000e+00> : vector<16x384xf32>
    %286 = tpu.matmul %284, %285, %cst_98 {dimension_numbers = #tpu.dot_dimension_numbers<[1], [0], [0], [1], [0, 0, 1, 1], [], []>} : vector<16x128xbf16>, vector<128x384xbf16>, vector<16x384xf32> -> vector<16x384xf32>
    %287 = vector.extract_strided_slice %282 {offsets = [0, 0], sizes = [16, 128], strides = [1, 1]} : vector<16x384xf32> to vector<16x128xf32>
    %288 = vector.extract_strided_slice %286 {offsets = [0, 0], sizes = [16, 128], strides = [1, 1]} : vector<16x384xf32> to vector<16x128xf32>
    %289 = arith.addf %287, %288 : vector<16x128xf32>
    %290 = arith.negf %289 : vector<16x128xf32>
    %291 = math.exp %290 : vector<16x128xf32>
    %cst_99 = arith.constant 1.000000e+00 : f32
    %292 = vector.broadcast %cst_99 : f32 to vector<16x128xf32>
    %293 = arith.addf %292, %291 : vector<16x128xf32>
    %294 = arith.divf %292, %293 : vector<16x128xf32>
    %295 = vector.extract_strided_slice %282 {offsets = [0, 128], sizes = [16, 128], strides = [1, 1]} : vector<16x384xf32> to vector<16x128xf32>
    %296 = vector.extract_strided_slice %286 {offsets = [0, 128], sizes = [16, 128], strides = [1, 1]} : vector<16x384xf32> to vector<16x128xf32>
    %297 = arith.addf %295, %296 : vector<16x128xf32>
    %298 = arith.negf %297 : vector<16x128xf32>
    %299 = math.exp %298 : vector<16x128xf32>
    %cst_100 = arith.constant 1.000000e+00 : f32
    %300 = vector.broadcast %cst_100 : f32 to vector<16x128xf32>
    %301 = arith.addf %300, %299 : vector<16x128xf32>
    %302 = arith.divf %300, %301 : vector<16x128xf32>
    %303 = vector.extract_strided_slice %282 {offsets = [0, 256], sizes = [16, 128], strides = [1, 1]} : vector<16x384xf32> to vector<16x128xf32>
    %304 = vector.extract_strided_slice %286 {offsets = [0, 256], sizes = [16, 128], strides = [1, 1]} : vector<16x384xf32> to vector<16x128xf32>
    %305 = vector.broadcast %12 : vector<1x128xf32> to vector<16x128xf32>
    %306 = arith.addf %304, %305 : vector<16x128xf32>
    %307 = arith.mulf %294, %306 : vector<16x128xf32>
    %308 = arith.addf %303, %307 : vector<16x128xf32>
    %309 = math.tanh %308 : vector<16x128xf32>
    %cst_101 = arith.constant 1.000000e+00 : f32
    %310 = vector.broadcast %cst_101 : f32 to vector<16x128xf32>
    %311 = arith.subf %310, %302 : vector<16x128xf32>
    %312 = arith.mulf %311, %309 : vector<16x128xf32>
    %313 = arith.mulf %302, %283 : vector<16x128xf32>
    %314 = arith.addf %312, %313 : vector<16x128xf32>
    %315 = vector.broadcast %277 : i32 to vector<16x1xi32>
    %316 = arith.cmpi slt, %315, %11 : vector<16x1xi32>
    %317 = vector.shape_cast %316 : vector<16x1xi1> to vector<16x1xi1>
    %318 = vector.broadcast %317 : vector<16x1xi1> to vector<16x128xi1>
    %319 = arith.select %318, %314, %283 : vector<16x128xi1>, vector<16x128xf32>
    %c0_102 = arith.constant 0 : index
    %c0_103 = arith.constant 0 : index
    %320 = vector.load %arg11[%c0_102, %c0_103] : memref<16x128xf32, #tpu.memory_space<vmem>>, vector<16x128xf32>
    tpu.vector_store %arg11[%c0_102, %c0_103], %319 {strides = array<i32>} : memref<16x128xf32, #tpu.memory_space<vmem>>, vector<16x128xf32>,
    %c7_i32_104 = arith.constant 7 : i32
    %c7_i32_105 = arith.constant 7 : i32
    %321 = arith.subi %c7_i32_105, %c7_i32_104 : i32
    %c16_i32_106 = arith.constant 16 : i32
    %322 = arith.muli %321, %c16_i32_106 : i32
    %323 = tpu.assume_multiple %322, 16 : i32
    %324 = arith.index_cast %323 : i32 to index
    %c0_107 = arith.constant 0 : index
    %325 = vector.load %arg10[%324, %c0_107] : memref<128x384xbf16, #tpu.memory_space<vmem>>, vector<16x384xbf16>
    %326 = arith.extf %325 : vector<16x384xbf16> to vector<16x384xf32>
    %c0_108 = arith.constant 0 : index
    %c0_109 = arith.constant 0 : index
    %327 = vector.load %arg11[%c0_108, %c0_109] : memref<16x128xf32, #tpu.memory_space<vmem>>, vector<16x128xf32>
    %328 = arith.truncf %327 : vector<16x128xf32> to vector<16x128xbf16>
    %c0_110 = arith.constant 0 : index
    %c0_111 = arith.constant 0 : index
    %329 = vector.load %arg5[%c0_110, %c0_111] : memref<128x384xbf16, #tpu.memory_space<vmem>>, vector<128x384xbf16>
    %cst_112 = arith.constant dense<0.000000e+00> : vector<16x384xf32>
    %330 = tpu.matmul %328, %329, %cst_112 {dimension_numbers = #tpu.dot_dimension_numbers<[1], [0], [0], [1], [0, 0, 1, 1], [], []>} : vector<16x128xbf16>, vector<128x384xbf16>, vector<16x384xf32> -> vector<16x384xf32>
    %331 = vector.extract_strided_slice %326 {offsets = [0, 0], sizes = [16, 128], strides = [1, 1]} : vector<16x384xf32> to vector<16x128xf32>
    %332 = vector.extract_strided_slice %330 {offsets = [0, 0], sizes = [16, 128], strides = [1, 1]} : vector<16x384xf32> to vector<16x128xf32>
    %333 = arith.addf %331, %332 : vector<16x128xf32>
    %334 = arith.negf %333 : vector<16x128xf32>
    %335 = math.exp %334 : vector<16x128xf32>
    %cst_113 = arith.constant 1.000000e+00 : f32
    %336 = vector.broadcast %cst_113 : f32 to vector<16x128xf32>
    %337 = arith.addf %336, %335 : vector<16x128xf32>
    %338 = arith.divf %336, %337 : vector<16x128xf32>
    %339 = vector.extract_strided_slice %326 {offsets = [0, 128], sizes = [16, 128], strides = [1, 1]} : vector<16x384xf32> to vector<16x128xf32>
    %340 = vector.extract_strided_slice %330 {offsets = [0, 128], sizes = [16, 128], strides = [1, 1]} : vector<16x384xf32> to vector<16x128xf32>
    %341 = arith.addf %339, %340 : vector<16x128xf32>
    %342 = arith.negf %341 : vector<16x128xf32>
    %343 = math.exp %342 : vector<16x128xf32>
    %cst_114 = arith.constant 1.000000e+00 : f32
    %344 = vector.broadcast %cst_114 : f32 to vector<16x128xf32>
    %345 = arith.addf %344, %343 : vector<16x128xf32>
    %346 = arith.divf %344, %345 : vector<16x128xf32>
    %347 = vector.extract_strided_slice %326 {offsets = [0, 256], sizes = [16, 128], strides = [1, 1]} : vector<16x384xf32> to vector<16x128xf32>
    %348 = vector.extract_strided_slice %330 {offsets = [0, 256], sizes = [16, 128], strides = [1, 1]} : vector<16x384xf32> to vector<16x128xf32>
    %349 = vector.broadcast %12 : vector<1x128xf32> to vector<16x128xf32>
    %350 = arith.addf %348, %349 : vector<16x128xf32>
    %351 = arith.mulf %338, %350 : vector<16x128xf32>
    %352 = arith.addf %347, %351 : vector<16x128xf32>
    %353 = math.tanh %352 : vector<16x128xf32>
    %cst_115 = arith.constant 1.000000e+00 : f32
    %354 = vector.broadcast %cst_115 : f32 to vector<16x128xf32>
    %355 = arith.subf %354, %346 : vector<16x128xf32>
    %356 = arith.mulf %355, %353 : vector<16x128xf32>
    %357 = arith.mulf %346, %327 : vector<16x128xf32>
    %358 = arith.addf %356, %357 : vector<16x128xf32>
    %359 = vector.broadcast %321 : i32 to vector<16x1xi32>
    %360 = arith.cmpi slt, %359, %11 : vector<16x1xi32>
    %361 = vector.shape_cast %360 : vector<16x1xi1> to vector<16x1xi1>
    %362 = vector.broadcast %361 : vector<16x1xi1> to vector<16x128xi1>
    %363 = arith.select %362, %358, %327 : vector<16x128xi1>, vector<16x128xf32>
    %c0_116 = arith.constant 0 : index
    %c0_117 = arith.constant 0 : index
    %364 = vector.load %arg11[%c0_116, %c0_117] : memref<16x128xf32, #tpu.memory_space<vmem>>, vector<16x128xf32>
    tpu.vector_store %arg11[%c0_116, %c0_117], %363 {strides = array<i32>} : memref<16x128xf32, #tpu.memory_space<vmem>>, vector<16x128xf32>,
    %c8_i32 = arith.constant 8 : i32
    %c0_118 = arith.constant 0 : index
    %c0_119 = arith.constant 0 : index
    %365 = vector.load %arg11[%c0_118, %c0_119] : memref<16x128xf32, #tpu.memory_space<vmem>>, vector<16x128xf32>
    %c0_120 = arith.constant 0 : index
    %c0_121 = arith.constant 0 : index
    %366 = vector.load %arg7[%c0_120, %c0_121] : memref<128x128xf32, #tpu.memory_space<vmem>>, vector<128x128xf32>
    %cst_122 = arith.constant dense<0.000000e+00> : vector<16x128xf32>
    %367 = tpu.matmul %365, %366, %cst_122 {dimension_numbers = #tpu.dot_dimension_numbers<[1], [0], [0], [1], [0, 0, 1, 1], [], []>} : vector<16x128xf32>, vector<128x128xf32>, vector<16x128xf32> -> vector<16x128xf32>
    %c0_123 = arith.constant 0 : index
    %c0_124 = arith.constant 0 : index
    %368 = vector.load %arg8[%c0_123, %c0_124] : memref<1x128xf32, #tpu.memory_space<vmem>>, vector<1x128xf32>
    %369 = vector.broadcast %368 : vector<1x128xf32> to vector<16x128xf32>
    %370 = arith.addf %367, %369 : vector<16x128xf32>
    %c0_125 = arith.constant 0 : index
    %c0_126 = arith.constant 0 : index
    %371 = vector.load %arg9[%c0_125, %c0_126] : memref<16x128xf32, #tpu.memory_space<vmem>>, vector<16x128xf32>
    tpu.vector_store %arg9[%c0_125, %c0_126], %370 {strides = array<i32>} : memref<16x128xf32, #tpu.memory_space<vmem>>, vector<16x128xf32>,
    return
  }
  func.func @transform_0(%arg0: i32) -> (i32, i32) {
    %c0_i32 = arith.constant 0 : i32
    %c0_i32_0 = arith.constant 0 : i32
    return %arg0, %c0_i32 : i32, i32
  }
  func.func @transform_1(%arg0: i32) -> (i32, i32, i32) {
    %c0_i32 = arith.constant 0 : i32
    %c0_i32_0 = arith.constant 0 : i32
    %c0_i32_1 = arith.constant 0 : i32
    return %c0_i32, %arg0, %c0_i32_0 : i32, i32, i32
  }
  func.func @transform_2(%arg0: i32) -> (i32, i32) {
    %c0_i32 = arith.constant 0 : i32
    %c0_i32_0 = arith.constant 0 : i32
    %c0_i32_1 = arith.constant 0 : i32
    return %c0_i32, %c0_i32_0 : i32, i32
  }
  func.func @transform_3(%arg0: i32) -> (i32, i32) {
    %c0_i32 = arith.constant 0 : i32
    %c0_i32_0 = arith.constant 0 : i32
    %c0_i32_1 = arith.constant 0 : i32
    return %c0_i32, %c0_i32_0 : i32, i32
  }
  func.func @transform_4(%arg0: i32) -> (i32, i32) {
    %c0_i32 = arith.constant 0 : i32
    %c0_i32_0 = arith.constant 0 : i32
    %c0_i32_1 = arith.constant 0 : i32
    return %c0_i32, %c0_i32_0 : i32, i32
  }
  func.func @transform_5(%arg0: i32) -> (i32, i32) {
    %c0_i32 = arith.constant 0 : i32
    %c0_i32_0 = arith.constant 0 : i32
    %c0_i32_1 = arith.constant 0 : i32
    return %c0_i32, %c0_i32_0 : i32, i32
  }
  func.func @transform_6(%arg0: i32) -> (i32, i32) {
    %c0_i32 = arith.constant 0 : i32
    %c0_i32_0 = arith.constant 0 : i32
    %c0_i32_1 = arith.constant 0 : i32
    return %c0_i32, %c0_i32_0 : i32, i32
  }
  func.func @transform_7(%arg0: i32) -> (i32, i32) {
    %c0_i32 = arith.constant 0 : i32
    %c0_i32_0 = arith.constant 0 : i32
    %c0_i32_1 = arith.constant 0 : i32
    return %c0_i32, %c0_i32_0 : i32, i32
  }
  func.func @transform_8(%arg0: i32) -> (i32, i32) {
    %c0_i32 = arith.constant 0 : i32
    %c0_i32_0 = arith.constant 0 : i32
    return %arg0, %c0_i32 : i32, i32
  }
}

module attributes {stable_mosaic.version = 11 : i64} {
  func.func @_bigru_mid_kernel(%arg0: i32, %arg1: memref<16x1xi32, #tpu.memory_space<vmem>>, %arg2: memref<8x16x128xbf16, #tpu.memory_space<vmem>>, %arg3: memref<128x768xbf16, #tpu.memory_space<vmem>>, %arg4: memref<1x768xf32, #tpu.memory_space<vmem>>, %arg5: memref<128x384xbf16, #tpu.memory_space<vmem>>, %arg6: memref<1x128xf32, #tpu.memory_space<vmem>>, %arg7: memref<128x384xbf16, #tpu.memory_space<vmem>>, %arg8: memref<1x128xf32, #tpu.memory_space<vmem>>, %arg9: memref<8x16x256xbf16, #tpu.memory_space<vmem>>, %arg10: memref<128x768xbf16, #tpu.memory_space<vmem>>, %arg11: memref<16x128xf32, #tpu.memory_space<vmem>>, %arg12: memref<16x128xf32, #tpu.memory_space<vmem>>) attributes {dimension_semantics = [#tpu.dimension_semantics<parallel>], iteration_bounds = array<i64: 1>, scalar_prefetch = 0 : i64, scratch_operands = 3 : i64, tpu.core_type = #tpu.core_type<tc>, window_params = [{transform_indices = @transform_0, window_bounds = array<i64: 16, 1>}, {transform_indices = @transform_1, window_bounds = array<i64: 8, 16, 128>}, {pipeline_mode = #tpu.pipeline_mode<synchronous>, transform_indices = @transform_2, window_bounds = array<i64: 128, 768>}, {pipeline_mode = #tpu.pipeline_mode<synchronous>, transform_indices = @transform_3, window_bounds = array<i64: 1, 768>}, {pipeline_mode = #tpu.pipeline_mode<synchronous>, transform_indices = @transform_4, window_bounds = array<i64: 128, 384>}, {pipeline_mode = #tpu.pipeline_mode<synchronous>, transform_indices = @transform_5, window_bounds = array<i64: 1, 128>}, {pipeline_mode = #tpu.pipeline_mode<synchronous>, transform_indices = @transform_6, window_bounds = array<i64: 128, 384>}, {pipeline_mode = #tpu.pipeline_mode<synchronous>, transform_indices = @transform_7, window_bounds = array<i64: 1, 128>}, {transform_indices = @transform_8, window_bounds = array<i64: 8, 16, 256>}]} {
    %c0 = arith.constant 0 : index
    %c0_0 = arith.constant 0 : index
    %c0_1 = arith.constant 0 : index
    %0 = vector.load %arg2[%c0, %c0_0, %c0_1] : memref<8x16x128xbf16, #tpu.memory_space<vmem>>, vector<8x16x128xbf16>
    %1 = vector.shape_cast %0 : vector<8x16x128xbf16> to vector<128x128xbf16>
    %c0_2 = arith.constant 0 : index
    %c0_3 = arith.constant 0 : index
    %2 = vector.load %arg3[%c0_2, %c0_3] : memref<128x768xbf16, #tpu.memory_space<vmem>>, vector<128x768xbf16>
    %cst = arith.constant dense<0.000000e+00> : vector<128x768xf32>
    %3 = tpu.matmul %1, %2, %cst {dimension_numbers = #tpu.dot_dimension_numbers<[1], [0], [0], [1], [0, 0, 1, 1], [], []>} : vector<128x128xbf16>, vector<128x768xbf16>, vector<128x768xf32> -> vector<128x768xf32>
    %c0_4 = arith.constant 0 : index
    %c0_5 = arith.constant 0 : index
    %4 = vector.load %arg4[%c0_4, %c0_5] : memref<1x768xf32, #tpu.memory_space<vmem>>, vector<1x768xf32>
    %5 = vector.broadcast %4 : vector<1x768xf32> to vector<128x768xf32>
    %6 = arith.addf %3, %5 : vector<128x768xf32>
    %7 = arith.truncf %6 : vector<128x768xf32> to vector<128x768xbf16>
    %c0_6 = arith.constant 0 : index
    %c0_7 = arith.constant 0 : index
    %8 = vector.load %arg10[%c0_6, %c0_7] : memref<128x768xbf16, #tpu.memory_space<vmem>>, vector<128x768xbf16>
    tpu.vector_store %arg10[%c0_6, %c0_7], %7 {strides = array<i32>} : memref<128x768xbf16, #tpu.memory_space<vmem>>, vector<128x768xbf16>,
    %cst_8 = arith.constant 0.000000e+00 : f32
    %9 = vector.broadcast %cst_8 : f32 to vector<16x128xf32>
    %c0_9 = arith.constant 0 : index
    %c0_10 = arith.constant 0 : index
    %10 = vector.load %arg11[%c0_9, %c0_10] : memref<16x128xf32, #tpu.memory_space<vmem>>, vector<16x128xf32>
    tpu.vector_store %arg11[%c0_9, %c0_10], %9 {strides = array<i32>} : memref<16x128xf32, #tpu.memory_space<vmem>>, vector<16x128xf32>,
    %cst_11 = arith.constant 0.000000e+00 : f32
    %11 = vector.broadcast %cst_11 : f32 to vector<16x128xf32>
    %c0_12 = arith.constant 0 : index
    %c0_13 = arith.constant 0 : index
    %12 = vector.load %arg12[%c0_12, %c0_13] : memref<16x128xf32, #tpu.memory_space<vmem>>, vector<16x128xf32>
    tpu.vector_store %arg12[%c0_12, %c0_13], %11 {strides = array<i32>} : memref<16x128xf32, #tpu.memory_space<vmem>>, vector<16x128xf32>,
    %c0_14 = arith.constant 0 : index
    %c0_15 = arith.constant 0 : index
    %13 = vector.load %arg1[%c0_14, %c0_15] : memref<16x1xi32, #tpu.memory_space<vmem>>, vector<16x1xi32>
    %c0_16 = arith.constant 0 : index
    %c0_17 = arith.constant 0 : index
    %14 = vector.load %arg6[%c0_16, %c0_17] : memref<1x128xf32, #tpu.memory_space<vmem>>, vector<1x128xf32>
    %c0_18 = arith.constant 0 : index
    %c0_19 = arith.constant 0 : index
    %15 = vector.load %arg8[%c0_18, %c0_19] : memref<1x128xf32, #tpu.memory_space<vmem>>, vector<1x128xf32>
    %c0_i32 = arith.constant 0 : i32
    %c7_i32 = arith.constant 7 : i32
    %16 = arith.subi %c7_i32, %c0_i32 : i32
    %c16_i32 = arith.constant 16 : i32
    %17 = arith.muli %c0_i32, %c16_i32 : i32
    %18 = tpu.assume_multiple %17, 16 : i32
    %c16_i32_20 = arith.constant 16 : i32
    %19 = arith.muli %16, %c16_i32_20 : i32
    %20 = tpu.assume_multiple %19, 16 : i32
    %c0_21 = arith.constant 0 : index
    %c0_22 = arith.constant 0 : index
    %21 = vector.load %arg11[%c0_21, %c0_22] : memref<16x128xf32, #tpu.memory_space<vmem>>, vector<16x128xf32>
    %22 = arith.truncf %21 : vector<16x128xf32> to vector<16x128xbf16>
    %c0_23 = arith.constant 0 : index
    %c0_24 = arith.constant 0 : index
    %23 = vector.load %arg5[%c0_23, %c0_24] : memref<128x384xbf16, #tpu.memory_space<vmem>>, vector<128x384xbf16>
    %cst_25 = arith.constant dense<0.000000e+00> : vector<16x384xf32>
    %24 = tpu.matmul %22, %23, %cst_25 {dimension_numbers = #tpu.dot_dimension_numbers<[1], [0], [0], [1], [0, 0, 1, 1], [], []>} : vector<16x128xbf16>, vector<128x384xbf16>, vector<16x384xf32> -> vector<16x384xf32>
    %25 = arith.index_cast %18 : i32 to index
    %c0_26 = arith.constant 0 : index
    %26 = vector.load %arg10[%25, %c0_26] : memref<128x768xbf16, #tpu.memory_space<vmem>>, vector<16x384xbf16>
    %27 = arith.extf %26 : vector<16x384xbf16> to vector<16x384xf32>
    %28 = vector.extract_strided_slice %27 {offsets = [0, 0], sizes = [16, 128], strides = [1, 1]} : vector<16x384xf32> to vector<16x128xf32>
    %29 = vector.extract_strided_slice %24 {offsets = [0, 0], sizes = [16, 128], strides = [1, 1]} : vector<16x384xf32> to vector<16x128xf32>
    %30 = arith.addf %28, %29 : vector<16x128xf32>
    %31 = arith.negf %30 : vector<16x128xf32>
    %32 = math.exp %31 : vector<16x128xf32>
    %cst_27 = arith.constant 1.000000e+00 : f32
    %33 = vector.broadcast %cst_27 : f32 to vector<16x128xf32>
    %34 = arith.addf %33, %32 : vector<16x128xf32>
    %35 = arith.divf %33, %34 : vector<16x128xf32>
    %36 = vector.extract_strided_slice %27 {offsets = [0, 128], sizes = [16, 128], strides = [1, 1]} : vector<16x384xf32> to vector<16x128xf32>
    %37 = vector.extract_strided_slice %24 {offsets = [0, 128], sizes = [16, 128], strides = [1, 1]} : vector<16x384xf32> to vector<16x128xf32>
    %38 = arith.addf %36, %37 : vector<16x128xf32>
    %39 = arith.negf %38 : vector<16x128xf32>
    %40 = math.exp %39 : vector<16x128xf32>
    %cst_28 = arith.constant 1.000000e+00 : f32
    %41 = vector.broadcast %cst_28 : f32 to vector<16x128xf32>
    %42 = arith.addf %41, %40 : vector<16x128xf32>
    %43 = arith.divf %41, %42 : vector<16x128xf32>
    %44 = vector.extract_strided_slice %27 {offsets = [0, 256], sizes = [16, 128], strides = [1, 1]} : vector<16x384xf32> to vector<16x128xf32>
    %45 = vector.extract_strided_slice %24 {offsets = [0, 256], sizes = [16, 128], strides = [1, 1]} : vector<16x384xf32> to vector<16x128xf32>
    %46 = vector.broadcast %14 : vector<1x128xf32> to vector<16x128xf32>
    %47 = arith.addf %45, %46 : vector<16x128xf32>
    %48 = arith.mulf %35, %47 : vector<16x128xf32>
    %49 = arith.addf %44, %48 : vector<16x128xf32>
    %50 = math.tanh %49 : vector<16x128xf32>
    %cst_29 = arith.constant 1.000000e+00 : f32
    %51 = vector.broadcast %cst_29 : f32 to vector<16x128xf32>
    %52 = arith.subf %51, %43 : vector<16x128xf32>
    %53 = arith.mulf %52, %50 : vector<16x128xf32>
    %54 = arith.mulf %43, %21 : vector<16x128xf32>
    %55 = arith.addf %53, %54 : vector<16x128xf32>
    %56 = vector.broadcast %c0_i32 : i32 to vector<16x1xi32>
    %57 = arith.cmpi slt, %56, %13 : vector<16x1xi32>
    %58 = vector.shape_cast %57 : vector<16x1xi1> to vector<16x1xi1>
    %59 = vector.broadcast %58 : vector<16x1xi1> to vector<16x128xi1>
    %60 = arith.select %59, %55, %21 : vector<16x128xi1>, vector<16x128xf32>
    %c0_30 = arith.constant 0 : index
    %c0_31 = arith.constant 0 : index
    %61 = vector.load %arg11[%c0_30, %c0_31] : memref<16x128xf32, #tpu.memory_space<vmem>>, vector<16x128xf32>
    tpu.vector_store %arg11[%c0_30, %c0_31], %60 {strides = array<i32>} : memref<16x128xf32, #tpu.memory_space<vmem>>, vector<16x128xf32>,
    %62 = arith.truncf %60 : vector<16x128xf32> to vector<16x128xbf16>
    %63 = arith.index_cast %c0_i32 : i32 to index
    %c0_32 = arith.constant 0 : index
    %c0_33 = arith.constant 0 : index
    %64 = vector.load %arg9[%63, %c0_32, %c0_33] : memref<8x16x256xbf16, #tpu.memory_space<vmem>>, vector<1x16x128xbf16>
    %65 = vector.shape_cast %64 : vector<1x16x128xbf16> to vector<16x128xbf16>
    %66 = vector.shape_cast %62 : vector<16x128xbf16> to vector<1x16x128xbf16>
    tpu.vector_store %arg9[%63, %c0_32, %c0_33], %66 {strides = array<i32>} : memref<8x16x256xbf16, #tpu.memory_space<vmem>>, vector<1x16x128xbf16>,
    %c0_34 = arith.constant 0 : index
    %c0_35 = arith.constant 0 : index
    %67 = vector.load %arg12[%c0_34, %c0_35] : memref<16x128xf32, #tpu.memory_space<vmem>>, vector<16x128xf32>
    %68 = arith.truncf %67 : vector<16x128xf32> to vector<16x128xbf16>
    %c0_36 = arith.constant 0 : index
    %c0_37 = arith.constant 0 : index
    %69 = vector.load %arg7[%c0_36, %c0_37] : memref<128x384xbf16, #tpu.memory_space<vmem>>, vector<128x384xbf16>
    %cst_38 = arith.constant dense<0.000000e+00> : vector<16x384xf32>
    %70 = tpu.matmul %68, %69, %cst_38 {dimension_numbers = #tpu.dot_dimension_numbers<[1], [0], [0], [1], [0, 0, 1, 1], [], []>} : vector<16x128xbf16>, vector<128x384xbf16>, vector<16x384xf32> -> vector<16x384xf32>
    %71 = arith.index_cast %20 : i32 to index
    %c384 = arith.constant 384 : index
    %72 = vector.load %arg10[%71, %c384] : memref<128x768xbf16, #tpu.memory_space<vmem>>, vector<16x384xbf16>
    %73 = arith.extf %72 : vector<16x384xbf16> to vector<16x384xf32>
    %74 = vector.extract_strided_slice %73 {offsets = [0, 0], sizes = [16, 128], strides = [1, 1]} : vector<16x384xf32> to vector<16x128xf32>
    %75 = vector.extract_strided_slice %70 {offsets = [0, 0], sizes = [16, 128], strides = [1, 1]} : vector<16x384xf32> to vector<16x128xf32>
    %76 = arith.addf %74, %75 : vector<16x128xf32>
    %77 = arith.negf %76 : vector<16x128xf32>
    %78 = math.exp %77 : vector<16x128xf32>
    %cst_39 = arith.constant 1.000000e+00 : f32
    %79 = vector.broadcast %cst_39 : f32 to vector<16x128xf32>
    %80 = arith.addf %79, %78 : vector<16x128xf32>
    %81 = arith.divf %79, %80 : vector<16x128xf32>
    %82 = vector.extract_strided_slice %73 {offsets = [0, 128], sizes = [16, 128], strides = [1, 1]} : vector<16x384xf32> to vector<16x128xf32>
    %83 = vector.extract_strided_slice %70 {offsets = [0, 128], sizes = [16, 128], strides = [1, 1]} : vector<16x384xf32> to vector<16x128xf32>
    %84 = arith.addf %82, %83 : vector<16x128xf32>
    %85 = arith.negf %84 : vector<16x128xf32>
    %86 = math.exp %85 : vector<16x128xf32>
    %cst_40 = arith.constant 1.000000e+00 : f32
    %87 = vector.broadcast %cst_40 : f32 to vector<16x128xf32>
    %88 = arith.addf %87, %86 : vector<16x128xf32>
    %89 = arith.divf %87, %88 : vector<16x128xf32>
    %90 = vector.extract_strided_slice %73 {offsets = [0, 256], sizes = [16, 128], strides = [1, 1]} : vector<16x384xf32> to vector<16x128xf32>
    %91 = vector.extract_strided_slice %70 {offsets = [0, 256], sizes = [16, 128], strides = [1, 1]} : vector<16x384xf32> to vector<16x128xf32>
    %92 = vector.broadcast %15 : vector<1x128xf32> to vector<16x128xf32>
    %93 = arith.addf %91, %92 : vector<16x128xf32>
    %94 = arith.mulf %81, %93 : vector<16x128xf32>
    %95 = arith.addf %90, %94 : vector<16x128xf32>
    %96 = math.tanh %95 : vector<16x128xf32>
    %cst_41 = arith.constant 1.000000e+00 : f32
    %97 = vector.broadcast %cst_41 : f32 to vector<16x128xf32>
    %98 = arith.subf %97, %89 : vector<16x128xf32>
    %99 = arith.mulf %98, %96 : vector<16x128xf32>
    %100 = arith.mulf %89, %67 : vector<16x128xf32>
    %101 = arith.addf %99, %100 : vector<16x128xf32>
    %102 = vector.broadcast %16 : i32 to vector<16x1xi32>
    %103 = arith.cmpi slt, %102, %13 : vector<16x1xi32>
    %104 = vector.shape_cast %103 : vector<16x1xi1> to vector<16x1xi1>
    %105 = vector.broadcast %104 : vector<16x1xi1> to vector<16x128xi1>
    %106 = arith.select %105, %101, %67 : vector<16x128xi1>, vector<16x128xf32>
    %c0_42 = arith.constant 0 : index
    %c0_43 = arith.constant 0 : index
    %107 = vector.load %arg12[%c0_42, %c0_43] : memref<16x128xf32, #tpu.memory_space<vmem>>, vector<16x128xf32>
    tpu.vector_store %arg12[%c0_42, %c0_43], %106 {strides = array<i32>} : memref<16x128xf32, #tpu.memory_space<vmem>>, vector<16x128xf32>,
    %108 = arith.truncf %106 : vector<16x128xf32> to vector<16x128xbf16>
    %109 = arith.index_cast %16 : i32 to index
    %c0_44 = arith.constant 0 : index
    %c128 = arith.constant 128 : index
    %110 = vector.load %arg9[%109, %c0_44, %c128] : memref<8x16x256xbf16, #tpu.memory_space<vmem>>, vector<1x16x128xbf16>
    %111 = vector.shape_cast %110 : vector<1x16x128xbf16> to vector<16x128xbf16>
    %112 = vector.shape_cast %108 : vector<16x128xbf16> to vector<1x16x128xbf16>
    tpu.vector_store %arg9[%109, %c0_44, %c128], %112 {strides = array<i32>} : memref<8x16x256xbf16, #tpu.memory_space<vmem>>, vector<1x16x128xbf16>,
    %c1_i32 = arith.constant 1 : i32
    %c7_i32_45 = arith.constant 7 : i32
    %113 = arith.subi %c7_i32_45, %c1_i32 : i32
    %c16_i32_46 = arith.constant 16 : i32
    %114 = arith.muli %c1_i32, %c16_i32_46 : i32
    %115 = tpu.assume_multiple %114, 16 : i32
    %c16_i32_47 = arith.constant 16 : i32
    %116 = arith.muli %113, %c16_i32_47 : i32
    %117 = tpu.assume_multiple %116, 16 : i32
    %c0_48 = arith.constant 0 : index
    %c0_49 = arith.constant 0 : index
    %118 = vector.load %arg11[%c0_48, %c0_49] : memref<16x128xf32, #tpu.memory_space<vmem>>, vector<16x128xf32>
    %119 = arith.truncf %118 : vector<16x128xf32> to vector<16x128xbf16>
    %c0_50 = arith.constant 0 : index
    %c0_51 = arith.constant 0 : index
    %120 = vector.load %arg5[%c0_50, %c0_51] : memref<128x384xbf16, #tpu.memory_space<vmem>>, vector<128x384xbf16>
    %cst_52 = arith.constant dense<0.000000e+00> : vector<16x384xf32>
    %121 = tpu.matmul %119, %120, %cst_52 {dimension_numbers = #tpu.dot_dimension_numbers<[1], [0], [0], [1], [0, 0, 1, 1], [], []>} : vector<16x128xbf16>, vector<128x384xbf16>, vector<16x384xf32> -> vector<16x384xf32>
    %122 = arith.index_cast %115 : i32 to index
    %c0_53 = arith.constant 0 : index
    %123 = vector.load %arg10[%122, %c0_53] : memref<128x768xbf16, #tpu.memory_space<vmem>>, vector<16x384xbf16>
    %124 = arith.extf %123 : vector<16x384xbf16> to vector<16x384xf32>
    %125 = vector.extract_strided_slice %124 {offsets = [0, 0], sizes = [16, 128], strides = [1, 1]} : vector<16x384xf32> to vector<16x128xf32>
    %126 = vector.extract_strided_slice %121 {offsets = [0, 0], sizes = [16, 128], strides = [1, 1]} : vector<16x384xf32> to vector<16x128xf32>
    %127 = arith.addf %125, %126 : vector<16x128xf32>
    %128 = arith.negf %127 : vector<16x128xf32>
    %129 = math.exp %128 : vector<16x128xf32>
    %cst_54 = arith.constant 1.000000e+00 : f32
    %130 = vector.broadcast %cst_54 : f32 to vector<16x128xf32>
    %131 = arith.addf %130, %129 : vector<16x128xf32>
    %132 = arith.divf %130, %131 : vector<16x128xf32>
    %133 = vector.extract_strided_slice %124 {offsets = [0, 128], sizes = [16, 128], strides = [1, 1]} : vector<16x384xf32> to vector<16x128xf32>
    %134 = vector.extract_strided_slice %121 {offsets = [0, 128], sizes = [16, 128], strides = [1, 1]} : vector<16x384xf32> to vector<16x128xf32>
    %135 = arith.addf %133, %134 : vector<16x128xf32>
    %136 = arith.negf %135 : vector<16x128xf32>
    %137 = math.exp %136 : vector<16x128xf32>
    %cst_55 = arith.constant 1.000000e+00 : f32
    %138 = vector.broadcast %cst_55 : f32 to vector<16x128xf32>
    %139 = arith.addf %138, %137 : vector<16x128xf32>
    %140 = arith.divf %138, %139 : vector<16x128xf32>
    %141 = vector.extract_strided_slice %124 {offsets = [0, 256], sizes = [16, 128], strides = [1, 1]} : vector<16x384xf32> to vector<16x128xf32>
    %142 = vector.extract_strided_slice %121 {offsets = [0, 256], sizes = [16, 128], strides = [1, 1]} : vector<16x384xf32> to vector<16x128xf32>
    %143 = vector.broadcast %14 : vector<1x128xf32> to vector<16x128xf32>
    %144 = arith.addf %142, %143 : vector<16x128xf32>
    %145 = arith.mulf %132, %144 : vector<16x128xf32>
    %146 = arith.addf %141, %145 : vector<16x128xf32>
    %147 = math.tanh %146 : vector<16x128xf32>
    %cst_56 = arith.constant 1.000000e+00 : f32
    %148 = vector.broadcast %cst_56 : f32 to vector<16x128xf32>
    %149 = arith.subf %148, %140 : vector<16x128xf32>
    %150 = arith.mulf %149, %147 : vector<16x128xf32>
    %151 = arith.mulf %140, %118 : vector<16x128xf32>
    %152 = arith.addf %150, %151 : vector<16x128xf32>
    %153 = vector.broadcast %c1_i32 : i32 to vector<16x1xi32>
    %154 = arith.cmpi slt, %153, %13 : vector<16x1xi32>
    %155 = vector.shape_cast %154 : vector<16x1xi1> to vector<16x1xi1>
    %156 = vector.broadcast %155 : vector<16x1xi1> to vector<16x128xi1>
    %157 = arith.select %156, %152, %118 : vector<16x128xi1>, vector<16x128xf32>
    %c0_57 = arith.constant 0 : index
    %c0_58 = arith.constant 0 : index
    %158 = vector.load %arg11[%c0_57, %c0_58] : memref<16x128xf32, #tpu.memory_space<vmem>>, vector<16x128xf32>
    tpu.vector_store %arg11[%c0_57, %c0_58], %157 {strides = array<i32>} : memref<16x128xf32, #tpu.memory_space<vmem>>, vector<16x128xf32>,
    %159 = arith.truncf %157 : vector<16x128xf32> to vector<16x128xbf16>
    %160 = arith.index_cast %c1_i32 : i32 to index
    %c0_59 = arith.constant 0 : index
    %c0_60 = arith.constant 0 : index
    %161 = vector.load %arg9[%160, %c0_59, %c0_60] : memref<8x16x256xbf16, #tpu.memory_space<vmem>>, vector<1x16x128xbf16>
    %162 = vector.shape_cast %161 : vector<1x16x128xbf16> to vector<16x128xbf16>
    %163 = vector.shape_cast %159 : vector<16x128xbf16> to vector<1x16x128xbf16>
    tpu.vector_store %arg9[%160, %c0_59, %c0_60], %163 {strides = array<i32>} : memref<8x16x256xbf16, #tpu.memory_space<vmem>>, vector<1x16x128xbf16>,
    %c0_61 = arith.constant 0 : index
    %c0_62 = arith.constant 0 : index
    %164 = vector.load %arg12[%c0_61, %c0_62] : memref<16x128xf32, #tpu.memory_space<vmem>>, vector<16x128xf32>
    %165 = arith.truncf %164 : vector<16x128xf32> to vector<16x128xbf16>
    %c0_63 = arith.constant 0 : index
    %c0_64 = arith.constant 0 : index
    %166 = vector.load %arg7[%c0_63, %c0_64] : memref<128x384xbf16, #tpu.memory_space<vmem>>, vector<128x384xbf16>
    %cst_65 = arith.constant dense<0.000000e+00> : vector<16x384xf32>
    %167 = tpu.matmul %165, %166, %cst_65 {dimension_numbers = #tpu.dot_dimension_numbers<[1], [0], [0], [1], [0, 0, 1, 1], [], []>} : vector<16x128xbf16>, vector<128x384xbf16>, vector<16x384xf32> -> vector<16x384xf32>
    %168 = arith.index_cast %117 : i32 to index
    %c384_66 = arith.constant 384 : index
    %169 = vector.load %arg10[%168, %c384_66] : memref<128x768xbf16, #tpu.memory_space<vmem>>, vector<16x384xbf16>
    %170 = arith.extf %169 : vector<16x384xbf16> to vector<16x384xf32>
    %171 = vector.extract_strided_slice %170 {offsets = [0, 0], sizes = [16, 128], strides = [1, 1]} : vector<16x384xf32> to vector<16x128xf32>
    %172 = vector.extract_strided_slice %167 {offsets = [0, 0], sizes = [16, 128], strides = [1, 1]} : vector<16x384xf32> to vector<16x128xf32>
    %173 = arith.addf %171, %172 : vector<16x128xf32>
    %174 = arith.negf %173 : vector<16x128xf32>
    %175 = math.exp %174 : vector<16x128xf32>
    %cst_67 = arith.constant 1.000000e+00 : f32
    %176 = vector.broadcast %cst_67 : f32 to vector<16x128xf32>
    %177 = arith.addf %176, %175 : vector<16x128xf32>
    %178 = arith.divf %176, %177 : vector<16x128xf32>
    %179 = vector.extract_strided_slice %170 {offsets = [0, 128], sizes = [16, 128], strides = [1, 1]} : vector<16x384xf32> to vector<16x128xf32>
    %180 = vector.extract_strided_slice %167 {offsets = [0, 128], sizes = [16, 128], strides = [1, 1]} : vector<16x384xf32> to vector<16x128xf32>
    %181 = arith.addf %179, %180 : vector<16x128xf32>
    %182 = arith.negf %181 : vector<16x128xf32>
    %183 = math.exp %182 : vector<16x128xf32>
    %cst_68 = arith.constant 1.000000e+00 : f32
    %184 = vector.broadcast %cst_68 : f32 to vector<16x128xf32>
    %185 = arith.addf %184, %183 : vector<16x128xf32>
    %186 = arith.divf %184, %185 : vector<16x128xf32>
    %187 = vector.extract_strided_slice %170 {offsets = [0, 256], sizes = [16, 128], strides = [1, 1]} : vector<16x384xf32> to vector<16x128xf32>
    %188 = vector.extract_strided_slice %167 {offsets = [0, 256], sizes = [16, 128], strides = [1, 1]} : vector<16x384xf32> to vector<16x128xf32>
    %189 = vector.broadcast %15 : vector<1x128xf32> to vector<16x128xf32>
    %190 = arith.addf %188, %189 : vector<16x128xf32>
    %191 = arith.mulf %178, %190 : vector<16x128xf32>
    %192 = arith.addf %187, %191 : vector<16x128xf32>
    %193 = math.tanh %192 : vector<16x128xf32>
    %cst_69 = arith.constant 1.000000e+00 : f32
    %194 = vector.broadcast %cst_69 : f32 to vector<16x128xf32>
    %195 = arith.subf %194, %186 : vector<16x128xf32>
    %196 = arith.mulf %195, %193 : vector<16x128xf32>
    %197 = arith.mulf %186, %164 : vector<16x128xf32>
    %198 = arith.addf %196, %197 : vector<16x128xf32>
    %199 = vector.broadcast %113 : i32 to vector<16x1xi32>
    %200 = arith.cmpi slt, %199, %13 : vector<16x1xi32>
    %201 = vector.shape_cast %200 : vector<16x1xi1> to vector<16x1xi1>
    %202 = vector.broadcast %201 : vector<16x1xi1> to vector<16x128xi1>
    %203 = arith.select %202, %198, %164 : vector<16x128xi1>, vector<16x128xf32>
    %c0_70 = arith.constant 0 : index
    %c0_71 = arith.constant 0 : index
    %204 = vector.load %arg12[%c0_70, %c0_71] : memref<16x128xf32, #tpu.memory_space<vmem>>, vector<16x128xf32>
    tpu.vector_store %arg12[%c0_70, %c0_71], %203 {strides = array<i32>} : memref<16x128xf32, #tpu.memory_space<vmem>>, vector<16x128xf32>,
    %205 = arith.truncf %203 : vector<16x128xf32> to vector<16x128xbf16>
    %206 = arith.index_cast %113 : i32 to index
    %c0_72 = arith.constant 0 : index
    %c128_73 = arith.constant 128 : index
    %207 = vector.load %arg9[%206, %c0_72, %c128_73] : memref<8x16x256xbf16, #tpu.memory_space<vmem>>, vector<1x16x128xbf16>
    %208 = vector.shape_cast %207 : vector<1x16x128xbf16> to vector<16x128xbf16>
    %209 = vector.shape_cast %205 : vector<16x128xbf16> to vector<1x16x128xbf16>
    tpu.vector_store %arg9[%206, %c0_72, %c128_73], %209 {strides = array<i32>} : memref<8x16x256xbf16, #tpu.memory_space<vmem>>, vector<1x16x128xbf16>,
    %c2_i32 = arith.constant 2 : i32
    %c7_i32_74 = arith.constant 7 : i32
    %210 = arith.subi %c7_i32_74, %c2_i32 : i32
    %c16_i32_75 = arith.constant 16 : i32
    %211 = arith.muli %c2_i32, %c16_i32_75 : i32
    %212 = tpu.assume_multiple %211, 16 : i32
    %c16_i32_76 = arith.constant 16 : i32
    %213 = arith.muli %210, %c16_i32_76 : i32
    %214 = tpu.assume_multiple %213, 16 : i32
    %c0_77 = arith.constant 0 : index
    %c0_78 = arith.constant 0 : index
    %215 = vector.load %arg11[%c0_77, %c0_78] : memref<16x128xf32, #tpu.memory_space<vmem>>, vector<16x128xf32>
    %216 = arith.truncf %215 : vector<16x128xf32> to vector<16x128xbf16>
    %c0_79 = arith.constant 0 : index
    %c0_80 = arith.constant 0 : index
    %217 = vector.load %arg5[%c0_79, %c0_80] : memref<128x384xbf16, #tpu.memory_space<vmem>>, vector<128x384xbf16>
    %cst_81 = arith.constant dense<0.000000e+00> : vector<16x384xf32>
    %218 = tpu.matmul %216, %217, %cst_81 {dimension_numbers = #tpu.dot_dimension_numbers<[1], [0], [0], [1], [0, 0, 1, 1], [], []>} : vector<16x128xbf16>, vector<128x384xbf16>, vector<16x384xf32> -> vector<16x384xf32>
    %219 = arith.index_cast %212 : i32 to index
    %c0_82 = arith.constant 0 : index
    %220 = vector.load %arg10[%219, %c0_82] : memref<128x768xbf16, #tpu.memory_space<vmem>>, vector<16x384xbf16>
    %221 = arith.extf %220 : vector<16x384xbf16> to vector<16x384xf32>
    %222 = vector.extract_strided_slice %221 {offsets = [0, 0], sizes = [16, 128], strides = [1, 1]} : vector<16x384xf32> to vector<16x128xf32>
    %223 = vector.extract_strided_slice %218 {offsets = [0, 0], sizes = [16, 128], strides = [1, 1]} : vector<16x384xf32> to vector<16x128xf32>
    %224 = arith.addf %222, %223 : vector<16x128xf32>
    %225 = arith.negf %224 : vector<16x128xf32>
    %226 = math.exp %225 : vector<16x128xf32>
    %cst_83 = arith.constant 1.000000e+00 : f32
    %227 = vector.broadcast %cst_83 : f32 to vector<16x128xf32>
    %228 = arith.addf %227, %226 : vector<16x128xf32>
    %229 = arith.divf %227, %228 : vector<16x128xf32>
    %230 = vector.extract_strided_slice %221 {offsets = [0, 128], sizes = [16, 128], strides = [1, 1]} : vector<16x384xf32> to vector<16x128xf32>
    %231 = vector.extract_strided_slice %218 {offsets = [0, 128], sizes = [16, 128], strides = [1, 1]} : vector<16x384xf32> to vector<16x128xf32>
    %232 = arith.addf %230, %231 : vector<16x128xf32>
    %233 = arith.negf %232 : vector<16x128xf32>
    %234 = math.exp %233 : vector<16x128xf32>
    %cst_84 = arith.constant 1.000000e+00 : f32
    %235 = vector.broadcast %cst_84 : f32 to vector<16x128xf32>
    %236 = arith.addf %235, %234 : vector<16x128xf32>
    %237 = arith.divf %235, %236 : vector<16x128xf32>
    %238 = vector.extract_strided_slice %221 {offsets = [0, 256], sizes = [16, 128], strides = [1, 1]} : vector<16x384xf32> to vector<16x128xf32>
    %239 = vector.extract_strided_slice %218 {offsets = [0, 256], sizes = [16, 128], strides = [1, 1]} : vector<16x384xf32> to vector<16x128xf32>
    %240 = vector.broadcast %14 : vector<1x128xf32> to vector<16x128xf32>
    %241 = arith.addf %239, %240 : vector<16x128xf32>
    %242 = arith.mulf %229, %241 : vector<16x128xf32>
    %243 = arith.addf %238, %242 : vector<16x128xf32>
    %244 = math.tanh %243 : vector<16x128xf32>
    %cst_85 = arith.constant 1.000000e+00 : f32
    %245 = vector.broadcast %cst_85 : f32 to vector<16x128xf32>
    %246 = arith.subf %245, %237 : vector<16x128xf32>
    %247 = arith.mulf %246, %244 : vector<16x128xf32>
    %248 = arith.mulf %237, %215 : vector<16x128xf32>
    %249 = arith.addf %247, %248 : vector<16x128xf32>
    %250 = vector.broadcast %c2_i32 : i32 to vector<16x1xi32>
    %251 = arith.cmpi slt, %250, %13 : vector<16x1xi32>
    %252 = vector.shape_cast %251 : vector<16x1xi1> to vector<16x1xi1>
    %253 = vector.broadcast %252 : vector<16x1xi1> to vector<16x128xi1>
    %254 = arith.select %253, %249, %215 : vector<16x128xi1>, vector<16x128xf32>
    %c0_86 = arith.constant 0 : index
    %c0_87 = arith.constant 0 : index
    %255 = vector.load %arg11[%c0_86, %c0_87] : memref<16x128xf32, #tpu.memory_space<vmem>>, vector<16x128xf32>
    tpu.vector_store %arg11[%c0_86, %c0_87], %254 {strides = array<i32>} : memref<16x128xf32, #tpu.memory_space<vmem>>, vector<16x128xf32>,
    %256 = arith.truncf %254 : vector<16x128xf32> to vector<16x128xbf16>
    %257 = arith.index_cast %c2_i32 : i32 to index
    %c0_88 = arith.constant 0 : index
    %c0_89 = arith.constant 0 : index
    %258 = vector.load %arg9[%257, %c0_88, %c0_89] : memref<8x16x256xbf16, #tpu.memory_space<vmem>>, vector<1x16x128xbf16>
    %259 = vector.shape_cast %258 : vector<1x16x128xbf16> to vector<16x128xbf16>
    %260 = vector.shape_cast %256 : vector<16x128xbf16> to vector<1x16x128xbf16>
    tpu.vector_store %arg9[%257, %c0_88, %c0_89], %260 {strides = array<i32>} : memref<8x16x256xbf16, #tpu.memory_space<vmem>>, vector<1x16x128xbf16>,
    %c0_90 = arith.constant 0 : index
    %c0_91 = arith.constant 0 : index
    %261 = vector.load %arg12[%c0_90, %c0_91] : memref<16x128xf32, #tpu.memory_space<vmem>>, vector<16x128xf32>
    %262 = arith.truncf %261 : vector<16x128xf32> to vector<16x128xbf16>
    %c0_92 = arith.constant 0 : index
    %c0_93 = arith.constant 0 : index
    %263 = vector.load %arg7[%c0_92, %c0_93] : memref<128x384xbf16, #tpu.memory_space<vmem>>, vector<128x384xbf16>
    %cst_94 = arith.constant dense<0.000000e+00> : vector<16x384xf32>
    %264 = tpu.matmul %262, %263, %cst_94 {dimension_numbers = #tpu.dot_dimension_numbers<[1], [0], [0], [1], [0, 0, 1, 1], [], []>} : vector<16x128xbf16>, vector<128x384xbf16>, vector<16x384xf32> -> vector<16x384xf32>
    %265 = arith.index_cast %214 : i32 to index
    %c384_95 = arith.constant 384 : index
    %266 = vector.load %arg10[%265, %c384_95] : memref<128x768xbf16, #tpu.memory_space<vmem>>, vector<16x384xbf16>
    %267 = arith.extf %266 : vector<16x384xbf16> to vector<16x384xf32>
    %268 = vector.extract_strided_slice %267 {offsets = [0, 0], sizes = [16, 128], strides = [1, 1]} : vector<16x384xf32> to vector<16x128xf32>
    %269 = vector.extract_strided_slice %264 {offsets = [0, 0], sizes = [16, 128], strides = [1, 1]} : vector<16x384xf32> to vector<16x128xf32>
    %270 = arith.addf %268, %269 : vector<16x128xf32>
    %271 = arith.negf %270 : vector<16x128xf32>
    %272 = math.exp %271 : vector<16x128xf32>
    %cst_96 = arith.constant 1.000000e+00 : f32
    %273 = vector.broadcast %cst_96 : f32 to vector<16x128xf32>
    %274 = arith.addf %273, %272 : vector<16x128xf32>
    %275 = arith.divf %273, %274 : vector<16x128xf32>
    %276 = vector.extract_strided_slice %267 {offsets = [0, 128], sizes = [16, 128], strides = [1, 1]} : vector<16x384xf32> to vector<16x128xf32>
    %277 = vector.extract_strided_slice %264 {offsets = [0, 128], sizes = [16, 128], strides = [1, 1]} : vector<16x384xf32> to vector<16x128xf32>
    %278 = arith.addf %276, %277 : vector<16x128xf32>
    %279 = arith.negf %278 : vector<16x128xf32>
    %280 = math.exp %279 : vector<16x128xf32>
    %cst_97 = arith.constant 1.000000e+00 : f32
    %281 = vector.broadcast %cst_97 : f32 to vector<16x128xf32>
    %282 = arith.addf %281, %280 : vector<16x128xf32>
    %283 = arith.divf %281, %282 : vector<16x128xf32>
    %284 = vector.extract_strided_slice %267 {offsets = [0, 256], sizes = [16, 128], strides = [1, 1]} : vector<16x384xf32> to vector<16x128xf32>
    %285 = vector.extract_strided_slice %264 {offsets = [0, 256], sizes = [16, 128], strides = [1, 1]} : vector<16x384xf32> to vector<16x128xf32>
    %286 = vector.broadcast %15 : vector<1x128xf32> to vector<16x128xf32>
    %287 = arith.addf %285, %286 : vector<16x128xf32>
    %288 = arith.mulf %275, %287 : vector<16x128xf32>
    %289 = arith.addf %284, %288 : vector<16x128xf32>
    %290 = math.tanh %289 : vector<16x128xf32>
    %cst_98 = arith.constant 1.000000e+00 : f32
    %291 = vector.broadcast %cst_98 : f32 to vector<16x128xf32>
    %292 = arith.subf %291, %283 : vector<16x128xf32>
    %293 = arith.mulf %292, %290 : vector<16x128xf32>
    %294 = arith.mulf %283, %261 : vector<16x128xf32>
    %295 = arith.addf %293, %294 : vector<16x128xf32>
    %296 = vector.broadcast %210 : i32 to vector<16x1xi32>
    %297 = arith.cmpi slt, %296, %13 : vector<16x1xi32>
    %298 = vector.shape_cast %297 : vector<16x1xi1> to vector<16x1xi1>
    %299 = vector.broadcast %298 : vector<16x1xi1> to vector<16x128xi1>
    %300 = arith.select %299, %295, %261 : vector<16x128xi1>, vector<16x128xf32>
    %c0_99 = arith.constant 0 : index
    %c0_100 = arith.constant 0 : index
    %301 = vector.load %arg12[%c0_99, %c0_100] : memref<16x128xf32, #tpu.memory_space<vmem>>, vector<16x128xf32>
    tpu.vector_store %arg12[%c0_99, %c0_100], %300 {strides = array<i32>} : memref<16x128xf32, #tpu.memory_space<vmem>>, vector<16x128xf32>,
    %302 = arith.truncf %300 : vector<16x128xf32> to vector<16x128xbf16>
    %303 = arith.index_cast %210 : i32 to index
    %c0_101 = arith.constant 0 : index
    %c128_102 = arith.constant 128 : index
    %304 = vector.load %arg9[%303, %c0_101, %c128_102] : memref<8x16x256xbf16, #tpu.memory_space<vmem>>, vector<1x16x128xbf16>
    %305 = vector.shape_cast %304 : vector<1x16x128xbf16> to vector<16x128xbf16>
    %306 = vector.shape_cast %302 : vector<16x128xbf16> to vector<1x16x128xbf16>
    tpu.vector_store %arg9[%303, %c0_101, %c128_102], %306 {strides = array<i32>} : memref<8x16x256xbf16, #tpu.memory_space<vmem>>, vector<1x16x128xbf16>,
    %c3_i32 = arith.constant 3 : i32
    %c7_i32_103 = arith.constant 7 : i32
    %307 = arith.subi %c7_i32_103, %c3_i32 : i32
    %c16_i32_104 = arith.constant 16 : i32
    %308 = arith.muli %c3_i32, %c16_i32_104 : i32
    %309 = tpu.assume_multiple %308, 16 : i32
    %c16_i32_105 = arith.constant 16 : i32
    %310 = arith.muli %307, %c16_i32_105 : i32
    %311 = tpu.assume_multiple %310, 16 : i32
    %c0_106 = arith.constant 0 : index
    %c0_107 = arith.constant 0 : index
    %312 = vector.load %arg11[%c0_106, %c0_107] : memref<16x128xf32, #tpu.memory_space<vmem>>, vector<16x128xf32>
    %313 = arith.truncf %312 : vector<16x128xf32> to vector<16x128xbf16>
    %c0_108 = arith.constant 0 : index
    %c0_109 = arith.constant 0 : index
    %314 = vector.load %arg5[%c0_108, %c0_109] : memref<128x384xbf16, #tpu.memory_space<vmem>>, vector<128x384xbf16>
    %cst_110 = arith.constant dense<0.000000e+00> : vector<16x384xf32>
    %315 = tpu.matmul %313, %314, %cst_110 {dimension_numbers = #tpu.dot_dimension_numbers<[1], [0], [0], [1], [0, 0, 1, 1], [], []>} : vector<16x128xbf16>, vector<128x384xbf16>, vector<16x384xf32> -> vector<16x384xf32>
    %316 = arith.index_cast %309 : i32 to index
    %c0_111 = arith.constant 0 : index
    %317 = vector.load %arg10[%316, %c0_111] : memref<128x768xbf16, #tpu.memory_space<vmem>>, vector<16x384xbf16>
    %318 = arith.extf %317 : vector<16x384xbf16> to vector<16x384xf32>
    %319 = vector.extract_strided_slice %318 {offsets = [0, 0], sizes = [16, 128], strides = [1, 1]} : vector<16x384xf32> to vector<16x128xf32>
    %320 = vector.extract_strided_slice %315 {offsets = [0, 0], sizes = [16, 128], strides = [1, 1]} : vector<16x384xf32> to vector<16x128xf32>
    %321 = arith.addf %319, %320 : vector<16x128xf32>
    %322 = arith.negf %321 : vector<16x128xf32>
    %323 = math.exp %322 : vector<16x128xf32>
    %cst_112 = arith.constant 1.000000e+00 : f32
    %324 = vector.broadcast %cst_112 : f32 to vector<16x128xf32>
    %325 = arith.addf %324, %323 : vector<16x128xf32>
    %326 = arith.divf %324, %325 : vector<16x128xf32>
    %327 = vector.extract_strided_slice %318 {offsets = [0, 128], sizes = [16, 128], strides = [1, 1]} : vector<16x384xf32> to vector<16x128xf32>
    %328 = vector.extract_strided_slice %315 {offsets = [0, 128], sizes = [16, 128], strides = [1, 1]} : vector<16x384xf32> to vector<16x128xf32>
    %329 = arith.addf %327, %328 : vector<16x128xf32>
    %330 = arith.negf %329 : vector<16x128xf32>
    %331 = math.exp %330 : vector<16x128xf32>
    %cst_113 = arith.constant 1.000000e+00 : f32
    %332 = vector.broadcast %cst_113 : f32 to vector<16x128xf32>
    %333 = arith.addf %332, %331 : vector<16x128xf32>
    %334 = arith.divf %332, %333 : vector<16x128xf32>
    %335 = vector.extract_strided_slice %318 {offsets = [0, 256], sizes = [16, 128], strides = [1, 1]} : vector<16x384xf32> to vector<16x128xf32>
    %336 = vector.extract_strided_slice %315 {offsets = [0, 256], sizes = [16, 128], strides = [1, 1]} : vector<16x384xf32> to vector<16x128xf32>
    %337 = vector.broadcast %14 : vector<1x128xf32> to vector<16x128xf32>
    %338 = arith.addf %336, %337 : vector<16x128xf32>
    %339 = arith.mulf %326, %338 : vector<16x128xf32>
    %340 = arith.addf %335, %339 : vector<16x128xf32>
    %341 = math.tanh %340 : vector<16x128xf32>
    %cst_114 = arith.constant 1.000000e+00 : f32
    %342 = vector.broadcast %cst_114 : f32 to vector<16x128xf32>
    %343 = arith.subf %342, %334 : vector<16x128xf32>
    %344 = arith.mulf %343, %341 : vector<16x128xf32>
    %345 = arith.mulf %334, %312 : vector<16x128xf32>
    %346 = arith.addf %344, %345 : vector<16x128xf32>
    %347 = vector.broadcast %c3_i32 : i32 to vector<16x1xi32>
    %348 = arith.cmpi slt, %347, %13 : vector<16x1xi32>
    %349 = vector.shape_cast %348 : vector<16x1xi1> to vector<16x1xi1>
    %350 = vector.broadcast %349 : vector<16x1xi1> to vector<16x128xi1>
    %351 = arith.select %350, %346, %312 : vector<16x128xi1>, vector<16x128xf32>
    %c0_115 = arith.constant 0 : index
    %c0_116 = arith.constant 0 : index
    %352 = vector.load %arg11[%c0_115, %c0_116] : memref<16x128xf32, #tpu.memory_space<vmem>>, vector<16x128xf32>
    tpu.vector_store %arg11[%c0_115, %c0_116], %351 {strides = array<i32>} : memref<16x128xf32, #tpu.memory_space<vmem>>, vector<16x128xf32>,
    %353 = arith.truncf %351 : vector<16x128xf32> to vector<16x128xbf16>
    %354 = arith.index_cast %c3_i32 : i32 to index
    %c0_117 = arith.constant 0 : index
    %c0_118 = arith.constant 0 : index
    %355 = vector.load %arg9[%354, %c0_117, %c0_118] : memref<8x16x256xbf16, #tpu.memory_space<vmem>>, vector<1x16x128xbf16>
    %356 = vector.shape_cast %355 : vector<1x16x128xbf16> to vector<16x128xbf16>
    %357 = vector.shape_cast %353 : vector<16x128xbf16> to vector<1x16x128xbf16>
    tpu.vector_store %arg9[%354, %c0_117, %c0_118], %357 {strides = array<i32>} : memref<8x16x256xbf16, #tpu.memory_space<vmem>>, vector<1x16x128xbf16>,
    %c0_119 = arith.constant 0 : index
    %c0_120 = arith.constant 0 : index
    %358 = vector.load %arg12[%c0_119, %c0_120] : memref<16x128xf32, #tpu.memory_space<vmem>>, vector<16x128xf32>
    %359 = arith.truncf %358 : vector<16x128xf32> to vector<16x128xbf16>
    %c0_121 = arith.constant 0 : index
    %c0_122 = arith.constant 0 : index
    %360 = vector.load %arg7[%c0_121, %c0_122] : memref<128x384xbf16, #tpu.memory_space<vmem>>, vector<128x384xbf16>
    %cst_123 = arith.constant dense<0.000000e+00> : vector<16x384xf32>
    %361 = tpu.matmul %359, %360, %cst_123 {dimension_numbers = #tpu.dot_dimension_numbers<[1], [0], [0], [1], [0, 0, 1, 1], [], []>} : vector<16x128xbf16>, vector<128x384xbf16>, vector<16x384xf32> -> vector<16x384xf32>
    %362 = arith.index_cast %311 : i32 to index
    %c384_124 = arith.constant 384 : index
    %363 = vector.load %arg10[%362, %c384_124] : memref<128x768xbf16, #tpu.memory_space<vmem>>, vector<16x384xbf16>
    %364 = arith.extf %363 : vector<16x384xbf16> to vector<16x384xf32>
    %365 = vector.extract_strided_slice %364 {offsets = [0, 0], sizes = [16, 128], strides = [1, 1]} : vector<16x384xf32> to vector<16x128xf32>
    %366 = vector.extract_strided_slice %361 {offsets = [0, 0], sizes = [16, 128], strides = [1, 1]} : vector<16x384xf32> to vector<16x128xf32>
    %367 = arith.addf %365, %366 : vector<16x128xf32>
    %368 = arith.negf %367 : vector<16x128xf32>
    %369 = math.exp %368 : vector<16x128xf32>
    %cst_125 = arith.constant 1.000000e+00 : f32
    %370 = vector.broadcast %cst_125 : f32 to vector<16x128xf32>
    %371 = arith.addf %370, %369 : vector<16x128xf32>
    %372 = arith.divf %370, %371 : vector<16x128xf32>
    %373 = vector.extract_strided_slice %364 {offsets = [0, 128], sizes = [16, 128], strides = [1, 1]} : vector<16x384xf32> to vector<16x128xf32>
    %374 = vector.extract_strided_slice %361 {offsets = [0, 128], sizes = [16, 128], strides = [1, 1]} : vector<16x384xf32> to vector<16x128xf32>
    %375 = arith.addf %373, %374 : vector<16x128xf32>
    %376 = arith.negf %375 : vector<16x128xf32>
    %377 = math.exp %376 : vector<16x128xf32>
    %cst_126 = arith.constant 1.000000e+00 : f32
    %378 = vector.broadcast %cst_126 : f32 to vector<16x128xf32>
    %379 = arith.addf %378, %377 : vector<16x128xf32>
    %380 = arith.divf %378, %379 : vector<16x128xf32>
    %381 = vector.extract_strided_slice %364 {offsets = [0, 256], sizes = [16, 128], strides = [1, 1]} : vector<16x384xf32> to vector<16x128xf32>
    %382 = vector.extract_strided_slice %361 {offsets = [0, 256], sizes = [16, 128], strides = [1, 1]} : vector<16x384xf32> to vector<16x128xf32>
    %383 = vector.broadcast %15 : vector<1x128xf32> to vector<16x128xf32>
    %384 = arith.addf %382, %383 : vector<16x128xf32>
    %385 = arith.mulf %372, %384 : vector<16x128xf32>
    %386 = arith.addf %381, %385 : vector<16x128xf32>
    %387 = math.tanh %386 : vector<16x128xf32>
    %cst_127 = arith.constant 1.000000e+00 : f32
    %388 = vector.broadcast %cst_127 : f32 to vector<16x128xf32>
    %389 = arith.subf %388, %380 : vector<16x128xf32>
    %390 = arith.mulf %389, %387 : vector<16x128xf32>
    %391 = arith.mulf %380, %358 : vector<16x128xf32>
    %392 = arith.addf %390, %391 : vector<16x128xf32>
    %393 = vector.broadcast %307 : i32 to vector<16x1xi32>
    %394 = arith.cmpi slt, %393, %13 : vector<16x1xi32>
    %395 = vector.shape_cast %394 : vector<16x1xi1> to vector<16x1xi1>
    %396 = vector.broadcast %395 : vector<16x1xi1> to vector<16x128xi1>
    %397 = arith.select %396, %392, %358 : vector<16x128xi1>, vector<16x128xf32>
    %c0_128 = arith.constant 0 : index
    %c0_129 = arith.constant 0 : index
    %398 = vector.load %arg12[%c0_128, %c0_129] : memref<16x128xf32, #tpu.memory_space<vmem>>, vector<16x128xf32>
    tpu.vector_store %arg12[%c0_128, %c0_129], %397 {strides = array<i32>} : memref<16x128xf32, #tpu.memory_space<vmem>>, vector<16x128xf32>,
    %399 = arith.truncf %397 : vector<16x128xf32> to vector<16x128xbf16>
    %400 = arith.index_cast %307 : i32 to index
    %c0_130 = arith.constant 0 : index
    %c128_131 = arith.constant 128 : index
    %401 = vector.load %arg9[%400, %c0_130, %c128_131] : memref<8x16x256xbf16, #tpu.memory_space<vmem>>, vector<1x16x128xbf16>
    %402 = vector.shape_cast %401 : vector<1x16x128xbf16> to vector<16x128xbf16>
    %403 = vector.shape_cast %399 : vector<16x128xbf16> to vector<1x16x128xbf16>
    tpu.vector_store %arg9[%400, %c0_130, %c128_131], %403 {strides = array<i32>} : memref<8x16x256xbf16, #tpu.memory_space<vmem>>, vector<1x16x128xbf16>,
    %c4_i32 = arith.constant 4 : i32
    %c7_i32_132 = arith.constant 7 : i32
    %404 = arith.subi %c7_i32_132, %c4_i32 : i32
    %c16_i32_133 = arith.constant 16 : i32
    %405 = arith.muli %c4_i32, %c16_i32_133 : i32
    %406 = tpu.assume_multiple %405, 16 : i32
    %c16_i32_134 = arith.constant 16 : i32
    %407 = arith.muli %404, %c16_i32_134 : i32
    %408 = tpu.assume_multiple %407, 16 : i32
    %c0_135 = arith.constant 0 : index
    %c0_136 = arith.constant 0 : index
    %409 = vector.load %arg11[%c0_135, %c0_136] : memref<16x128xf32, #tpu.memory_space<vmem>>, vector<16x128xf32>
    %410 = arith.truncf %409 : vector<16x128xf32> to vector<16x128xbf16>
    %c0_137 = arith.constant 0 : index
    %c0_138 = arith.constant 0 : index
    %411 = vector.load %arg5[%c0_137, %c0_138] : memref<128x384xbf16, #tpu.memory_space<vmem>>, vector<128x384xbf16>
    %cst_139 = arith.constant dense<0.000000e+00> : vector<16x384xf32>
    %412 = tpu.matmul %410, %411, %cst_139 {dimension_numbers = #tpu.dot_dimension_numbers<[1], [0], [0], [1], [0, 0, 1, 1], [], []>} : vector<16x128xbf16>, vector<128x384xbf16>, vector<16x384xf32> -> vector<16x384xf32>
    %413 = arith.index_cast %406 : i32 to index
    %c0_140 = arith.constant 0 : index
    %414 = vector.load %arg10[%413, %c0_140] : memref<128x768xbf16, #tpu.memory_space<vmem>>, vector<16x384xbf16>
    %415 = arith.extf %414 : vector<16x384xbf16> to vector<16x384xf32>
    %416 = vector.extract_strided_slice %415 {offsets = [0, 0], sizes = [16, 128], strides = [1, 1]} : vector<16x384xf32> to vector<16x128xf32>
    %417 = vector.extract_strided_slice %412 {offsets = [0, 0], sizes = [16, 128], strides = [1, 1]} : vector<16x384xf32> to vector<16x128xf32>
    %418 = arith.addf %416, %417 : vector<16x128xf32>
    %419 = arith.negf %418 : vector<16x128xf32>
    %420 = math.exp %419 : vector<16x128xf32>
    %cst_141 = arith.constant 1.000000e+00 : f32
    %421 = vector.broadcast %cst_141 : f32 to vector<16x128xf32>
    %422 = arith.addf %421, %420 : vector<16x128xf32>
    %423 = arith.divf %421, %422 : vector<16x128xf32>
    %424 = vector.extract_strided_slice %415 {offsets = [0, 128], sizes = [16, 128], strides = [1, 1]} : vector<16x384xf32> to vector<16x128xf32>
    %425 = vector.extract_strided_slice %412 {offsets = [0, 128], sizes = [16, 128], strides = [1, 1]} : vector<16x384xf32> to vector<16x128xf32>
    %426 = arith.addf %424, %425 : vector<16x128xf32>
    %427 = arith.negf %426 : vector<16x128xf32>
    %428 = math.exp %427 : vector<16x128xf32>
    %cst_142 = arith.constant 1.000000e+00 : f32
    %429 = vector.broadcast %cst_142 : f32 to vector<16x128xf32>
    %430 = arith.addf %429, %428 : vector<16x128xf32>
    %431 = arith.divf %429, %430 : vector<16x128xf32>
    %432 = vector.extract_strided_slice %415 {offsets = [0, 256], sizes = [16, 128], strides = [1, 1]} : vector<16x384xf32> to vector<16x128xf32>
    %433 = vector.extract_strided_slice %412 {offsets = [0, 256], sizes = [16, 128], strides = [1, 1]} : vector<16x384xf32> to vector<16x128xf32>
    %434 = vector.broadcast %14 : vector<1x128xf32> to vector<16x128xf32>
    %435 = arith.addf %433, %434 : vector<16x128xf32>
    %436 = arith.mulf %423, %435 : vector<16x128xf32>
    %437 = arith.addf %432, %436 : vector<16x128xf32>
    %438 = math.tanh %437 : vector<16x128xf32>
    %cst_143 = arith.constant 1.000000e+00 : f32
    %439 = vector.broadcast %cst_143 : f32 to vector<16x128xf32>
    %440 = arith.subf %439, %431 : vector<16x128xf32>
    %441 = arith.mulf %440, %438 : vector<16x128xf32>
    %442 = arith.mulf %431, %409 : vector<16x128xf32>
    %443 = arith.addf %441, %442 : vector<16x128xf32>
    %444 = vector.broadcast %c4_i32 : i32 to vector<16x1xi32>
    %445 = arith.cmpi slt, %444, %13 : vector<16x1xi32>
    %446 = vector.shape_cast %445 : vector<16x1xi1> to vector<16x1xi1>
    %447 = vector.broadcast %446 : vector<16x1xi1> to vector<16x128xi1>
    %448 = arith.select %447, %443, %409 : vector<16x128xi1>, vector<16x128xf32>
    %c0_144 = arith.constant 0 : index
    %c0_145 = arith.constant 0 : index
    %449 = vector.load %arg11[%c0_144, %c0_145] : memref<16x128xf32, #tpu.memory_space<vmem>>, vector<16x128xf32>
    tpu.vector_store %arg11[%c0_144, %c0_145], %448 {strides = array<i32>} : memref<16x128xf32, #tpu.memory_space<vmem>>, vector<16x128xf32>,
    %450 = arith.truncf %448 : vector<16x128xf32> to vector<16x128xbf16>
    %451 = arith.index_cast %c4_i32 : i32 to index
    %c0_146 = arith.constant 0 : index
    %c0_147 = arith.constant 0 : index
    %452 = vector.load %arg9[%451, %c0_146, %c0_147] : memref<8x16x256xbf16, #tpu.memory_space<vmem>>, vector<1x16x128xbf16>
    %453 = vector.shape_cast %452 : vector<1x16x128xbf16> to vector<16x128xbf16>
    %454 = vector.shape_cast %450 : vector<16x128xbf16> to vector<1x16x128xbf16>
    tpu.vector_store %arg9[%451, %c0_146, %c0_147], %454 {strides = array<i32>} : memref<8x16x256xbf16, #tpu.memory_space<vmem>>, vector<1x16x128xbf16>,
    %c0_148 = arith.constant 0 : index
    %c0_149 = arith.constant 0 : index
    %455 = vector.load %arg12[%c0_148, %c0_149] : memref<16x128xf32, #tpu.memory_space<vmem>>, vector<16x128xf32>
    %456 = arith.truncf %455 : vector<16x128xf32> to vector<16x128xbf16>
    %c0_150 = arith.constant 0 : index
    %c0_151 = arith.constant 0 : index
    %457 = vector.load %arg7[%c0_150, %c0_151] : memref<128x384xbf16, #tpu.memory_space<vmem>>, vector<128x384xbf16>
    %cst_152 = arith.constant dense<0.000000e+00> : vector<16x384xf32>
    %458 = tpu.matmul %456, %457, %cst_152 {dimension_numbers = #tpu.dot_dimension_numbers<[1], [0], [0], [1], [0, 0, 1, 1], [], []>} : vector<16x128xbf16>, vector<128x384xbf16>, vector<16x384xf32> -> vector<16x384xf32>
    %459 = arith.index_cast %408 : i32 to index
    %c384_153 = arith.constant 384 : index
    %460 = vector.load %arg10[%459, %c384_153] : memref<128x768xbf16, #tpu.memory_space<vmem>>, vector<16x384xbf16>
    %461 = arith.extf %460 : vector<16x384xbf16> to vector<16x384xf32>
    %462 = vector.extract_strided_slice %461 {offsets = [0, 0], sizes = [16, 128], strides = [1, 1]} : vector<16x384xf32> to vector<16x128xf32>
    %463 = vector.extract_strided_slice %458 {offsets = [0, 0], sizes = [16, 128], strides = [1, 1]} : vector<16x384xf32> to vector<16x128xf32>
    %464 = arith.addf %462, %463 : vector<16x128xf32>
    %465 = arith.negf %464 : vector<16x128xf32>
    %466 = math.exp %465 : vector<16x128xf32>
    %cst_154 = arith.constant 1.000000e+00 : f32
    %467 = vector.broadcast %cst_154 : f32 to vector<16x128xf32>
    %468 = arith.addf %467, %466 : vector<16x128xf32>
    %469 = arith.divf %467, %468 : vector<16x128xf32>
    %470 = vector.extract_strided_slice %461 {offsets = [0, 128], sizes = [16, 128], strides = [1, 1]} : vector<16x384xf32> to vector<16x128xf32>
    %471 = vector.extract_strided_slice %458 {offsets = [0, 128], sizes = [16, 128], strides = [1, 1]} : vector<16x384xf32> to vector<16x128xf32>
    %472 = arith.addf %470, %471 : vector<16x128xf32>
    %473 = arith.negf %472 : vector<16x128xf32>
    %474 = math.exp %473 : vector<16x128xf32>
    %cst_155 = arith.constant 1.000000e+00 : f32
    %475 = vector.broadcast %cst_155 : f32 to vector<16x128xf32>
    %476 = arith.addf %475, %474 : vector<16x128xf32>
    %477 = arith.divf %475, %476 : vector<16x128xf32>
    %478 = vector.extract_strided_slice %461 {offsets = [0, 256], sizes = [16, 128], strides = [1, 1]} : vector<16x384xf32> to vector<16x128xf32>
    %479 = vector.extract_strided_slice %458 {offsets = [0, 256], sizes = [16, 128], strides = [1, 1]} : vector<16x384xf32> to vector<16x128xf32>
    %480 = vector.broadcast %15 : vector<1x128xf32> to vector<16x128xf32>
    %481 = arith.addf %479, %480 : vector<16x128xf32>
    %482 = arith.mulf %469, %481 : vector<16x128xf32>
    %483 = arith.addf %478, %482 : vector<16x128xf32>
    %484 = math.tanh %483 : vector<16x128xf32>
    %cst_156 = arith.constant 1.000000e+00 : f32
    %485 = vector.broadcast %cst_156 : f32 to vector<16x128xf32>
    %486 = arith.subf %485, %477 : vector<16x128xf32>
    %487 = arith.mulf %486, %484 : vector<16x128xf32>
    %488 = arith.mulf %477, %455 : vector<16x128xf32>
    %489 = arith.addf %487, %488 : vector<16x128xf32>
    %490 = vector.broadcast %404 : i32 to vector<16x1xi32>
    %491 = arith.cmpi slt, %490, %13 : vector<16x1xi32>
    %492 = vector.shape_cast %491 : vector<16x1xi1> to vector<16x1xi1>
    %493 = vector.broadcast %492 : vector<16x1xi1> to vector<16x128xi1>
    %494 = arith.select %493, %489, %455 : vector<16x128xi1>, vector<16x128xf32>
    %c0_157 = arith.constant 0 : index
    %c0_158 = arith.constant 0 : index
    %495 = vector.load %arg12[%c0_157, %c0_158] : memref<16x128xf32, #tpu.memory_space<vmem>>, vector<16x128xf32>
    tpu.vector_store %arg12[%c0_157, %c0_158], %494 {strides = array<i32>} : memref<16x128xf32, #tpu.memory_space<vmem>>, vector<16x128xf32>,
    %496 = arith.truncf %494 : vector<16x128xf32> to vector<16x128xbf16>
    %497 = arith.index_cast %404 : i32 to index
    %c0_159 = arith.constant 0 : index
    %c128_160 = arith.constant 128 : index
    %498 = vector.load %arg9[%497, %c0_159, %c128_160] : memref<8x16x256xbf16, #tpu.memory_space<vmem>>, vector<1x16x128xbf16>
    %499 = vector.shape_cast %498 : vector<1x16x128xbf16> to vector<16x128xbf16>
    %500 = vector.shape_cast %496 : vector<16x128xbf16> to vector<1x16x128xbf16>
    tpu.vector_store %arg9[%497, %c0_159, %c128_160], %500 {strides = array<i32>} : memref<8x16x256xbf16, #tpu.memory_space<vmem>>, vector<1x16x128xbf16>,
    %c5_i32 = arith.constant 5 : i32
    %c7_i32_161 = arith.constant 7 : i32
    %501 = arith.subi %c7_i32_161, %c5_i32 : i32
    %c16_i32_162 = arith.constant 16 : i32
    %502 = arith.muli %c5_i32, %c16_i32_162 : i32
    %503 = tpu.assume_multiple %502, 16 : i32
    %c16_i32_163 = arith.constant 16 : i32
    %504 = arith.muli %501, %c16_i32_163 : i32
    %505 = tpu.assume_multiple %504, 16 : i32
    %c0_164 = arith.constant 0 : index
    %c0_165 = arith.constant 0 : index
    %506 = vector.load %arg11[%c0_164, %c0_165] : memref<16x128xf32, #tpu.memory_space<vmem>>, vector<16x128xf32>
    %507 = arith.truncf %506 : vector<16x128xf32> to vector<16x128xbf16>
    %c0_166 = arith.constant 0 : index
    %c0_167 = arith.constant 0 : index
    %508 = vector.load %arg5[%c0_166, %c0_167] : memref<128x384xbf16, #tpu.memory_space<vmem>>, vector<128x384xbf16>
    %cst_168 = arith.constant dense<0.000000e+00> : vector<16x384xf32>
    %509 = tpu.matmul %507, %508, %cst_168 {dimension_numbers = #tpu.dot_dimension_numbers<[1], [0], [0], [1], [0, 0, 1, 1], [], []>} : vector<16x128xbf16>, vector<128x384xbf16>, vector<16x384xf32> -> vector<16x384xf32>
    %510 = arith.index_cast %503 : i32 to index
    %c0_169 = arith.constant 0 : index
    %511 = vector.load %arg10[%510, %c0_169] : memref<128x768xbf16, #tpu.memory_space<vmem>>, vector<16x384xbf16>
    %512 = arith.extf %511 : vector<16x384xbf16> to vector<16x384xf32>
    %513 = vector.extract_strided_slice %512 {offsets = [0, 0], sizes = [16, 128], strides = [1, 1]} : vector<16x384xf32> to vector<16x128xf32>
    %514 = vector.extract_strided_slice %509 {offsets = [0, 0], sizes = [16, 128], strides = [1, 1]} : vector<16x384xf32> to vector<16x128xf32>
    %515 = arith.addf %513, %514 : vector<16x128xf32>
    %516 = arith.negf %515 : vector<16x128xf32>
    %517 = math.exp %516 : vector<16x128xf32>
    %cst_170 = arith.constant 1.000000e+00 : f32
    %518 = vector.broadcast %cst_170 : f32 to vector<16x128xf32>
    %519 = arith.addf %518, %517 : vector<16x128xf32>
    %520 = arith.divf %518, %519 : vector<16x128xf32>
    %521 = vector.extract_strided_slice %512 {offsets = [0, 128], sizes = [16, 128], strides = [1, 1]} : vector<16x384xf32> to vector<16x128xf32>
    %522 = vector.extract_strided_slice %509 {offsets = [0, 128], sizes = [16, 128], strides = [1, 1]} : vector<16x384xf32> to vector<16x128xf32>
    %523 = arith.addf %521, %522 : vector<16x128xf32>
    %524 = arith.negf %523 : vector<16x128xf32>
    %525 = math.exp %524 : vector<16x128xf32>
    %cst_171 = arith.constant 1.000000e+00 : f32
    %526 = vector.broadcast %cst_171 : f32 to vector<16x128xf32>
    %527 = arith.addf %526, %525 : vector<16x128xf32>
    %528 = arith.divf %526, %527 : vector<16x128xf32>
    %529 = vector.extract_strided_slice %512 {offsets = [0, 256], sizes = [16, 128], strides = [1, 1]} : vector<16x384xf32> to vector<16x128xf32>
    %530 = vector.extract_strided_slice %509 {offsets = [0, 256], sizes = [16, 128], strides = [1, 1]} : vector<16x384xf32> to vector<16x128xf32>
    %531 = vector.broadcast %14 : vector<1x128xf32> to vector<16x128xf32>
    %532 = arith.addf %530, %531 : vector<16x128xf32>
    %533 = arith.mulf %520, %532 : vector<16x128xf32>
    %534 = arith.addf %529, %533 : vector<16x128xf32>
    %535 = math.tanh %534 : vector<16x128xf32>
    %cst_172 = arith.constant 1.000000e+00 : f32
    %536 = vector.broadcast %cst_172 : f32 to vector<16x128xf32>
    %537 = arith.subf %536, %528 : vector<16x128xf32>
    %538 = arith.mulf %537, %535 : vector<16x128xf32>
    %539 = arith.mulf %528, %506 : vector<16x128xf32>
    %540 = arith.addf %538, %539 : vector<16x128xf32>
    %541 = vector.broadcast %c5_i32 : i32 to vector<16x1xi32>
    %542 = arith.cmpi slt, %541, %13 : vector<16x1xi32>
    %543 = vector.shape_cast %542 : vector<16x1xi1> to vector<16x1xi1>
    %544 = vector.broadcast %543 : vector<16x1xi1> to vector<16x128xi1>
    %545 = arith.select %544, %540, %506 : vector<16x128xi1>, vector<16x128xf32>
    %c0_173 = arith.constant 0 : index
    %c0_174 = arith.constant 0 : index
    %546 = vector.load %arg11[%c0_173, %c0_174] : memref<16x128xf32, #tpu.memory_space<vmem>>, vector<16x128xf32>
    tpu.vector_store %arg11[%c0_173, %c0_174], %545 {strides = array<i32>} : memref<16x128xf32, #tpu.memory_space<vmem>>, vector<16x128xf32>,
    %547 = arith.truncf %545 : vector<16x128xf32> to vector<16x128xbf16>
    %548 = arith.index_cast %c5_i32 : i32 to index
    %c0_175 = arith.constant 0 : index
    %c0_176 = arith.constant 0 : index
    %549 = vector.load %arg9[%548, %c0_175, %c0_176] : memref<8x16x256xbf16, #tpu.memory_space<vmem>>, vector<1x16x128xbf16>
    %550 = vector.shape_cast %549 : vector<1x16x128xbf16> to vector<16x128xbf16>
    %551 = vector.shape_cast %547 : vector<16x128xbf16> to vector<1x16x128xbf16>
    tpu.vector_store %arg9[%548, %c0_175, %c0_176], %551 {strides = array<i32>} : memref<8x16x256xbf16, #tpu.memory_space<vmem>>, vector<1x16x128xbf16>,
    %c0_177 = arith.constant 0 : index
    %c0_178 = arith.constant 0 : index
    %552 = vector.load %arg12[%c0_177, %c0_178] : memref<16x128xf32, #tpu.memory_space<vmem>>, vector<16x128xf32>
    %553 = arith.truncf %552 : vector<16x128xf32> to vector<16x128xbf16>
    %c0_179 = arith.constant 0 : index
    %c0_180 = arith.constant 0 : index
    %554 = vector.load %arg7[%c0_179, %c0_180] : memref<128x384xbf16, #tpu.memory_space<vmem>>, vector<128x384xbf16>
    %cst_181 = arith.constant dense<0.000000e+00> : vector<16x384xf32>
    %555 = tpu.matmul %553, %554, %cst_181 {dimension_numbers = #tpu.dot_dimension_numbers<[1], [0], [0], [1], [0, 0, 1, 1], [], []>} : vector<16x128xbf16>, vector<128x384xbf16>, vector<16x384xf32> -> vector<16x384xf32>
    %556 = arith.index_cast %505 : i32 to index
    %c384_182 = arith.constant 384 : index
    %557 = vector.load %arg10[%556, %c384_182] : memref<128x768xbf16, #tpu.memory_space<vmem>>, vector<16x384xbf16>
    %558 = arith.extf %557 : vector<16x384xbf16> to vector<16x384xf32>
    %559 = vector.extract_strided_slice %558 {offsets = [0, 0], sizes = [16, 128], strides = [1, 1]} : vector<16x384xf32> to vector<16x128xf32>
    %560 = vector.extract_strided_slice %555 {offsets = [0, 0], sizes = [16, 128], strides = [1, 1]} : vector<16x384xf32> to vector<16x128xf32>
    %561 = arith.addf %559, %560 : vector<16x128xf32>
    %562 = arith.negf %561 : vector<16x128xf32>
    %563 = math.exp %562 : vector<16x128xf32>
    %cst_183 = arith.constant 1.000000e+00 : f32
    %564 = vector.broadcast %cst_183 : f32 to vector<16x128xf32>
    %565 = arith.addf %564, %563 : vector<16x128xf32>
    %566 = arith.divf %564, %565 : vector<16x128xf32>
    %567 = vector.extract_strided_slice %558 {offsets = [0, 128], sizes = [16, 128], strides = [1, 1]} : vector<16x384xf32> to vector<16x128xf32>
    %568 = vector.extract_strided_slice %555 {offsets = [0, 128], sizes = [16, 128], strides = [1, 1]} : vector<16x384xf32> to vector<16x128xf32>
    %569 = arith.addf %567, %568 : vector<16x128xf32>
    %570 = arith.negf %569 : vector<16x128xf32>
    %571 = math.exp %570 : vector<16x128xf32>
    %cst_184 = arith.constant 1.000000e+00 : f32
    %572 = vector.broadcast %cst_184 : f32 to vector<16x128xf32>
    %573 = arith.addf %572, %571 : vector<16x128xf32>
    %574 = arith.divf %572, %573 : vector<16x128xf32>
    %575 = vector.extract_strided_slice %558 {offsets = [0, 256], sizes = [16, 128], strides = [1, 1]} : vector<16x384xf32> to vector<16x128xf32>
    %576 = vector.extract_strided_slice %555 {offsets = [0, 256], sizes = [16, 128], strides = [1, 1]} : vector<16x384xf32> to vector<16x128xf32>
    %577 = vector.broadcast %15 : vector<1x128xf32> to vector<16x128xf32>
    %578 = arith.addf %576, %577 : vector<16x128xf32>
    %579 = arith.mulf %566, %578 : vector<16x128xf32>
    %580 = arith.addf %575, %579 : vector<16x128xf32>
    %581 = math.tanh %580 : vector<16x128xf32>
    %cst_185 = arith.constant 1.000000e+00 : f32
    %582 = vector.broadcast %cst_185 : f32 to vector<16x128xf32>
    %583 = arith.subf %582, %574 : vector<16x128xf32>
    %584 = arith.mulf %583, %581 : vector<16x128xf32>
    %585 = arith.mulf %574, %552 : vector<16x128xf32>
    %586 = arith.addf %584, %585 : vector<16x128xf32>
    %587 = vector.broadcast %501 : i32 to vector<16x1xi32>
    %588 = arith.cmpi slt, %587, %13 : vector<16x1xi32>
    %589 = vector.shape_cast %588 : vector<16x1xi1> to vector<16x1xi1>
    %590 = vector.broadcast %589 : vector<16x1xi1> to vector<16x128xi1>
    %591 = arith.select %590, %586, %552 : vector<16x128xi1>, vector<16x128xf32>
    %c0_186 = arith.constant 0 : index
    %c0_187 = arith.constant 0 : index
    %592 = vector.load %arg12[%c0_186, %c0_187] : memref<16x128xf32, #tpu.memory_space<vmem>>, vector<16x128xf32>
    tpu.vector_store %arg12[%c0_186, %c0_187], %591 {strides = array<i32>} : memref<16x128xf32, #tpu.memory_space<vmem>>, vector<16x128xf32>,
    %593 = arith.truncf %591 : vector<16x128xf32> to vector<16x128xbf16>
    %594 = arith.index_cast %501 : i32 to index
    %c0_188 = arith.constant 0 : index
    %c128_189 = arith.constant 128 : index
    %595 = vector.load %arg9[%594, %c0_188, %c128_189] : memref<8x16x256xbf16, #tpu.memory_space<vmem>>, vector<1x16x128xbf16>
    %596 = vector.shape_cast %595 : vector<1x16x128xbf16> to vector<16x128xbf16>
    %597 = vector.shape_cast %593 : vector<16x128xbf16> to vector<1x16x128xbf16>
    tpu.vector_store %arg9[%594, %c0_188, %c128_189], %597 {strides = array<i32>} : memref<8x16x256xbf16, #tpu.memory_space<vmem>>, vector<1x16x128xbf16>,
    %c6_i32 = arith.constant 6 : i32
    %c7_i32_190 = arith.constant 7 : i32
    %598 = arith.subi %c7_i32_190, %c6_i32 : i32
    %c16_i32_191 = arith.constant 16 : i32
    %599 = arith.muli %c6_i32, %c16_i32_191 : i32
    %600 = tpu.assume_multiple %599, 16 : i32
    %c16_i32_192 = arith.constant 16 : i32
    %601 = arith.muli %598, %c16_i32_192 : i32
    %602 = tpu.assume_multiple %601, 16 : i32
    %c0_193 = arith.constant 0 : index
    %c0_194 = arith.constant 0 : index
    %603 = vector.load %arg11[%c0_193, %c0_194] : memref<16x128xf32, #tpu.memory_space<vmem>>, vector<16x128xf32>
    %604 = arith.truncf %603 : vector<16x128xf32> to vector<16x128xbf16>
    %c0_195 = arith.constant 0 : index
    %c0_196 = arith.constant 0 : index
    %605 = vector.load %arg5[%c0_195, %c0_196] : memref<128x384xbf16, #tpu.memory_space<vmem>>, vector<128x384xbf16>
    %cst_197 = arith.constant dense<0.000000e+00> : vector<16x384xf32>
    %606 = tpu.matmul %604, %605, %cst_197 {dimension_numbers = #tpu.dot_dimension_numbers<[1], [0], [0], [1], [0, 0, 1, 1], [], []>} : vector<16x128xbf16>, vector<128x384xbf16>, vector<16x384xf32> -> vector<16x384xf32>
    %607 = arith.index_cast %600 : i32 to index
    %c0_198 = arith.constant 0 : index
    %608 = vector.load %arg10[%607, %c0_198] : memref<128x768xbf16, #tpu.memory_space<vmem>>, vector<16x384xbf16>
    %609 = arith.extf %608 : vector<16x384xbf16> to vector<16x384xf32>
    %610 = vector.extract_strided_slice %609 {offsets = [0, 0], sizes = [16, 128], strides = [1, 1]} : vector<16x384xf32> to vector<16x128xf32>
    %611 = vector.extract_strided_slice %606 {offsets = [0, 0], sizes = [16, 128], strides = [1, 1]} : vector<16x384xf32> to vector<16x128xf32>
    %612 = arith.addf %610, %611 : vector<16x128xf32>
    %613 = arith.negf %612 : vector<16x128xf32>
    %614 = math.exp %613 : vector<16x128xf32>
    %cst_199 = arith.constant 1.000000e+00 : f32
    %615 = vector.broadcast %cst_199 : f32 to vector<16x128xf32>
    %616 = arith.addf %615, %614 : vector<16x128xf32>
    %617 = arith.divf %615, %616 : vector<16x128xf32>
    %618 = vector.extract_strided_slice %609 {offsets = [0, 128], sizes = [16, 128], strides = [1, 1]} : vector<16x384xf32> to vector<16x128xf32>
    %619 = vector.extract_strided_slice %606 {offsets = [0, 128], sizes = [16, 128], strides = [1, 1]} : vector<16x384xf32> to vector<16x128xf32>
    %620 = arith.addf %618, %619 : vector<16x128xf32>
    %621 = arith.negf %620 : vector<16x128xf32>
    %622 = math.exp %621 : vector<16x128xf32>
    %cst_200 = arith.constant 1.000000e+00 : f32
    %623 = vector.broadcast %cst_200 : f32 to vector<16x128xf32>
    %624 = arith.addf %623, %622 : vector<16x128xf32>
    %625 = arith.divf %623, %624 : vector<16x128xf32>
    %626 = vector.extract_strided_slice %609 {offsets = [0, 256], sizes = [16, 128], strides = [1, 1]} : vector<16x384xf32> to vector<16x128xf32>
    %627 = vector.extract_strided_slice %606 {offsets = [0, 256], sizes = [16, 128], strides = [1, 1]} : vector<16x384xf32> to vector<16x128xf32>
    %628 = vector.broadcast %14 : vector<1x128xf32> to vector<16x128xf32>
    %629 = arith.addf %627, %628 : vector<16x128xf32>
    %630 = arith.mulf %617, %629 : vector<16x128xf32>
    %631 = arith.addf %626, %630 : vector<16x128xf32>
    %632 = math.tanh %631 : vector<16x128xf32>
    %cst_201 = arith.constant 1.000000e+00 : f32
    %633 = vector.broadcast %cst_201 : f32 to vector<16x128xf32>
    %634 = arith.subf %633, %625 : vector<16x128xf32>
    %635 = arith.mulf %634, %632 : vector<16x128xf32>
    %636 = arith.mulf %625, %603 : vector<16x128xf32>
    %637 = arith.addf %635, %636 : vector<16x128xf32>
    %638 = vector.broadcast %c6_i32 : i32 to vector<16x1xi32>
    %639 = arith.cmpi slt, %638, %13 : vector<16x1xi32>
    %640 = vector.shape_cast %639 : vector<16x1xi1> to vector<16x1xi1>
    %641 = vector.broadcast %640 : vector<16x1xi1> to vector<16x128xi1>
    %642 = arith.select %641, %637, %603 : vector<16x128xi1>, vector<16x128xf32>
    %c0_202 = arith.constant 0 : index
    %c0_203 = arith.constant 0 : index
    %643 = vector.load %arg11[%c0_202, %c0_203] : memref<16x128xf32, #tpu.memory_space<vmem>>, vector<16x128xf32>
    tpu.vector_store %arg11[%c0_202, %c0_203], %642 {strides = array<i32>} : memref<16x128xf32, #tpu.memory_space<vmem>>, vector<16x128xf32>,
    %644 = arith.truncf %642 : vector<16x128xf32> to vector<16x128xbf16>
    %645 = arith.index_cast %c6_i32 : i32 to index
    %c0_204 = arith.constant 0 : index
    %c0_205 = arith.constant 0 : index
    %646 = vector.load %arg9[%645, %c0_204, %c0_205] : memref<8x16x256xbf16, #tpu.memory_space<vmem>>, vector<1x16x128xbf16>
    %647 = vector.shape_cast %646 : vector<1x16x128xbf16> to vector<16x128xbf16>
    %648 = vector.shape_cast %644 : vector<16x128xbf16> to vector<1x16x128xbf16>
    tpu.vector_store %arg9[%645, %c0_204, %c0_205], %648 {strides = array<i32>} : memref<8x16x256xbf16, #tpu.memory_space<vmem>>, vector<1x16x128xbf16>,
    %c0_206 = arith.constant 0 : index
    %c0_207 = arith.constant 0 : index
    %649 = vector.load %arg12[%c0_206, %c0_207] : memref<16x128xf32, #tpu.memory_space<vmem>>, vector<16x128xf32>
    %650 = arith.truncf %649 : vector<16x128xf32> to vector<16x128xbf16>
    %c0_208 = arith.constant 0 : index
    %c0_209 = arith.constant 0 : index
    %651 = vector.load %arg7[%c0_208, %c0_209] : memref<128x384xbf16, #tpu.memory_space<vmem>>, vector<128x384xbf16>
    %cst_210 = arith.constant dense<0.000000e+00> : vector<16x384xf32>
    %652 = tpu.matmul %650, %651, %cst_210 {dimension_numbers = #tpu.dot_dimension_numbers<[1], [0], [0], [1], [0, 0, 1, 1], [], []>} : vector<16x128xbf16>, vector<128x384xbf16>, vector<16x384xf32> -> vector<16x384xf32>
    %653 = arith.index_cast %602 : i32 to index
    %c384_211 = arith.constant 384 : index
    %654 = vector.load %arg10[%653, %c384_211] : memref<128x768xbf16, #tpu.memory_space<vmem>>, vector<16x384xbf16>
    %655 = arith.extf %654 : vector<16x384xbf16> to vector<16x384xf32>
    %656 = vector.extract_strided_slice %655 {offsets = [0, 0], sizes = [16, 128], strides = [1, 1]} : vector<16x384xf32> to vector<16x128xf32>
    %657 = vector.extract_strided_slice %652 {offsets = [0, 0], sizes = [16, 128], strides = [1, 1]} : vector<16x384xf32> to vector<16x128xf32>
    %658 = arith.addf %656, %657 : vector<16x128xf32>
    %659 = arith.negf %658 : vector<16x128xf32>
    %660 = math.exp %659 : vector<16x128xf32>
    %cst_212 = arith.constant 1.000000e+00 : f32
    %661 = vector.broadcast %cst_212 : f32 to vector<16x128xf32>
    %662 = arith.addf %661, %660 : vector<16x128xf32>
    %663 = arith.divf %661, %662 : vector<16x128xf32>
    %664 = vector.extract_strided_slice %655 {offsets = [0, 128], sizes = [16, 128], strides = [1, 1]} : vector<16x384xf32> to vector<16x128xf32>
    %665 = vector.extract_strided_slice %652 {offsets = [0, 128], sizes = [16, 128], strides = [1, 1]} : vector<16x384xf32> to vector<16x128xf32>
    %666 = arith.addf %664, %665 : vector<16x128xf32>
    %667 = arith.negf %666 : vector<16x128xf32>
    %668 = math.exp %667 : vector<16x128xf32>
    %cst_213 = arith.constant 1.000000e+00 : f32
    %669 = vector.broadcast %cst_213 : f32 to vector<16x128xf32>
    %670 = arith.addf %669, %668 : vector<16x128xf32>
    %671 = arith.divf %669, %670 : vector<16x128xf32>
    %672 = vector.extract_strided_slice %655 {offsets = [0, 256], sizes = [16, 128], strides = [1, 1]} : vector<16x384xf32> to vector<16x128xf32>
    %673 = vector.extract_strided_slice %652 {offsets = [0, 256], sizes = [16, 128], strides = [1, 1]} : vector<16x384xf32> to vector<16x128xf32>
    %674 = vector.broadcast %15 : vector<1x128xf32> to vector<16x128xf32>
    %675 = arith.addf %673, %674 : vector<16x128xf32>
    %676 = arith.mulf %663, %675 : vector<16x128xf32>
    %677 = arith.addf %672, %676 : vector<16x128xf32>
    %678 = math.tanh %677 : vector<16x128xf32>
    %cst_214 = arith.constant 1.000000e+00 : f32
    %679 = vector.broadcast %cst_214 : f32 to vector<16x128xf32>
    %680 = arith.subf %679, %671 : vector<16x128xf32>
    %681 = arith.mulf %680, %678 : vector<16x128xf32>
    %682 = arith.mulf %671, %649 : vector<16x128xf32>
    %683 = arith.addf %681, %682 : vector<16x128xf32>
    %684 = vector.broadcast %598 : i32 to vector<16x1xi32>
    %685 = arith.cmpi slt, %684, %13 : vector<16x1xi32>
    %686 = vector.shape_cast %685 : vector<16x1xi1> to vector<16x1xi1>
    %687 = vector.broadcast %686 : vector<16x1xi1> to vector<16x128xi1>
    %688 = arith.select %687, %683, %649 : vector<16x128xi1>, vector<16x128xf32>
    %c0_215 = arith.constant 0 : index
    %c0_216 = arith.constant 0 : index
    %689 = vector.load %arg12[%c0_215, %c0_216] : memref<16x128xf32, #tpu.memory_space<vmem>>, vector<16x128xf32>
    tpu.vector_store %arg12[%c0_215, %c0_216], %688 {strides = array<i32>} : memref<16x128xf32, #tpu.memory_space<vmem>>, vector<16x128xf32>,
    %690 = arith.truncf %688 : vector<16x128xf32> to vector<16x128xbf16>
    %691 = arith.index_cast %598 : i32 to index
    %c0_217 = arith.constant 0 : index
    %c128_218 = arith.constant 128 : index
    %692 = vector.load %arg9[%691, %c0_217, %c128_218] : memref<8x16x256xbf16, #tpu.memory_space<vmem>>, vector<1x16x128xbf16>
    %693 = vector.shape_cast %692 : vector<1x16x128xbf16> to vector<16x128xbf16>
    %694 = vector.shape_cast %690 : vector<16x128xbf16> to vector<1x16x128xbf16>
    tpu.vector_store %arg9[%691, %c0_217, %c128_218], %694 {strides = array<i32>} : memref<8x16x256xbf16, #tpu.memory_space<vmem>>, vector<1x16x128xbf16>,
    %c7_i32_219 = arith.constant 7 : i32
    %c7_i32_220 = arith.constant 7 : i32
    %695 = arith.subi %c7_i32_220, %c7_i32_219 : i32
    %c16_i32_221 = arith.constant 16 : i32
    %696 = arith.muli %c7_i32_219, %c16_i32_221 : i32
    %697 = tpu.assume_multiple %696, 16 : i32
    %c16_i32_222 = arith.constant 16 : i32
    %698 = arith.muli %695, %c16_i32_222 : i32
    %699 = tpu.assume_multiple %698, 16 : i32
    %c0_223 = arith.constant 0 : index
    %c0_224 = arith.constant 0 : index
    %700 = vector.load %arg11[%c0_223, %c0_224] : memref<16x128xf32, #tpu.memory_space<vmem>>, vector<16x128xf32>
    %701 = arith.truncf %700 : vector<16x128xf32> to vector<16x128xbf16>
    %c0_225 = arith.constant 0 : index
    %c0_226 = arith.constant 0 : index
    %702 = vector.load %arg5[%c0_225, %c0_226] : memref<128x384xbf16, #tpu.memory_space<vmem>>, vector<128x384xbf16>
    %cst_227 = arith.constant dense<0.000000e+00> : vector<16x384xf32>
    %703 = tpu.matmul %701, %702, %cst_227 {dimension_numbers = #tpu.dot_dimension_numbers<[1], [0], [0], [1], [0, 0, 1, 1], [], []>} : vector<16x128xbf16>, vector<128x384xbf16>, vector<16x384xf32> -> vector<16x384xf32>
    %704 = arith.index_cast %697 : i32 to index
    %c0_228 = arith.constant 0 : index
    %705 = vector.load %arg10[%704, %c0_228] : memref<128x768xbf16, #tpu.memory_space<vmem>>, vector<16x384xbf16>
    %706 = arith.extf %705 : vector<16x384xbf16> to vector<16x384xf32>
    %707 = vector.extract_strided_slice %706 {offsets = [0, 0], sizes = [16, 128], strides = [1, 1]} : vector<16x384xf32> to vector<16x128xf32>
    %708 = vector.extract_strided_slice %703 {offsets = [0, 0], sizes = [16, 128], strides = [1, 1]} : vector<16x384xf32> to vector<16x128xf32>
    %709 = arith.addf %707, %708 : vector<16x128xf32>
    %710 = arith.negf %709 : vector<16x128xf32>
    %711 = math.exp %710 : vector<16x128xf32>
    %cst_229 = arith.constant 1.000000e+00 : f32
    %712 = vector.broadcast %cst_229 : f32 to vector<16x128xf32>
    %713 = arith.addf %712, %711 : vector<16x128xf32>
    %714 = arith.divf %712, %713 : vector<16x128xf32>
    %715 = vector.extract_strided_slice %706 {offsets = [0, 128], sizes = [16, 128], strides = [1, 1]} : vector<16x384xf32> to vector<16x128xf32>
    %716 = vector.extract_strided_slice %703 {offsets = [0, 128], sizes = [16, 128], strides = [1, 1]} : vector<16x384xf32> to vector<16x128xf32>
    %717 = arith.addf %715, %716 : vector<16x128xf32>
    %718 = arith.negf %717 : vector<16x128xf32>
    %719 = math.exp %718 : vector<16x128xf32>
    %cst_230 = arith.constant 1.000000e+00 : f32
    %720 = vector.broadcast %cst_230 : f32 to vector<16x128xf32>
    %721 = arith.addf %720, %719 : vector<16x128xf32>
    %722 = arith.divf %720, %721 : vector<16x128xf32>
    %723 = vector.extract_strided_slice %706 {offsets = [0, 256], sizes = [16, 128], strides = [1, 1]} : vector<16x384xf32> to vector<16x128xf32>
    %724 = vector.extract_strided_slice %703 {offsets = [0, 256], sizes = [16, 128], strides = [1, 1]} : vector<16x384xf32> to vector<16x128xf32>
    %725 = vector.broadcast %14 : vector<1x128xf32> to vector<16x128xf32>
    %726 = arith.addf %724, %725 : vector<16x128xf32>
    %727 = arith.mulf %714, %726 : vector<16x128xf32>
    %728 = arith.addf %723, %727 : vector<16x128xf32>
    %729 = math.tanh %728 : vector<16x128xf32>
    %cst_231 = arith.constant 1.000000e+00 : f32
    %730 = vector.broadcast %cst_231 : f32 to vector<16x128xf32>
    %731 = arith.subf %730, %722 : vector<16x128xf32>
    %732 = arith.mulf %731, %729 : vector<16x128xf32>
    %733 = arith.mulf %722, %700 : vector<16x128xf32>
    %734 = arith.addf %732, %733 : vector<16x128xf32>
    %735 = vector.broadcast %c7_i32_219 : i32 to vector<16x1xi32>
    %736 = arith.cmpi slt, %735, %13 : vector<16x1xi32>
    %737 = vector.shape_cast %736 : vector<16x1xi1> to vector<16x1xi1>
    %738 = vector.broadcast %737 : vector<16x1xi1> to vector<16x128xi1>
    %739 = arith.select %738, %734, %700 : vector<16x128xi1>, vector<16x128xf32>
    %c0_232 = arith.constant 0 : index
    %c0_233 = arith.constant 0 : index
    %740 = vector.load %arg11[%c0_232, %c0_233] : memref<16x128xf32, #tpu.memory_space<vmem>>, vector<16x128xf32>
    tpu.vector_store %arg11[%c0_232, %c0_233], %739 {strides = array<i32>} : memref<16x128xf32, #tpu.memory_space<vmem>>, vector<16x128xf32>,
    %741 = arith.truncf %739 : vector<16x128xf32> to vector<16x128xbf16>
    %742 = arith.index_cast %c7_i32_219 : i32 to index
    %c0_234 = arith.constant 0 : index
    %c0_235 = arith.constant 0 : index
    %743 = vector.load %arg9[%742, %c0_234, %c0_235] : memref<8x16x256xbf16, #tpu.memory_space<vmem>>, vector<1x16x128xbf16>
    %744 = vector.shape_cast %743 : vector<1x16x128xbf16> to vector<16x128xbf16>
    %745 = vector.shape_cast %741 : vector<16x128xbf16> to vector<1x16x128xbf16>
    tpu.vector_store %arg9[%742, %c0_234, %c0_235], %745 {strides = array<i32>} : memref<8x16x256xbf16, #tpu.memory_space<vmem>>, vector<1x16x128xbf16>,
    %c0_236 = arith.constant 0 : index
    %c0_237 = arith.constant 0 : index
    %746 = vector.load %arg12[%c0_236, %c0_237] : memref<16x128xf32, #tpu.memory_space<vmem>>, vector<16x128xf32>
    %747 = arith.truncf %746 : vector<16x128xf32> to vector<16x128xbf16>
    %c0_238 = arith.constant 0 : index
    %c0_239 = arith.constant 0 : index
    %748 = vector.load %arg7[%c0_238, %c0_239] : memref<128x384xbf16, #tpu.memory_space<vmem>>, vector<128x384xbf16>
    %cst_240 = arith.constant dense<0.000000e+00> : vector<16x384xf32>
    %749 = tpu.matmul %747, %748, %cst_240 {dimension_numbers = #tpu.dot_dimension_numbers<[1], [0], [0], [1], [0, 0, 1, 1], [], []>} : vector<16x128xbf16>, vector<128x384xbf16>, vector<16x384xf32> -> vector<16x384xf32>
    %750 = arith.index_cast %699 : i32 to index
    %c384_241 = arith.constant 384 : index
    %751 = vector.load %arg10[%750, %c384_241] : memref<128x768xbf16, #tpu.memory_space<vmem>>, vector<16x384xbf16>
    %752 = arith.extf %751 : vector<16x384xbf16> to vector<16x384xf32>
    %753 = vector.extract_strided_slice %752 {offsets = [0, 0], sizes = [16, 128], strides = [1, 1]} : vector<16x384xf32> to vector<16x128xf32>
    %754 = vector.extract_strided_slice %749 {offsets = [0, 0], sizes = [16, 128], strides = [1, 1]} : vector<16x384xf32> to vector<16x128xf32>
    %755 = arith.addf %753, %754 : vector<16x128xf32>
    %756 = arith.negf %755 : vector<16x128xf32>
    %757 = math.exp %756 : vector<16x128xf32>
    %cst_242 = arith.constant 1.000000e+00 : f32
    %758 = vector.broadcast %cst_242 : f32 to vector<16x128xf32>
    %759 = arith.addf %758, %757 : vector<16x128xf32>
    %760 = arith.divf %758, %759 : vector<16x128xf32>
    %761 = vector.extract_strided_slice %752 {offsets = [0, 128], sizes = [16, 128], strides = [1, 1]} : vector<16x384xf32> to vector<16x128xf32>
    %762 = vector.extract_strided_slice %749 {offsets = [0, 128], sizes = [16, 128], strides = [1, 1]} : vector<16x384xf32> to vector<16x128xf32>
    %763 = arith.addf %761, %762 : vector<16x128xf32>
    %764 = arith.negf %763 : vector<16x128xf32>
    %765 = math.exp %764 : vector<16x128xf32>
    %cst_243 = arith.constant 1.000000e+00 : f32
    %766 = vector.broadcast %cst_243 : f32 to vector<16x128xf32>
    %767 = arith.addf %766, %765 : vector<16x128xf32>
    %768 = arith.divf %766, %767 : vector<16x128xf32>
    %769 = vector.extract_strided_slice %752 {offsets = [0, 256], sizes = [16, 128], strides = [1, 1]} : vector<16x384xf32> to vector<16x128xf32>
    %770 = vector.extract_strided_slice %749 {offsets = [0, 256], sizes = [16, 128], strides = [1, 1]} : vector<16x384xf32> to vector<16x128xf32>
    %771 = vector.broadcast %15 : vector<1x128xf32> to vector<16x128xf32>
    %772 = arith.addf %770, %771 : vector<16x128xf32>
    %773 = arith.mulf %760, %772 : vector<16x128xf32>
    %774 = arith.addf %769, %773 : vector<16x128xf32>
    %775 = math.tanh %774 : vector<16x128xf32>
    %cst_244 = arith.constant 1.000000e+00 : f32
    %776 = vector.broadcast %cst_244 : f32 to vector<16x128xf32>
    %777 = arith.subf %776, %768 : vector<16x128xf32>
    %778 = arith.mulf %777, %775 : vector<16x128xf32>
    %779 = arith.mulf %768, %746 : vector<16x128xf32>
    %780 = arith.addf %778, %779 : vector<16x128xf32>
    %781 = vector.broadcast %695 : i32 to vector<16x1xi32>
    %782 = arith.cmpi slt, %781, %13 : vector<16x1xi32>
    %783 = vector.shape_cast %782 : vector<16x1xi1> to vector<16x1xi1>
    %784 = vector.broadcast %783 : vector<16x1xi1> to vector<16x128xi1>
    %785 = arith.select %784, %780, %746 : vector<16x128xi1>, vector<16x128xf32>
    %c0_245 = arith.constant 0 : index
    %c0_246 = arith.constant 0 : index
    %786 = vector.load %arg12[%c0_245, %c0_246] : memref<16x128xf32, #tpu.memory_space<vmem>>, vector<16x128xf32>
    tpu.vector_store %arg12[%c0_245, %c0_246], %785 {strides = array<i32>} : memref<16x128xf32, #tpu.memory_space<vmem>>, vector<16x128xf32>,
    %787 = arith.truncf %785 : vector<16x128xf32> to vector<16x128xbf16>
    %788 = arith.index_cast %695 : i32 to index
    %c0_247 = arith.constant 0 : index
    %c128_248 = arith.constant 128 : index
    %789 = vector.load %arg9[%788, %c0_247, %c128_248] : memref<8x16x256xbf16, #tpu.memory_space<vmem>>, vector<1x16x128xbf16>
    %790 = vector.shape_cast %789 : vector<1x16x128xbf16> to vector<16x128xbf16>
    %791 = vector.shape_cast %787 : vector<16x128xbf16> to vector<1x16x128xbf16>
    tpu.vector_store %arg9[%788, %c0_247, %c128_248], %791 {strides = array<i32>} : memref<8x16x256xbf16, #tpu.memory_space<vmem>>, vector<1x16x128xbf16>,
    %c8_i32 = arith.constant 8 : i32
    return
  }
  func.func @transform_0(%arg0: i32) -> (i32, i32) {
    %c0_i32 = arith.constant 0 : i32
    %c0_i32_0 = arith.constant 0 : i32
    return %arg0, %c0_i32 : i32, i32
  }
  func.func @transform_1(%arg0: i32) -> (i32, i32, i32) {
    %c0_i32 = arith.constant 0 : i32
    %c0_i32_0 = arith.constant 0 : i32
    %c0_i32_1 = arith.constant 0 : i32
    return %c0_i32, %arg0, %c0_i32_0 : i32, i32, i32
  }
  func.func @transform_2(%arg0: i32) -> (i32, i32) {
    %c0_i32 = arith.constant 0 : i32
    %c0_i32_0 = arith.constant 0 : i32
    %c0_i32_1 = arith.constant 0 : i32
    return %c0_i32, %c0_i32_0 : i32, i32
  }
  func.func @transform_3(%arg0: i32) -> (i32, i32) {
    %c0_i32 = arith.constant 0 : i32
    %c0_i32_0 = arith.constant 0 : i32
    %c0_i32_1 = arith.constant 0 : i32
    return %c0_i32, %c0_i32_0 : i32, i32
  }
  func.func @transform_4(%arg0: i32) -> (i32, i32) {
    %c0_i32 = arith.constant 0 : i32
    %c0_i32_0 = arith.constant 0 : i32
    %c0_i32_1 = arith.constant 0 : i32
    return %c0_i32, %c0_i32_0 : i32, i32
  }
  func.func @transform_5(%arg0: i32) -> (i32, i32) {
    %c0_i32 = arith.constant 0 : i32
    %c0_i32_0 = arith.constant 0 : i32
    %c0_i32_1 = arith.constant 0 : i32
    return %c0_i32, %c0_i32_0 : i32, i32
  }
  func.func @transform_6(%arg0: i32) -> (i32, i32) {
    %c0_i32 = arith.constant 0 : i32
    %c0_i32_0 = arith.constant 0 : i32
    %c0_i32_1 = arith.constant 0 : i32
    return %c0_i32, %c0_i32_0 : i32, i32
  }
  func.func @transform_7(%arg0: i32) -> (i32, i32) {
    %c0_i32 = arith.constant 0 : i32
    %c0_i32_0 = arith.constant 0 : i32
    %c0_i32_1 = arith.constant 0 : i32
    return %c0_i32, %c0_i32_0 : i32, i32
  }
  func.func @transform_8(%arg0: i32) -> (i32, i32, i32) {
    %c0_i32 = arith.constant 0 : i32
    %c0_i32_0 = arith.constant 0 : i32
    %c0_i32_1 = arith.constant 0 : i32
    return %c0_i32, %arg0, %c0_i32_0 : i32, i32, i32
  }
}

</mosaic_0001>

<llo_original>
// kernel: _lambda_.3
$region0: #{_lambda_.3}
  #allocation0 [shape = 'u32[]', space=smem, size = 0x4, offset = 0x4, fixed_abs, tag = 'smem constant byte address 0x4 - core index']
  #allocation1 [shape = 'u32[72,128]{1,0:T(1,128)}', space=vmem, size = 0x9000, scoped, tag = 'internal scratch']
  #allocation2 [shape = 'bf16[128,384]{1,0:T(8,128)(2,1)}', space=vmem, size = 0x18000, scoped, tag = 'scratch operand']
  #allocation3 [shape = 'f32[16,128]{1,0:T(8,128)}', space=vmem, size = 0x2000, scoped, tag = 'scratch operand']
  %s0 = inlined_call_operand.vmem [shape: s32[16,1], index: 0, kind: input, shape index: {}]
  %s1 = inlined_call_operand.vmem [shape: bf16[8,16,256], index: 1, kind: input, shape index: {}]
  %s2 = inlined_call_operand.vmem [shape: bf16[256,384], index: 2, kind: input, shape index: {}]
  %s3 = inlined_call_operand.vmem [shape: f32[1,384], index: 3, kind: input, shape index: {}]
  %s4 = inlined_call_operand.vmem [shape: bf16[128,384], index: 4, kind: input, shape index: {}]
  %s5 = inlined_call_operand.vmem [shape: f32[1,128], index: 5, kind: input, shape index: {}]
  %s6 = inlined_call_operand.vmem [shape: f32[128,128], index: 6, kind: input, shape index: {}]
  %s7 = inlined_call_operand.vmem [shape: f32[1,128], index: 7, kind: input, shape index: {}]
  %s8 = inlined_call_operand.vmem [shape: f32[16,128], index: 8, kind: output, shape index: {}]
  %s9 = sld [smem:[#allocation0]]
  $region42: #{_lambda_.3} parent=0
    _
  %s11 = ssub.s32 1, %s9
  %s12 = scalar_select 0, %s11, %s9
  // Predicated region
  $region2: #{_lambda_.3} parent=0 // pred_check
    _
  $region3: #{_lambda_.3} parent=0 // pred_check_branch
    %14 = sbr.rel (0) target = $region5
  $region4: #{_lambda_.3} parent=0 // pred_region
    _
  $region5: #{_lambda_.3} parent=0 // pred_fallthru
    _
  // Predicated region
  $region6: #{_lambda_.3} parent=0 // pred_check
    _
  $region7: #{_lambda_.3} parent=0 // pred_check_branch
    %16 = sbr.rel (0) target = $region9
  $region8: #{_lambda_.3} parent=0 // pred_region
    _
  $region9: #{_lambda_.3} parent=0 // pred_fallthru
    _
  // Predicated region
  $region10: #{_lambda_.3} parent=0 // pred_check
    _
  $region11: #{_lambda_.3} parent=0 // pred_check_branch
    %18 = sbr.rel (0) target = $region13
  $region12: #{_lambda_.3} parent=0 // pred_region
    _
  $region13: #{_lambda_.3} parent=0 // pred_fallthru
    _
  // Predicated region
  $region14: #{_lambda_.3} parent=0 // pred_check
    _
  $region15: #{_lambda_.3} parent=0 // pred_check_branch
    %20 = sbr.rel (0) target = $region17
  $region16: #{_lambda_.3} parent=0 // pred_region
    _
  $region17: #{_lambda_.3} parent=0 // pred_fallthru
    _
  // Predicated region
  $region18: #{_lambda_.3} parent=0 // pred_check
    _
  $region19: #{_lambda_.3} parent=0 // pred_check_branch
    %22 = sbr.rel (0) target = $region21
  $region20: #{_lambda_.3} parent=0 // pred_region
    _
  $region21: #{_lambda_.3} parent=0 // pred_fallthru
    _
  // Predicated region
  $region22: #{_lambda_.3} parent=0 // pred_check
    _
  $region23: #{_lambda_.3} parent=0 // pred_check_branch
    %24 = sbr.rel (0) target = $region25
  $region24: #{_lambda_.3} parent=0 // pred_region
    _
  $region25: #{_lambda_.3} parent=0 // pred_fallthru
    _
  // Predicated region
  $region26: #{_lambda_.3} parent=0 // pred_check
    _
  $region27: #{_lambda_.3} parent=0 // pred_check_branch
    %26 = sbr.rel (0) target = $region29
  $region28: #{_lambda_.3} parent=0 // pred_region
    _
  $region29: #{_lambda_.3} parent=0 // pred_fallthru
    _
  // Predicated region
  $region30: #{_lambda_.3} parent=0 // pred_check
    _
  $region31: #{_lambda_.3} parent=0 // pred_check_branch
    %28 = sbr.rel (0) target = $region33
  $region32: #{_lambda_.3} parent=0 // pred_region
    _
  $region33: #{_lambda_.3} parent=0 // pred_fallthru
    _
  %v29 = vld [vmem:[%s1] sm:$0xff]
  %v30 = vld [vmem:[%s1 + $0x8] sm:$0xff]
  %v31 = vld [vmem:[%s1 + $0x10] sm:$0xff]
  %v32 = vld [vmem:[%s1 + $0x18] sm:$0xff]
  %v33 = vld [vmem:[%s1 + $0x20] sm:$0xff]
  %v34 = vld [vmem:[%s1 + $0x28] sm:$0xff]
  %v35 = vld [vmem:[%s1 + $0x30] sm:$0xff]
  %v36 = vld [vmem:[%s1 + $0x38] sm:$0xff]
  %v37 = vld [vmem:[%s1 + $0x40] sm:$0xff]
  %v38 = vld [vmem:[%s1 + $0x48] sm:$0xff]
  %v39 = vld [vmem:[%s1 + $0x50] sm:$0xff]
  %v40 = vld [vmem:[%s1 + $0x58] sm:$0xff]
  %v41 = vld [vmem:[%s1 + $0x60] sm:$0xff]
  %v42 = vld [vmem:[%s1 + $0x68] sm:$0xff]
  %v43 = vld [vmem:[%s1 + $0x70] sm:$0xff]
  %v44 = vld [vmem:[%s1 + $0x78] sm:$0xff]
  %v45 = vld [vmem:[%s2] sm:$0xff]
  %v46 = vld [vmem:[%s2 + $0x8] sm:$0xf]
  %v47 = vld [vmem:[%s2 + $0xc] sm:$0xff]
  %v48 = vld [vmem:[%s2 + $0x14] sm:$0xf]
  %v49 = vld [vmem:[%s2 + $0x18] sm:$0xff]
  %v50 = vld [vmem:[%s2 + $0x20] sm:$0xf]
  %v51 = vld [vmem:[%s2 + $0x24] sm:$0xff]
  %v52 = vld [vmem:[%s2 + $0x2c] sm:$0xf]
  %v53 = vld [vmem:[%s2 + $0x30] sm:$0xff]
  %v54 = vld [vmem:[%s2 + $0x38] sm:$0xf]
  %v55 = vld [vmem:[%s2 + $0x3c] sm:$0xff]
  %v56 = vld [vmem:[%s2 + $0x44] sm:$0xf]
  %v57 = vld [vmem:[%s2 + $0x48] sm:$0xff]
  %v58 = vld [vmem:[%s2 + $0x50] sm:$0xf]
  %v59 = vld [vmem:[%s2 + $0x54] sm:$0xff]
  %v60 = vld [vmem:[%s2 + $0x5c] sm:$0xf]
  %v61 = vld [vmem:[%s2 + $0x60] sm:$0xff]
  %v62 = vld [vmem:[%s2 + $0x68] sm:$0xf]
  %v63 = vld [vmem:[%s2 + $0x6c] sm:$0xff]
  %v64 = vld [vmem:[%s2 + $0x74] sm:$0xf]
  %v65 = vld [vmem:[%s2 + $0x78] sm:$0xff]
  %v66 = vld [vmem:[%s2 + $0x80] sm:$0xf]
  %v67 = vld [vmem:[%s2 + $0x84] sm:$0xff]
  %v68 = vld [vmem:[%s2 + $0x8c] sm:$0xf]
  %v69 = vld [vmem:[%s2 + $0x90] sm:$0xff]
  %v70 = vld [vmem:[%s2 + $0x98] sm:$0xf]
  %v71 = vld [vmem:[%s2 + $0x9c] sm:$0xff]
  %v72 = vld [vmem:[%s2 + $0xa4] sm:$0xf]
  %v73 = vld [vmem:[%s2 + $0xa8] sm:$0xff]
  %v74 = vld [vmem:[%s2 + $0xb0] sm:$0xf]
  %v75 = vld [vmem:[%s2 + $0xb4] sm:$0xff]
  %v76 = vld [vmem:[%s2 + $0xbc] sm:$0xf]
  %v77 = vld [vmem:[%s2 + $0xc0] sm:$0xff]
  %v78 = vld [vmem:[%s2 + $0xc8] sm:$0xf]
  %v79 = vld [vmem:[%s2 + $0xcc] sm:$0xff]
  %v80 = vld [vmem:[%s2 + $0xd4] sm:$0xf]
  %v81 = vld [vmem:[%s2 + $0xd8] sm:$0xff]
  %v82 = vld [vmem:[%s2 + $0xe0] sm:$0xf]
  %v83 = vld [vmem:[%s2 + $0xe4] sm:$0xff]
  %v84 = vld [vmem:[%s2 + $0xec] sm:$0xf]
  %v85 = vld [vmem:[%s2 + $0xf0] sm:$0xff]
  %v86 = vld [vmem:[%s2 + $0xf8] sm:$0xf]
  %v87 = vld [vmem:[%s2 + $0xfc] sm:$0xff]
  %v88 = vld [vmem:[%s2 + $0x104] sm:$0xf]
  %v89 = vld [vmem:[%s2 + $0x108] sm:$0xff]
  %v90 = vld [vmem:[%s2 + $0x110] sm:$0xf]
  %v91 = vld [vmem:[%s2 + $0x114] sm:$0xff]
  %v92 = vld [vmem:[%s2 + $0x11c] sm:$0xf]
  %v93 = vld [vmem:[%s2 + $0x120] sm:$0xff]
  %v94 = vld [vmem:[%s2 + $0x128] sm:$0xf]
  %v95 = vld [vmem:[%s2 + $0x12c] sm:$0xff]
  %v96 = vld [vmem:[%s2 + $0x134] sm:$0xf]
  %v97 = vld [vmem:[%s2 + $0x138] sm:$0xff]
  %v98 = vld [vmem:[%s2 + $0x140] sm:$0xf]
  %v99 = vld [vmem:[%s2 + $0x144] sm:$0xff]
  %v100 = vld [vmem:[%s2 + $0x14c] sm:$0xf]
  %v101 = vld [vmem:[%s2 + $0x150] sm:$0xff]
  %v102 = vld [vmem:[%s2 + $0x158] sm:$0xf]
  %v103 = vld [vmem:[%s2 + $0x15c] sm:$0xff]
  %v104 = vld [vmem:[%s2 + $0x164] sm:$0xf]
  %v105 = vld [vmem:[%s2 + $0x168] sm:$0xff]
  %v106 = vld [vmem:[%s2 + $0x170] sm:$0xf]
  %v107 = vld [vmem:[%s2 + $0x174] sm:$0xff]
  %v108 = vld [vmem:[%s2 + $0x17c] sm:$0xf]
  %v109 = vld [vmem:[%s3] sm:$0x7]
  %v111 = vperm.slane %v109, 0
  %v112 = vperm.slane %v109, 1
  %v113 = vperm.slane %v109, 2
  %v133 = vunpack.c.l.b16 %v29
  %v134 = vunpack.c.h.b16 %v29
  %v135 = vunpack.c.l.b16 %v30
  %v136 = vunpack.c.h.b16 %v30
  %v137 = vunpack.c.l.b16 %v31
  %v138 = vunpack.c.h.b16 %v31
  %v139 = vunpack.c.l.b16 %v32
  %v140 = vunpack.c.h.b16 %v32
  %v141 = vunpack.c.l.b16 %v33
  %v142 = vunpack.c.h.b16 %v33
  %v143 = vunpack.c.l.b16 %v34
  %v144 = vunpack.c.h.b16 %v34
  %v145 = vunpack.c.l.b16 %v35
  %v146 = vunpack.c.h.b16 %v35
  %v147 = vunpack.c.l.b16 %v36
  %v148 = vunpack.c.h.b16 %v36
  %v149 = vunpack.c.l.b16 %v37
  %v150 = vunpack.c.h.b16 %v37
  %v151 = vunpack.c.l.b16 %v38
  %v152 = vunpack.c.h.b16 %v38
  %v153 = vunpack.c.l.b16 %v39
  %v154 = vunpack.c.h.b16 %v39
  %v155 = vunpack.c.l.b16 %v40
  %v156 = vunpack.c.h.b16 %v40
  %v157 = vunpack.c.l.b16 %v41
  %v158 = vunpack.c.h.b16 %v41
  %v159 = vunpack.c.l.b16 %v42
  %v160 = vunpack.c.h.b16 %v42
  %v161 = vunpack.c.l.b16 %v43
  %v162 = vunpack.c.h.b16 %v43
  %v163 = vunpack.c.l.b16 %v44
  %v164 = vunpack.c.h.b16 %v44
  %v165 = vpack.c.b16 %v135, %v133
  %v166 = vpack.c.b16 %v136, %v134
  %v167 = vpack.c.b16 %v139, %v137
  %v168 = vpack.c.b16 %v140, %v138
  %v169 = vpack.c.b16 %v143, %v141
  %v170 = vpack.c.b16 %v144, %v142
  %v171 = vpack.c.b16 %v147, %v145
  %v172 = vpack.c.b16 %v148, %v146
  %v173 = vpack.c.b16 %v151, %v149
  %v174 = vpack.c.b16 %v152, %v150
  %v175 = vpack.c.b16 %v155, %v153
  %v176 = vpack.c.b16 %v156, %v154
  %v177 = vpack.c.b16 %v159, %v157
  %v178 = vpack.c.b16 %v160, %v158
  %v179 = vpack.c.b16 %v163, %v161
  %v180 = vpack.c.b16 %v164, %v162
  %v261 = vunpack.c.l.b16 %v45
  %v262 = vunpack.c.h.b16 %v45
  %v263 = vunpack.c.l.b16 %v46
  %v264 = vunpack.c.l.b16 %v47
  %v265 = vunpack.c.h.b16 %v47
  %v266 = vunpack.c.l.b16 %v48
  %v267 = vunpack.c.l.b16 %v49
  %v268 = vunpack.c.h.b16 %v49
  %v269 = vunpack.c.l.b16 %v50
  %v270 = vunpack.c.l.b16 %v51
  %v271 = vunpack.c.h.b16 %v51
  %v272 = vunpack.c.l.b16 %v52
  %v273 = vunpack.c.l.b16 %v53
  %v274 = vunpack.c.h.b16 %v53
  %v275 = vunpack.c.l.b16 %v54
  %v276 = vunpack.c.l.b16 %v55
  %v277 = vunpack.c.h.b16 %v55
  %v278 = vunpack.c.l.b16 %v56
  %v279 = vunpack.c.l.b16 %v57
  %v280 = vunpack.c.h.b16 %v57
  %v281 = vunpack.c.l.b16 %v58
  %v282 = vunpack.c.l.b16 %v59
  %v283 = vunpack.c.h.b16 %v59
  %v284 = vunpack.c.l.b16 %v60
  %v285 = vunpack.c.l.b16 %v61
  %v286 = vunpack.c.h.b16 %v61
  %v287 = vunpack.c.l.b16 %v62
  %v288 = vunpack.c.l.b16 %v63
  %v289 = vunpack.c.h.b16 %v63
  %v290 = vunpack.c.l.b16 %v64
  %v291 = vunpack.c.l.b16 %v65
  %v292 = vunpack.c.h.b16 %v65
  %v293 = vunpack.c.l.b16 %v66
  %v294 = vunpack.c.l.b16 %v67
  %v295 = vunpack.c.h.b16 %v67
  %v296 = vunpack.c.l.b16 %v68
  %v297 = vunpack.c.l.b16 %v69
  %v298 = vunpack.c.h.b16 %v69
  %v299 = vunpack.c.l.b16 %v70
  %v300 = vunpack.c.l.b16 %v71
  %v301 = vunpack.c.h.b16 %v71
  %v302 = vunpack.c.l.b16 %v72
  %v303 = vunpack.c.l.b16 %v73
  %v304 = vunpack.c.h.b16 %v73
  %v305 = vunpack.c.l.b16 %v74
  %v306 = vunpack.c.l.b16 %v75
  %v307 = vunpack.c.h.b16 %v75
  %v308 = vunpack.c.l.b16 %v76
  %v309 = vunpack.c.l.b16 %v77
  %v310 = vunpack.c.h.b16 %v77
  %v311 = vunpack.c.l.b16 %v78
  %v312 = vunpack.c.l.b16 %v79
  %v313 = vunpack.c.h.b16 %v79
  %v314 = vunpack.c.l.b16 %v80
  %v315 = vunpack.c.l.b16 %v81
  %v316 = vunpack.c.h.b16 %v81
  %v317 = vunpack.c.l.b16 %v82
  %v318 = vunpack.c.l.b16 %v83
  %v319 = vunpack.c.h.b16 %v83
  %v320 = vunpack.c.l.b16 %v84
  %v321 = vunpack.c.l.b16 %v85
  %v322 = vunpack.c.h.b16 %v85
  %v323 = vunpack.c.l.b16 %v86
  %v324 = vunpack.c.l.b16 %v87
  %v325 = vunpack.c.h.b16 %v87
  %v326 = vunpack.c.l.b16 %v88
  %v327 = vunpack.c.l.b16 %v89
  %v328 = vunpack.c.h.b16 %v89
  %v329 = vunpack.c.l.b16 %v90
  %v330 = vunpack.c.l.b16 %v91
  %v331 = vunpack.c.h.b16 %v91
  %v332 = vunpack.c.l.b16 %v92
  %v333 = vunpack.c.l.b16 %v93
  %v334 = vunpack.c.h.b16 %v93
  %v335 = vunpack.c.l.b16 %v94
  %v336 = vunpack.c.l.b16 %v95
  %v337 = vunpack.c.h.b16 %v95
  %v338 = vunpack.c.l.b16 %v96
  %v339 = vunpack.c.l.b16 %v97
  %v340 = vunpack.c.h.b16 %v97
  %v341 = vunpack.c.l.b16 %v98
  %v342 = vunpack.c.l.b16 %v99
  %v343 = vunpack.c.h.b16 %v99
  %v344 = vunpack.c.l.b16 %v100
  %v345 = vunpack.c.l.b16 %v101
  %v346 = vunpack.c.h.b16 %v101
  %v347 = vunpack.c.l.b16 %v102
  %v348 = vunpack.c.l.b16 %v103
  %v349 = vunpack.c.h.b16 %v103
  %v350 = vunpack.c.l.b16 %v104
  %v351 = vunpack.c.l.b16 %v105
  %v352 = vunpack.c.h.b16 %v105
  %v353 = vunpack.c.l.b16 %v106
  %v354 = vunpack.c.l.b16 %v107
  %v355 = vunpack.c.h.b16 %v107
  %v356 = vunpack.c.l.b16 %v108
  %v357 = vpack.c.b16 %v264, %v261
  %v358 = vpack.c.b16 %v265, %v262
  %v359 = vpack.c.b16 %v266, %v263
  %v360 = vpack.c.b16 %v270, %v267
  %v361 = vpack.c.b16 %v271, %v268
  %v362 = vpack.c.b16 %v272, %v269
  %v363 = vpack.c.b16 %v276, %v273
  %v364 = vpack.c.b16 %v277, %v274
  %v365 = vpack.c.b16 %v278, %v275
  %v366 = vpack.c.b16 %v282, %v279
  %v367 = vpack.c.b16 %v283, %v280
  %v368 = vpack.c.b16 %v284, %v281
  %v369 = vpack.c.b16 %v288, %v285
  %v370 = vpack.c.b16 %v289, %v286
  %v371 = vpack.c.b16 %v290, %v287
  %v372 = vpack.c.b16 %v294, %v291
  %v373 = vpack.c.b16 %v295, %v292
  %v374 = vpack.c.b16 %v296, %v293
  %v375 = vpack.c.b16 %v300, %v297
  %v376 = vpack.c.b16 %v301, %v298
  %v377 = vpack.c.b16 %v302, %v299
  %v378 = vpack.c.b16 %v306, %v303
  %v379 = vpack.c.b16 %v307, %v304
  %v380 = vpack.c.b16 %v308, %v305
  %v381 = vpack.c.b16 %v312, %v309
  %v382 = vpack.c.b16 %v313, %v310
  %v383 = vpack.c.b16 %v314, %v311
  %v384 = vpack.c.b16 %v318, %v315
  %v385 = vpack.c.b16 %v319, %v316
  %v386 = vpack.c.b16 %v320, %v317
  %v387 = vpack.c.b16 %v324, %v321
  %v388 = vpack.c.b16 %v325, %v322
  %v389 = vpack.c.b16 %v326, %v323
  %v390 = vpack.c.b16 %v330, %v327
  %v391 = vpack.c.b16 %v331, %v328
  %v392 = vpack.c.b16 %v332, %v329
  %v393 = vpack.c.b16 %v336, %v333
  %v394 = vpack.c.b16 %v337, %v334
  %v395 = vpack.c.b16 %v338, %v335
  %v396 = vpack.c.b16 %v342, %v339
  %v397 = vpack.c.b16 %v343, %v340
  %v398 = vpack.c.b16 %v344, %v341
  %v399 = vpack.c.b16 %v348, %v345
  %v400 = vpack.c.b16 %v349, %v346
  %v401 = vpack.c.b16 %v350, %v347
  %v402 = vpack.c.b16 %v354, %v351
  %v403 = vpack.c.b16 %v355, %v352
  %v404 = vpack.c.b16 %v356, %v353
  %453 = vmatpush.bf16.msra.mxu0 %v378
  %454 = vmatpush.bf16.msra.mxu0 %v375
  %455 = vmatpush.bf16.msra.mxu0 %v372
  %456 = vmatpush.bf16.msra.mxu0 %v369
  %457 = vmatpush.bf16.msra.mxu0 %v366
  %458 = vmatpush.bf16.msra.mxu0 %v363
  %459 = vmatpush.bf16.msra.mxu0 %v360
  %460 = vmatpush.bf16.msra.mxu0 %v357
  %461 = vmatmul.bf16.gmra.mxu0 %v165
  %v462 = vpop.f32.mrf.mxu0
  %v463 = vadd.f32 %v111, %v462
  %v464 = vpop.f32.mrf.mxu0
  %v465 = vadd.f32 %v111, %v464
  %466 = vmatmul.bf16.gmra.mxu0 %v167
  %v467 = vpop.f32.mrf.mxu0
  %v468 = vadd.f32 %v111, %v467
  %v469 = vpop.f32.mrf.mxu0
  %v470 = vadd.f32 %v111, %v469
  %471 = vmatmul.bf16.gmra.mxu0 %v169
  %v472 = vpop.f32.mrf.mxu0
  %v473 = vadd.f32 %v111, %v472
  %v474 = vpop.f32.mrf.mxu0
  %v475 = vadd.f32 %v111, %v474
  %476 = vmatmul.bf16.gmra.mxu0 %v171
  %v477 = vpop.f32.mrf.mxu0
  %v478 = vadd.f32 %v111, %v477
  %v479 = vpop.f32.mrf.mxu0
  %v480 = vadd.f32 %v111, %v479
  %481 = vmatmul.bf16.gmra.mxu0 %v173
  %v482 = vpop.f32.mrf.mxu0
  %v483 = vadd.f32 %v111, %v482
  %v484 = vpop.f32.mrf.mxu0
  %v485 = vadd.f32 %v111, %v484
  %486 = vmatmul.bf16.gmra.mxu0 %v175
  %v487 = vpop.f32.mrf.mxu0
  %v488 = vadd.f32 %v111, %v487
  %v489 = vpop.f32.mrf.mxu0
  %v490 = vadd.f32 %v111, %v489
  %491 = vmatmul.bf16.gmra.mxu0 %v177
  %v492 = vpop.f32.mrf.mxu0
  %v493 = vadd.f32 %v111, %v492
  %v494 = vpop.f32.mrf.mxu0
  %v495 = vadd.f32 %v111, %v494
  %496 = vmatmul.bf16.gmra.mxu0 %v179
  %v497 = vpop.f32.mrf.mxu0
  %v498 = vadd.f32 %v111, %v497
  %v499 = vpop.f32.mrf.mxu0
  %v500 = vadd.f32 %v111, %v499
  %501 = vdwg.mxu0
  %502 = vmatpush.bf16.msra.mxu0 %v402
  %503 = vmatpush.bf16.msra.mxu0 %v399
  %504 = vmatpush.bf16.msra.mxu0 %v396
  %505 = vmatpush.bf16.msra.mxu0 %v393
  %506 = vmatpush.bf16.msra.mxu0 %v390
  %507 = vmatpush.bf16.msra.mxu0 %v387
  %508 = vmatpush.bf16.msra.mxu0 %v384
  %509 = vmatpush.bf16.msra.mxu0 %v381
  %510 = vmatmul.bf16.gmra.mxu0 %v166
  %v511 = vpop.f32.mrf.mxu0
  %v512 = vadd.f32 %v463, %v511
  %v513 = vpop.f32.mrf.mxu0
  %v514 = vadd.f32 %v465, %v513
  %515 = vmatmul.bf16.gmra.mxu0 %v168
  %v516 = vpop.f32.mrf.mxu0
  %v517 = vadd.f32 %v468, %v516
  %v518 = vpop.f32.mrf.mxu0
  %v519 = vadd.f32 %v470, %v518
  %520 = vmatmul.bf16.gmra.mxu0 %v170
  %v521 = vpop.f32.mrf.mxu0
  %v522 = vadd.f32 %v473, %v521
  %v523 = vpop.f32.mrf.mxu0
  %v524 = vadd.f32 %v475, %v523
  %525 = vmatmul.bf16.gmra.mxu0 %v172
  %v526 = vpop.f32.mrf.mxu0
  %v527 = vadd.f32 %v478, %v526
  %v528 = vpop.f32.mrf.mxu0
  %v529 = vadd.f32 %v480, %v528
  %530 = vmatmul.bf16.gmra.mxu0 %v174
  %v531 = vpop.f32.mrf.mxu0
  %v532 = vadd.f32 %v483, %v531
  %v533 = vpop.f32.mrf.mxu0
  %v534 = vadd.f32 %v485, %v533
  %535 = vmatmul.bf16.gmra.mxu0 %v176
  %v536 = vpop.f32.mrf.mxu0
  %v537 = vadd.f32 %v488, %v536
  %v538 = vpop.f32.mrf.mxu0
  %v539 = vadd.f32 %v490, %v538
  %540 = vmatmul.bf16.gmra.mxu0 %v178
  %v541 = vpop.f32.mrf.mxu0
  %v542 = vadd.f32 %v493, %v541
  %v543 = vpop.f32.mrf.mxu0
  %v544 = vadd.f32 %v495, %v543
  %545 = vmatmul.bf16.gmra.mxu0 %v180
  %v546 = vpop.f32.mrf.mxu0
  %v547 = vadd.f32 %v498, %v546
  %v548 = vpop.f32.mrf.mxu0
  %v549 = vadd.f32 %v500, %v548
  %550 = vdwg.mxu0
  %551 = vmatpush.bf16.msra.mxu0 %v379
  %552 = vmatpush.bf16.msra.mxu0 %v376
  %553 = vmatpush.bf16.msra.mxu0 %v373
  %554 = vmatpush.bf16.msra.mxu0 %v370
  %555 = vmatpush.bf16.msra.mxu0 %v367
  %556 = vmatpush.bf16.msra.mxu0 %v364
  %557 = vmatpush.bf16.msra.mxu0 %v361
  %558 = vmatpush.bf16.msra.mxu0 %v358
  %559 = vmatmul.bf16.gmra.mxu0 %v165
  %v560 = vpop.f32.mrf.mxu0
  %v561 = vadd.f32 %v112, %v560
  %v562 = vpop.f32.mrf.mxu0
  %v563 = vadd.f32 %v112, %v562
  %564 = vmatmul.bf16.gmra.mxu0 %v167
  %v565 = vpop.f32.mrf.mxu0
  %v566 = vadd.f32 %v112, %v565
  %v567 = vpop.f32.mrf.mxu0
  %v568 = vadd.f32 %v112, %v567
  %569 = vmatmul.bf16.gmra.mxu0 %v169
  %v570 = vpop.f32.mrf.mxu0
  %v571 = vadd.f32 %v112, %v570
  %v572 = vpop.f32.mrf.mxu0
  %v573 = vadd.f32 %v112, %v572
  %574 = vmatmul.bf16.gmra.mxu0 %v171
  %v575 = vpop.f32.mrf.mxu0
  %v576 = vadd.f32 %v112, %v575
  %v577 = vpop.f32.mrf.mxu0
  %v578 = vadd.f32 %v112, %v577
  %579 = vmatmul.bf16.gmra.mxu0 %v173
  %v580 = vpop.f32.mrf.mxu0
  %v581 = vadd.f32 %v112, %v580
  %v582 = vpop.f32.mrf.mxu0
  %v583 = vadd.f32 %v112, %v582
  %584 = vmatmul.bf16.gmra.mxu0 %v175
  %v585 = vpop.f32.mrf.mxu0
  %v586 = vadd.f32 %v112, %v585
  %v587 = vpop.f32.mrf.mxu0
  %v588 = vadd.f32 %v112, %v587
  %589 = vmatmul.bf16.gmra.mxu0 %v177
  %v590 = vpop.f32.mrf.mxu0
  %v591 = vadd.f32 %v112, %v590
  %v592 = vpop.f32.mrf.mxu0
  %v593 = vadd.f32 %v112, %v592
  %594 = vmatmul.bf16.gmra.mxu0 %v179
  %v595 = vpop.f32.mrf.mxu0
  %v596 = vadd.f32 %v112, %v595
  %v597 = vpop.f32.mrf.mxu0
  %v598 = vadd.f32 %v112, %v597
  %599 = vdwg.mxu0
  %600 = vmatpush.bf16.msra.mxu0 %v403
  %601 = vmatpush.bf16.msra.mxu0 %v400
  %602 = vmatpush.bf16.msra.mxu0 %v397
  %603 = vmatpush.bf16.msra.mxu0 %v394
  %604 = vmatpush.bf16.msra.mxu0 %v391
  %605 = vmatpush.bf16.msra.mxu0 %v388
  %606 = vmatpush.bf16.msra.mxu0 %v385
  %607 = vmatpush.bf16.msra.mxu0 %v382
  %608 = vmatmul.bf16.gmra.mxu0 %v166
  %v609 = vpop.f32.mrf.mxu0
  %v610 = vadd.f32 %v561, %v609
  %v611 = vpop.f32.mrf.mxu0
  %v612 = vadd.f32 %v563, %v611
  %613 = vmatmul.bf16.gmra.mxu0 %v168
  %v614 = vpop.f32.mrf.mxu0
  %v615 = vadd.f32 %v566, %v614
  %v616 = vpop.f32.mrf.mxu0
  %v617 = vadd.f32 %v568, %v616
  %618 = vmatmul.bf16.gmra.mxu0 %v170
  %v619 = vpop.f32.mrf.mxu0
  %v620 = vadd.f32 %v571, %v619
  %v621 = vpop.f32.mrf.mxu0
  %v622 = vadd.f32 %v573, %v621
  %623 = vmatmul.bf16.gmra.mxu0 %v172
  %v624 = vpop.f32.mrf.mxu0
  %v625 = vadd.f32 %v576, %v624
  %v626 = vpop.f32.mrf.mxu0
  %v627 = vadd.f32 %v578, %v626
  %628 = vmatmul.bf16.gmra.mxu0 %v174
  %v629 = vpop.f32.mrf.mxu0
  %v630 = vadd.f32 %v581, %v629
  %v631 = vpop.f32.mrf.mxu0
  %v632 = vadd.f32 %v583, %v631
  %633 = vmatmul.bf16.gmra.mxu0 %v176
  %v634 = vpop.f32.mrf.mxu0
  %v635 = vadd.f32 %v586, %v634
  %v636 = vpop.f32.mrf.mxu0
  %v637 = vadd.f32 %v588, %v636
  %638 = vmatmul.bf16.gmra.mxu0 %v178
  %v639 = vpop.f32.mrf.mxu0
  %v640 = vadd.f32 %v591, %v639
  %v641 = vpop.f32.mrf.mxu0
  %v642 = vadd.f32 %v593, %v641
  %643 = vmatmul.bf16.gmra.mxu0 %v180
  %v644 = vpop.f32.mrf.mxu0
  %v645 = vadd.f32 %v596, %v644
  %v646 = vpop.f32.mrf.mxu0
  %v647 = vadd.f32 %v598, %v646
  %648 = vdwg.mxu0
  %649 = vmatpush.bf16.msra.mxu0 %v380
  %650 = vmatpush.bf16.msra.mxu0 %v377
  %651 = vmatpush.bf16.msra.mxu0 %v374
  %652 = vmatpush.bf16.msra.mxu0 %v371
  %653 = vmatpush.bf16.msra.mxu0 %v368
  %654 = vmatpush.bf16.msra.mxu0 %v365
  %655 = vmatpush.bf16.msra.mxu0 %v362
  %656 = vmatpush.bf16.msra.mxu0 %v359
  %657 = vmatmul.bf16.gmra.mxu0 %v165
  %v658 = vpop.f32.mrf.mxu0
  %v659 = vadd.f32 %v113, %v658
  %v660 = vpop.f32.mrf.mxu0
  %v661 = vadd.f32 %v113, %v660
  %662 = vmatmul.bf16.gmra.mxu0 %v167
  %v663 = vpop.f32.mrf.mxu0
  %v664 = vadd.f32 %v113, %v663
  %v665 = vpop.f32.mrf.mxu0
  %v666 = vadd.f32 %v113, %v665
  %667 = vmatmul.bf16.gmra.mxu0 %v169
  %v668 = vpop.f32.mrf.mxu0
  %v669 = vadd.f32 %v113, %v668
  %v670 = vpop.f32.mrf.mxu0
  %v671 = vadd.f32 %v113, %v670
  %672 = vmatmul.bf16.gmra.mxu0 %v171
  %v673 = vpop.f32.mrf.mxu0
  %v674 = vadd.f32 %v113, %v673
  %v675 = vpop.f32.mrf.mxu0
  %v676 = vadd.f32 %v113, %v675
  %677 = vmatmul.bf16.gmra.mxu0 %v173
  %v678 = vpop.f32.mrf.mxu0
  %v679 = vadd.f32 %v113, %v678
  %v680 = vpop.f32.mrf.mxu0
  %v681 = vadd.f32 %v113, %v680
  %682 = vmatmul.bf16.gmra.mxu0 %v175
  %v683 = vpop.f32.mrf.mxu0
  %v684 = vadd.f32 %v113, %v683
  %v685 = vpop.f32.mrf.mxu0
  %v686 = vadd.f32 %v113, %v685
  %687 = vmatmul.bf16.gmra.mxu0 %v177
  %v688 = vpop.f32.mrf.mxu0
  %v689 = vadd.f32 %v113, %v688
  %v690 = vpop.f32.mrf.mxu0
  %v691 = vadd.f32 %v113, %v690
  %692 = vmatmul.bf16.gmra.mxu0 %v179
  %v693 = vpop.f32.mrf.mxu0
  %v694 = vadd.f32 %v113, %v693
  %v695 = vpop.f32.mrf.mxu0
  %v696 = vadd.f32 %v113, %v695
  %697 = vdwg.mxu0
  %698 = vmatpush.bf16.msra.mxu0 %v404
  %699 = vmatpush.bf16.msra.mxu0 %v401
  %700 = vmatpush.bf16.msra.mxu0 %v398
  %701 = vmatpush.bf16.msra.mxu0 %v395
  %702 = vmatpush.bf16.msra.mxu0 %v392
  %703 = vmatpush.bf16.msra.mxu0 %v389
  %704 = vmatpush.bf16.msra.mxu0 %v386
  %705 = vmatpush.bf16.msra.mxu0 %v383
  %706 = vmatmul.bf16.gmra.mxu0 %v166
  %v707 = vpop.f32.mrf.mxu0
  %v708 = vadd.f32 %v659, %v707
  %v709 = vpop.f32.mrf.mxu0
  %v710 = vadd.f32 %v661, %v709
  %711 = vmatmul.bf16.gmra.mxu0 %v168
  %v712 = vpop.f32.mrf.mxu0
  %v713 = vadd.f32 %v664, %v712
  %v714 = vpop.f32.mrf.mxu0
  %v715 = vadd.f32 %v666, %v714
  %716 = vmatmul.bf16.gmra.mxu0 %v170
  %v717 = vpop.f32.mrf.mxu0
  %v718 = vadd.f32 %v669, %v717
  %v719 = vpop.f32.mrf.mxu0
  %v720 = vadd.f32 %v671, %v719
  %721 = vmatmul.bf16.gmra.mxu0 %v172
  %v722 = vpop.f32.mrf.mxu0
  %v723 = vadd.f32 %v674, %v722
  %v724 = vpop.f32.mrf.mxu0
  %v725 = vadd.f32 %v676, %v724
  %726 = vmatmul.bf16.gmra.mxu0 %v174
  %v727 = vpop.f32.mrf.mxu0
  %v728 = vadd.f32 %v679, %v727
  %v729 = vpop.f32.mrf.mxu0
  %v730 = vadd.f32 %v681, %v729
  %731 = vmatmul.bf16.gmra.mxu0 %v176
  %v732 = vpop.f32.mrf.mxu0
  %v733 = vadd.f32 %v684, %v732
  %v734 = vpop.f32.mrf.mxu0
  %v735 = vadd.f32 %v686, %v734
  %736 = vmatmul.bf16.gmra.mxu0 %v178
  %v737 = vpop.f32.mrf.mxu0
  %v738 = vadd.f32 %v689, %v737
  %v739 = vpop.f32.mrf.mxu0
  %v740 = vadd.f32 %v691, %v739
  %741 = vmatmul.bf16.gmra.mxu0 %v180
  %v742 = vpop.f32.mrf.mxu0
  %v743 = vadd.f32 %v694, %v742
  %v744 = vpop.f32.mrf.mxu0
  %v745 = vadd.f32 %v696, %v744
  %746 = vdwg.mxu0
  %v747 = vpack.c.bf16 %v610, %v512
  %v748 = vpack.c.bf16 %v708, %v708
  %v749 = vpack.c.bf16 %v612, %v514
  %v750 = vpack.c.bf16 %v710, %v710
  %v751 = vpack.c.bf16 %v615, %v517
  %v752 = vpack.c.bf16 %v713, %v713
  %v753 = vpack.c.bf16 %v617, %v519
  %v754 = vpack.c.bf16 %v715, %v715
  %v755 = vpack.c.bf16 %v620, %v522
  %v756 = vpack.c.bf16 %v718, %v718
  %v757 = vpack.c.bf16 %v622, %v524
  %v758 = vpack.c.bf16 %v720, %v720
  %v759 = vpack.c.bf16 %v625, %v527
  %v760 = vpack.c.bf16 %v723, %v723
  %v761 = vpack.c.bf16 %v627, %v529
  %v762 = vpack.c.bf16 %v725, %v725
  %v763 = vpack.c.bf16 %v630, %v532
  %v764 = vpack.c.bf16 %v728, %v728
  %v765 = vpack.c.bf16 %v632, %v534
  %v766 = vpack.c.bf16 %v730, %v730
  %v767 = vpack.c.bf16 %v635, %v537
  %v768 = vpack.c.bf16 %v733, %v733
  %v769 = vpack.c.bf16 %v637, %v539
  %v770 = vpack.c.bf16 %v735, %v735
  %v771 = vpack.c.bf16 %v640, %v542
  %v772 = vpack.c.bf16 %v738, %v738
  %v773 = vpack.c.bf16 %v642, %v544
  %v774 = vpack.c.bf16 %v740, %v740
  %v775 = vpack.c.bf16 %v645, %v547
  %v776 = vpack.c.bf16 %v743, %v743
  %v777 = vpack.c.bf16 %v647, %v549
  %v778 = vpack.c.bf16 %v745, %v745
  %779 = vst [vmem:[#allocation2] sm:$0xff] %v747
  %780 = vst [vmem:[#allocation2 + $0x8] sm:$0xf] %v748
  %781 = vst [vmem:[#allocation2 + $0xc] sm:$0xff] %v749
  %782 = vst [vmem:[#allocation2 + $0x14] sm:$0xf] %v750
  %783 = vst [vmem:[#allocation2 + $0x18] sm:$0xff] %v751
  %784 = vst [vmem:[#allocation2 + $0x20] sm:$0xf] %v752
  %785 = vst [vmem:[#allocation2 + $0x24] sm:$0xff] %v753
  %786 = vst [vmem:[#allocation2 + $0x2c] sm:$0xf] %v754
  %787 = vst [vmem:[#allocation2 + $0x30] sm:$0xff] %v755
  %788 = vst [vmem:[#allocation2 + $0x38] sm:$0xf] %v756
  %789 = vst [vmem:[#allocation2 + $0x3c] sm:$0xff] %v757
  %790 = vst [vmem:[#allocation2 + $0x44] sm:$0xf] %v758
  %791 = vst [vmem:[#allocation2 + $0x48] sm:$0xff] %v759
  %792 = vst [vmem:[#allocation2 + $0x50] sm:$0xf] %v760
  %793 = vst [vmem:[#allocation2 + $0x54] sm:$0xff] %v761
  %794 = vst [vmem:[#allocation2 + $0x5c] sm:$0xf] %v762
  %795 = vst [vmem:[#allocation2 + $0x60] sm:$0xff] %v763
  %796 = vst [vmem:[#allocation2 + $0x68] sm:$0xf] %v764
  %797 = vst [vmem:[#allocation2 + $0x6c] sm:$0xff] %v765
  %798 = vst [vmem:[#allocation2 + $0x74] sm:$0xf] %v766
  %799 = vst [vmem:[#allocation2 + $0x78] sm:$0xff] %v767
  %800 = vst [vmem:[#allocation2 + $0x80] sm:$0xf] %v768
  %801 = vst [vmem:[#allocation2 + $0x84] sm:$0xff] %v769
  %802 = vst [vmem:[#allocation2 + $0x8c] sm:$0xf] %v770
  %803 = vst [vmem:[#allocation2 + $0x90] sm:$0xff] %v771
  %804 = vst [vmem:[#allocation2 + $0x98] sm:$0xf] %v772
  %805 = vst [vmem:[#allocation2 + $0x9c] sm:$0xff] %v773
  %806 = vst [vmem:[#allocation2 + $0xa4] sm:$0xf] %v774
  %807 = vst [vmem:[#allocation2 + $0xa8] sm:$0xff] %v775
  %808 = vst [vmem:[#allocation2 + $0xb0] sm:$0xf] %v776
  %809 = vst [vmem:[#allocation2 + $0xb4] sm:$0xff] %v777
  %810 = vst [vmem:[#allocation2 + $0xbc] sm:$0xf] %v778
  %811 = vst [vmem:[#allocation3] sm:$0xff] 0.0
  %812 = vst [vmem:[#allocation3 + $0x8] sm:$0xff] 0.0
  %v813 = vld [vmem:[%s0] sm:$0xff]
  %v814 = vld [vmem:[%s0 + $0x8] sm:$0xff]
  %v815 = vld [vmem:[%s5] sm:$0x1]
  %s816 = smul.u32 14, 3
  %s817 = smul.addr %s816, 4
  %s818 = scalar_lea.vmem [#allocation2], %s817
  %v819 = vld [vmem:[%s818] sm:$0xff]
  %v820 = vld [vmem:[%s818 + $0x8] sm:$0xf]
  %v821 = vld [vmem:[%s818 + $0xc] sm:$0xff]
  %v822 = vld [vmem:[%s818 + $0x14] sm:$0xf]
  %v823 = vunpack.c.l.bf16 %v819
  %v824 = vunpack.c.h.bf16 %v819
  %v825 = vunpack.c.l.bf16 %v820
  %v826 = vunpack.c.l.bf16 %v821
  %v827 = vunpack.c.h.bf16 %v821
  %v828 = vunpack.c.l.bf16 %v822
  %v829 = vld [vmem:[#allocation3] sm:$0xff]
  %v830 = vld [vmem:[#allocation3 + $0x8] sm:$0xff]
  %v831 = vpack.c.bf16 %v830, %v829
  %v832 = vld [vmem:[%s4] sm:$0xff]
  %v833 = vld [vmem:[%s4 + $0x8] sm:$0xf]
  %v834 = vld [vmem:[%s4 + $0xc] sm:$0xff]
  %v835 = vld [vmem:[%s4 + $0x14] sm:$0xf]
  %v836 = vld [vmem:[%s4 + $0x18] sm:$0xff]
  %v837 = vld [vmem:[%s4 + $0x20] sm:$0xf]
  %v838 = vld [vmem:[%s4 + $0x24] sm:$0xff]
  %v839 = vld [vmem:[%s4 + $0x2c] sm:$0xf]
  %v840 = vld [vmem:[%s4 + $0x30] sm:$0xff]
  %v841 = vld [vmem:[%s4 + $0x38] sm:$0xf]
  %v842 = vld [vmem:[%s4 + $0x3c] sm:$0xff]
  %v843 = vld [vmem:[%s4 + $0x44] sm:$0xf]
  %v844 = vld [vmem:[%s4 + $0x48] sm:$0xff]
  %v845 = vld [vmem:[%s4 + $0x50] sm:$0xf]
  %v846 = vld [vmem:[%s4 + $0x54] sm:$0xff]
  %v847 = vld [vmem:[%s4 + $0x5c] sm:$0xf]
  %v848 = vld [vmem:[%s4 + $0x60] sm:$0xff]
  %v849 = vld [vmem:[%s4 + $0x68] sm:$0xf]
  %v850 = vld [vmem:[%s4 + $0x6c] sm:$0xff]
  %v851 = vld [vmem:[%s4 + $0x74] sm:$0xf]
  %v852 = vld [vmem:[%s4 + $0x78] sm:$0xff]
  %v853 = vld [vmem:[%s4 + $0x80] sm:$0xf]
  %v854 = vld [vmem:[%s4 + $0x84] sm:$0xff]
  %v855 = vld [vmem:[%s4 + $0x8c] sm:$0xf]
  %v856 = vld [vmem:[%s4 + $0x90] sm:$0xff]
  %v857 = vld [vmem:[%s4 + $0x98] sm:$0xf]
  %v858 = vld [vmem:[%s4 + $0x9c] sm:$0xff]
  %v859 = vld [vmem:[%s4 + $0xa4] sm:$0xf]
  %v860 = vld [vmem:[%s4 + $0xa8] sm:$0xff]
  %v861 = vld [vmem:[%s4 + $0xb0] sm:$0xf]
  %v862 = vld [vmem:[%s4 + $0xb4] sm:$0xff]
  %v863 = vld [vmem:[%s4 + $0xbc] sm:$0xf]
  %v896 = vunpack.c.l.b16 %v832
  %v897 = vunpack.c.h.b16 %v832
  %v898 = vunpack.c.l.b16 %v833
  %v899 = vunpack.c.l.b16 %v834
  %v900 = vunpack.c.h.b16 %v834
  %v901 = vunpack.c.l.b16 %v835
  %v902 = vunpack.c.l.b16 %v836
  %v903 = vunpack.c.h.b16 %v836
  %v904 = vunpack.c.l.b16 %v837
  %v905 = vunpack.c.l.b16 %v838
  %v906 = vunpack.c.h.b16 %v838
  %v907 = vunpack.c.l.b16 %v839
  %v908 = vunpack.c.l.b16 %v840
  %v909 = vunpack.c.h.b16 %v840
  %v910 = vunpack.c.l.b16 %v841
  %v911 = vunpack.c.l.b16 %v842
  %v912 = vunpack.c.h.b16 %v842
  %v913 = vunpack.c.l.b16 %v843
  %v914 = vunpack.c.l.b16 %v844
  %v915 = vunpack.c.h.b16 %v844
  %v916 = vunpack.c.l.b16 %v845
  %v917 = vunpack.c.l.b16 %v846
  %v918 = vunpack.c.h.b16 %v846
  %v919 = vunpack.c.l.b16 %v847
  %v920 = vunpack.c.l.b16 %v848
  %v921 = vunpack.c.h.b16 %v848
  %v922 = vunpack.c.l.b16 %v849
  %v923 = vunpack.c.l.b16 %v850
  %v924 = vunpack.c.h.b16 %v850
  %v925 = vunpack.c.l.b16 %v851
  %v926 = vunpack.c.l.b16 %v852
  %v927 = vunpack.c.h.b16 %v852
  %v928 = vunpack.c.l.b16 %v853
  %v929 = vunpack.c.l.b16 %v854
  %v930 = vunpack.c.h.b16 %v854
  %v931 = vunpack.c.l.b16 %v855
  %v932 = vunpack.c.l.b16 %v856
  %v933 = vunpack.c.h.b16 %v856
  %v934 = vunpack.c.l.b16 %v857
  %v935 = vunpack.c.l.b16 %v858
  %v936 = vunpack.c.h.b16 %v858
  %v937 = vunpack.c.l.b16 %v859
  %v938 = vunpack.c.l.b16 %v860
  %v939 = vunpack.c.h.b16 %v860
  %v940 = vunpack.c.l.b16 %v861
  %v941 = vunpack.c.l.b16 %v862
  %v942 = vunpack.c.h.b16 %v862
  %v943 = vunpack.c.l.b16 %v863
  %v944 = vpack.c.b16 %v899, %v896
  %v945 = vpack.c.b16 %v900, %v897
  %v946 = vpack.c.b16 %v901, %v898
  %v947 = vpack.c.b16 %v905, %v902
  %v948 = vpack.c.b16 %v906, %v903
  %v949 = vpack.c.b16 %v907, %v904
  %v950 = vpack.c.b16 %v911, %v908
  %v951 = vpack.c.b16 %v912, %v909
  %v952 = vpack.c.b16 %v913, %v910
  %v953 = vpack.c.b16 %v917, %v914
  %v954 = vpack.c.b16 %v918, %v915
  %v955 = vpack.c.b16 %v919, %v916
  %v956 = vpack.c.b16 %v923, %v920
  %v957 = vpack.c.b16 %v924, %v921
  %v958 = vpack.c.b16 %v925, %v922
  %v959 = vpack.c.b16 %v929, %v926
  %v960 = vpack.c.b16 %v930, %v927
  %v961 = vpack.c.b16 %v931, %v928
  %v962 = vpack.c.b16 %v935, %v932
  %v963 = vpack.c.b16 %v936, %v933
  %v964 = vpack.c.b16 %v937, %v934
  %v965 = vpack.c.b16 %v941, %v938
  %v966 = vpack.c.b16 %v942, %v939
  %v967 = vpack.c.b16 %v943, %v940
  %992 = vmatpush.bf16.msra.mxu0 %v965
  %993 = vmatpush.bf16.msra.mxu0 %v962
  %994 = vmatpush.bf16.msra.mxu0 %v959
  %995 = vmatpush.bf16.msra.mxu0 %v956
  %996 = vmatpush.bf16.msra.mxu0 %v953
  %997 = vmatpush.bf16.msra.mxu0 %v950
  %998 = vmatpush.bf16.msra.mxu0 %v947
  %999 = vmatpush.bf16.msra.mxu0 %v944
  %1000 = vmatmul.bf16.gmra.mxu0 %v831
  %v1001 = vpop.f32.mrf.mxu0
  %v1002 = vadd.f32 0.0, %v1001
  %v1003 = vpop.f32.mrf.mxu0
  %v1004 = vadd.f32 0.0, %v1003
  %1005 = vdwg.mxu0
  %1006 = vmatpush.bf16.msra.mxu0 %v966
  %1007 = vmatpush.bf16.msra.mxu0 %v963
  %1008 = vmatpush.bf16.msra.mxu0 %v960
  %1009 = vmatpush.bf16.msra.mxu0 %v957
  %1010 = vmatpush.bf16.msra.mxu0 %v954
  %1011 = vmatpush.bf16.msra.mxu0 %v951
  %1012 = vmatpush.bf16.msra.mxu0 %v948
  %1013 = vmatpush.bf16.msra.mxu0 %v945
  %1014 = vmatmul.bf16.gmra.mxu0 %v831
  %v1015 = vpop.f32.mrf.mxu0
  %v1016 = vadd.f32 0.0, %v1015
  %v1017 = vpop.f32.mrf.mxu0
  %v1018 = vadd.f32 0.0, %v1017
  %1019 = vdwg.mxu0
  %1020 = vmatpush.bf16.msra.mxu0 %v967
  %1021 = vmatpush.bf16.msra.mxu0 %v964
  %1022 = vmatpush.bf16.msra.mxu0 %v961
  %1023 = vmatpush.bf16.msra.mxu0 %v958
  %1024 = vmatpush.bf16.msra.mxu0 %v955
  %1025 = vmatpush.bf16.msra.mxu0 %v952
  %1026 = vmatpush.bf16.msra.mxu0 %v949
  %1027 = vmatpush.bf16.msra.mxu0 %v946
  %1028 = vmatmul.bf16.gmra.mxu0 %v831
  %v1029 = vpop.f32.mrf.mxu0
  %v1030 = vadd.f32 0.0, %v1029
  %v1031 = vpop.f32.mrf.mxu0
  %v1032 = vadd.f32 0.0, %v1031
  %1033 = vdwg.mxu0
  %v1034 = vadd.f32 %v823, %v1002
  %v1035 = vadd.f32 %v826, %v1004
  %v1036 = vxor.u32 %v1034, 2147483648
  %v1037 = vxor.u32 %v1035, 2147483648
  %v1038 = vmul.f32 %v1036, 1.442695
  %v1039 = vpow.pop %v1038
  %v1040 = vmul.f32 %v1037, 1.442695
  %v1041 = vpow.pop %v1040
  %v1042 = vadd.f32 %v1039, 1.0
  %v1043 = vadd.f32 %v1041, 1.0
  %v1044 = vrcp.pop %v1042
  %v1045 = vmul.f32 %v1042, %v1044
  %v1046 = vsub.f32 1.0, %v1045
  %v1047 = vmul.f32 %v1044, %v1046
  %v1048 = vadd.f32 %v1044, %v1047
  %vm1049 = vweird.f32 %v1042
  %vm1050 = vweird.f32 %v1044
  %vm1051 = vmor %vm1049, %vm1050
  %v1052 = vsel %vm1051, %v1044, %v1048
  %v1053 = vand.u32 2147483647, %v1042
  %vm1054 = vcmp.eq.f32.partialorder %v1053, 8.507059e+37
  %v1055 = vand.u32 %v1042, 2147483648
  %v1056 = vor.u32 1.1754944e-38, %v1055
  %v1057 = vsel %vm1054, %v1056, %v1052
  %v1058 = vmul.f32 1.0, %v1057
  %v1059 = vrcp.pop %v1043
  %v1060 = vmul.f32 %v1043, %v1059
  %v1061 = vsub.f32 1.0, %v1060
  %v1062 = vmul.f32 %v1059, %v1061
  %v1063 = vadd.f32 %v1059, %v1062
  %vm1064 = vweird.f32 %v1043
  %vm1065 = vweird.f32 %v1059
  %vm1066 = vmor %vm1064, %vm1065
  %v1067 = vsel %vm1066, %v1059, %v1063
  %v1068 = vand.u32 2147483647, %v1043
  %vm1069 = vcmp.eq.f32.partialorder %v1068, 8.507059e+37
  %v1070 = vand.u32 %v1043, 2147483648
  %v1071 = vor.u32 1.1754944e-38, %v1070
  %v1072 = vsel %vm1069, %v1071, %v1067
  %v1073 = vmul.f32 1.0, %v1072
  %v1074 = vadd.f32 %v824, %v1016
  %v1075 = vadd.f32 %v827, %v1018
  %v1076 = vxor.u32 %v1074, 2147483648
  %v1077 = vxor.u32 %v1075, 2147483648
  %v1078 = vmul.f32 %v1076, 1.442695
  %v1079 = vpow.pop %v1078
  %v1080 = vmul.f32 %v1077, 1.442695
  %v1081 = vpow.pop %v1080
  %v1082 = vadd.f32 %v1079, 1.0
  %v1083 = vadd.f32 %v1081, 1.0
  %v1084 = vrcp.pop %v1082
  %v1085 = vmul.f32 %v1082, %v1084
  %v1086 = vsub.f32 1.0, %v1085
  %v1087 = vmul.f32 %v1084, %v1086
  %v1088 = vadd.f32 %v1084, %v1087
  %vm1089 = vweird.f32 %v1082
  %vm1090 = vweird.f32 %v1084
  %vm1091 = vmor %vm1089, %vm1090
  %v1092 = vsel %vm1091, %v1084, %v1088
  %v1093 = vand.u32 2147483647, %v1082
  %vm1094 = vcmp.eq.f32.partialorder %v1093, 8.507059e+37
  %v1095 = vand.u32 %v1082, 2147483648
  %v1096 = vor.u32 1.1754944e-38, %v1095
  %v1097 = vsel %vm1094, %v1096, %v1092
  %v1098 = vmul.f32 1.0, %v1097
  %v1099 = vrcp.pop %v1083
  %v1100 = vmul.f32 %v1083, %v1099
  %v1101 = vsub.f32 1.0, %v1100
  %v1102 = vmul.f32 %v1099, %v1101
  %v1103 = vadd.f32 %v1099, %v1102
  %vm1104 = vweird.f32 %v1083
  %vm1105 = vweird.f32 %v1099
  %vm1106 = vmor %vm1104, %vm1105
  %v1107 = vsel %vm1106, %v1099, %v1103
  %v1108 = vand.u32 2147483647, %v1083
  %vm1109 = vcmp.eq.f32.partialorder %v1108, 8.507059e+37
  %v1110 = vand.u32 %v1083, 2147483648
  %v1111 = vor.u32 1.1754944e-38, %v1110
  %v1112 = vsel %vm1109, %v1111, %v1107
  %v1113 = vmul.f32 1.0, %v1112
  %v1115 = vperm.slane %v815, 0
  %v1117 = vadd.f32 %v1030, %v1115
  %v1118 = vadd.f32 %v1032, %v1115
  %v1119 = vmul.f32 %v1058, %v1117
  %v1120 = vmul.f32 %v1073, %v1118
  %v1121 = vadd.f32 %v825, %v1119
  %v1122 = vadd.f32 %v828, %v1120
  %v1123 = vtanh.pop %v1121
  %v1124 = vtanh.pop %v1122
  %v1125 = vsub.f32 1.0, %v1098
  %v1126 = vsub.f32 1.0, %v1113
  %v1127 = vmul.f32 %v1125, %v1123
  %v1128 = vmul.f32 %v1126, %v1124
  %v1129 = vmul.f32 %v1098, %v829
  %v1130 = vmul.f32 %v1113, %v830
  %v1131 = vadd.f32 %v1127, %v1129
  %v1132 = vadd.f32 %v1128, %v1130
  %vm1133 = vcmp.gt.s32.totalorder %v813, 7
  %vm1134 = vcmp.gt.s32.totalorder %v814, 7
  %v1135 = vsel %vm1133, 1, 0
  %v1136 = vsel %vm1134, 1, 0
  %1137 = vset.pattern.permute.xlu0 0
  %1138 = vperm.xlu0 %1137, %v1135
  %v1139 = vpop.permute.xlu0 %1138
  %1140 = vset.pattern.permute.xlu0 0
  %1141 = vperm.xlu0 %1140, %v1136
  %v1142 = vpop.permute.xlu0 %1141
  %vm1143 = vcmp.eq.s32.totalorder %v1139, 1
  %vm1144 = vcmp.eq.s32.totalorder %v1142, 1
  %v1145 = vsel %vm1143, %v1131, %v829
  %v1146 = vsel %vm1144, %v1132, %v830
  %1147 = vst [vmem:[#allocation3] sm:$0xff] %v1145
  %1148 = vst [vmem:[#allocation3 + $0x8] sm:$0xff] %v1146
  %s1149 = smul.u32 12, 3
  %s1150 = smul.addr %s1149, 4
  %s1151 = scalar_lea.vmem [#allocation2], %s1150
  %v1152 = vld [vmem:[%s1151] sm:$0xff]
  %v1153 = vld [vmem:[%s1151 + $0x8] sm:$0xf]
  %v1154 = vld [vmem:[%s1151 + $0xc] sm:$0xff]
  %v1155 = vld [vmem:[%s1151 + $0x14] sm:$0xf]
  %v1156 = vunpack.c.l.bf16 %v1152
  %v1157 = vunpack.c.h.bf16 %v1152
  %v1158 = vunpack.c.l.bf16 %v1153
  %v1159 = vunpack.c.l.bf16 %v1154
  %v1160 = vunpack.c.h.bf16 %v1154
  %v1161 = vunpack.c.l.bf16 %v1155
  %v1162 = vld [vmem:[#allocation3] sm:$0xff]
  %v1163 = vld [vmem:[#allocation3 + $0x8] sm:$0xff]
  %v1164 = vpack.c.bf16 %v1163, %v1162
  %v1165 = vld [vmem:[%s4] sm:$0xff]
  %v1166 = vld [vmem:[%s4 + $0x8] sm:$0xf]
  %v1167 = vld [vmem:[%s4 + $0xc] sm:$0xff]
  %v1168 = vld [vmem:[%s4 + $0x14] sm:$0xf]
  %v1169 = vld [vmem:[%s4 + $0x18] sm:$0xff]
  %v1170 = vld [vmem:[%s4 + $0x20] sm:$0xf]
  %v1171 = vld [vmem:[%s4 + $0x24] sm:$0xff]
  %v1172 = vld [vmem:[%s4 + $0x2c] sm:$0xf]
  %v1173 = vld [vmem:[%s4 + $0x30] sm:$0xff]
  %v1174 = vld [vmem:[%s4 + $0x38] sm:$0xf]
  %v1175 = vld [vmem:[%s4 + $0x3c] sm:$0xff]
  %v1176 = vld [vmem:[%s4 + $0x44] sm:$0xf]
  %v1177 = vld [vmem:[%s4 + $0x48] sm:$0xff]
  %v1178 = vld [vmem:[%s4 + $0x50] sm:$0xf]
  %v1179 = vld [vmem:[%s4 + $0x54] sm:$0xff]
  %v1180 = vld [vmem:[%s4 + $0x5c] sm:$0xf]
  %v1181 = vld [vmem:[%s4 + $0x60] sm:$0xff]
  %v1182 = vld [vmem:[%s4 + $0x68] sm:$0xf]
  %v1183 = vld [vmem:[%s4 + $0x6c] sm:$0xff]
  %v1184 = vld [vmem:[%s4 + $0x74] sm:$0xf]
  %v1185 = vld [vmem:[%s4 + $0x78] sm:$0xff]
  %v1186 = vld [vmem:[%s4 + $0x80] sm:$0xf]
  %v1187 = vld [vmem:[%s4 + $0x84] sm:$0xff]
  %v1188 = vld [vmem:[%s4 + $0x8c] sm:$0xf]
  %v1189 = vld [vmem:[%s4 + $0x90] sm:$0xff]
  %v1190 = vld [vmem:[%s4 + $0x98] sm:$0xf]
  %v1191 = vld [vmem:[%s4 + $0x9c] sm:$0xff]
  %v1192 = vld [vmem:[%s4 + $0xa4] sm:$0xf]
  %v1193 = vld [vmem:[%s4 + $0xa8] sm:$0xff]
  %v1194 = vld [vmem:[%s4 + $0xb0] sm:$0xf]
  %v1195 = vld [vmem:[%s4 + $0xb4] sm:$0xff]
  %v1196 = vld [vmem:[%s4 + $0xbc] sm:$0xf]
  %v1229 = vunpack.c.l.b16 %v1165
  %v1230 = vunpack.c.h.b16 %v1165
  %v1231 = vunpack.c.l.b16 %v1166
  %v1232 = vunpack.c.l.b16 %v1167
  %v1233 = vunpack.c.h.b16 %v1167
  %v1234 = vunpack.c.l.b16 %v1168
  %v1235 = vunpack.c.l.b16 %v1169
  %v1236 = vunpack.c.h.b16 %v1169
  %v1237 = vunpack.c.l.b16 %v1170
  %v1238 = vunpack.c.l.b16 %v1171
  %v1239 = vunpack.c.h.b16 %v1171
  %v1240 = vunpack.c.l.b16 %v1172
  %v1241 = vunpack.c.l.b16 %v1173
  %v1242 = vunpack.c.h.b16 %v1173
  %v1243 = vunpack.c.l.b16 %v1174
  %v1244 = vunpack.c.l.b16 %v1175
  %v1245 = vunpack.c.h.b16 %v1175
  %v1246 = vunpack.c.l.b16 %v1176
  %v1247 = vunpack.c.l.b16 %v1177
  %v1248 = vunpack.c.h.b16 %v1177
  %v1249 = vunpack.c.l.b16 %v1178
  %v1250 = vunpack.c.l.b16 %v1179
  %v1251 = vunpack.c.h.b16 %v1179
  %v1252 = vunpack.c.l.b16 %v1180
  %v1253 = vunpack.c.l.b16 %v1181
  %v1254 = vunpack.c.h.b16 %v1181
  %v1255 = vunpack.c.l.b16 %v1182
  %v1256 = vunpack.c.l.b16 %v1183
  %v1257 = vunpack.c.h.b16 %v1183
  %v1258 = vunpack.c.l.b16 %v1184
  %v1259 = vunpack.c.l.b16 %v1185
  %v1260 = vunpack.c.h.b16 %v1185
  %v1261 = vunpack.c.l.b16 %v1186
  %v1262 = vunpack.c.l.b16 %v1187
  %v1263 = vunpack.c.h.b16 %v1187
  %v1264 = vunpack.c.l.b16 %v1188
  %v1265 = vunpack.c.l.b16 %v1189
  %v1266 = vunpack.c.h.b16 %v1189
  %v1267 = vunpack.c.l.b16 %v1190
  %v1268 = vunpack.c.l.b16 %v1191
  %v1269 = vunpack.c.h.b16 %v1191
  %v1270 = vunpack.c.l.b16 %v1192
  %v1271 = vunpack.c.l.b16 %v1193
  %v1272 = vunpack.c.h.b16 %v1193
  %v1273 = vunpack.c.l.b16 %v1194
  %v1274 = vunpack.c.l.b16 %v1195
  %v1275 = vunpack.c.h.b16 %v1195
  %v1276 = vunpack.c.l.b16 %v1196
  %v1277 = vpack.c.b16 %v1232, %v1229
  %v1278 = vpack.c.b16 %v1233, %v1230
  %v1279 = vpack.c.b16 %v1234, %v1231
  %v1280 = vpack.c.b16 %v1238, %v1235
  %v1281 = vpack.c.b16 %v1239, %v1236
  %v1282 = vpack.c.b16 %v1240, %v1237
  %v1283 = vpack.c.b16 %v1244, %v1241
  %v1284 = vpack.c.b16 %v1245, %v1242
  %v1285 = vpack.c.b16 %v1246, %v1243
  %v1286 = vpack.c.b16 %v1250, %v1247
  %v1287 = vpack.c.b16 %v1251, %v1248
  %v1288 = vpack.c.b16 %v1252, %v1249
  %v1289 = vpack.c.b16 %v1256, %v1253
  %v1290 = vpack.c.b16 %v1257, %v1254
  %v1291 = vpack.c.b16 %v1258, %v1255
  %v1292 = vpack.c.b16 %v1262, %v1259
  %v1293 = vpack.c.b16 %v1263, %v1260
  %v1294 = vpack.c.b16 %v1264, %v1261
  %v1295 = vpack.c.b16 %v1268, %v1265
  %v1296 = vpack.c.b16 %v1269, %v1266
  %v1297 = vpack.c.b16 %v1270, %v1267
  %v1298 = vpack.c.b16 %v1274, %v1271
  %v1299 = vpack.c.b16 %v1275, %v1272
  %v1300 = vpack.c.b16 %v1276, %v1273
  %1325 = vmatpush.bf16.msra.mxu0 %v1298
  %1326 = vmatpush.bf16.msra.mxu0 %v1295
  %1327 = vmatpush.bf16.msra.mxu0 %v1292
  %1328 = vmatpush.bf16.msra.mxu0 %v1289
  %1329 = vmatpush.bf16.msra.mxu0 %v1286
  %1330 = vmatpush.bf16.msra.mxu0 %v1283
  %1331 = vmatpush.bf16.msra.mxu0 %v1280
  %1332 = vmatpush.bf16.msra.mxu0 %v1277
  %1333 = vmatmul.bf16.gmra.mxu0 %v1164
  %v1334 = vpop.f32.mrf.mxu0
  %v1335 = vadd.f32 0.0, %v1334
  %v1336 = vpop.f32.mrf.mxu0
  %v1337 = vadd.f32 0.0, %v1336
  %1338 = vdwg.mxu0
  %1339 = vmatpush.bf16.msra.mxu0 %v1299
  %1340 = vmatpush.bf16.msra.mxu0 %v1296
  %1341 = vmatpush.bf16.msra.mxu0 %v1293
  %1342 = vmatpush.bf16.msra.mxu0 %v1290
  %1343 = vmatpush.bf16.msra.mxu0 %v1287
  %1344 = vmatpush.bf16.msra.mxu0 %v1284
  %1345 = vmatpush.bf16.msra.mxu0 %v1281
  %1346 = vmatpush.bf16.msra.mxu0 %v1278
  %1347 = vmatmul.bf16.gmra.mxu0 %v1164
  %v1348 = vpop.f32.mrf.mxu0
  %v1349 = vadd.f32 0.0, %v1348
  %v1350 = vpop.f32.mrf.mxu0
  %v1351 = vadd.f32 0.0, %v1350
  %1352 = vdwg.mxu0
  %1353 = vmatpush.bf16.msra.mxu0 %v1300
  %1354 = vmatpush.bf16.msra.mxu0 %v1297
  %1355 = vmatpush.bf16.msra.mxu0 %v1294
  %1356 = vmatpush.bf16.msra.mxu0 %v1291
  %1357 = vmatpush.bf16.msra.mxu0 %v1288
  %1358 = vmatpush.bf16.msra.mxu0 %v1285
  %1359 = vmatpush.bf16.msra.mxu0 %v1282
  %1360 = vmatpush.bf16.msra.mxu0 %v1279
  %1361 = vmatmul.bf16.gmra.mxu0 %v1164
  %v1362 = vpop.f32.mrf.mxu0
  %v1363 = vadd.f32 0.0, %v1362
  %v1364 = vpop.f32.mrf.mxu0
  %v1365 = vadd.f32 0.0, %v1364
  %1366 = vdwg.mxu0
  %v1367 = vadd.f32 %v1156, %v1335
  %v1368 = vadd.f32 %v1159, %v1337
  %v1369 = vxor.u32 %v1367, 2147483648
  %v1370 = vxor.u32 %v1368, 2147483648
  %v1371 = vmul.f32 %v1369, 1.442695
  %v1372 = vpow.pop %v1371
  %v1373 = vmul.f32 %v1370, 1.442695
  %v1374 = vpow.pop %v1373
  %v1375 = vadd.f32 %v1372, 1.0
  %v1376 = vadd.f32 %v1374, 1.0
  %v1377 = vrcp.pop %v1375
  %v1378 = vmul.f32 %v1375, %v1377
  %v1379 = vsub.f32 1.0, %v1378
  %v1380 = vmul.f32 %v1377, %v1379
  %v1381 = vadd.f32 %v1377, %v1380
  %vm1382 = vweird.f32 %v1375
  %vm1383 = vweird.f32 %v1377
  %vm1384 = vmor %vm1382, %vm1383
  %v1385 = vsel %vm1384, %v1377, %v1381
  %v1386 = vand.u32 2147483647, %v1375
  %vm1387 = vcmp.eq.f32.partialorder %v1386, 8.507059e+37
  %v1388 = vand.u32 %v1375, 2147483648
  %v1389 = vor.u32 1.1754944e-38, %v1388
  %v1390 = vsel %vm1387, %v1389, %v1385
  %v1391 = vmul.f32 1.0, %v1390
  %v1392 = vrcp.pop %v1376
  %v1393 = vmul.f32 %v1376, %v1392
  %v1394 = vsub.f32 1.0, %v1393
  %v1395 = vmul.f32 %v1392, %v1394
  %v1396 = vadd.f32 %v1392, %v1395
  %vm1397 = vweird.f32 %v1376
  %vm1398 = vweird.f32 %v1392
  %vm1399 = vmor %vm1397, %vm1398
  %v1400 = vsel %vm1399, %v1392, %v1396
  %v1401 = vand.u32 2147483647, %v1376
  %vm1402 = vcmp.eq.f32.partialorder %v1401, 8.507059e+37
  %v1403 = vand.u32 %v1376, 2147483648
  %v1404 = vor.u32 1.1754944e-38, %v1403
  %v1405 = vsel %vm1402, %v1404, %v1400
  %v1406 = vmul.f32 1.0, %v1405
  %v1407 = vadd.f32 %v1157, %v1349
  %v1408 = vadd.f32 %v1160, %v1351
  %v1409 = vxor.u32 %v1407, 2147483648
  %v1410 = vxor.u32 %v1408, 2147483648
  %v1411 = vmul.f32 %v1409, 1.442695
  %v1412 = vpow.pop %v1411
  %v1413 = vmul.f32 %v1410, 1.442695
  %v1414 = vpow.pop %v1413
  %v1415 = vadd.f32 %v1412, 1.0
  %v1416 = vadd.f32 %v1414, 1.0
  %v1417 = vrcp.pop %v1415
  %v1418 = vmul.f32 %v1415, %v1417
  %v1419 = vsub.f32 1.0, %v1418
  %v1420 = vmul.f32 %v1417, %v1419
  %v1421 = vadd.f32 %v1417, %v1420
  %vm1422 = vweird.f32 %v1415
  %vm1423 = vweird.f32 %v1417
  %vm1424 = vmor %vm1422, %vm1423
  %v1425 = vsel %vm1424, %v1417, %v1421
  %v1426 = vand.u32 2147483647, %v1415
  %vm1427 = vcmp.eq.f32.partialorder %v1426, 8.507059e+37
  %v1428 = vand.u32 %v1415, 2147483648
  %v1429 = vor.u32 1.1754944e-38, %v1428
  %v1430 = vsel %vm1427, %v1429, %v1425
  %v1431 = vmul.f32 1.0, %v1430
  %v1432 = vrcp.pop %v1416
  %v1433 = vmul.f32 %v1416, %v1432
  %v1434 = vsub.f32 1.0, %v1433
  %v1435 = vmul.f32 %v1432, %v1434
  %v1436 = vadd.f32 %v1432, %v1435
  %vm1437 = vweird.f32 %v1416
  %vm1438 = vweird.f32 %v1432
  %vm1439 = vmor %vm1437, %vm1438
  %v1440 = vsel %vm1439, %v1432, %v1436
  %v1441 = vand.u32 2147483647, %v1416
  %vm1442 = vcmp.eq.f32.partialorder %v1441, 8.507059e+37
  %v1443 = vand.u32 %v1416, 2147483648
  %v1444 = vor.u32 1.1754944e-38, %v1443
  %v1445 = vsel %vm1442, %v1444, %v1440
  %v1446 = vmul.f32 1.0, %v1445
  %v1447 = vadd.f32 %v1363, %v1115
  %v1448 = vadd.f32 %v1365, %v1115
  %v1449 = vmul.f32 %v1391, %v1447
  %v1450 = vmul.f32 %v1406, %v1448
  %v1451 = vadd.f32 %v1158, %v1449
  %v1452 = vadd.f32 %v1161, %v1450
  %v1453 = vtanh.pop %v1451
  %v1454 = vtanh.pop %v1452
  %v1455 = vsub.f32 1.0, %v1431
  %v1456 = vsub.f32 1.0, %v1446
  %v1457 = vmul.f32 %v1455, %v1453
  %v1458 = vmul.f32 %v1456, %v1454
  %v1459 = vmul.f32 %v1431, %v1162
  %v1460 = vmul.f32 %v1446, %v1163
  %v1461 = vadd.f32 %v1457, %v1459
  %v1462 = vadd.f32 %v1458, %v1460
  %vm1463 = vcmp.gt.s32.totalorder %v813, 6
  %vm1464 = vcmp.gt.s32.totalorder %v814, 6
  %v1465 = vsel %vm1463, 1, 0
  %v1466 = vsel %vm1464, 1, 0
  %1467 = vset.pattern.permute.xlu0 0
  %1468 = vperm.xlu0 %1467, %v1465
  %v1469 = vpop.permute.xlu0 %1468
  %1470 = vset.pattern.permute.xlu0 0
  %1471 = vperm.xlu0 %1470, %v1466
  %v1472 = vpop.permute.xlu0 %1471
  %vm1473 = vcmp.eq.s32.totalorder %v1469, 1
  %vm1474 = vcmp.eq.s32.totalorder %v1472, 1
  %v1475 = vsel %vm1473, %v1461, %v1162
  %v1476 = vsel %vm1474, %v1462, %v1163
  %1477 = vst [vmem:[#allocation3] sm:$0xff] %v1475
  %1478 = vst [vmem:[#allocation3 + $0x8] sm:$0xff] %v1476
  %s1479 = smul.u32 10, 3
  %s1480 = smul.addr %s1479, 4
  %s1481 = scalar_lea.vmem [#allocation2], %s1480
  %v1482 = vld [vmem:[%s1481] sm:$0xff]
  %v1483 = vld [vmem:[%s1481 + $0x8] sm:$0xf]
  %v1484 = vld [vmem:[%s1481 + $0xc] sm:$0xff]
  %v1485 = vld [vmem:[%s1481 + $0x14] sm:$0xf]
  %v1486 = vunpack.c.l.bf16 %v1482
  %v1487 = vunpack.c.h.bf16 %v1482
  %v1488 = vunpack.c.l.bf16 %v1483
  %v1489 = vunpack.c.l.bf16 %v1484
  %v1490 = vunpack.c.h.bf16 %v1484
  %v1491 = vunpack.c.l.bf16 %v1485
  %v1492 = vld [vmem:[#allocation3] sm:$0xff]
  %v1493 = vld [vmem:[#allocation3 + $0x8] sm:$0xff]
  %v1494 = vpack.c.bf16 %v1493, %v1492
  %v1495 = vld [vmem:[%s4] sm:$0xff]
  %v1496 = vld [vmem:[%s4 + $0x8] sm:$0xf]
  %v1497 = vld [vmem:[%s4 + $0xc] sm:$0xff]
  %v1498 = vld [vmem:[%s4 + $0x14] sm:$0xf]
  %v1499 = vld [vmem:[%s4 + $0x18] sm:$0xff]
  %v1500 = vld [vmem:[%s4 + $0x20] sm:$0xf]
  %v1501 = vld [vmem:[%s4 + $0x24] sm:$0xff]
  %v1502 = vld [vmem:[%s4 + $0x2c] sm:$0xf]
  %v1503 = vld [vmem:[%s4 + $0x30] sm:$0xff]
  %v1504 = vld [vmem:[%s4 + $0x38] sm:$0xf]
  %v1505 = vld [vmem:[%s4 + $0x3c] sm:$0xff]
  %v1506 = vld [vmem:[%s4 + $0x44] sm:$0xf]
  %v1507 = vld [vmem:[%s4 + $0x48] sm:$0xff]
  %v1508 = vld [vmem:[%s4 + $0x50] sm:$0xf]
  %v1509 = vld [vmem:[%s4 + $0x54] sm:$0xff]
  %v1510 = vld [vmem:[%s4 + $0x5c] sm:$0xf]
  %v1511 = vld [vmem:[%s4 + $0x60] sm:$0xff]
  %v1512 = vld [vmem:[%s4 + $0x68] sm:$0xf]
  %v1513 = vld [vmem:[%s4 + $0x6c] sm:$0xff]
  %v1514 = vld [vmem:[%s4 + $0x74] sm:$0xf]
  %v1515 = vld [vmem:[%s4 + $0x78] sm:$0xff]
  %v1516 = vld [vmem:[%s4 + $0x80] sm:$0xf]
  %v1517 = vld [vmem:[%s4 + $0x84] sm:$0xff]
  %v1518 = vld [vmem:[%s4 + $0x8c] sm:$0xf]
  %v1519 = vld [vmem:[%s4 + $0x90] sm:$0xff]
  %v1520 = vld [vmem:[%s4 + $0x98] sm:$0xf]
  %v1521 = vld [vmem:[%s4 + $0x9c] sm:$0xff]
  %v1522 = vld [vmem:[%s4 + $0xa4] sm:$0xf]
  %v1523 = vld [vmem:[%s4 + $0xa8] sm:$0xff]
  %v1524 = vld [vmem:[%s4 + $0xb0] sm:$0xf]
  %v1525 = vld [vmem:[%s4 + $0xb4] sm:$0xff]
  %v1526 = vld [vmem:[%s4 + $0xbc] sm:$0xf]
  %v1559 = vunpack.c.l.b16 %v1495
  %v1560 = vunpack.c.h.b16 %v1495
  %v1561 = vunpack.c.l.b16 %v1496
  %v1562 = vunpack.c.l.b16 %v1497
  %v1563 = vunpack.c.h.b16 %v1497
  %v1564 = vunpack.c.l.b16 %v1498
  %v1565 = vunpack.c.l.b16 %v1499
  %v1566 = vunpack.c.h.b16 %v1499
  %v1567 = vunpack.c.l.b16 %v1500
  %v1568 = vunpack.c.l.b16 %v1501
  %v1569 = vunpack.c.h.b16 %v1501
  %v1570 = vunpack.c.l.b16 %v1502
  %v1571 = vunpack.c.l.b16 %v1503
  %v1572 = vunpack.c.h.b16 %v1503
  %v1573 = vunpack.c.l.b16 %v1504
  %v1574 = vunpack.c.l.b16 %v1505
  %v1575 = vunpack.c.h.b16 %v1505
  %v1576 = vunpack.c.l.b16 %v1506
  %v1577 = vunpack.c.l.b16 %v1507
  %v1578 = vunpack.c.h.b16 %v1507
  %v1579 = vunpack.c.l.b16 %v1508
  %v1580 = vunpack.c.l.b16 %v1509
  %v1581 = vunpack.c.h.b16 %v1509
  %v1582 = vunpack.c.l.b16 %v1510
  %v1583 = vunpack.c.l.b16 %v1511
  %v1584 = vunpack.c.h.b16 %v1511
  %v1585 = vunpack.c.l.b16 %v1512
  %v1586 = vunpack.c.l.b16 %v1513
  %v1587 = vunpack.c.h.b16 %v1513
  %v1588 = vunpack.c.l.b16 %v1514
  %v1589 = vunpack.c.l.b16 %v1515
  %v1590 = vunpack.c.h.b16 %v1515
  %v1591 = vunpack.c.l.b16 %v1516
  %v1592 = vunpack.c.l.b16 %v1517
  %v1593 = vunpack.c.h.b16 %v1517
  %v1594 = vunpack.c.l.b16 %v1518
  %v1595 = vunpack.c.l.b16 %v1519
  %v1596 = vunpack.c.h.b16 %v1519
  %v1597 = vunpack.c.l.b16 %v1520
  %v1598 = vunpack.c.l.b16 %v1521
  %v1599 = vunpack.c.h.b16 %v1521
  %v1600 = vunpack.c.l.b16 %v1522
  %v1601 = vunpack.c.l.b16 %v1523
  %v1602 = vunpack.c.h.b16 %v1523
  %v1603 = vunpack.c.l.b16 %v1524
  %v1604 = vunpack.c.l.b16 %v1525
  %v1605 = vunpack.c.h.b16 %v1525
  %v1606 = vunpack.c.l.b16 %v1526
  %v1607 = vpack.c.b16 %v1562, %v1559
  %v1608 = vpack.c.b16 %v1563, %v1560
  %v1609 = vpack.c.b16 %v1564, %v1561
  %v1610 = vpack.c.b16 %v1568, %v1565
  %v1611 = vpack.c.b16 %v1569, %v1566
  %v1612 = vpack.c.b16 %v1570, %v1567
  %v1613 = vpack.c.b16 %v1574, %v1571
  %v1614 = vpack.c.b16 %v1575, %v1572
  %v1615 = vpack.c.b16 %v1576, %v1573
  %v1616 = vpack.c.b16 %v1580, %v1577
  %v1617 = vpack.c.b16 %v1581, %v1578
  %v1618 = vpack.c.b16 %v1582, %v1579
  %v1619 = vpack.c.b16 %v1586, %v1583
  %v1620 = vpack.c.b16 %v1587, %v1584
  %v1621 = vpack.c.b16 %v1588, %v1585
  %v1622 = vpack.c.b16 %v1592, %v1589
  %v1623 = vpack.c.b16 %v1593, %v1590
  %v1624 = vpack.c.b16 %v1594, %v1591
  %v1625 = vpack.c.b16 %v1598, %v1595
  %v1626 = vpack.c.b16 %v1599, %v1596
  %v1627 = vpack.c.b16 %v1600, %v1597
  %v1628 = vpack.c.b16 %v1604, %v1601
  %v1629 = vpack.c.b16 %v1605, %v1602
  %v1630 = vpack.c.b16 %v1606, %v1603
  %1655 = vmatpush.bf16.msra.mxu0 %v1628
  %1656 = vmatpush.bf16.msra.mxu0 %v1625
  %1657 = vmatpush.bf16.msra.mxu0 %v1622
  %1658 = vmatpush.bf16.msra.mxu0 %v1619
  %1659 = vmatpush.bf16.msra.mxu0 %v1616
  %1660 = vmatpush.bf16.msra.mxu0 %v1613
  %1661 = vmatpush.bf16.msra.mxu0 %v1610
  %1662 = vmatpush.bf16.msra.mxu0 %v1607
  %1663 = vmatmul.bf16.gmra.mxu0 %v1494
  %v1664 = vpop.f32.mrf.mxu0
  %v1665 = vadd.f32 0.0, %v1664
  %v1666 = vpop.f32.mrf.mxu0
  %v1667 = vadd.f32 0.0, %v1666
  %1668 = vdwg.mxu0
  %1669 = vmatpush.bf16.msra.mxu0 %v1629
  %1670 = vmatpush.bf16.msra.mxu0 %v1626
  %1671 = vmatpush.bf16.msra.mxu0 %v1623
  %1672 = vmatpush.bf16.msra.mxu0 %v1620
  %1673 = vmatpush.bf16.msra.mxu0 %v1617
  %1674 = vmatpush.bf16.msra.mxu0 %v1614
  %1675 = vmatpush.bf16.msra.mxu0 %v1611
  %1676 = vmatpush.bf16.msra.mxu0 %v1608
  %1677 = vmatmul.bf16.gmra.mxu0 %v1494
  %v1678 = vpop.f32.mrf.mxu0
  %v1679 = vadd.f32 0.0, %v1678
  %v1680 = vpop.f32.mrf.mxu0
  %v1681 = vadd.f32 0.0, %v1680
  %1682 = vdwg.mxu0
  %1683 = vmatpush.bf16.msra.mxu0 %v1630
  %1684 = vmatpush.bf16.msra.mxu0 %v1627
  %1685 = vmatpush.bf16.msra.mxu0 %v1624
  %1686 = vmatpush.bf16.msra.mxu0 %v1621
  %1687 = vmatpush.bf16.msra.mxu0 %v1618
  %1688 = vmatpush.bf16.msra.mxu0 %v1615
  %1689 = vmatpush.bf16.msra.mxu0 %v1612
  %1690 = vmatpush.bf16.msra.mxu0 %v1609
  %1691 = vmatmul.bf16.gmra.mxu0 %v1494
  %v1692 = vpop.f32.mrf.mxu0
  %v1693 = vadd.f32 0.0, %v1692
  %v1694 = vpop.f32.mrf.mxu0
  %v1695 = vadd.f32 0.0, %v1694
  %1696 = vdwg.mxu0
  %v1697 = vadd.f32 %v1486, %v1665
  %v1698 = vadd.f32 %v1489, %v1667
  %v1699 = vxor.u32 %v1697, 2147483648
  %v1700 = vxor.u32 %v1698, 2147483648
  %v1701 = vmul.f32 %v1699, 1.442695
  %v1702 = vpow.pop %v1701
  %v1703 = vmul.f32 %v1700, 1.442695
  %v1704 = vpow.pop %v1703
  %v1705 = vadd.f32 %v1702, 1.0
  %v1706 = vadd.f32 %v1704, 1.0
  %v1707 = vrcp.pop %v1705
  %v1708 = vmul.f32 %v1705, %v1707
  %v1709 = vsub.f32 1.0, %v1708
  %v1710 = vmul.f32 %v1707, %v1709
  %v1711 = vadd.f32 %v1707, %v1710
  %vm1712 = vweird.f32 %v1705
  %vm1713 = vweird.f32 %v1707
  %vm1714 = vmor %vm1712, %vm1713
  %v1715 = vsel %vm1714, %v1707, %v1711
  %v1716 = vand.u32 2147483647, %v1705
  %vm1717 = vcmp.eq.f32.partialorder %v1716, 8.507059e+37
  %v1718 = vand.u32 %v1705, 2147483648
  %v1719 = vor.u32 1.1754944e-38, %v1718
  %v1720 = vsel %vm1717, %v1719, %v1715
  %v1721 = vmul.f32 1.0, %v1720
  %v1722 = vrcp.pop %v1706
  %v1723 = vmul.f32 %v1706, %v1722
  %v1724 = vsub.f32 1.0, %v1723
  %v1725 = vmul.f32 %v1722, %v1724
  %v1726 = vadd.f32 %v1722, %v1725
  %vm1727 = vweird.f32 %v1706
  %vm1728 = vweird.f32 %v1722
  %vm1729 = vmor %vm1727, %vm1728
  %v1730 = vsel %vm1729, %v1722, %v1726
  %v1731 = vand.u32 2147483647, %v1706
  %vm1732 = vcmp.eq.f32.partialorder %v1731, 8.507059e+37
  %v1733 = vand.u32 %v1706, 2147483648
  %v1734 = vor.u32 1.1754944e-38, %v1733
  %v1735 = vsel %vm1732, %v1734, %v1730
  %v1736 = vmul.f32 1.0, %v1735
  %v1737 = vadd.f32 %v1487, %v1679
  %v1738 = vadd.f32 %v1490, %v1681
  %v1739 = vxor.u32 %v1737, 2147483648
  %v1740 = vxor.u32 %v1738, 2147483648
  %v1741 = vmul.f32 %v1739, 1.442695
  %v1742 = vpow.pop %v1741
  %v1743 = vmul.f32 %v1740, 1.442695
  %v1744 = vpow.pop %v1743
  %v1745 = vadd.f32 %v1742, 1.0
  %v1746 = vadd.f32 %v1744, 1.0
  %v1747 = vrcp.pop %v1745
  %v1748 = vmul.f32 %v1745, %v1747
  %v1749 = vsub.f32 1.0, %v1748
  %v1750 = vmul.f32 %v1747, %v1749
  %v1751 = vadd.f32 %v1747, %v1750
  %vm1752 = vweird.f32 %v1745
  %vm1753 = vweird.f32 %v1747
  %vm1754 = vmor %vm1752, %vm1753
  %v1755 = vsel %vm1754, %v1747, %v1751
  %v1756 = vand.u32 2147483647, %v1745
  %vm1757 = vcmp.eq.f32.partialorder %v1756, 8.507059e+37
  %v1758 = vand.u32 %v1745, 2147483648
  %v1759 = vor.u32 1.1754944e-38, %v1758
  %v1760 = vsel %vm1757, %v1759, %v1755
  %v1761 = vmul.f32 1.0, %v1760
  %v1762 = vrcp.pop %v1746
  %v1763 = vmul.f32 %v1746, %v1762
  %v1764 = vsub.f32 1.0, %v1763
  %v1765 = vmul.f32 %v1762, %v1764
  %v1766 = vadd.f32 %v1762, %v1765
  %vm1767 = vweird.f32 %v1746
  %vm1768 = vweird.f32 %v1762
  %vm1769 = vmor %vm1767, %vm1768
  %v1770 = vsel %vm1769, %v1762, %v1766
  %v1771 = vand.u32 2147483647, %v1746
  %vm1772 = vcmp.eq.f32.partialorder %v1771, 8.507059e+37
  %v1773 = vand.u32 %v1746, 2147483648
  %v1774 = vor.u32 1.1754944e-38, %v1773
  %v1775 = vsel %vm1772, %v1774, %v1770
  %v1776 = vmul.f32 1.0, %v1775
  %v1777 = vadd.f32 %v1693, %v1115
  %v1778 = vadd.f32 %v1695, %v1115
  %v1779 = vmul.f32 %v1721, %v1777
  %v1780 = vmul.f32 %v1736, %v1778
  %v1781 = vadd.f32 %v1488, %v1779
  %v1782 = vadd.f32 %v1491, %v1780
  %v1783 = vtanh.pop %v1781
  %v1784 = vtanh.pop %v1782
  %v1785 = vsub.f32 1.0, %v1761
  %v1786 = vsub.f32 1.0, %v1776
  %v1787 = vmul.f32 %v1785, %v1783
  %v1788 = vmul.f32 %v1786, %v1784
  %v1789 = vmul.f32 %v1761, %v1492
  %v1790 = vmul.f32 %v1776, %v1493
  %v1791 = vadd.f32 %v1787, %v1789
  %v1792 = vadd.f32 %v1788, %v1790
  %vm1793 = vcmp.gt.s32.totalorder %v813, 5
  %vm1794 = vcmp.gt.s32.totalorder %v814, 5
  %v1795 = vsel %vm1793, 1, 0
  %v1796 = vsel %vm1794, 1, 0
  %1797 = vset.pattern.permute.xlu0 0
  %1798 = vperm.xlu0 %1797, %v1795
  %v1799 = vpop.permute.xlu0 %1798
  %1800 = vset.pattern.permute.xlu0 0
  %1801 = vperm.xlu0 %1800, %v1796
  %v1802 = vpop.permute.xlu0 %1801
  %vm1803 = vcmp.eq.s32.totalorder %v1799, 1
  %vm1804 = vcmp.eq.s32.totalorder %v1802, 1
  %v1805 = vsel %vm1803, %v1791, %v1492
  %v1806 = vsel %vm1804, %v1792, %v1493
  %1807 = vst [vmem:[#allocation3] sm:$0xff] %v1805
  %1808 = vst [vmem:[#allocation3 + $0x8] sm:$0xff] %v1806
  %s1809 = smul.u32 8, 3
  %s1810 = smul.addr %s1809, 4
  %s1811 = scalar_lea.vmem [#allocation2], %s1810
  %v1812 = vld [vmem:[%s1811] sm:$0xff]
  %v1813 = vld [vmem:[%s1811 + $0x8] sm:$0xf]
  %v1814 = vld [vmem:[%s1811 + $0xc] sm:$0xff]
  %v1815 = vld [vmem:[%s1811 + $0x14] sm:$0xf]
  %v1816 = vunpack.c.l.bf16 %v1812
  %v1817 = vunpack.c.h.bf16 %v1812
  %v1818 = vunpack.c.l.bf16 %v1813
  %v1819 = vunpack.c.l.bf16 %v1814
  %v1820 = vunpack.c.h.bf16 %v1814
  %v1821 = vunpack.c.l.bf16 %v1815
  %v1822 = vld [vmem:[#allocation3] sm:$0xff]
  %v1823 = vld [vmem:[#allocation3 + $0x8] sm:$0xff]
  %v1824 = vpack.c.bf16 %v1823, %v1822
  %v1825 = vld [vmem:[%s4] sm:$0xff]
  %v1826 = vld [vmem:[%s4 + $0x8] sm:$0xf]
  %v1827 = vld [vmem:[%s4 + $0xc] sm:$0xff]
  %v1828 = vld [vmem:[%s4 + $0x14] sm:$0xf]
  %v1829 = vld [vmem:[%s4 + $0x18] sm:$0xff]
  %v1830 = vld [vmem:[%s4 + $0x20] sm:$0xf]
  %v1831 = vld [vmem:[%s4 + $0x24] sm:$0xff]
  %v1832 = vld [vmem:[%s4 + $0x2c] sm:$0xf]
  %v1833 = vld [vmem:[%s4 + $0x30] sm:$0xff]
  %v1834 = vld [vmem:[%s4 + $0x38] sm:$0xf]
  %v1835 = vld [vmem:[%s4 + $0x3c] sm:$0xff]
  %v1836 = vld [vmem:[%s4 + $0x44] sm:$0xf]
  %v1837 = vld [vmem:[%s4 + $0x48] sm:$0xff]
  %v1838 = vld [vmem:[%s4 + $0x50] sm:$0xf]
  %v1839 = vld [vmem:[%s4 + $0x54] sm:$0xff]
  %v1840 = vld [vmem:[%s4 + $0x5c] sm:$0xf]
  %v1841 = vld [vmem:[%s4 + $0x60] sm:$0xff]
  %v1842 = vld [vmem:[%s4 + $0x68] sm:$0xf]
  %v1843 = vld [vmem:[%s4 + $0x6c] sm:$0xff]
  %v1844 = vld [vmem:[%s4 + $0x74] sm:$0xf]
  %v1845 = vld [vmem:[%s4 + $0x78] sm:$0xff]
  %v1846 = vld [vmem:[%s4 + $0x80] sm:$0xf]
  %v1847 = vld [vmem:[%s4 + $0x84] sm:$0xff]
  %v1848 = vld [vmem:[%s4 + $0x8c] sm:$0xf]
  %v1849 = vld [vmem:[%s4 + $0x90] sm:$0xff]
  %v1850 = vld [vmem:[%s4 + $0x98] sm:$0xf]
  %v1851 = vld [vmem:[%s4 + $0x9c] sm:$0xff]
  %v1852 = vld [vmem:[%s4 + $0xa4] sm:$0xf]
  %v1853 = vld [vmem:[%s4 + $0xa8] sm:$0xff]
  %v1854 = vld [vmem:[%s4 + $0xb0] sm:$0xf]
  %v1855 = vld [vmem:[%s4 + $0xb4] sm:$0xff]
  %v1856 = vld [vmem:[%s4 + $0xbc] sm:$0xf]
  %v1889 = vunpack.c.l.b16 %v1825
  %v1890 = vunpack.c.h.b16 %v1825
  %v1891 = vunpack.c.l.b16 %v1826
  %v1892 = vunpack.c.l.b16 %v1827
  %v1893 = vunpack.c.h.b16 %v1827
  %v1894 = vunpack.c.l.b16 %v1828
  %v1895 = vunpack.c.l.b16 %v1829
  %v1896 = vunpack.c.h.b16 %v1829
  %v1897 = vunpack.c.l.b16 %v1830
  %v1898 = vunpack.c.l.b16 %v1831
  %v1899 = vunpack.c.h.b16 %v1831
  %v1900 = vunpack.c.l.b16 %v1832
  %v1901 = vunpack.c.l.b16 %v1833
  %v1902 = vunpack.c.h.b16 %v1833
  %v1903 = vunpack.c.l.b16 %v1834
  %v1904 = vunpack.c.l.b16 %v1835
  %v1905 = vunpack.c.h.b16 %v1835
  %v1906 = vunpack.c.l.b16 %v1836
  %v1907 = vunpack.c.l.b16 %v1837
  %v1908 = vunpack.c.h.b16 %v1837
  %v1909 = vunpack.c.l.b16 %v1838
  %v1910 = vunpack.c.l.b16 %v1839
  %v1911 = vunpack.c.h.b16 %v1839
  %v1912 = vunpack.c.l.b16 %v1840
  %v1913 = vunpack.c.l.b16 %v1841
  %v1914 = vunpack.c.h.b16 %v1841
  %v1915 = vunpack.c.l.b16 %v1842
  %v1916 = vunpack.c.l.b16 %v1843
  %v1917 = vunpack.c.h.b16 %v1843
  %v1918 = vunpack.c.l.b16 %v1844
  %v1919 = vunpack.c.l.b16 %v1845
  %v1920 = vunpack.c.h.b16 %v1845
  %v1921 = vunpack.c.l.b16 %v1846
  %v1922 = vunpack.c.l.b16 %v1847
  %v1923 = vunpack.c.h.b16 %v1847
  %v1924 = vunpack.c.l.b16 %v1848
  %v1925 = vunpack.c.l.b16 %v1849
  %v1926 = vunpack.c.h.b16 %v1849
  %v1927 = vunpack.c.l.b16 %v1850
  %v1928 = vunpack.c.l.b16 %v1851
  %v1929 = vunpack.c.h.b16 %v1851
  %v1930 = vunpack.c.l.b16 %v1852
  %v1931 = vunpack.c.l.b16 %v1853
  %v1932 = vunpack.c.h.b16 %v1853
  %v1933 = vunpack.c.l.b16 %v1854
  %v1934 = vunpack.c.l.b16 %v1855
  %v1935 = vunpack.c.h.b16 %v1855
  %v1936 = vunpack.c.l.b16 %v1856
  %v1937 = vpack.c.b16 %v1892, %v1889
  %v1938 = vpack.c.b16 %v1893, %v1890
  %v1939 = vpack.c.b16 %v1894, %v1891
  %v1940 = vpack.c.b16 %v1898, %v1895
  %v1941 = vpack.c.b16 %v1899, %v1896
  %v1942 = vpack.c.b16 %v1900, %v1897
  %v1943 = vpack.c.b16 %v1904, %v1901
  %v1944 = vpack.c.b16 %v1905, %v1902
  %v1945 = vpack.c.b16 %v1906, %v1903
  %v1946 = vpack.c.b16 %v1910, %v1907
  %v1947 = vpack.c.b16 %v1911, %v1908
  %v1948 = vpack.c.b16 %v1912, %v1909
  %v1949 = vpack.c.b16 %v1916, %v1913
  %v1950 = vpack.c.b16 %v1917, %v1914
  %v1951 = vpack.c.b16 %v1918, %v1915
  %v1952 = vpack.c.b16 %v1922, %v1919
  %v1953 = vpack.c.b16 %v1923, %v1920
  %v1954 = vpack.c.b16 %v1924, %v1921
  %v1955 = vpack.c.b16 %v1928, %v1925
  %v1956 = vpack.c.b16 %v1929, %v1926
  %v1957 = vpack.c.b16 %v1930, %v1927
  %v1958 = vpack.c.b16 %v1934, %v1931
  %v1959 = vpack.c.b16 %v1935, %v1932
  %v1960 = vpack.c.b16 %v1936, %v1933
  %1985 = vmatpush.bf16.msra.mxu0 %v1958
  %1986 = vmatpush.bf16.msra.mxu0 %v1955
  %1987 = vmatpush.bf16.msra.mxu0 %v1952
  %1988 = vmatpush.bf16.msra.mxu0 %v1949
  %1989 = vmatpush.bf16.msra.mxu0 %v1946
  %1990 = vmatpush.bf16.msra.mxu0 %v1943
  %1991 = vmatpush.bf16.msra.mxu0 %v1940
  %1992 = vmatpush.bf16.msra.mxu0 %v1937
  %1993 = vmatmul.bf16.gmra.mxu0 %v1824
  %v1994 = vpop.f32.mrf.mxu0
  %v1995 = vadd.f32 0.0, %v1994
  %v1996 = vpop.f32.mrf.mxu0
  %v1997 = vadd.f32 0.0, %v1996
  %1998 = vdwg.mxu0
  %1999 = vmatpush.bf16.msra.mxu0 %v1959
  %2000 = vmatpush.bf16.msra.mxu0 %v1956
  %2001 = vmatpush.bf16.msra.mxu0 %v1953
  %2002 = vmatpush.bf16.msra.mxu0 %v1950
  %2003 = vmatpush.bf16.msra.mxu0 %v1947
  %2004 = vmatpush.bf16.msra.mxu0 %v1944
  %2005 = vmatpush.bf16.msra.mxu0 %v1941
  %2006 = vmatpush.bf16.msra.mxu0 %v1938
  %2007 = vmatmul.bf16.gmra.mxu0 %v1824
  %v2008 = vpop.f32.mrf.mxu0
  %v2009 = vadd.f32 0.0, %v2008
  %v2010 = vpop.f32.mrf.mxu0
  %v2011 = vadd.f32 0.0, %v2010
  %2012 = vdwg.mxu0
  %2013 = vmatpush.bf16.msra.mxu0 %v1960
  %2014 = vmatpush.bf16.msra.mxu0 %v1957
  %2015 = vmatpush.bf16.msra.mxu0 %v1954
  %2016 = vmatpush.bf16.msra.mxu0 %v1951
  %2017 = vmatpush.bf16.msra.mxu0 %v1948
  %2018 = vmatpush.bf16.msra.mxu0 %v1945
  %2019 = vmatpush.bf16.msra.mxu0 %v1942
  %2020 = vmatpush.bf16.msra.mxu0 %v1939
  %2021 = vmatmul.bf16.gmra.mxu0 %v1824
  %v2022 = vpop.f32.mrf.mxu0
  %v2023 = vadd.f32 0.0, %v2022
  %v2024 = vpop.f32.mrf.mxu0
  %v2025 = vadd.f32 0.0, %v2024
  %2026 = vdwg.mxu0
  %v2027 = vadd.f32 %v1816, %v1995
  %v2028 = vadd.f32 %v1819, %v1997
  %v2029 = vxor.u32 %v2027, 2147483648
  %v2030 = vxor.u32 %v2028, 2147483648
  %v2031 = vmul.f32 %v2029, 1.442695
  %v2032 = vpow.pop %v2031
  %v2033 = vmul.f32 %v2030, 1.442695
  %v2034 = vpow.pop %v2033
  %v2035 = vadd.f32 %v2032, 1.0
  %v2036 = vadd.f32 %v2034, 1.0
  %v2037 = vrcp.pop %v2035
  %v2038 = vmul.f32 %v2035, %v2037
  %v2039 = vsub.f32 1.0, %v2038
  %v2040 = vmul.f32 %v2037, %v2039
  %v2041 = vadd.f32 %v2037, %v2040
  %vm2042 = vweird.f32 %v2035
  %vm2043 = vweird.f32 %v2037
  %vm2044 = vmor %vm2042, %vm2043
  %v2045 = vsel %vm2044, %v2037, %v2041
  %v2046 = vand.u32 2147483647, %v2035
  %vm2047 = vcmp.eq.f32.partialorder %v2046, 8.507059e+37
  %v2048 = vand.u32 %v2035, 2147483648
  %v2049 = vor.u32 1.1754944e-38, %v2048
  %v2050 = vsel %vm2047, %v2049, %v2045
  %v2051 = vmul.f32 1.0, %v2050
  %v2052 = vrcp.pop %v2036
  %v2053 = vmul.f32 %v2036, %v2052
  %v2054 = vsub.f32 1.0, %v2053
  %v2055 = vmul.f32 %v2052, %v2054
  %v2056 = vadd.f32 %v2052, %v2055
  %vm2057 = vweird.f32 %v2036
  %vm2058 = vweird.f32 %v2052
  %vm2059 = vmor %vm2057, %vm2058
  %v2060 = vsel %vm2059, %v2052, %v2056
  %v2061 = vand.u32 2147483647, %v2036
  %vm2062 = vcmp.eq.f32.partialorder %v2061, 8.507059e+37
  %v2063 = vand.u32 %v2036, 2147483648
  %v2064 = vor.u32 1.1754944e-38, %v2063
  %v2065 = vsel %vm2062, %v2064, %v2060
  %v2066 = vmul.f32 1.0, %v2065
  %v2067 = vadd.f32 %v1817, %v2009
  %v2068 = vadd.f32 %v1820, %v2011
  %v2069 = vxor.u32 %v2067, 2147483648
  %v2070 = vxor.u32 %v2068, 2147483648
  %v2071 = vmul.f32 %v2069, 1.442695
  %v2072 = vpow.pop %v2071
  %v2073 = vmul.f32 %v2070, 1.442695
  %v2074 = vpow.pop %v2073
  %v2075 = vadd.f32 %v2072, 1.0
  %v2076 = vadd.f32 %v2074, 1.0
  %v2077 = vrcp.pop %v2075
  %v2078 = vmul.f32 %v2075, %v2077
  %v2079 = vsub.f32 1.0, %v2078
  %v2080 = vmul.f32 %v2077, %v2079
  %v2081 = vadd.f32 %v2077, %v2080
  %vm2082 = vweird.f32 %v2075
  %vm2083 = vweird.f32 %v2077
  %vm2084 = vmor %vm2082, %vm2083
  %v2085 = vsel %vm2084, %v2077, %v2081
  %v2086 = vand.u32 2147483647, %v2075
  %vm2087 = vcmp.eq.f32.partialorder %v2086, 8.507059e+37
  %v2088 = vand.u32 %v2075, 2147483648
  %v2089 = vor.u32 1.1754944e-38, %v2088
  %v2090 = vsel %vm2087, %v2089, %v2085
  %v2091 = vmul.f32 1.0, %v2090
  %v2092 = vrcp.pop %v2076
  %v2093 = vmul.f32 %v2076, %v2092
  %v2094 = vsub.f32 1.0, %v2093
  %v2095 = vmul.f32 %v2092, %v2094
  %v2096 = vadd.f32 %v2092, %v2095
  %vm2097 = vweird.f32 %v2076
  %vm2098 = vweird.f32 %v2092
  %vm2099 = vmor %vm2097, %vm2098
  %v2100 = vsel %vm2099, %v2092, %v2096
  %v2101 = vand.u32 2147483647, %v2076
  %vm2102 = vcmp.eq.f32.partialorder %v2101, 8.507059e+37
  %v2103 = vand.u32 %v2076, 2147483648
  %v2104 = vor.u32 1.1754944e-38, %v2103
  %v2105 = vsel %vm2102, %v2104, %v2100
  %v2106 = vmul.f32 1.0, %v2105
  %v2107 = vadd.f32 %v2023, %v1115
  %v2108 = vadd.f32 %v2025, %v1115
  %v2109 = vmul.f32 %v2051, %v2107
  %v2110 = vmul.f32 %v2066, %v2108
  %v2111 = vadd.f32 %v1818, %v2109
  %v2112 = vadd.f32 %v1821, %v2110
  %v2113 = vtanh.pop %v2111
  %v2114 = vtanh.pop %v2112
  %v2115 = vsub.f32 1.0, %v2091
  %v2116 = vsub.f32 1.0, %v2106
  %v2117 = vmul.f32 %v2115, %v2113
  %v2118 = vmul.f32 %v2116, %v2114
  %v2119 = vmul.f32 %v2091, %v1822
  %v2120 = vmul.f32 %v2106, %v1823
  %v2121 = vadd.f32 %v2117, %v2119
  %v2122 = vadd.f32 %v2118, %v2120
  %vm2123 = vcmp.gt.s32.totalorder %v813, 4
  %vm2124 = vcmp.gt.s32.totalorder %v814, 4
  %v2125 = vsel %vm2123, 1, 0
  %v2126 = vsel %vm2124, 1, 0
  %2127 = vset.pattern.permute.xlu0 0
  %2128 = vperm.xlu0 %2127, %v2125
  %v2129 = vpop.permute.xlu0 %2128
  %2130 = vset.pattern.permute.xlu0 0
  %2131 = vperm.xlu0 %2130, %v2126
  %v2132 = vpop.permute.xlu0 %2131
  %vm2133 = vcmp.eq.s32.totalorder %v2129, 1
  %vm2134 = vcmp.eq.s32.totalorder %v2132, 1
  %v2135 = vsel %vm2133, %v2121, %v1822
  %v2136 = vsel %vm2134, %v2122, %v1823
  %2137 = vst [vmem:[#allocation3] sm:$0xff] %v2135
  %2138 = vst [vmem:[#allocation3 + $0x8] sm:$0xff] %v2136
  %s2139 = smul.u32 6, 3
  %s2140 = smul.addr %s2139, 4
  %s2141 = scalar_lea.vmem [#allocation2], %s2140
  %v2142 = vld [vmem:[%s2141] sm:$0xff]
  %v2143 = vld [vmem:[%s2141 + $0x8] sm:$0xf]
  %v2144 = vld [vmem:[%s2141 + $0xc] sm:$0xff]
  %v2145 = vld [vmem:[%s2141 + $0x14] sm:$0xf]
  %v2146 = vunpack.c.l.bf16 %v2142
  %v2147 = vunpack.c.h.bf16 %v2142
  %v2148 = vunpack.c.l.bf16 %v2143
  %v2149 = vunpack.c.l.bf16 %v2144
  %v2150 = vunpack.c.h.bf16 %v2144
  %v2151 = vunpack.c.l.bf16 %v2145
  %v2152 = vld [vmem:[#allocation3] sm:$0xff]
  %v2153 = vld [vmem:[#allocation3 + $0x8] sm:$0xff]
  %v2154 = vpack.c.bf16 %v2153, %v2152
  %v2155 = vld [vmem:[%s4] sm:$0xff]
  %v2156 = vld [vmem:[%s4 + $0x8] sm:$0xf]
  %v2157 = vld [vmem:[%s4 + $0xc] sm:$0xff]
  %v2158 = vld [vmem:[%s4 + $0x14] sm:$0xf]
  %v2159 = vld [vmem:[%s4 + $0x18] sm:$0xff]
  %v2160 = vld [vmem:[%s4 + $0x20] sm:$0xf]
  %v2161 = vld [vmem:[%s4 + $0x24] sm:$0xff]
  %v2162 = vld [vmem:[%s4 + $0x2c] sm:$0xf]
  %v2163 = vld [vmem:[%s4 + $0x30] sm:$0xff]
  %v2164 = vld [vmem:[%s4 + $0x38] sm:$0xf]
  %v2165 = vld [vmem:[%s4 + $0x3c] sm:$0xff]
  %v2166 = vld [vmem:[%s4 + $0x44] sm:$0xf]
  %v2167 = vld [vmem:[%s4 + $0x48] sm:$0xff]
  %v2168 = vld [vmem:[%s4 + $0x50] sm:$0xf]
  %v2169 = vld [vmem:[%s4 + $0x54] sm:$0xff]
  %v2170 = vld [vmem:[%s4 + $0x5c] sm:$0xf]
  %v2171 = vld [vmem:[%s4 + $0x60] sm:$0xff]
  %v2172 = vld [vmem:[%s4 + $0x68] sm:$0xf]
  %v2173 = vld [vmem:[%s4 + $0x6c] sm:$0xff]
  %v2174 = vld [vmem:[%s4 + $0x74] sm:$0xf]
  %v2175 = vld [vmem:[%s4 + $0x78] sm:$0xff]
  %v2176 = vld [vmem:[%s4 + $0x80] sm:$0xf]
  %v2177 = vld [vmem:[%s4 + $0x84] sm:$0xff]
  %v2178 = vld [vmem:[%s4 + $0x8c] sm:$0xf]
  %v2179 = vld [vmem:[%s4 + $0x90] sm:$0xff]
  %v2180 = vld [vmem:[%s4 + $0x98] sm:$0xf]
  %v2181 = vld [vmem:[%s4 + $0x9c] sm:$0xff]
  %v2182 = vld [vmem:[%s4 + $0xa4] sm:$0xf]
  %v2183 = vld [vmem:[%s4 + $0xa8] sm:$0xff]
  %v2184 = vld [vmem:[%s4 + $0xb0] sm:$0xf]
  %v2185 = vld [vmem:[%s4 + $0xb4] sm:$0xff]
  %v2186 = vld [vmem:[%s4 + $0xbc] sm:$0xf]
  %v2219 = vunpack.c.l.b16 %v2155
  %v2220 = vunpack.c.h.b16 %v2155
  %v2221 = vunpack.c.l.b16 %v2156
  %v2222 = vunpack.c.l.b16 %v2157
  %v2223 = vunpack.c.h.b16 %v2157
  %v2224 = vunpack.c.l.b16 %v2158
  %v2225 = vunpack.c.l.b16 %v2159
  %v2226 = vunpack.c.h.b16 %v2159
  %v2227 = vunpack.c.l.b16 %v2160
  %v2228 = vunpack.c.l.b16 %v2161
  %v2229 = vunpack.c.h.b16 %v2161
  %v2230 = vunpack.c.l.b16 %v2162
  %v2231 = vunpack.c.l.b16 %v2163
  %v2232 = vunpack.c.h.b16 %v2163
  %v2233 = vunpack.c.l.b16 %v2164
  %v2234 = vunpack.c.l.b16 %v2165
  %v2235 = vunpack.c.h.b16 %v2165
  %v2236 = vunpack.c.l.b16 %v2166
  %v2237 = vunpack.c.l.b16 %v2167
  %v2238 = vunpack.c.h.b16 %v2167
  %v2239 = vunpack.c.l.b16 %v2168
  %v2240 = vunpack.c.l.b16 %v2169
  %v2241 = vunpack.c.h.b16 %v2169
  %v2242 = vunpack.c.l.b16 %v2170
  %v2243 = vunpack.c.l.b16 %v2171
  %v2244 = vunpack.c.h.b16 %v2171
  %v2245 = vunpack.c.l.b16 %v2172
  %v2246 = vunpack.c.l.b16 %v2173
  %v2247 = vunpack.c.h.b16 %v2173
  %v2248 = vunpack.c.l.b16 %v2174
  %v2249 = vunpack.c.l.b16 %v2175
  %v2250 = vunpack.c.h.b16 %v2175
  %v2251 = vunpack.c.l.b16 %v2176
  %v2252 = vunpack.c.l.b16 %v2177
  %v2253 = vunpack.c.h.b16 %v2177
  %v2254 = vunpack.c.l.b16 %v2178
  %v2255 = vunpack.c.l.b16 %v2179
  %v2256 = vunpack.c.h.b16 %v2179
  %v2257 = vunpack.c.l.b16 %v2180
  %v2258 = vunpack.c.l.b16 %v2181
  %v2259 = vunpack.c.h.b16 %v2181
  %v2260 = vunpack.c.l.b16 %v2182
  %v2261 = vunpack.c.l.b16 %v2183
  %v2262 = vunpack.c.h.b16 %v2183
  %v2263 = vunpack.c.l.b16 %v2184
  %v2264 = vunpack.c.l.b16 %v2185
  %v2265 = vunpack.c.h.b16 %v2185
  %v2266 = vunpack.c.l.b16 %v2186
  %v2267 = vpack.c.b16 %v2222, %v2219
  %v2268 = vpack.c.b16 %v2223, %v2220
  %v2269 = vpack.c.b16 %v2224, %v2221
  %v2270 = vpack.c.b16 %v2228, %v2225
  %v2271 = vpack.c.b16 %v2229, %v2226
  %v2272 = vpack.c.b16 %v2230, %v2227
  %v2273 = vpack.c.b16 %v2234, %v2231
  %v2274 = vpack.c.b16 %v2235, %v2232
  %v2275 = vpack.c.b16 %v2236, %v2233
  %v2276 = vpack.c.b16 %v2240, %v2237
  %v2277 = vpack.c.b16 %v2241, %v2238
  %v2278 = vpack.c.b16 %v2242, %v2239
  %v2279 = vpack.c.b16 %v2246, %v2243
  %v2280 = vpack.c.b16 %v2247, %v2244
  %v2281 = vpack.c.b16 %v2248, %v2245
  %v2282 = vpack.c.b16 %v2252, %v2249
  %v2283 = vpack.c.b16 %v2253, %v2250
  %v2284 = vpack.c.b16 %v2254, %v2251
  %v2285 = vpack.c.b16 %v2258, %v2255
  %v2286 = vpack.c.b16 %v2259, %v2256
  %v2287 = vpack.c.b16 %v2260, %v2257
  %v2288 = vpack.c.b16 %v2264, %v2261
  %v2289 = vpack.c.b16 %v2265, %v2262
  %v2290 = vpack.c.b16 %v2266, %v2263
  %2315 = vmatpush.bf16.msra.mxu0 %v2288
  %2316 = vmatpush.bf16.msra.mxu0 %v2285
  %2317 = vmatpush.bf16.msra.mxu0 %v2282
  %2318 = vmatpush.bf16.msra.mxu0 %v2279
  %2319 = vmatpush.bf16.msra.mxu0 %v2276
  %2320 = vmatpush.bf16.msra.mxu0 %v2273
  %2321 = vmatpush.bf16.msra.mxu0 %v2270
  %2322 = vmatpush.bf16.msra.mxu0 %v2267
  %2323 = vmatmul.bf16.gmra.mxu0 %v2154
  %v2324 = vpop.f32.mrf.mxu0
  %v2325 = vadd.f32 0.0, %v2324
  %v2326 = vpop.f32.mrf.mxu0
  %v2327 = vadd.f32 0.0, %v2326
  %2328 = vdwg.mxu0
  %2329 = vmatpush.bf16.msra.mxu0 %v2289
  %2330 = vmatpush.bf16.msra.mxu0 %v2286
  %2331 = vmatpush.bf16.msra.mxu0 %v2283
  %2332 = vmatpush.bf16.msra.mxu0 %v2280
  %2333 = vmatpush.bf16.msra.mxu0 %v2277
  %2334 = vmatpush.bf16.msra.mxu0 %v2274
  %2335 = vmatpush.bf16.msra.mxu0 %v2271
  %2336 = vmatpush.bf16.msra.mxu0 %v2268
  %2337 = vmatmul.bf16.gmra.mxu0 %v2154
  %v2338 = vpop.f32.mrf.mxu0
  %v2339 = vadd.f32 0.0, %v2338
  %v2340 = vpop.f32.mrf.mxu0
  %v2341 = vadd.f32 0.0, %v2340
  %2342 = vdwg.mxu0
  %2343 = vmatpush.bf16.msra.mxu0 %v2290
  %2344 = vmatpush.bf16.msra.mxu0 %v2287
  %2345 = vmatpush.bf16.msra.mxu0 %v2284
  %2346 = vmatpush.bf16.msra.mxu0 %v2281
  %2347 = vmatpush.bf16.msra.mxu0 %v2278
  %2348 = vmatpush.bf16.msra.mxu0 %v2275
  %2349 = vmatpush.bf16.msra.mxu0 %v2272
  %2350 = vmatpush.bf16.msra.mxu0 %v2269
  %2351 = vmatmul.bf16.gmra.mxu0 %v2154
  %v2352 = vpop.f32.mrf.mxu0
  %v2353 = vadd.f32 0.0, %v2352
  %v2354 = vpop.f32.mrf.mxu0
  %v2355 = vadd.f32 0.0, %v2354
  %2356 = vdwg.mxu0
  %v2357 = vadd.f32 %v2146, %v2325
  %v2358 = vadd.f32 %v2149, %v2327
  %v2359 = vxor.u32 %v2357, 2147483648
  %v2360 = vxor.u32 %v2358, 2147483648
  %v2361 = vmul.f32 %v2359, 1.442695
  %v2362 = vpow.pop %v2361
  %v2363 = vmul.f32 %v2360, 1.442695
  %v2364 = vpow.pop %v2363
  %v2365 = vadd.f32 %v2362, 1.0
  %v2366 = vadd.f32 %v2364, 1.0
  %v2367 = vrcp.pop %v2365
  %v2368 = vmul.f32 %v2365, %v2367
  %v2369 = vsub.f32 1.0, %v2368
  %v2370 = vmul.f32 %v2367, %v2369
  %v2371 = vadd.f32 %v2367, %v2370
  %vm2372 = vweird.f32 %v2365
  %vm2373 = vweird.f32 %v2367
  %vm2374 = vmor %vm2372, %vm2373
  %v2375 = vsel %vm2374, %v2367, %v2371
  %v2376 = vand.u32 2147483647, %v2365
  %vm2377 = vcmp.eq.f32.partialorder %v2376, 8.507059e+37
  %v2378 = vand.u32 %v2365, 2147483648
  %v2379 = vor.u32 1.1754944e-38, %v2378
  %v2380 = vsel %vm2377, %v2379, %v2375
  %v2381 = vmul.f32 1.0, %v2380
  %v2382 = vrcp.pop %v2366
  %v2383 = vmul.f32 %v2366, %v2382
  %v2384 = vsub.f32 1.0, %v2383
  %v2385 = vmul.f32 %v2382, %v2384
  %v2386 = vadd.f32 %v2382, %v2385
  %vm2387 = vweird.f32 %v2366
  %vm2388 = vweird.f32 %v2382
  %vm2389 = vmor %vm2387, %vm2388
  %v2390 = vsel %vm2389, %v2382, %v2386
  %v2391 = vand.u32 2147483647, %v2366
  %vm2392 = vcmp.eq.f32.partialorder %v2391, 8.507059e+37
  %v2393 = vand.u32 %v2366, 2147483648
  %v2394 = vor.u32 1.1754944e-38, %v2393
  %v2395 = vsel %vm2392, %v2394, %v2390
  %v2396 = vmul.f32 1.0, %v2395
  %v2397 = vadd.f32 %v2147, %v2339
  %v2398 = vadd.f32 %v2150, %v2341
  %v2399 = vxor.u32 %v2397, 2147483648
  %v2400 = vxor.u32 %v2398, 2147483648
  %v2401 = vmul.f32 %v2399, 1.442695
  %v2402 = vpow.pop %v2401
  %v2403 = vmul.f32 %v2400, 1.442695
  %v2404 = vpow.pop %v2403
  %v2405 = vadd.f32 %v2402, 1.0
  %v2406 = vadd.f32 %v2404, 1.0
  %v2407 = vrcp.pop %v2405
  %v2408 = vmul.f32 %v2405, %v2407
  %v2409 = vsub.f32 1.0, %v2408
  %v2410 = vmul.f32 %v2407, %v2409
  %v2411 = vadd.f32 %v2407, %v2410
  %vm2412 = vweird.f32 %v2405
  %vm2413 = vweird.f32 %v2407
  %vm2414 = vmor %vm2412, %vm2413
  %v2415 = vsel %vm2414, %v2407, %v2411
  %v2416 = vand.u32 2147483647, %v2405
  %vm2417 = vcmp.eq.f32.partialorder %v2416, 8.507059e+37
  %v2418 = vand.u32 %v2405, 2147483648
  %v2419 = vor.u32 1.1754944e-38, %v2418
  %v2420 = vsel %vm2417, %v2419, %v2415
  %v2421 = vmul.f32 1.0, %v2420
  %v2422 = vrcp.pop %v2406
  %v2423 = vmul.f32 %v2406, %v2422
  %v2424 = vsub.f32 1.0, %v2423
  %v2425 = vmul.f32 %v2422, %v2424
  %v2426 = vadd.f32 %v2422, %v2425
  %vm2427 = vweird.f32 %v2406
  %vm2428 = vweird.f32 %v2422
  %vm2429 = vmor %vm2427, %vm2428
  %v2430 = vsel %vm2429, %v2422, %v2426
  %v2431 = vand.u32 2147483647, %v2406
  %vm2432 = vcmp.eq.f32.partialorder %v2431, 8.507059e+37
  %v2433 = vand.u32 %v2406, 2147483648
  %v2434 = vor.u32 1.1754944e-38, %v2433
  %v2435 = vsel %vm2432, %v2434, %v2430
  %v2436 = vmul.f32 1.0, %v2435
  %v2437 = vadd.f32 %v2353, %v1115
  %v2438 = vadd.f32 %v2355, %v1115
  %v2439 = vmul.f32 %v2381, %v2437
  %v2440 = vmul.f32 %v2396, %v2438
  %v2441 = vadd.f32 %v2148, %v2439
  %v2442 = vadd.f32 %v2151, %v2440
  %v2443 = vtanh.pop %v2441
  %v2444 = vtanh.pop %v2442
  %v2445 = vsub.f32 1.0, %v2421
  %v2446 = vsub.f32 1.0, %v2436
  %v2447 = vmul.f32 %v2445, %v2443
  %v2448 = vmul.f32 %v2446, %v2444
  %v2449 = vmul.f32 %v2421, %v2152
  %v2450 = vmul.f32 %v2436, %v2153
  %v2451 = vadd.f32 %v2447, %v2449
  %v2452 = vadd.f32 %v2448, %v2450
  %vm2453 = vcmp.gt.s32.totalorder %v813, 3
  %vm2454 = vcmp.gt.s32.totalorder %v814, 3
  %v2455 = vsel %vm2453, 1, 0
  %v2456 = vsel %vm2454, 1, 0
  %2457 = vset.pattern.permute.xlu0 0
  %2458 = vperm.xlu0 %2457, %v2455
  %v2459 = vpop.permute.xlu0 %2458
  %2460 = vset.pattern.permute.xlu0 0
  %2461 = vperm.xlu0 %2460, %v2456
  %v2462 = vpop.permute.xlu0 %2461
  %vm2463 = vcmp.eq.s32.totalorder %v2459, 1
  %vm2464 = vcmp.eq.s32.totalorder %v2462, 1
  %v2465 = vsel %vm2463, %v2451, %v2152
  %v2466 = vsel %vm2464, %v2452, %v2153
  %2467 = vst [vmem:[#allocation3] sm:$0xff] %v2465
  %2468 = vst [vmem:[#allocation3 + $0x8] sm:$0xff] %v2466
  %s2469 = smul.u32 4, 3
  %s2470 = smul.addr %s2469, 4
  %s2471 = scalar_lea.vmem [#allocation2], %s2470
  %v2472 = vld [vmem:[%s2471] sm:$0xff]
  %v2473 = vld [vmem:[%s2471 + $0x8] sm:$0xf]
  %v2474 = vld [vmem:[%s2471 + $0xc] sm:$0xff]
  %v2475 = vld [vmem:[%s2471 + $0x14] sm:$0xf]
  %v2476 = vunpack.c.l.bf16 %v2472
  %v2477 = vunpack.c.h.bf16 %v2472
  %v2478 = vunpack.c.l.bf16 %v2473
  %v2479 = vunpack.c.l.bf16 %v2474
  %v2480 = vunpack.c.h.bf16 %v2474
  %v2481 = vunpack.c.l.bf16 %v2475
  %v2482 = vld [vmem:[#allocation3] sm:$0xff]
  %v2483 = vld [vmem:[#allocation3 + $0x8] sm:$0xff]
  %v2484 = vpack.c.bf16 %v2483, %v2482
  %v2485 = vld [vmem:[%s4] sm:$0xff]
  %v2486 = vld [vmem:[%s4 + $0x8] sm:$0xf]
  %v2487 = vld [vmem:[%s4 + $0xc] sm:$0xff]
  %v2488 = vld [vmem:[%s4 + $0x14] sm:$0xf]
  %v2489 = vld [vmem:[%s4 + $0x18] sm:$0xff]
  %v2490 = vld [vmem:[%s4 + $0x20] sm:$0xf]
  %v2491 = vld [vmem:[%s4 + $0x24] sm:$0xff]
  %v2492 = vld [vmem:[%s4 + $0x2c] sm:$0xf]
  %v2493 = vld [vmem:[%s4 + $0x30] sm:$0xff]
  %v2494 = vld [vmem:[%s4 + $0x38] sm:$0xf]
  %v2495 = vld [vmem:[%s4 + $0x3c] sm:$0xff]
  %v2496 = vld [vmem:[%s4 + $0x44] sm:$0xf]
  %v2497 = vld [vmem:[%s4 + $0x48] sm:$0xff]
  %v2498 = vld [vmem:[%s4 + $0x50] sm:$0xf]
  %v2499 = vld [vmem:[%s4 + $0x54] sm:$0xff]
  %v2500 = vld [vmem:[%s4 + $0x5c] sm:$0xf]
  %v2501 = vld [vmem:[%s4 + $0x60] sm:$0xff]
  %v2502 = vld [vmem:[%s4 + $0x68] sm:$0xf]
  %v2503 = vld [vmem:[%s4 + $0x6c] sm:$0xff]
  %v2504 = vld [vmem:[%s4 + $0x74] sm:$0xf]
  %v2505 = vld [vmem:[%s4 + $0x78] sm:$0xff]
  %v2506 = vld [vmem:[%s4 + $0x80] sm:$0xf]
  %v2507 = vld [vmem:[%s4 + $0x84] sm:$0xff]
  %v2508 = vld [vmem:[%s4 + $0x8c] sm:$0xf]
  %v2509 = vld [vmem:[%s4 + $0x90] sm:$0xff]
  %v2510 = vld [vmem:[%s4 + $0x98] sm:$0xf]
  %v2511 = vld [vmem:[%s4 + $0x9c] sm:$0xff]
  %v2512 = vld [vmem:[%s4 + $0xa4] sm:$0xf]
  %v2513 = vld [vmem:[%s4 + $0xa8] sm:$0xff]
  %v2514 = vld [vmem:[%s4 + $0xb0] sm:$0xf]
  %v2515 = vld [vmem:[%s4 + $0xb4] sm:$0xff]
  %v2516 = vld [vmem:[%s4 + $0xbc] sm:$0xf]
  %v2549 = vunpack.c.l.b16 %v2485
  %v2550 = vunpack.c.h.b16 %v2485
  %v2551 = vunpack.c.l.b16 %v2486
  %v2552 = vunpack.c.l.b16 %v2487
  %v2553 = vunpack.c.h.b16 %v2487
  %v2554 = vunpack.c.l.b16 %v2488
  %v2555 = vunpack.c.l.b16 %v2489
  %v2556 = vunpack.c.h.b16 %v2489
  %v2557 = vunpack.c.l.b16 %v2490
  %v2558 = vunpack.c.l.b16 %v2491
  %v2559 = vunpack.c.h.b16 %v2491
  %v2560 = vunpack.c.l.b16 %v2492
  %v2561 = vunpack.c.l.b16 %v2493
  %v2562 = vunpack.c.h.b16 %v2493
  %v2563 = vunpack.c.l.b16 %v2494
  %v2564 = vunpack.c.l.b16 %v2495
  %v2565 = vunpack.c.h.b16 %v2495
  %v2566 = vunpack.c.l.b16 %v2496
  %v2567 = vunpack.c.l.b16 %v2497
  %v2568 = vunpack.c.h.b16 %v2497
  %v2569 = vunpack.c.l.b16 %v2498
  %v2570 = vunpack.c.l.b16 %v2499
  %v2571 = vunpack.c.h.b16 %v2499
  %v2572 = vunpack.c.l.b16 %v2500
  %v2573 = vunpack.c.l.b16 %v2501
  %v2574 = vunpack.c.h.b16 %v2501
  %v2575 = vunpack.c.l.b16 %v2502
  %v2576 = vunpack.c.l.b16 %v2503
  %v2577 = vunpack.c.h.b16 %v2503
  %v2578 = vunpack.c.l.b16 %v2504
  %v2579 = vunpack.c.l.b16 %v2505
  %v2580 = vunpack.c.h.b16 %v2505
  %v2581 = vunpack.c.l.b16 %v2506
  %v2582 = vunpack.c.l.b16 %v2507
  %v2583 = vunpack.c.h.b16 %v2507
  %v2584 = vunpack.c.l.b16 %v2508
  %v2585 = vunpack.c.l.b16 %v2509
  %v2586 = vunpack.c.h.b16 %v2509
  %v2587 = vunpack.c.l.b16 %v2510
  %v2588 = vunpack.c.l.b16 %v2511
  %v2589 = vunpack.c.h.b16 %v2511
  %v2590 = vunpack.c.l.b16 %v2512
  %v2591 = vunpack.c.l.b16 %v2513
  %v2592 = vunpack.c.h.b16 %v2513
  %v2593 = vunpack.c.l.b16 %v2514
  %v2594 = vunpack.c.l.b16 %v2515
  %v2595 = vunpack.c.h.b16 %v2515
  %v2596 = vunpack.c.l.b16 %v2516
  %v2597 = vpack.c.b16 %v2552, %v2549
  %v2598 = vpack.c.b16 %v2553, %v2550
  %v2599 = vpack.c.b16 %v2554, %v2551
  %v2600 = vpack.c.b16 %v2558, %v2555
  %v2601 = vpack.c.b16 %v2559, %v2556
  %v2602 = vpack.c.b16 %v2560, %v2557
  %v2603 = vpack.c.b16 %v2564, %v2561
  %v2604 = vpack.c.b16 %v2565, %v2562
  %v2605 = vpack.c.b16 %v2566, %v2563
  %v2606 = vpack.c.b16 %v2570, %v2567
  %v2607 = vpack.c.b16 %v2571, %v2568
  %v2608 = vpack.c.b16 %v2572, %v2569
  %v2609 = vpack.c.b16 %v2576, %v2573
  %v2610 = vpack.c.b16 %v2577, %v2574
  %v2611 = vpack.c.b16 %v2578, %v2575
  %v2612 = vpack.c.b16 %v2582, %v2579
  %v2613 = vpack.c.b16 %v2583, %v2580
  %v2614 = vpack.c.b16 %v2584, %v2581
  %v2615 = vpack.c.b16 %v2588, %v2585
  %v2616 = vpack.c.b16 %v2589, %v2586
  %v2617 = vpack.c.b16 %v2590, %v2587
  %v2618 = vpack.c.b16 %v2594, %v2591
  %v2619 = vpack.c.b16 %v2595, %v2592
  %v2620 = vpack.c.b16 %v2596, %v2593
  %2645 = vmatpush.bf16.msra.mxu0 %v2618
  %2646 = vmatpush.bf16.msra.mxu0 %v2615
  %2647 = vmatpush.bf16.msra.mxu0 %v2612
  %2648 = vmatpush.bf16.msra.mxu0 %v2609
  %2649 = vmatpush.bf16.msra.mxu0 %v2606
  %2650 = vmatpush.bf16.msra.mxu0 %v2603
  %2651 = vmatpush.bf16.msra.mxu0 %v2600
  %2652 = vmatpush.bf16.msra.mxu0 %v2597
  %2653 = vmatmul.bf16.gmra.mxu0 %v2484
  %v2654 = vpop.f32.mrf.mxu0
  %v2655 = vadd.f32 0.0, %v2654
  %v2656 = vpop.f32.mrf.mxu0
  %v2657 = vadd.f32 0.0, %v2656
  %2658 = vdwg.mxu0
  %2659 = vmatpush.bf16.msra.mxu0 %v2619
  %2660 = vmatpush.bf16.msra.mxu0 %v2616
  %2661 = vmatpush.bf16.msra.mxu0 %v2613
  %2662 = vmatpush.bf16.msra.mxu0 %v2610
  %2663 = vmatpush.bf16.msra.mxu0 %v2607
  %2664 = vmatpush.bf16.msra.mxu0 %v2604
  %2665 = vmatpush.bf16.msra.mxu0 %v2601
  %2666 = vmatpush.bf16.msra.mxu0 %v2598
  %2667 = vmatmul.bf16.gmra.mxu0 %v2484
  %v2668 = vpop.f32.mrf.mxu0
  %v2669 = vadd.f32 0.0, %v2668
  %v2670 = vpop.f32.mrf.mxu0
  %v2671 = vadd.f32 0.0, %v2670
  %2672 = vdwg.mxu0
  %2673 = vmatpush.bf16.msra.mxu0 %v2620
  %2674 = vmatpush.bf16.msra.mxu0 %v2617
  %2675 = vmatpush.bf16.msra.mxu0 %v2614
  %2676 = vmatpush.bf16.msra.mxu0 %v2611
  %2677 = vmatpush.bf16.msra.mxu0 %v2608
  %2678 = vmatpush.bf16.msra.mxu0 %v2605
  %2679 = vmatpush.bf16.msra.mxu0 %v2602
  %2680 = vmatpush.bf16.msra.mxu0 %v2599
  %2681 = vmatmul.bf16.gmra.mxu0 %v2484
  %v2682 = vpop.f32.mrf.mxu0
  %v2683 = vadd.f32 0.0, %v2682
  %v2684 = vpop.f32.mrf.mxu0
  %v2685 = vadd.f32 0.0, %v2684
  %2686 = vdwg.mxu0
  %v2687 = vadd.f32 %v2476, %v2655
  %v2688 = vadd.f32 %v2479, %v2657
  %v2689 = vxor.u32 %v2687, 2147483648
  %v2690 = vxor.u32 %v2688, 2147483648
  %v2691 = vmul.f32 %v2689, 1.442695
  %v2692 = vpow.pop %v2691
  %v2693 = vmul.f32 %v2690, 1.442695
  %v2694 = vpow.pop %v2693
  %v2695 = vadd.f32 %v2692, 1.0
  %v2696 = vadd.f32 %v2694, 1.0
  %v2697 = vrcp.pop %v2695
  %v2698 = vmul.f32 %v2695, %v2697
  %v2699 = vsub.f32 1.0, %v2698
  %v2700 = vmul.f32 %v2697, %v2699
  %v2701 = vadd.f32 %v2697, %v2700
  %vm2702 = vweird.f32 %v2695
  %vm2703 = vweird.f32 %v2697
  %vm2704 = vmor %vm2702, %vm2703
  %v2705 = vsel %vm2704, %v2697, %v2701
  %v2706 = vand.u32 2147483647, %v2695
  %vm2707 = vcmp.eq.f32.partialorder %v2706, 8.507059e+37
  %v2708 = vand.u32 %v2695, 2147483648
  %v2709 = vor.u32 1.1754944e-38, %v2708
  %v2710 = vsel %vm2707, %v2709, %v2705
  %v2711 = vmul.f32 1.0, %v2710
  %v2712 = vrcp.pop %v2696
  %v2713 = vmul.f32 %v2696, %v2712
  %v2714 = vsub.f32 1.0, %v2713
  %v2715 = vmul.f32 %v2712, %v2714
  %v2716 = vadd.f32 %v2712, %v2715
  %vm2717 = vweird.f32 %v2696
  %vm2718 = vweird.f32 %v2712
  %vm2719 = vmor %vm2717, %vm2718
  %v2720 = vsel %vm2719, %v2712, %v2716
  %v2721 = vand.u32 2147483647, %v2696
  %vm2722 = vcmp.eq.f32.partialorder %v2721, 8.507059e+37
  %v2723 = vand.u32 %v2696, 2147483648
  %v2724 = vor.u32 1.1754944e-38, %v2723
  %v2725 = vsel %vm2722, %v2724, %v2720
  %v2726 = vmul.f32 1.0, %v2725
  %v2727 = vadd.f32 %v2477, %v2669
  %v2728 = vadd.f32 %v2480, %v2671
  %v2729 = vxor.u32 %v2727, 2147483648
  %v2730 = vxor.u32 %v2728, 2147483648
  %v2731 = vmul.f32 %v2729, 1.442695
  %v2732 = vpow.pop %v2731
  %v2733 = vmul.f32 %v2730, 1.442695
  %v2734 = vpow.pop %v2733
  %v2735 = vadd.f32 %v2732, 1.0
  %v2736 = vadd.f32 %v2734, 1.0
  %v2737 = vrcp.pop %v2735
  %v2738 = vmul.f32 %v2735, %v2737
  %v2739 = vsub.f32 1.0, %v2738
  %v2740 = vmul.f32 %v2737, %v2739
  %v2741 = vadd.f32 %v2737, %v2740
  %vm2742 = vweird.f32 %v2735
  %vm2743 = vweird.f32 %v2737
  %vm2744 = vmor %vm2742, %vm2743
  %v2745 = vsel %vm2744, %v2737, %v2741
  %v2746 = vand.u32 2147483647, %v2735
  %vm2747 = vcmp.eq.f32.partialorder %v2746, 8.507059e+37
  %v2748 = vand.u32 %v2735, 2147483648
  %v2749 = vor.u32 1.1754944e-38, %v2748
  %v2750 = vsel %vm2747, %v2749, %v2745
  %v2751 = vmul.f32 1.0, %v2750
  %v2752 = vrcp.pop %v2736
  %v2753 = vmul.f32 %v2736, %v2752
  %v2754 = vsub.f32 1.0, %v2753
  %v2755 = vmul.f32 %v2752, %v2754
  %v2756 = vadd.f32 %v2752, %v2755
  %vm2757 = vweird.f32 %v2736
  %vm2758 = vweird.f32 %v2752
  %vm2759 = vmor %vm2757, %vm2758
  %v2760 = vsel %vm2759, %v2752, %v2756
  %v2761 = vand.u32 2147483647, %v2736
  %vm2762 = vcmp.eq.f32.partialorder %v2761, 8.507059e+37
  %v2763 = vand.u32 %v2736, 2147483648
  %v2764 = vor.u32 1.1754944e-38, %v2763
  %v2765 = vsel %vm2762, %v2764, %v2760
  %v2766 = vmul.f32 1.0, %v2765
  %v2767 = vadd.f32 %v2683, %v1115
  %v2768 = vadd.f32 %v2685, %v1115
  %v2769 = vmul.f32 %v2711, %v2767
  %v2770 = vmul.f32 %v2726, %v2768
  %v2771 = vadd.f32 %v2478, %v2769
  %v2772 = vadd.f32 %v2481, %v2770
  %v2773 = vtanh.pop %v2771
  %v2774 = vtanh.pop %v2772
  %v2775 = vsub.f32 1.0, %v2751
  %v2776 = vsub.f32 1.0, %v2766
  %v2777 = vmul.f32 %v2775, %v2773
  %v2778 = vmul.f32 %v2776, %v2774
  %v2779 = vmul.f32 %v2751, %v2482
  %v2780 = vmul.f32 %v2766, %v2483
  %v2781 = vadd.f32 %v2777, %v2779
  %v2782 = vadd.f32 %v2778, %v2780
  %vm2783 = vcmp.gt.s32.totalorder %v813, 2
  %vm2784 = vcmp.gt.s32.totalorder %v814, 2
  %v2785 = vsel %vm2783, 1, 0
  %v2786 = vsel %vm2784, 1, 0
  %2787 = vset.pattern.permute.xlu0 0
  %2788 = vperm.xlu0 %2787, %v2785
  %v2789 = vpop.permute.xlu0 %2788
  %2790 = vset.pattern.permute.xlu0 0
  %2791 = vperm.xlu0 %2790, %v2786
  %v2792 = vpop.permute.xlu0 %2791
  %vm2793 = vcmp.eq.s32.totalorder %v2789, 1
  %vm2794 = vcmp.eq.s32.totalorder %v2792, 1
  %v2795 = vsel %vm2793, %v2781, %v2482
  %v2796 = vsel %vm2794, %v2782, %v2483
  %2797 = vst [vmem:[#allocation3] sm:$0xff] %v2795
  %2798 = vst [vmem:[#allocation3 + $0x8] sm:$0xff] %v2796
  %s2799 = smul.u32 2, 3
  %s2800 = smul.addr %s2799, 4
  %s2801 = scalar_lea.vmem [#allocation2], %s2800
  %v2802 = vld [vmem:[%s2801] sm:$0xff]
  %v2803 = vld [vmem:[%s2801 + $0x8] sm:$0xf]
  %v2804 = vld [vmem:[%s2801 + $0xc] sm:$0xff]
  %v2805 = vld [vmem:[%s2801 + $0x14] sm:$0xf]
  %v2806 = vunpack.c.l.bf16 %v2802
  %v2807 = vunpack.c.h.bf16 %v2802
  %v2808 = vunpack.c.l.bf16 %v2803
  %v2809 = vunpack.c.l.bf16 %v2804
  %v2810 = vunpack.c.h.bf16 %v2804
  %v2811 = vunpack.c.l.bf16 %v2805
  %v2812 = vld [vmem:[#allocation3] sm:$0xff]
  %v2813 = vld [vmem:[#allocation3 + $0x8] sm:$0xff]
  %v2814 = vpack.c.bf16 %v2813, %v2812
  %v2815 = vld [vmem:[%s4] sm:$0xff]
  %v2816 = vld [vmem:[%s4 + $0x8] sm:$0xf]
  %v2817 = vld [vmem:[%s4 + $0xc] sm:$0xff]
  %v2818 = vld [vmem:[%s4 + $0x14] sm:$0xf]
  %v2819 = vld [vmem:[%s4 + $0x18] sm:$0xff]
  %v2820 = vld [vmem:[%s4 + $0x20] sm:$0xf]
  %v2821 = vld [vmem:[%s4 + $0x24] sm:$0xff]
  %v2822 = vld [vmem:[%s4 + $0x2c] sm:$0xf]
  %v2823 = vld [vmem:[%s4 + $0x30] sm:$0xff]
  %v2824 = vld [vmem:[%s4 + $0x38] sm:$0xf]
  %v2825 = vld [vmem:[%s4 + $0x3c] sm:$0xff]
  %v2826 = vld [vmem:[%s4 + $0x44] sm:$0xf]
  %v2827 = vld [vmem:[%s4 + $0x48] sm:$0xff]
  %v2828 = vld [vmem:[%s4 + $0x50] sm:$0xf]
  %v2829 = vld [vmem:[%s4 + $0x54] sm:$0xff]
  %v2830 = vld [vmem:[%s4 + $0x5c] sm:$0xf]
  %v2831 = vld [vmem:[%s4 + $0x60] sm:$0xff]
  %v2832 = vld [vmem:[%s4 + $0x68] sm:$0xf]
  %v2833 = vld [vmem:[%s4 + $0x6c] sm:$0xff]
  %v2834 = vld [vmem:[%s4 + $0x74] sm:$0xf]
  %v2835 = vld [vmem:[%s4 + $0x78] sm:$0xff]
  %v2836 = vld [vmem:[%s4 + $0x80] sm:$0xf]
  %v2837 = vld [vmem:[%s4 + $0x84] sm:$0xff]
  %v2838 = vld [vmem:[%s4 + $0x8c] sm:$0xf]
  %v2839 = vld [vmem:[%s4 + $0x90] sm:$0xff]
  %v2840 = vld [vmem:[%s4 + $0x98] sm:$0xf]
  %v2841 = vld [vmem:[%s4 + $0x9c] sm:$0xff]
  %v2842 = vld [vmem:[%s4 + $0xa4] sm:$0xf]
  %v2843 = vld [vmem:[%s4 + $0xa8] sm:$0xff]
  %v2844 = vld [vmem:[%s4 + $0xb0] sm:$0xf]
  %v2845 = vld [vmem:[%s4 + $0xb4] sm:$0xff]
  %v2846 = vld [vmem:[%s4 + $0xbc] sm:$0xf]
  %v2879 = vunpack.c.l.b16 %v2815
  %v2880 = vunpack.c.h.b16 %v2815
  %v2881 = vunpack.c.l.b16 %v2816
  %v2882 = vunpack.c.l.b16 %v2817
  %v2883 = vunpack.c.h.b16 %v2817
  %v2884 = vunpack.c.l.b16 %v2818
  %v2885 = vunpack.c.l.b16 %v2819
  %v2886 = vunpack.c.h.b16 %v2819
  %v2887 = vunpack.c.l.b16 %v2820
  %v2888 = vunpack.c.l.b16 %v2821
  %v2889 = vunpack.c.h.b16 %v2821
  %v2890 = vunpack.c.l.b16 %v2822
  %v2891 = vunpack.c.l.b16 %v2823
  %v2892 = vunpack.c.h.b16 %v2823
  %v2893 = vunpack.c.l.b16 %v2824
  %v2894 = vunpack.c.l.b16 %v2825
  %v2895 = vunpack.c.h.b16 %v2825
  %v2896 = vunpack.c.l.b16 %v2826
  %v2897 = vunpack.c.l.b16 %v2827
  %v2898 = vunpack.c.h.b16 %v2827
  %v2899 = vunpack.c.l.b16 %v2828
  %v2900 = vunpack.c.l.b16 %v2829
  %v2901 = vunpack.c.h.b16 %v2829
  %v2902 = vunpack.c.l.b16 %v2830
  %v2903 = vunpack.c.l.b16 %v2831
  %v2904 = vunpack.c.h.b16 %v2831
  %v2905 = vunpack.c.l.b16 %v2832
  %v2906 = vunpack.c.l.b16 %v2833
  %v2907 = vunpack.c.h.b16 %v2833
  %v2908 = vunpack.c.l.b16 %v2834
  %v2909 = vunpack.c.l.b16 %v2835
  %v2910 = vunpack.c.h.b16 %v2835
  %v2911 = vunpack.c.l.b16 %v2836
  %v2912 = vunpack.c.l.b16 %v2837
  %v2913 = vunpack.c.h.b16 %v2837
  %v2914 = vunpack.c.l.b16 %v2838
  %v2915 = vunpack.c.l.b16 %v2839
  %v2916 = vunpack.c.h.b16 %v2839
  %v2917 = vunpack.c.l.b16 %v2840
  %v2918 = vunpack.c.l.b16 %v2841
  %v2919 = vunpack.c.h.b16 %v2841
  %v2920 = vunpack.c.l.b16 %v2842
  %v2921 = vunpack.c.l.b16 %v2843
  %v2922 = vunpack.c.h.b16 %v2843
  %v2923 = vunpack.c.l.b16 %v2844
  %v2924 = vunpack.c.l.b16 %v2845
  %v2925 = vunpack.c.h.b16 %v2845
  %v2926 = vunpack.c.l.b16 %v2846
  %v2927 = vpack.c.b16 %v2882, %v2879
  %v2928 = vpack.c.b16 %v2883, %v2880
  %v2929 = vpack.c.b16 %v2884, %v2881
  %v2930 = vpack.c.b16 %v2888, %v2885
  %v2931 = vpack.c.b16 %v2889, %v2886
  %v2932 = vpack.c.b16 %v2890, %v2887
  %v2933 = vpack.c.b16 %v2894, %v2891
  %v2934 = vpack.c.b16 %v2895, %v2892
  %v2935 = vpack.c.b16 %v2896, %v2893
  %v2936 = vpack.c.b16 %v2900, %v2897
  %v2937 = vpack.c.b16 %v2901, %v2898
  %v2938 = vpack.c.b16 %v2902, %v2899
  %v2939 = vpack.c.b16 %v2906, %v2903
  %v2940 = vpack.c.b16 %v2907, %v2904
  %v2941 = vpack.c.b16 %v2908, %v2905
  %v2942 = vpack.c.b16 %v2912, %v2909
  %v2943 = vpack.c.b16 %v2913, %v2910
  %v2944 = vpack.c.b16 %v2914, %v2911
  %v2945 = vpack.c.b16 %v2918, %v2915
  %v2946 = vpack.c.b16 %v2919, %v2916
  %v2947 = vpack.c.b16 %v2920, %v2917
  %v2948 = vpack.c.b16 %v2924, %v2921
  %v2949 = vpack.c.b16 %v2925, %v2922
  %v2950 = vpack.c.b16 %v2926, %v2923
  %2975 = vmatpush.bf16.msra.mxu0 %v2948
  %2976 = vmatpush.bf16.msra.mxu0 %v2945
  %2977 = vmatpush.bf16.msra.mxu0 %v2942
  %2978 = vmatpush.bf16.msra.mxu0 %v2939
  %2979 = vmatpush.bf16.msra.mxu0 %v2936
  %2980 = vmatpush.bf16.msra.mxu0 %v2933
  %2981 = vmatpush.bf16.msra.mxu0 %v2930
  %2982 = vmatpush.bf16.msra.mxu0 %v2927
  %2983 = vmatmul.bf16.gmra.mxu0 %v2814
  %v2984 = vpop.f32.mrf.mxu0
  %v2985 = vadd.f32 0.0, %v2984
  %v2986 = vpop.f32.mrf.mxu0
  %v2987 = vadd.f32 0.0, %v2986
  %2988 = vdwg.mxu0
  %2989 = vmatpush.bf16.msra.mxu0 %v2949
  %2990 = vmatpush.bf16.msra.mxu0 %v2946
  %2991 = vmatpush.bf16.msra.mxu0 %v2943
  %2992 = vmatpush.bf16.msra.mxu0 %v2940
  %2993 = vmatpush.bf16.msra.mxu0 %v2937
  %2994 = vmatpush.bf16.msra.mxu0 %v2934
  %2995 = vmatpush.bf16.msra.mxu0 %v2931
  %2996 = vmatpush.bf16.msra.mxu0 %v2928
  %2997 = vmatmul.bf16.gmra.mxu0 %v2814
  %v2998 = vpop.f32.mrf.mxu0
  %v2999 = vadd.f32 0.0, %v2998
  %v3000 = vpop.f32.mrf.mxu0
  %v3001 = vadd.f32 0.0, %v3000
  %3002 = vdwg.mxu0
  %3003 = vmatpush.bf16.msra.mxu0 %v2950
  %3004 = vmatpush.bf16.msra.mxu0 %v2947
  %3005 = vmatpush.bf16.msra.mxu0 %v2944
  %3006 = vmatpush.bf16.msra.mxu0 %v2941
  %3007 = vmatpush.bf16.msra.mxu0 %v2938
  %3008 = vmatpush.bf16.msra.mxu0 %v2935
  %3009 = vmatpush.bf16.msra.mxu0 %v2932
  %3010 = vmatpush.bf16.msra.mxu0 %v2929
  %3011 = vmatmul.bf16.gmra.mxu0 %v2814
  %v3012 = vpop.f32.mrf.mxu0
  %v3013 = vadd.f32 0.0, %v3012
  %v3014 = vpop.f32.mrf.mxu0
  %v3015 = vadd.f32 0.0, %v3014
  %3016 = vdwg.mxu0
  %v3017 = vadd.f32 %v2806, %v2985
  %v3018 = vadd.f32 %v2809, %v2987
  %v3019 = vxor.u32 %v3017, 2147483648
  %v3020 = vxor.u32 %v3018, 2147483648
  %v3021 = vmul.f32 %v3019, 1.442695
  %v3022 = vpow.pop %v3021
  %v3023 = vmul.f32 %v3020, 1.442695
  %v3024 = vpow.pop %v3023
  %v3025 = vadd.f32 %v3022, 1.0
  %v3026 = vadd.f32 %v3024, 1.0
  %v3027 = vrcp.pop %v3025
  %v3028 = vmul.f32 %v3025, %v3027
  %v3029 = vsub.f32 1.0, %v3028
  %v3030 = vmul.f32 %v3027, %v3029
  %v3031 = vadd.f32 %v3027, %v3030
  %vm3032 = vweird.f32 %v3025
  %vm3033 = vweird.f32 %v3027
  %vm3034 = vmor %vm3032, %vm3033
  %v3035 = vsel %vm3034, %v3027, %v3031
  %v3036 = vand.u32 2147483647, %v3025
  %vm3037 = vcmp.eq.f32.partialorder %v3036, 8.507059e+37
  %v3038 = vand.u32 %v3025, 2147483648
  %v3039 = vor.u32 1.1754944e-38, %v3038
  %v3040 = vsel %vm3037, %v3039, %v3035
  %v3041 = vmul.f32 1.0, %v3040
  %v3042 = vrcp.pop %v3026
  %v3043 = vmul.f32 %v3026, %v3042
  %v3044 = vsub.f32 1.0, %v3043
  %v3045 = vmul.f32 %v3042, %v3044
  %v3046 = vadd.f32 %v3042, %v3045
  %vm3047 = vweird.f32 %v3026
  %vm3048 = vweird.f32 %v3042
  %vm3049 = vmor %vm3047, %vm3048
  %v3050 = vsel %vm3049, %v3042, %v3046
  %v3051 = vand.u32 2147483647, %v3026
  %vm3052 = vcmp.eq.f32.partialorder %v3051, 8.507059e+37
  %v3053 = vand.u32 %v3026, 2147483648
  %v3054 = vor.u32 1.1754944e-38, %v3053
  %v3055 = vsel %vm3052, %v3054, %v3050
  %v3056 = vmul.f32 1.0, %v3055
  %v3057 = vadd.f32 %v2807, %v2999
  %v3058 = vadd.f32 %v2810, %v3001
  %v3059 = vxor.u32 %v3057, 2147483648
  %v3060 = vxor.u32 %v3058, 2147483648
  %v3061 = vmul.f32 %v3059, 1.442695
  %v3062 = vpow.pop %v3061
  %v3063 = vmul.f32 %v3060, 1.442695
  %v3064 = vpow.pop %v3063
  %v3065 = vadd.f32 %v3062, 1.0
  %v3066 = vadd.f32 %v3064, 1.0
  %v3067 = vrcp.pop %v3065
  %v3068 = vmul.f32 %v3065, %v3067
  %v3069 = vsub.f32 1.0, %v3068
  %v3070 = vmul.f32 %v3067, %v3069
  %v3071 = vadd.f32 %v3067, %v3070
  %vm3072 = vweird.f32 %v3065
  %vm3073 = vweird.f32 %v3067
  %vm3074 = vmor %vm3072, %vm3073
  %v3075 = vsel %vm3074, %v3067, %v3071
  %v3076 = vand.u32 2147483647, %v3065
  %vm3077 = vcmp.eq.f32.partialorder %v3076, 8.507059e+37
  %v3078 = vand.u32 %v3065, 2147483648
  %v3079 = vor.u32 1.1754944e-38, %v3078
  %v3080 = vsel %vm3077, %v3079, %v3075
  %v3081 = vmul.f32 1.0, %v3080
  %v3082 = vrcp.pop %v3066
  %v3083 = vmul.f32 %v3066, %v3082
  %v3084 = vsub.f32 1.0, %v3083
  %v3085 = vmul.f32 %v3082, %v3084
  %v3086 = vadd.f32 %v3082, %v3085
  %vm3087 = vweird.f32 %v3066
  %vm3088 = vweird.f32 %v3082
  %vm3089 = vmor %vm3087, %vm3088
  %v3090 = vsel %vm3089, %v3082, %v3086
  %v3091 = vand.u32 2147483647, %v3066
  %vm3092 = vcmp.eq.f32.partialorder %v3091, 8.507059e+37
  %v3093 = vand.u32 %v3066, 2147483648
  %v3094 = vor.u32 1.1754944e-38, %v3093
  %v3095 = vsel %vm3092, %v3094, %v3090
  %v3096 = vmul.f32 1.0, %v3095
  %v3097 = vadd.f32 %v3013, %v1115
  %v3098 = vadd.f32 %v3015, %v1115
  %v3099 = vmul.f32 %v3041, %v3097
  %v3100 = vmul.f32 %v3056, %v3098
  %v3101 = vadd.f32 %v2808, %v3099
  %v3102 = vadd.f32 %v2811, %v3100
  %v3103 = vtanh.pop %v3101
  %v3104 = vtanh.pop %v3102
  %v3105 = vsub.f32 1.0, %v3081
  %v3106 = vsub.f32 1.0, %v3096
  %v3107 = vmul.f32 %v3105, %v3103
  %v3108 = vmul.f32 %v3106, %v3104
  %v3109 = vmul.f32 %v3081, %v2812
  %v3110 = vmul.f32 %v3096, %v2813
  %v3111 = vadd.f32 %v3107, %v3109
  %v3112 = vadd.f32 %v3108, %v3110
  %vm3113 = vcmp.gt.s32.totalorder %v813, 1
  %vm3114 = vcmp.gt.s32.totalorder %v814, 1
  %v3115 = vsel %vm3113, 1, 0
  %v3116 = vsel %vm3114, 1, 0
  %3117 = vset.pattern.permute.xlu0 0
  %3118 = vperm.xlu0 %3117, %v3115
  %v3119 = vpop.permute.xlu0 %3118
  %3120 = vset.pattern.permute.xlu0 0
  %3121 = vperm.xlu0 %3120, %v3116
  %v3122 = vpop.permute.xlu0 %3121
  %vm3123 = vcmp.eq.s32.totalorder %v3119, 1
  %vm3124 = vcmp.eq.s32.totalorder %v3122, 1
  %v3125 = vsel %vm3123, %v3111, %v2812
  %v3126 = vsel %vm3124, %v3112, %v2813
  %3127 = vst [vmem:[#allocation3] sm:$0xff] %v3125
  %3128 = vst [vmem:[#allocation3 + $0x8] sm:$0xff] %v3126
  %s3129 = smul.u32 0, 3
  %s3130 = smul.addr %s3129, 4
  %s3131 = scalar_lea.vmem [#allocation2], %s3130
  %v3132 = vld [vmem:[%s3131] sm:$0xff]
  %v3133 = vld [vmem:[%s3131 + $0x8] sm:$0xf]
  %v3134 = vld [vmem:[%s3131 + $0xc] sm:$0xff]
  %v3135 = vld [vmem:[%s3131 + $0x14] sm:$0xf]
  %v3136 = vunpack.c.l.bf16 %v3132
  %v3137 = vunpack.c.h.bf16 %v3132
  %v3138 = vunpack.c.l.bf16 %v3133
  %v3139 = vunpack.c.l.bf16 %v3134
  %v3140 = vunpack.c.h.bf16 %v3134
  %v3141 = vunpack.c.l.bf16 %v3135
  %v3142 = vld [vmem:[#allocation3] sm:$0xff]
  %v3143 = vld [vmem:[#allocation3 + $0x8] sm:$0xff]
  %v3144 = vpack.c.bf16 %v3143, %v3142
  %v3145 = vld [vmem:[%s4] sm:$0xff]
  %v3146 = vld [vmem:[%s4 + $0x8] sm:$0xf]
  %v3147 = vld [vmem:[%s4 + $0xc] sm:$0xff]
  %v3148 = vld [vmem:[%s4 + $0x14] sm:$0xf]
  %v3149 = vld [vmem:[%s4 + $0x18] sm:$0xff]
  %v3150 = vld [vmem:[%s4 + $0x20] sm:$0xf]
  %v3151 = vld [vmem:[%s4 + $0x24] sm:$0xff]
  %v3152 = vld [vmem:[%s4 + $0x2c] sm:$0xf]
  %v3153 = vld [vmem:[%s4 + $0x30] sm:$0xff]
  %v3154 = vld [vmem:[%s4 + $0x38] sm:$0xf]
  %v3155 = vld [vmem:[%s4 + $0x3c] sm:$0xff]
  %v3156 = vld [vmem:[%s4 + $0x44] sm:$0xf]
  %v3157 = vld [vmem:[%s4 + $0x48] sm:$0xff]
  %v3158 = vld [vmem:[%s4 + $0x50] sm:$0xf]
  %v3159 = vld [vmem:[%s4 + $0x54] sm:$0xff]
  %v3160 = vld [vmem:[%s4 + $0x5c] sm:$0xf]
  %v3161 = vld [vmem:[%s4 + $0x60] sm:$0xff]
  %v3162 = vld [vmem:[%s4 + $0x68] sm:$0xf]
  %v3163 = vld [vmem:[%s4 + $0x6c] sm:$0xff]
  %v3164 = vld [vmem:[%s4 + $0x74] sm:$0xf]
  %v3165 = vld [vmem:[%s4 + $0x78] sm:$0xff]
  %v3166 = vld [vmem:[%s4 + $0x80] sm:$0xf]
  %v3167 = vld [vmem:[%s4 + $0x84] sm:$0xff]
  %v3168 = vld [vmem:[%s4 + $0x8c] sm:$0xf]
  %v3169 = vld [vmem:[%s4 + $0x90] sm:$0xff]
  %v3170 = vld [vmem:[%s4 + $0x98] sm:$0xf]
  %v3171 = vld [vmem:[%s4 + $0x9c] sm:$0xff]
  %v3172 = vld [vmem:[%s4 + $0xa4] sm:$0xf]
  %v3173 = vld [vmem:[%s4 + $0xa8] sm:$0xff]
  %v3174 = vld [vmem:[%s4 + $0xb0] sm:$0xf]
  %v3175 = vld [vmem:[%s4 + $0xb4] sm:$0xff]
  %v3176 = vld [vmem:[%s4 + $0xbc] sm:$0xf]
  %v3209 = vunpack.c.l.b16 %v3145
  %v3210 = vunpack.c.h.b16 %v3145
  %v3211 = vunpack.c.l.b16 %v3146
  %v3212 = vunpack.c.l.b16 %v3147
  %v3213 = vunpack.c.h.b16 %v3147
  %v3214 = vunpack.c.l.b16 %v3148
  %v3215 = vunpack.c.l.b16 %v3149
  %v3216 = vunpack.c.h.b16 %v3149
  %v3217 = vunpack.c.l.b16 %v3150
  %v3218 = vunpack.c.l.b16 %v3151
  %v3219 = vunpack.c.h.b16 %v3151
  %v3220 = vunpack.c.l.b16 %v3152
  %v3221 = vunpack.c.l.b16 %v3153
  %v3222 = vunpack.c.h.b16 %v3153
  %v3223 = vunpack.c.l.b16 %v3154
  %v3224 = vunpack.c.l.b16 %v3155
  %v3225 = vunpack.c.h.b16 %v3155
  %v3226 = vunpack.c.l.b16 %v3156
  %v3227 = vunpack.c.l.b16 %v3157
  %v3228 = vunpack.c.h.b16 %v3157
  %v3229 = vunpack.c.l.b16 %v3158
  %v3230 = vunpack.c.l.b16 %v3159
  %v3231 = vunpack.c.h.b16 %v3159
  %v3232 = vunpack.c.l.b16 %v3160
  %v3233 = vunpack.c.l.b16 %v3161
  %v3234 = vunpack.c.h.b16 %v3161
  %v3235 = vunpack.c.l.b16 %v3162
  %v3236 = vunpack.c.l.b16 %v3163
  %v3237 = vunpack.c.h.b16 %v3163
  %v3238 = vunpack.c.l.b16 %v3164
  %v3239 = vunpack.c.l.b16 %v3165
  %v3240 = vunpack.c.h.b16 %v3165
  %v3241 = vunpack.c.l.b16 %v3166
  %v3242 = vunpack.c.l.b16 %v3167
  %v3243 = vunpack.c.h.b16 %v3167
  %v3244 = vunpack.c.l.b16 %v3168
  %v3245 = vunpack.c.l.b16 %v3169
  %v3246 = vunpack.c.h.b16 %v3169
  %v3247 = vunpack.c.l.b16 %v3170
  %v3248 = vunpack.c.l.b16 %v3171
  %v3249 = vunpack.c.h.b16 %v3171
  %v3250 = vunpack.c.l.b16 %v3172
  %v3251 = vunpack.c.l.b16 %v3173
  %v3252 = vunpack.c.h.b16 %v3173
  %v3253 = vunpack.c.l.b16 %v3174
  %v3254 = vunpack.c.l.b16 %v3175
  %v3255 = vunpack.c.h.b16 %v3175
  %v3256 = vunpack.c.l.b16 %v3176
  %v3257 = vpack.c.b16 %v3212, %v3209
  %v3258 = vpack.c.b16 %v3213, %v3210
  %v3259 = vpack.c.b16 %v3214, %v3211
  %v3260 = vpack.c.b16 %v3218, %v3215
  %v3261 = vpack.c.b16 %v3219, %v3216
  %v3262 = vpack.c.b16 %v3220, %v3217
  %v3263 = vpack.c.b16 %v3224, %v3221
  %v3264 = vpack.c.b16 %v3225, %v3222
  %v3265 = vpack.c.b16 %v3226, %v3223
  %v3266 = vpack.c.b16 %v3230, %v3227
  %v3267 = vpack.c.b16 %v3231, %v3228
  %v3268 = vpack.c.b16 %v3232, %v3229
  %v3269 = vpack.c.b16 %v3236, %v3233
  %v3270 = vpack.c.b16 %v3237, %v3234
  %v3271 = vpack.c.b16 %v3238, %v3235
  %v3272 = vpack.c.b16 %v3242, %v3239
  %v3273 = vpack.c.b16 %v3243, %v3240
  %v3274 = vpack.c.b16 %v3244, %v3241
  %v3275 = vpack.c.b16 %v3248, %v3245
  %v3276 = vpack.c.b16 %v3249, %v3246
  %v3277 = vpack.c.b16 %v3250, %v3247
  %v3278 = vpack.c.b16 %v3254, %v3251
  %v3279 = vpack.c.b16 %v3255, %v3252
  %v3280 = vpack.c.b16 %v3256, %v3253
  %3305 = vmatpush.bf16.msra.mxu0 %v3278
  %3306 = vmatpush.bf16.msra.mxu0 %v3275
  %3307 = vmatpush.bf16.msra.mxu0 %v3272
  %3308 = vmatpush.bf16.msra.mxu0 %v3269
  %3309 = vmatpush.bf16.msra.mxu0 %v3266
  %3310 = vmatpush.bf16.msra.mxu0 %v3263
  %3311 = vmatpush.bf16.msra.mxu0 %v3260
  %3312 = vmatpush.bf16.msra.mxu0 %v3257
  %3313 = vmatmul.bf16.gmra.mxu0 %v3144
  %v3314 = vpop.f32.mrf.mxu0
  %v3315 = vadd.f32 0.0, %v3314
  %v3316 = vpop.f32.mrf.mxu0
  %v3317 = vadd.f32 0.0, %v3316
  %3318 = vdwg.mxu0
  %3319 = vmatpush.bf16.msra.mxu0 %v3279
  %3320 = vmatpush.bf16.msra.mxu0 %v3276
  %3321 = vmatpush.bf16.msra.mxu0 %v3273
  %3322 = vmatpush.bf16.msra.mxu0 %v3270
  %3323 = vmatpush.bf16.msra.mxu0 %v3267
  %3324 = vmatpush.bf16.msra.mxu0 %v3264
  %3325 = vmatpush.bf16.msra.mxu0 %v3261
  %3326 = vmatpush.bf16.msra.mxu0 %v3258
  %3327 = vmatmul.bf16.gmra.mxu0 %v3144
  %v3328 = vpop.f32.mrf.mxu0
  %v3329 = vadd.f32 0.0, %v3328
  %v3330 = vpop.f32.mrf.mxu0
  %v3331 = vadd.f32 0.0, %v3330
  %3332 = vdwg.mxu0
  %3333 = vmatpush.bf16.msra.mxu0 %v3280
  %3334 = vmatpush.bf16.msra.mxu0 %v3277
  %3335 = vmatpush.bf16.msra.mxu0 %v3274
  %3336 = vmatpush.bf16.msra.mxu0 %v3271
  %3337 = vmatpush.bf16.msra.mxu0 %v3268
  %3338 = vmatpush.bf16.msra.mxu0 %v3265
  %3339 = vmatpush.bf16.msra.mxu0 %v3262
  %3340 = vmatpush.bf16.msra.mxu0 %v3259
  %3341 = vmatmul.bf16.gmra.mxu0 %v3144
  %v3342 = vpop.f32.mrf.mxu0
  %v3343 = vadd.f32 0.0, %v3342
  %v3344 = vpop.f32.mrf.mxu0
  %v3345 = vadd.f32 0.0, %v3344
  %3346 = vdwg.mxu0
  %v3347 = vadd.f32 %v3136, %v3315
  %v3348 = vadd.f32 %v3139, %v3317
  %v3349 = vxor.u32 %v3347, 2147483648
  %v3350 = vxor.u32 %v3348, 2147483648
  %v3351 = vmul.f32 %v3349, 1.442695
  %v3352 = vpow.pop %v3351
  %v3353 = vmul.f32 %v3350, 1.442695
  %v3354 = vpow.pop %v3353
  %v3355 = vadd.f32 %v3352, 1.0
  %v3356 = vadd.f32 %v3354, 1.0
  %v3357 = vrcp.pop %v3355
  %v3358 = vmul.f32 %v3355, %v3357
  %v3359 = vsub.f32 1.0, %v3358
  %v3360 = vmul.f32 %v3357, %v3359
  %v3361 = vadd.f32 %v3357, %v3360
  %vm3362 = vweird.f32 %v3355
  %vm3363 = vweird.f32 %v3357
  %vm3364 = vmor %vm3362, %vm3363
  %v3365 = vsel %vm3364, %v3357, %v3361
  %v3366 = vand.u32 2147483647, %v3355
  %vm3367 = vcmp.eq.f32.partialorder %v3366, 8.507059e+37
  %v3368 = vand.u32 %v3355, 2147483648
  %v3369 = vor.u32 1.1754944e-38, %v3368
  %v3370 = vsel %vm3367, %v3369, %v3365
  %v3371 = vmul.f32 1.0, %v3370
  %v3372 = vrcp.pop %v3356
  %v3373 = vmul.f32 %v3356, %v3372
  %v3374 = vsub.f32 1.0, %v3373
  %v3375 = vmul.f32 %v3372, %v3374
  %v3376 = vadd.f32 %v3372, %v3375
  %vm3377 = vweird.f32 %v3356
  %vm3378 = vweird.f32 %v3372
  %vm3379 = vmor %vm3377, %vm3378
  %v3380 = vsel %vm3379, %v3372, %v3376
  %v3381 = vand.u32 2147483647, %v3356
  %vm3382 = vcmp.eq.f32.partialorder %v3381, 8.507059e+37
  %v3383 = vand.u32 %v3356, 2147483648
  %v3384 = vor.u32 1.1754944e-38, %v3383
  %v3385 = vsel %vm3382, %v3384, %v3380
  %v3386 = vmul.f32 1.0, %v3385
  %v3387 = vadd.f32 %v3137, %v3329
  %v3388 = vadd.f32 %v3140, %v3331
  %v3389 = vxor.u32 %v3387, 2147483648
  %v3390 = vxor.u32 %v3388, 2147483648
  %v3391 = vmul.f32 %v3389, 1.442695
  %v3392 = vpow.pop %v3391
  %v3393 = vmul.f32 %v3390, 1.442695
  %v3394 = vpow.pop %v3393
  %v3395 = vadd.f32 %v3392, 1.0
  %v3396 = vadd.f32 %v3394, 1.0
  %v3397 = vrcp.pop %v3395
  %v3398 = vmul.f32 %v3395, %v3397
  %v3399 = vsub.f32 1.0, %v3398
  %v3400 = vmul.f32 %v3397, %v3399
  %v3401 = vadd.f32 %v3397, %v3400
  %vm3402 = vweird.f32 %v3395
  %vm3403 = vweird.f32 %v3397
  %vm3404 = vmor %vm3402, %vm3403
  %v3405 = vsel %vm3404, %v3397, %v3401
  %v3406 = vand.u32 2147483647, %v3395
  %vm3407 = vcmp.eq.f32.partialorder %v3406, 8.507059e+37
  %v3408 = vand.u32 %v3395, 2147483648
  %v3409 = vor.u32 1.1754944e-38, %v3408
  %v3410 = vsel %vm3407, %v3409, %v3405
  %v3411 = vmul.f32 1.0, %v3410
  %v3412 = vrcp.pop %v3396
  %v3413 = vmul.f32 %v3396, %v3412
  %v3414 = vsub.f32 1.0, %v3413
  %v3415 = vmul.f32 %v3412, %v3414
  %v3416 = vadd.f32 %v3412, %v3415
  %vm3417 = vweird.f32 %v3396
  %vm3418 = vweird.f32 %v3412
  %vm3419 = vmor %vm3417, %vm3418
  %v3420 = vsel %vm3419, %v3412, %v3416
  %v3421 = vand.u32 2147483647, %v3396
  %vm3422 = vcmp.eq.f32.partialorder %v3421, 8.507059e+37
  %v3423 = vand.u32 %v3396, 2147483648
  %v3424 = vor.u32 1.1754944e-38, %v3423
  %v3425 = vsel %vm3422, %v3424, %v3420
  %v3426 = vmul.f32 1.0, %v3425
  %v3427 = vadd.f32 %v3343, %v1115
  %v3428 = vadd.f32 %v3345, %v1115
  %v3429 = vmul.f32 %v3371, %v3427
  %v3430 = vmul.f32 %v3386, %v3428
  %v3431 = vadd.f32 %v3138, %v3429
  %v3432 = vadd.f32 %v3141, %v3430
  %v3433 = vtanh.pop %v3431
  %v3434 = vtanh.pop %v3432
  %v3435 = vsub.f32 1.0, %v3411
  %v3436 = vsub.f32 1.0, %v3426
  %v3437 = vmul.f32 %v3435, %v3433
  %v3438 = vmul.f32 %v3436, %v3434
  %v3439 = vmul.f32 %v3411, %v3142
  %v3440 = vmul.f32 %v3426, %v3143
  %v3441 = vadd.f32 %v3437, %v3439
  %v3442 = vadd.f32 %v3438, %v3440
  %vm3443 = vcmp.gt.s32.totalorder %v813, 0
  %vm3444 = vcmp.gt.s32.totalorder %v814, 0
  %v3445 = vsel %vm3443, 1, 0
  %v3446 = vsel %vm3444, 1, 0
  %3447 = vset.pattern.permute.xlu0 0
  %3448 = vperm.xlu0 %3447, %v3445
  %v3449 = vpop.permute.xlu0 %3448
  %3450 = vset.pattern.permute.xlu0 0
  %3451 = vperm.xlu0 %3450, %v3446
  %v3452 = vpop.permute.xlu0 %3451
  %vm3453 = vcmp.eq.s32.totalorder %v3449, 1
  %vm3454 = vcmp.eq.s32.totalorder %v3452, 1
  %v3455 = vsel %vm3453, %v3441, %v3142
  %v3456 = vsel %vm3454, %v3442, %v3143
  %3457 = vst [vmem:[#allocation3] sm:$0xff] %v3455
  %3458 = vst [vmem:[#allocation3 + $0x8] sm:$0xff] %v3456
  %v3459 = vld [vmem:[#allocation3] sm:$0xff]
  %v3460 = vld [vmem:[#allocation3 + $0x8] sm:$0xff]
  %v3461 = vld [vmem:[%s6] sm:$0xff]
  %v3462 = vld [vmem:[%s6 + $0x8] sm:$0xff]
  %v3463 = vld [vmem:[%s6 + $0x10] sm:$0xff]
  %v3464 = vld [vmem:[%s6 + $0x18] sm:$0xff]
  %v3465 = vld [vmem:[%s6 + $0x20] sm:$0xff]
  %v3466 = vld [vmem:[%s6 + $0x28] sm:$0xff]
  %v3467 = vld [vmem:[%s6 + $0x30] sm:$0xff]
  %v3468 = vld [vmem:[%s6 + $0x38] sm:$0xff]
  %v3469 = vld [vmem:[%s6 + $0x40] sm:$0xff]
  %v3470 = vld [vmem:[%s6 + $0x48] sm:$0xff]
  %v3471 = vld [vmem:[%s6 + $0x50] sm:$0xff]
  %v3472 = vld [vmem:[%s6 + $0x58] sm:$0xff]
  %v3473 = vld [vmem:[%s6 + $0x60] sm:$0xff]
  %v3474 = vld [vmem:[%s6 + $0x68] sm:$0xff]
  %v3475 = vld [vmem:[%s6 + $0x70] sm:$0xff]
  %v3476 = vld [vmem:[%s6 + $0x78] sm:$0xff]
  %v3477 = vld [vmem:[%s7] sm:$0x1]
  %v3479 = vperm.slane %v3477, 0
  %3481 = vmatpush.msra.mxu0 %v3476
  %3482 = vmatpush.msra.mxu0 %v3475
  %3483 = vmatpush.msra.mxu0 %v3474
  %3484 = vmatpush.msra.mxu0 %v3473
  %3485 = vmatpush.msra.mxu0 %v3472
  %3486 = vmatpush.msra.mxu0 %v3471
  %3487 = vmatpush.msra.mxu0 %v3470
  %3488 = vmatpush.msra.mxu0 %v3469
  %3489 = vmatpush.msra.mxu0 %v3468
  %3490 = vmatpush.msra.mxu0 %v3467
  %3491 = vmatpush.msra.mxu0 %v3466
  %3492 = vmatpush.msra.mxu0 %v3465
  %3493 = vmatpush.msra.mxu0 %v3464
  %3494 = vmatpush.msra.mxu0 %v3463
  %3495 = vmatpush.msra.mxu0 %v3462
  %3496 = vmatpush.msra.mxu0 %v3461
  %3497 = vmatmul.f32.gmra.mxu0 %v3459
  %v3498 = vpop.f32.mrf.mxu0
  %v3499 = vadd.f32 %v3479, %v3498
  %3500 = vmatmul.f32.gmra.mxu0 %v3460
  %v3501 = vpop.f32.mrf.mxu0
  %v3502 = vadd.f32 %v3479, %v3501
  %3503 = vdwg.mxu0
  %3504 = vst [vmem:[%s8] sm:$0xff] %v3499
  %3505 = vst [vmem:[%s8 + $0x8] sm:$0xff] %v3502
  // Predicated region
  $region34: #{_lambda_.3} parent=0 // pred_check
    _
  $region35: #{_lambda_.3} parent=0 // pred_check_branch
    %3507 = sbr.rel (0) target = $region37
  $region36: #{_lambda_.3} parent=0 // pred_region
    _
  $region37: #{_lambda_.3} parent=0 // pred_fallthru
    _
  // Predicated region
  $region38: #{_lambda_.3} parent=0 // pred_check
    _
  $region39: #{_lambda_.3} parent=0 // pred_check_branch
    %3509 = sbr.rel (0) target = $region41
  $region40: #{_lambda_.3} parent=0 // pred_region
    _
  $region41: #{_lambda_.3} parent=0 // pred_fallthru
    _

// kernel: _lambda_.2
$region0: #{_lambda_.2}
  #allocation0 [shape = 'u32[]', space=smem, size = 0x4, offset = 0x4, fixed_abs, tag = 'smem constant byte address 0x4 - core index']
  #allocation1 [shape = 'u32[72,128]{1,0:T(1,128)}', space=vmem, size = 0x9000, scoped, tag = 'internal scratch']
  #allocation2 [shape = 'bf16[128,768]{1,0:T(8,128)(2,1)}', space=vmem, size = 0x30000, scoped, tag = 'scratch operand']
  #allocation3 [shape = 'f32[16,128]{1,0:T(8,128)}', space=vmem, size = 0x2000, scoped, tag = 'scratch operand']
  #allocation4 [shape = 'f32[16,128]{1,0:T(8,128)}', space=vmem, size = 0x2000, scoped, tag = 'scratch operand']
  %s0 = inlined_call_operand.vmem [shape: s32[16,1], index: 0, kind: input, shape index: {}]
  %s1 = inlined_call_operand.vmem [shape: bf16[8,16,128], index: 1, kind: input, shape index: {}]
  %s2 = inlined_call_operand.hbm [shape: bf16[128,768], index: 2, kind: input, shape index: {}]
  %s3 = inlined_call_operand.vmem [shape: f32[1,768], index: 3, kind: input, shape index: {}]
  %s4 = inlined_call_operand.hbm [shape: bf16[128,384], index: 4, kind: input, shape index: {}]
  %s5 = inlined_call_operand.vmem [shape: f32[1,128], index: 5, kind: input, shape index: {}]
  %s6 = inlined_call_operand.hbm [shape: bf16[128,384], index: 6, kind: input, shape index: {}]
  %s7 = inlined_call_operand.vmem [shape: f32[1,128], index: 7, kind: input, shape index: {}]
  %s8 = inlined_call_operand.vmem [shape: bf16[8,16,256], index: 8, kind: output, shape index: {}]
  %s9 = sld [smem:[#allocation0]]
  $region54: #{_lambda_.2} parent=0
    _
  %s11 = ssub.s32 1, %s9
  %s12 = scalar_select 0, %s11, %s9
  $region1: #{_lambda_.2} parent=0
    #allocation5 [shape = 'u8[196608]{0}', space=vmem, size = 0x30000, scoped, tag = 'input window, operand 2, single buffered']
    #allocation6 [shape = 's32[1]{0}', space=sflag, size = 0x4, scoped, tag = 'scoped memory for _lambda_.2']
    #allocation7 [shape = 'u8[98304]{0}', space=vmem, size = 0x18000, scoped, tag = 'input window, operand 4, single buffered']
    #allocation8 [shape = 's32[1]{0}', space=sflag, size = 0x4, scoped, tag = 'scoped memory for _lambda_.2']
    #allocation9 [shape = 'u8[98304]{0}', space=vmem, size = 0x18000, scoped, tag = 'input window, operand 6, single buffered']
    %13 = vsyncpa [#allocation6], 0
    %14 = vsyncpa [#allocation8], 0
    // Predicated region
    $region2: #{_lambda_.2} parent=1 // pred_check
      _
    $region3: #{_lambda_.2} parent=1 // pred_check_branch
      %16 = sbr.rel (0) target = $region5
    $region4: #{_lambda_.2} parent=1 // pred_region
      _
    $region5: #{_lambda_.2} parent=1 // pred_fallthru
      _
    // Predicated region
    $region6: #{_lambda_.2} parent=1 // pred_check
      _
    $region7: #{_lambda_.2} parent=1 // pred_check_branch
      %18 = sbr.rel (0) target = $region9
    $region8: #{_lambda_.2} parent=1 // pred_region
      _
    $region9: #{_lambda_.2} parent=1 // pred_fallthru
      _
    // Predicated region
    $region10: #{_lambda_.2} parent=1 // pred_check
      _
    $region11: #{_lambda_.2} parent=1 // pred_check_branch
      %20 = sbr.rel (0) target = $region13
    $region12: #{_lambda_.2} parent=1 // pred_region
      %22 = vsyncadd [#allocation6], 0
      %s23 = sshll.u32 %s2, 4
      %s24 = int_to_ptr.hbm [resolvable:$true] %s23
      %s25 = sshll.u32 [#allocation5], 4
      %s26 = int_to_ptr.vmem [resolvable:$true] %s25
      %31 = dma.hbm_to_vmem [thread:$0]  %s24, 6144, %s26, [#allocation6], 384, 384, 24
    $region13: #{_lambda_.2} parent=1 // pred_fallthru
      _
    // Predicated region
    $region14: #{_lambda_.2} parent=1 // pred_check
      _
    $region15: #{_lambda_.2} parent=1 // pred_check_branch
      %33 = sbr.rel (0) target = $region17
    $region16: #{_lambda_.2} parent=1 // pred_region
      _
    $region17: #{_lambda_.2} parent=1 // pred_fallthru
      _
    // Predicated region
    $region18: #{_lambda_.2} parent=1 // pred_check
      _
    $region19: #{_lambda_.2} parent=1 // pred_check_branch
      %35 = sbr.rel (0) target = $region21
    $region20: #{_lambda_.2} parent=1 // pred_region
      %37 = vsyncadd [#allocation8], 0
      %s38 = sshll.u32 %s4, 4
      %s39 = int_to_ptr.hbm [resolvable:$true] %s38
      %s40 = sshll.u32 [#allocation7], 4
      %s41 = int_to_ptr.vmem [resolvable:$true] %s40
      %46 = dma.hbm_to_vmem [thread:$0]  %s39, 3072, %s41, [#allocation8], 192, 192, 12
    $region21: #{_lambda_.2} parent=1 // pred_fallthru
      _
    // Predicated region
    $region22: #{_lambda_.2} parent=1 // pred_check
      _
    $region23: #{_lambda_.2} parent=1 // pred_check_branch
      %48 = sbr.rel (0) target = $region25
    $region24: #{_lambda_.2} parent=1 // pred_region
      _
    $region25: #{_lambda_.2} parent=1 // pred_fallthru
      _
    // Predicated region
    $region26: #{_lambda_.2} parent=1 // pred_check
      _
    $region27: #{_lambda_.2} parent=1 // pred_check_branch
      %50 = sbr.rel (0) target = $region29
    $region28: #{_lambda_.2} parent=1 // pred_region
      %52 = vsyncadd [#allocation8], 0
      %s53 = sshll.u32 %s6, 4
      %s54 = int_to_ptr.hbm [resolvable:$true] %s53
      %s55 = sshll.u32 [#allocation9], 4
      %s56 = int_to_ptr.vmem [resolvable:$true] %s55
      %61 = dma.hbm_to_vmem [thread:$0]  %s54, 3072, %s56, [#allocation8], 192, 192, 12
    $region29: #{_lambda_.2} parent=1 // pred_fallthru
      _
    // Predicated region
    $region30: #{_lambda_.2} parent=1 // pred_check
      _
    $region31: #{_lambda_.2} parent=1 // pred_check_branch
      %63 = sbr.rel (0) target = $region33
    $region32: #{_lambda_.2} parent=1 // pred_region
      _
    $region33: #{_lambda_.2} parent=1 // pred_fallthru
      _
    // Predicated region
    $region34: #{_lambda_.2} parent=1 // pred_check
      _
    $region35: #{_lambda_.2} parent=1 // pred_check_branch
      %65 = sbr.rel (0) target = $region37
    $region36: #{_lambda_.2} parent=1 // pred_region
      %67 = dma.done [#allocation6], 6144
    $region37: #{_lambda_.2} parent=1 // pred_fallthru
      _
    // Predicated region
    $region38: #{_lambda_.2} parent=1 // pred_check
      _
    $region39: #{_lambda_.2} parent=1 // pred_check_branch
      %69 = sbr.rel (0) target = $region41
    $region40: #{_lambda_.2} parent=1 // pred_region
      %71 = dma.done [#allocation8], 3072
    $region41: #{_lambda_.2} parent=1 // pred_fallthru
      _
    // Predicated region
    $region42: #{_lambda_.2} parent=1 // pred_check
      _
    $region43: #{_lambda_.2} parent=1 // pred_check_branch
      %73 = sbr.rel (0) target = $region45
    $region44: #{_lambda_.2} parent=1 // pred_region
      %75 = dma.done [#allocation8], 3072
    $region45: #{_lambda_.2} parent=1 // pred_fallthru
      _
    %v76 = vld [vmem:[%s1] sm:$0xf]
    %v77 = vld [vmem:[%s1 + $0x4] sm:$0xf]
    %v78 = vld [vmem:[%s1 + $0x8] sm:$0xf]
    %v79 = vld [vmem:[%s1 + $0xc] sm:$0xf]
    %v80 = vld [vmem:[%s1 + $0x10] sm:$0xf]
    %v81 = vld [vmem:[%s1 + $0x14] sm:$0xf]
    %v82 = vld [vmem:[%s1 + $0x18] sm:$0xf]
    %v83 = vld [vmem:[%s1 + $0x1c] sm:$0xf]
    %v84 = vld [vmem:[%s1 + $0x20] sm:$0xf]
    %v85 = vld [vmem:[%s1 + $0x24] sm:$0xf]
    %v86 = vld [vmem:[%s1 + $0x28] sm:$0xf]
    %v87 = vld [vmem:[%s1 + $0x2c] sm:$0xf]
    %v88 = vld [vmem:[%s1 + $0x30] sm:$0xf]
    %v89 = vld [vmem:[%s1 + $0x34] sm:$0xf]
    %v90 = vld [vmem:[%s1 + $0x38] sm:$0xf]
    %v91 = vld [vmem:[%s1 + $0x3c] sm:$0xf]
    %v92 = vld [vmem:[#allocation5] sm:$0xff]
    %v93 = vld [vmem:[#allocation5 + $0x8] sm:$0xff]
    %v94 = vld [vmem:[#allocation5 + $0x10] sm:$0xff]
    %v95 = vld [vmem:[#allocation5 + $0x18] sm:$0xff]
    %v96 = vld [vmem:[#allocation5 + $0x20] sm:$0xff]
    %v97 = vld [vmem:[#allocation5 + $0x28] sm:$0xff]
    %v98 = vld [vmem:[#allocation5 + $0x30] sm:$0xff]
    %v99 = vld [vmem:[#allocation5 + $0x38] sm:$0xff]
    %v100 = vld [vmem:[#allocation5 + $0x40] sm:$0xff]
    %v101 = vld [vmem:[#allocation5 + $0x48] sm:$0xff]
    %v102 = vld [vmem:[#allocation5 + $0x50] sm:$0xff]
    %v103 = vld [vmem:[#allocation5 + $0x58] sm:$0xff]
    %v104 = vld [vmem:[#allocation5 + $0x60] sm:$0xff]
    %v105 = vld [vmem:[#allocation5 + $0x68] sm:$0xff]
    %v106 = vld [vmem:[#allocation5 + $0x70] sm:$0xff]
    %v107 = vld [vmem:[#allocation5 + $0x78] sm:$0xff]
    %v108 = vld [vmem:[#allocation5 + $0x80] sm:$0xff]
    %v109 = vld [vmem:[#allocation5 + $0x88] sm:$0xff]
    %v110 = vld [vmem:[#allocation5 + $0x90] sm:$0xff]
    %v111 = vld [vmem:[#allocation5 + $0x98] sm:$0xff]
    %v112 = vld [vmem:[#allocation5 + $0xa0] sm:$0xff]
    %v113 = vld [vmem:[#allocation5 + $0xa8] sm:$0xff]
    %v114 = vld [vmem:[#allocation5 + $0xb0] sm:$0xff]
    %v115 = vld [vmem:[#allocation5 + $0xb8] sm:$0xff]
    %v116 = vld [vmem:[#allocation5 + $0xc0] sm:$0xff]
    %v117 = vld [vmem:[#allocation5 + $0xc8] sm:$0xff]
    %v118 = vld [vmem:[#allocation5 + $0xd0] sm:$0xff]
    %v119 = vld [vmem:[#allocation5 + $0xd8] sm:$0xff]
    %v120 = vld [vmem:[#allocation5 + $0xe0] sm:$0xff]
    %v121 = vld [vmem:[#allocation5 + $0xe8] sm:$0xff]
    %v122 = vld [vmem:[#allocation5 + $0xf0] sm:$0xff]
    %v123 = vld [vmem:[#allocation5 + $0xf8] sm:$0xff]
    %v124 = vld [vmem:[#allocation5 + $0x100] sm:$0xff]
    %v125 = vld [vmem:[#allocation5 + $0x108] sm:$0xff]
    %v126 = vld [vmem:[#allocation5 + $0x110] sm:$0xff]
    %v127 = vld [vmem:[#allocation5 + $0x118] sm:$0xff]
    %v128 = vld [vmem:[#allocation5 + $0x120] sm:$0xff]
    %v129 = vld [vmem:[#allocation5 + $0x128] sm:$0xff]
    %v130 = vld [vmem:[#allocation5 + $0x130] sm:$0xff]
    %v131 = vld [vmem:[#allocation5 + $0x138] sm:$0xff]
    %v132 = vld [vmem:[#allocation5 + $0x140] sm:$0xff]
    %v133 = vld [vmem:[#allocation5 + $0x148] sm:$0xff]
    %v134 = vld [vmem:[#allocation5 + $0x150] sm:$0xff]
    %v135 = vld [vmem:[#allocation5 + $0x158] sm:$0xff]
    %v136 = vld [vmem:[#allocation5 + $0x160] sm:$0xff]
    %v137 = vld [vmem:[#allocation5 + $0x168] sm:$0xff]
    %v138 = vld [vmem:[#allocation5 + $0x170] sm:$0xff]
    %v139 = vld [vmem:[#allocation5 + $0x178] sm:$0xff]
    %v140 = vld [vmem:[%s3] sm:$0x3f]
    %v142 = vperm.slane %v140, 0
    %v143 = vperm.slane %v140, 1
    %v144 = vperm.slane %v140, 2
    %v145 = vperm.slane %v140, 3
    %v146 = vperm.slane %v140, 4
    %v147 = vperm.slane %v140, 5
    %v170 = vunpack.c.l.b16 %v76
    %v171 = vunpack.c.l.b16 %v77
    %v172 = vunpack.c.l.b16 %v78
    %v173 = vunpack.c.l.b16 %v79
    %v174 = vunpack.c.l.b16 %v80
    %v175 = vunpack.c.l.b16 %v81
    %v176 = vunpack.c.l.b16 %v82
    %v177 = vunpack.c.l.b16 %v83
    %v178 = vunpack.c.l.b16 %v84
    %v179 = vunpack.c.l.b16 %v85
    %v180 = vunpack.c.l.b16 %v86
    %v181 = vunpack.c.l.b16 %v87
    %v182 = vunpack.c.l.b16 %v88
    %v183 = vunpack.c.l.b16 %v89
    %v184 = vunpack.c.l.b16 %v90
    %v185 = vunpack.c.l.b16 %v91
    %v186 = vpack.c.b16 %v171, %v170
    %v187 = vpack.c.b16 %v173, %v172
    %v188 = vpack.c.b16 %v175, %v174
    %v189 = vpack.c.b16 %v177, %v176
    %v190 = vpack.c.b16 %v179, %v178
    %v191 = vpack.c.b16 %v181, %v180
    %v192 = vpack.c.b16 %v183, %v182
    %v193 = vpack.c.b16 %v185, %v184
    %v250 = vunpack.c.l.b16 %v92
    %v251 = vunpack.c.h.b16 %v92
    %v252 = vunpack.c.l.b16 %v93
    %v253 = vunpack.c.h.b16 %v93
    %v254 = vunpack.c.l.b16 %v94
    %v255 = vunpack.c.h.b16 %v94
    %v256 = vunpack.c.l.b16 %v95
    %v257 = vunpack.c.h.b16 %v95
    %v258 = vunpack.c.l.b16 %v96
    %v259 = vunpack.c.h.b16 %v96
    %v260 = vunpack.c.l.b16 %v97
    %v261 = vunpack.c.h.b16 %v97
    %v262 = vunpack.c.l.b16 %v98
    %v263 = vunpack.c.h.b16 %v98
    %v264 = vunpack.c.l.b16 %v99
    %v265 = vunpack.c.h.b16 %v99
    %v266 = vunpack.c.l.b16 %v100
    %v267 = vunpack.c.h.b16 %v100
    %v268 = vunpack.c.l.b16 %v101
    %v269 = vunpack.c.h.b16 %v101
    %v270 = vunpack.c.l.b16 %v102
    %v271 = vunpack.c.h.b16 %v102
    %v272 = vunpack.c.l.b16 %v103
    %v273 = vunpack.c.h.b16 %v103
    %v274 = vunpack.c.l.b16 %v104
    %v275 = vunpack.c.h.b16 %v104
    %v276 = vunpack.c.l.b16 %v105
    %v277 = vunpack.c.h.b16 %v105
    %v278 = vunpack.c.l.b16 %v106
    %v279 = vunpack.c.h.b16 %v106
    %v280 = vunpack.c.l.b16 %v107
    %v281 = vunpack.c.h.b16 %v107
    %v282 = vunpack.c.l.b16 %v108
    %v283 = vunpack.c.h.b16 %v108
    %v284 = vunpack.c.l.b16 %v109
    %v285 = vunpack.c.h.b16 %v109
    %v286 = vunpack.c.l.b16 %v110
    %v287 = vunpack.c.h.b16 %v110
    %v288 = vunpack.c.l.b16 %v111
    %v289 = vunpack.c.h.b16 %v111
    %v290 = vunpack.c.l.b16 %v112
    %v291 = vunpack.c.h.b16 %v112
    %v292 = vunpack.c.l.b16 %v113
    %v293 = vunpack.c.h.b16 %v113
    %v294 = vunpack.c.l.b16 %v114
    %v295 = vunpack.c.h.b16 %v114
    %v296 = vunpack.c.l.b16 %v115
    %v297 = vunpack.c.h.b16 %v115
    %v298 = vunpack.c.l.b16 %v116
    %v299 = vunpack.c.h.b16 %v116
    %v300 = vunpack.c.l.b16 %v117
    %v301 = vunpack.c.h.b16 %v117
    %v302 = vunpack.c.l.b16 %v118
    %v303 = vunpack.c.h.b16 %v118
    %v304 = vunpack.c.l.b16 %v119
    %v305 = vunpack.c.h.b16 %v119
    %v306 = vunpack.c.l.b16 %v120
    %v307 = vunpack.c.h.b16 %v120
    %v308 = vunpack.c.l.b16 %v121
    %v309 = vunpack.c.h.b16 %v121
    %v310 = vunpack.c.l.b16 %v122
    %v311 = vunpack.c.h.b16 %v122
    %v312 = vunpack.c.l.b16 %v123
    %v313 = vunpack.c.h.b16 %v123
    %v314 = vunpack.c.l.b16 %v124
    %v315 = vunpack.c.h.b16 %v124
    %v316 = vunpack.c.l.b16 %v125
    %v317 = vunpack.c.h.b16 %v125
    %v318 = vunpack.c.l.b16 %v126
    %v319 = vunpack.c.h.b16 %v126
    %v320 = vunpack.c.l.b16 %v127
    %v321 = vunpack.c.h.b16 %v127
    %v322 = vunpack.c.l.b16 %v128
    %v323 = vunpack.c.h.b16 %v128
    %v324 = vunpack.c.l.b16 %v129
    %v325 = vunpack.c.h.b16 %v129
    %v326 = vunpack.c.l.b16 %v130
    %v327 = vunpack.c.h.b16 %v130
    %v328 = vunpack.c.l.b16 %v131
    %v329 = vunpack.c.h.b16 %v131
    %v330 = vunpack.c.l.b16 %v132
    %v331 = vunpack.c.h.b16 %v132
    %v332 = vunpack.c.l.b16 %v133
    %v333 = vunpack.c.h.b16 %v133
    %v334 = vunpack.c.l.b16 %v134
    %v335 = vunpack.c.h.b16 %v134
    %v336 = vunpack.c.l.b16 %v135
    %v337 = vunpack.c.h.b16 %v135
    %v338 = vunpack.c.l.b16 %v136
    %v339 = vunpack.c.h.b16 %v136
    %v340 = vunpack.c.l.b16 %v137
    %v341 = vunpack.c.h.b16 %v137
    %v342 = vunpack.c.l.b16 %v138
    %v343 = vunpack.c.h.b16 %v138
    %v344 = vunpack.c.l.b16 %v139
    %v345 = vunpack.c.h.b16 %v139
    %v346 = vpack.c.b16 %v256, %v250
    %v347 = vpack.c.b16 %v257, %v251
    %v348 = vpack.c.b16 %v258, %v252
    %v349 = vpack.c.b16 %v259, %v253
    %v350 = vpack.c.b16 %v260, %v254
    %v351 = vpack.c.b16 %v261, %v255
    %v352 = vpack.c.b16 %v268, %v262
    %v353 = vpack.c.b16 %v269, %v263
    %v354 = vpack.c.b16 %v270, %v264
    %v355 = vpack.c.b16 %v271, %v265
    %v356 = vpack.c.b16 %v272, %v266
    %v357 = vpack.c.b16 %v273, %v267
    %v358 = vpack.c.b16 %v280, %v274
    %v359 = vpack.c.b16 %v281, %v275
    %v360 = vpack.c.b16 %v282, %v276
    %v361 = vpack.c.b16 %v283, %v277
    %v362 = vpack.c.b16 %v284, %v278
    %v363 = vpack.c.b16 %v285, %v279
    %v364 = vpack.c.b16 %v292, %v286
    %v365 = vpack.c.b16 %v293, %v287
    %v366 = vpack.c.b16 %v294, %v288
    %v367 = vpack.c.b16 %v295, %v289
    %v368 = vpack.c.b16 %v296, %v290
    %v369 = vpack.c.b16 %v297, %v291
    %v370 = vpack.c.b16 %v304, %v298
    %v371 = vpack.c.b16 %v305, %v299
    %v372 = vpack.c.b16 %v306, %v300
    %v373 = vpack.c.b16 %v307, %v301
    %v374 = vpack.c.b16 %v308, %v302
    %v375 = vpack.c.b16 %v309, %v303
    %v376 = vpack.c.b16 %v316, %v310
    %v377 = vpack.c.b16 %v317, %v311
    %v378 = vpack.c.b16 %v318, %v312
    %v379 = vpack.c.b16 %v319, %v313
    %v380 = vpack.c.b16 %v320, %v314
    %v381 = vpack.c.b16 %v321, %v315
    %v382 = vpack.c.b16 %v328, %v322
    %v383 = vpack.c.b16 %v329, %v323
    %v384 = vpack.c.b16 %v330, %v324
    %v385 = vpack.c.b16 %v331, %v325
    %v386 = vpack.c.b16 %v332, %v326
    %v387 = vpack.c.b16 %v333, %v327
    %v388 = vpack.c.b16 %v340, %v334
    %v389 = vpack.c.b16 %v341, %v335
    %v390 = vpack.c.b16 %v342, %v336
    %v391 = vpack.c.b16 %v343, %v337
    %v392 = vpack.c.b16 %v344, %v338
    %v393 = vpack.c.b16 %v345, %v339
    %442 = vmatpush.bf16.msra.mxu0 %v388
    %443 = vmatpush.bf16.msra.mxu0 %v382
    %444 = vmatpush.bf16.msra.mxu0 %v376
    %445 = vmatpush.bf16.msra.mxu0 %v370
    %446 = vmatpush.bf16.msra.mxu0 %v364
    %447 = vmatpush.bf16.msra.mxu0 %v358
    %448 = vmatpush.bf16.msra.mxu0 %v352
    %449 = vmatpush.bf16.msra.mxu0 %v346
    %450 = vmatmul.bf16.gmra.mxu0 %v186
    %v451 = vpop.f32.mrf.mxu0
    %v452 = vadd.f32 %v142, %v451
    %v453 = vpop.f32.mrf.mxu0
    %v454 = vadd.f32 %v142, %v453
    %455 = vmatmul.bf16.gmra.mxu0 %v187
    %v456 = vpop.f32.mrf.mxu0
    %v457 = vadd.f32 %v142, %v456
    %v458 = vpop.f32.mrf.mxu0
    %v459 = vadd.f32 %v142, %v458
    %460 = vmatmul.bf16.gmra.mxu0 %v188
    %v461 = vpop.f32.mrf.mxu0
    %v462 = vadd.f32 %v142, %v461
    %v463 = vpop.f32.mrf.mxu0
    %v464 = vadd.f32 %v142, %v463
    %465 = vmatmul.bf16.gmra.mxu0 %v189
    %v466 = vpop.f32.mrf.mxu0
    %v467 = vadd.f32 %v142, %v466
    %v468 = vpop.f32.mrf.mxu0
    %v469 = vadd.f32 %v142, %v468
    %470 = vmatmul.bf16.gmra.mxu0 %v190
    %v471 = vpop.f32.mrf.mxu0
    %v472 = vadd.f32 %v142, %v471
    %v473 = vpop.f32.mrf.mxu0
    %v474 = vadd.f32 %v142, %v473
    %475 = vmatmul.bf16.gmra.mxu0 %v191
    %v476 = vpop.f32.mrf.mxu0
    %v477 = vadd.f32 %v142, %v476
    %v478 = vpop.f32.mrf.mxu0
    %v479 = vadd.f32 %v142, %v478
    %480 = vmatmul.bf16.gmra.mxu0 %v192
    %v481 = vpop.f32.mrf.mxu0
    %v482 = vadd.f32 %v142, %v481
    %v483 = vpop.f32.mrf.mxu0
    %v484 = vadd.f32 %v142, %v483
    %485 = vmatmul.bf16.gmra.mxu0 %v193
    %v486 = vpop.f32.mrf.mxu0
    %v487 = vadd.f32 %v142, %v486
    %v488 = vpop.f32.mrf.mxu0
    %v489 = vadd.f32 %v142, %v488
    %490 = vdwg.mxu0
    %491 = vmatpush.bf16.msra.mxu0 %v389
    %492 = vmatpush.bf16.msra.mxu0 %v383
    %493 = vmatpush.bf16.msra.mxu0 %v377
    %494 = vmatpush.bf16.msra.mxu0 %v371
    %495 = vmatpush.bf16.msra.mxu0 %v365
    %496 = vmatpush.bf16.msra.mxu0 %v359
    %497 = vmatpush.bf16.msra.mxu0 %v353
    %498 = vmatpush.bf16.msra.mxu0 %v347
    %499 = vmatmul.bf16.gmra.mxu0 %v186
    %v500 = vpop.f32.mrf.mxu0
    %v501 = vadd.f32 %v143, %v500
    %v502 = vpop.f32.mrf.mxu0
    %v503 = vadd.f32 %v143, %v502
    %504 = vmatmul.bf16.gmra.mxu0 %v187
    %v505 = vpop.f32.mrf.mxu0
    %v506 = vadd.f32 %v143, %v505
    %v507 = vpop.f32.mrf.mxu0
    %v508 = vadd.f32 %v143, %v507
    %509 = vmatmul.bf16.gmra.mxu0 %v188
    %v510 = vpop.f32.mrf.mxu0
    %v511 = vadd.f32 %v143, %v510
    %v512 = vpop.f32.mrf.mxu0
    %v513 = vadd.f32 %v143, %v512
    %514 = vmatmul.bf16.gmra.mxu0 %v189
    %v515 = vpop.f32.mrf.mxu0
    %v516 = vadd.f32 %v143, %v515
    %v517 = vpop.f32.mrf.mxu0
    %v518 = vadd.f32 %v143, %v517
    %519 = vmatmul.bf16.gmra.mxu0 %v190
    %v520 = vpop.f32.mrf.mxu0
    %v521 = vadd.f32 %v143, %v520
    %v522 = vpop.f32.mrf.mxu0
    %v523 = vadd.f32 %v143, %v522
    %524 = vmatmul.bf16.gmra.mxu0 %v191
    %v525 = vpop.f32.mrf.mxu0
    %v526 = vadd.f32 %v143, %v525
    %v527 = vpop.f32.mrf.mxu0
    %v528 = vadd.f32 %v143, %v527
    %529 = vmatmul.bf16.gmra.mxu0 %v192
    %v530 = vpop.f32.mrf.mxu0
    %v531 = vadd.f32 %v143, %v530
    %v532 = vpop.f32.mrf.mxu0
    %v533 = vadd.f32 %v143, %v532
    %534 = vmatmul.bf16.gmra.mxu0 %v193
    %v535 = vpop.f32.mrf.mxu0
    %v536 = vadd.f32 %v143, %v535
    %v537 = vpop.f32.mrf.mxu0
    %v538 = vadd.f32 %v143, %v537
    %539 = vdwg.mxu0
    %540 = vmatpush.bf16.msra.mxu0 %v390
    %541 = vmatpush.bf16.msra.mxu0 %v384
    %542 = vmatpush.bf16.msra.mxu0 %v378
    %543 = vmatpush.bf16.msra.mxu0 %v372
    %544 = vmatpush.bf16.msra.mxu0 %v366
    %545 = vmatpush.bf16.msra.mxu0 %v360
    %546 = vmatpush.bf16.msra.mxu0 %v354
    %547 = vmatpush.bf16.msra.mxu0 %v348
    %548 = vmatmul.bf16.gmra.mxu0 %v186
    %v549 = vpop.f32.mrf.mxu0
    %v550 = vadd.f32 %v144, %v549
    %v551 = vpop.f32.mrf.mxu0
    %v552 = vadd.f32 %v144, %v551
    %553 = vmatmul.bf16.gmra.mxu0 %v187
    %v554 = vpop.f32.mrf.mxu0
    %v555 = vadd.f32 %v144, %v554
    %v556 = vpop.f32.mrf.mxu0
    %v557 = vadd.f32 %v144, %v556
    %558 = vmatmul.bf16.gmra.mxu0 %v188
    %v559 = vpop.f32.mrf.mxu0
    %v560 = vadd.f32 %v144, %v559
    %v561 = vpop.f32.mrf.mxu0
    %v562 = vadd.f32 %v144, %v561
    %563 = vmatmul.bf16.gmra.mxu0 %v189
    %v564 = vpop.f32.mrf.mxu0
    %v565 = vadd.f32 %v144, %v564
    %v566 = vpop.f32.mrf.mxu0
    %v567 = vadd.f32 %v144, %v566
    %568 = vmatmul.bf16.gmra.mxu0 %v190
    %v569 = vpop.f32.mrf.mxu0
    %v570 = vadd.f32 %v144, %v569
    %v571 = vpop.f32.mrf.mxu0
    %v572 = vadd.f32 %v144, %v571
    %573 = vmatmul.bf16.gmra.mxu0 %v191
    %v574 = vpop.f32.mrf.mxu0
    %v575 = vadd.f32 %v144, %v574
    %v576 = vpop.f32.mrf.mxu0
    %v577 = vadd.f32 %v144, %v576
    %578 = vmatmul.bf16.gmra.mxu0 %v192
    %v579 = vpop.f32.mrf.mxu0
    %v580 = vadd.f32 %v144, %v579
    %v581 = vpop.f32.mrf.mxu0
    %v582 = vadd.f32 %v144, %v581
    %583 = vmatmul.bf16.gmra.mxu0 %v193
    %v584 = vpop.f32.mrf.mxu0
    %v585 = vadd.f32 %v144, %v584
    %v586 = vpop.f32.mrf.mxu0
    %v587 = vadd.f32 %v144, %v586
    %588 = vdwg.mxu0
    %589 = vmatpush.bf16.msra.mxu0 %v391
    %590 = vmatpush.bf16.msra.mxu0 %v385
    %591 = vmatpush.bf16.msra.mxu0 %v379
    %592 = vmatpush.bf16.msra.mxu0 %v373
    %593 = vmatpush.bf16.msra.mxu0 %v367
    %594 = vmatpush.bf16.msra.mxu0 %v361
    %595 = vmatpush.bf16.msra.mxu0 %v355
    %596 = vmatpush.bf16.msra.mxu0 %v349
    %597 = vmatmul.bf16.gmra.mxu0 %v186
    %v598 = vpop.f32.mrf.mxu0
    %v599 = vadd.f32 %v145, %v598
    %v600 = vpop.f32.mrf.mxu0
    %v601 = vadd.f32 %v145, %v600
    %602 = vmatmul.bf16.gmra.mxu0 %v187
    %v603 = vpop.f32.mrf.mxu0
    %v604 = vadd.f32 %v145, %v603
    %v605 = vpop.f32.mrf.mxu0
    %v606 = vadd.f32 %v145, %v605
    %607 = vmatmul.bf16.gmra.mxu0 %v188
    %v608 = vpop.f32.mrf.mxu0
    %v609 = vadd.f32 %v145, %v608
    %v610 = vpop.f32.mrf.mxu0
    %v611 = vadd.f32 %v145, %v610
    %612 = vmatmul.bf16.gmra.mxu0 %v189
    %v613 = vpop.f32.mrf.mxu0
    %v614 = vadd.f32 %v145, %v613
    %v615 = vpop.f32.mrf.mxu0
    %v616 = vadd.f32 %v145, %v615
    %617 = vmatmul.bf16.gmra.mxu0 %v190
    %v618 = vpop.f32.mrf.mxu0
    %v619 = vadd.f32 %v145, %v618
    %v620 = vpop.f32.mrf.mxu0
    %v621 = vadd.f32 %v145, %v620
    %622 = vmatmul.bf16.gmra.mxu0 %v191
    %v623 = vpop.f32.mrf.mxu0
    %v624 = vadd.f32 %v145, %v623
    %v625 = vpop.f32.mrf.mxu0
    %v626 = vadd.f32 %v145, %v625
    %627 = vmatmul.bf16.gmra.mxu0 %v192
    %v628 = vpop.f32.mrf.mxu0
    %v629 = vadd.f32 %v145, %v628
    %v630 = vpop.f32.mrf.mxu0
    %v631 = vadd.f32 %v145, %v630
    %632 = vmatmul.bf16.gmra.mxu0 %v193
    %v633 = vpop.f32.mrf.mxu0
    %v634 = vadd.f32 %v145, %v633
    %v635 = vpop.f32.mrf.mxu0
    %v636 = vadd.f32 %v145, %v635
    %637 = vdwg.mxu0
    %638 = vmatpush.bf16.msra.mxu0 %v392
    %639 = vmatpush.bf16.msra.mxu0 %v386
    %640 = vmatpush.bf16.msra.mxu0 %v380
    %641 = vmatpush.bf16.msra.mxu0 %v374
    %642 = vmatpush.bf16.msra.mxu0 %v368
    %643 = vmatpush.bf16.msra.mxu0 %v362
    %644 = vmatpush.bf16.msra.mxu0 %v356
    %645 = vmatpush.bf16.msra.mxu0 %v350
    %646 = vmatmul.bf16.gmra.mxu0 %v186
    %v647 = vpop.f32.mrf.mxu0
    %v648 = vadd.f32 %v146, %v647
    %v649 = vpop.f32.mrf.mxu0
    %v650 = vadd.f32 %v146, %v649
    %651 = vmatmul.bf16.gmra.mxu0 %v187
    %v652 = vpop.f32.mrf.mxu0
    %v653 = vadd.f32 %v146, %v652
    %v654 = vpop.f32.mrf.mxu0
    %v655 = vadd.f32 %v146, %v654
    %656 = vmatmul.bf16.gmra.mxu0 %v188
    %v657 = vpop.f32.mrf.mxu0
    %v658 = vadd.f32 %v146, %v657
    %v659 = vpop.f32.mrf.mxu0
    %v660 = vadd.f32 %v146, %v659
    %661 = vmatmul.bf16.gmra.mxu0 %v189
    %v662 = vpop.f32.mrf.mxu0
    %v663 = vadd.f32 %v146, %v662
    %v664 = vpop.f32.mrf.mxu0
    %v665 = vadd.f32 %v146, %v664
    %666 = vmatmul.bf16.gmra.mxu0 %v190
    %v667 = vpop.f32.mrf.mxu0
    %v668 = vadd.f32 %v146, %v667
    %v669 = vpop.f32.mrf.mxu0
    %v670 = vadd.f32 %v146, %v669
    %671 = vmatmul.bf16.gmra.mxu0 %v191
    %v672 = vpop.f32.mrf.mxu0
    %v673 = vadd.f32 %v146, %v672
    %v674 = vpop.f32.mrf.mxu0
    %v675 = vadd.f32 %v146, %v674
    %676 = vmatmul.bf16.gmra.mxu0 %v192
    %v677 = vpop.f32.mrf.mxu0
    %v678 = vadd.f32 %v146, %v677
    %v679 = vpop.f32.mrf.mxu0
    %v680 = vadd.f32 %v146, %v679
    %681 = vmatmul.bf16.gmra.mxu0 %v193
    %v682 = vpop.f32.mrf.mxu0
    %v683 = vadd.f32 %v146, %v682
    %v684 = vpop.f32.mrf.mxu0
    %v685 = vadd.f32 %v146, %v684
    %686 = vdwg.mxu0
    %687 = vmatpush.bf16.msra.mxu0 %v393
    %688 = vmatpush.bf16.msra.mxu0 %v387
    %689 = vmatpush.bf16.msra.mxu0 %v381
    %690 = vmatpush.bf16.msra.mxu0 %v375
    %691 = vmatpush.bf16.msra.mxu0 %v369
    %692 = vmatpush.bf16.msra.mxu0 %v363
    %693 = vmatpush.bf16.msra.mxu0 %v357
    %694 = vmatpush.bf16.msra.mxu0 %v351
    %695 = vmatmul.bf16.gmra.mxu0 %v186
    %v696 = vpop.f32.mrf.mxu0
    %v697 = vadd.f32 %v147, %v696
    %v698 = vpop.f32.mrf.mxu0
    %v699 = vadd.f32 %v147, %v698
    %700 = vmatmul.bf16.gmra.mxu0 %v187
    %v701 = vpop.f32.mrf.mxu0
    %v702 = vadd.f32 %v147, %v701
    %v703 = vpop.f32.mrf.mxu0
    %v704 = vadd.f32 %v147, %v703
    %705 = vmatmul.bf16.gmra.mxu0 %v188
    %v706 = vpop.f32.mrf.mxu0
    %v707 = vadd.f32 %v147, %v706
    %v708 = vpop.f32.mrf.mxu0
    %v709 = vadd.f32 %v147, %v708
    %710 = vmatmul.bf16.gmra.mxu0 %v189
    %v711 = vpop.f32.mrf.mxu0
    %v712 = vadd.f32 %v147, %v711
    %v713 = vpop.f32.mrf.mxu0
    %v714 = vadd.f32 %v147, %v713
    %715 = vmatmul.bf16.gmra.mxu0 %v190
    %v716 = vpop.f32.mrf.mxu0
    %v717 = vadd.f32 %v147, %v716
    %v718 = vpop.f32.mrf.mxu0
    %v719 = vadd.f32 %v147, %v718
    %720 = vmatmul.bf16.gmra.mxu0 %v191
    %v721 = vpop.f32.mrf.mxu0
    %v722 = vadd.f32 %v147, %v721
    %v723 = vpop.f32.mrf.mxu0
    %v724 = vadd.f32 %v147, %v723
    %725 = vmatmul.bf16.gmra.mxu0 %v192
    %v726 = vpop.f32.mrf.mxu0
    %v727 = vadd.f32 %v147, %v726
    %v728 = vpop.f32.mrf.mxu0
    %v729 = vadd.f32 %v147, %v728
    %730 = vmatmul.bf16.gmra.mxu0 %v193
    %v731 = vpop.f32.mrf.mxu0
    %v732 = vadd.f32 %v147, %v731
    %v733 = vpop.f32.mrf.mxu0
    %v734 = vadd.f32 %v147, %v733
    %735 = vdwg.mxu0
    %v736 = vpack.c.bf16 %v501, %v452
    %v737 = vpack.c.bf16 %v599, %v550
    %v738 = vpack.c.bf16 %v697, %v648
    %v739 = vpack.c.bf16 %v503, %v454
    %v740 = vpack.c.bf16 %v601, %v552
    %v741 = vpack.c.bf16 %v699, %v650
    %v742 = vpack.c.bf16 %v506, %v457
    %v743 = vpack.c.bf16 %v604, %v555
    %v744 = vpack.c.bf16 %v702, %v653
    %v745 = vpack.c.bf16 %v508, %v459
    %v746 = vpack.c.bf16 %v606, %v557
    %v747 = vpack.c.bf16 %v704, %v655
    %v748 = vpack.c.bf16 %v511, %v462
    %v749 = vpack.c.bf16 %v609, %v560
    %v750 = vpack.c.bf16 %v707, %v658
    %v751 = vpack.c.bf16 %v513, %v464
    %v752 = vpack.c.bf16 %v611, %v562
    %v753 = vpack.c.bf16 %v709, %v660
    %v754 = vpack.c.bf16 %v516, %v467
    %v755 = vpack.c.bf16 %v614, %v565
    %v756 = vpack.c.bf16 %v712, %v663
    %v757 = vpack.c.bf16 %v518, %v469
    %v758 = vpack.c.bf16 %v616, %v567
    %v759 = vpack.c.bf16 %v714, %v665
    %v760 = vpack.c.bf16 %v521, %v472
    %v761 = vpack.c.bf16 %v619, %v570
    %v762 = vpack.c.bf16 %v717, %v668
    %v763 = vpack.c.bf16 %v523, %v474
    %v764 = vpack.c.bf16 %v621, %v572
    %v765 = vpack.c.bf16 %v719, %v670
    %v766 = vpack.c.bf16 %v526, %v477
    %v767 = vpack.c.bf16 %v624, %v575
    %v768 = vpack.c.bf16 %v722, %v673
    %v769 = vpack.c.bf16 %v528, %v479
    %v770 = vpack.c.bf16 %v626, %v577
    %v771 = vpack.c.bf16 %v724, %v675
    %v772 = vpack.c.bf16 %v531, %v482
    %v773 = vpack.c.bf16 %v629, %v580
    %v774 = vpack.c.bf16 %v727, %v678
    %v775 = vpack.c.bf16 %v533, %v484
    %v776 = vpack.c.bf16 %v631, %v582
    %v777 = vpack.c.bf16 %v729, %v680
    %v778 = vpack.c.bf16 %v536, %v487
    %v779 = vpack.c.bf16 %v634, %v585
    %v780 = vpack.c.bf16 %v732, %v683
    %v781 = vpack.c.bf16 %v538, %v489
    %v782 = vpack.c.bf16 %v636, %v587
    %v783 = vpack.c.bf16 %v734, %v685
    %784 = vst [vmem:[#allocation2] sm:$0xff] %v736
    %785 = vst [vmem:[#allocation2 + $0x8] sm:$0xff] %v737
    %786 = vst [vmem:[#allocation2 + $0x10] sm:$0xff] %v738
    %787 = vst [vmem:[#allocation2 + $0x18] sm:$0xff] %v739
    %788 = vst [vmem:[#allocation2 + $0x20] sm:$0xff] %v740
    %789 = vst [vmem:[#allocation2 + $0x28] sm:$0xff] %v741
    %790 = vst [vmem:[#allocation2 + $0x30] sm:$0xff] %v742
    %791 = vst [vmem:[#allocation2 + $0x38] sm:$0xff] %v743
    %792 = vst [vmem:[#allocation2 + $0x40] sm:$0xff] %v744
    %793 = vst [vmem:[#allocation2 + $0x48] sm:$0xff] %v745
    %794 = vst [vmem:[#allocation2 + $0x50] sm:$0xff] %v746
    %795 = vst [vmem:[#allocation2 + $0x58] sm:$0xff] %v747
    %796 = vst [vmem:[#allocation2 + $0x60] sm:$0xff] %v748
    %797 = vst [vmem:[#allocation2 + $0x68] sm:$0xff] %v749
    %798 = vst [vmem:[#allocation2 + $0x70] sm:$0xff] %v750
    %799 = vst [vmem:[#allocation2 + $0x78] sm:$0xff] %v751
    %800 = vst [vmem:[#allocation2 + $0x80] sm:$0xff] %v752
    %801 = vst [vmem:[#allocation2 + $0x88] sm:$0xff] %v753
    %802 = vst [vmem:[#allocation2 + $0x90] sm:$0xff] %v754
    %803 = vst [vmem:[#allocation2 + $0x98] sm:$0xff] %v755
    %804 = vst [vmem:[#allocation2 + $0xa0] sm:$0xff] %v756
    %805 = vst [vmem:[#allocation2 + $0xa8] sm:$0xff] %v757
    %806 = vst [vmem:[#allocation2 + $0xb0] sm:$0xff] %v758
    %807 = vst [vmem:[#allocation2 + $0xb8] sm:$0xff] %v759
    %808 = vst [vmem:[#allocation2 + $0xc0] sm:$0xff] %v760
    %809 = vst [vmem:[#allocation2 + $0xc8] sm:$0xff] %v761
    %810 = vst [vmem:[#allocation2 + $0xd0] sm:$0xff] %v762
    %811 = vst [vmem:[#allocation2 + $0xd8] sm:$0xff] %v763
    %812 = vst [vmem:[#allocation2 + $0xe0] sm:$0xff] %v764
    %813 = vst [vmem:[#allocation2 + $0xe8] sm:$0xff] %v765
    %814 = vst [vmem:[#allocation2 + $0xf0] sm:$0xff] %v766
    %815 = vst [vmem:[#allocation2 + $0xf8] sm:$0xff] %v767
    %816 = vst [vmem:[#allocation2 + $0x100] sm:$0xff] %v768
    %817 = vst [vmem:[#allocation2 + $0x108] sm:$0xff] %v769
    %818 = vst [vmem:[#allocation2 + $0x110] sm:$0xff] %v770
    %819 = vst [vmem:[#allocation2 + $0x118] sm:$0xff] %v771
    %820 = vst [vmem:[#allocation2 + $0x120] sm:$0xff] %v772
    %821 = vst [vmem:[#allocation2 + $0x128] sm:$0xff] %v773
    %822 = vst [vmem:[#allocation2 + $0x130] sm:$0xff] %v774
    %823 = vst [vmem:[#allocation2 + $0x138] sm:$0xff] %v775
    %824 = vst [vmem:[#allocation2 + $0x140] sm:$0xff] %v776
    %825 = vst [vmem:[#allocation2 + $0x148] sm:$0xff] %v777
    %826 = vst [vmem:[#allocation2 + $0x150] sm:$0xff] %v778
    %827 = vst [vmem:[#allocation2 + $0x158] sm:$0xff] %v779
    %828 = vst [vmem:[#allocation2 + $0x160] sm:$0xff] %v780
    %829 = vst [vmem:[#allocation2 + $0x168] sm:$0xff] %v781
    %830 = vst [vmem:[#allocation2 + $0x170] sm:$0xff] %v782
    %831 = vst [vmem:[#allocation2 + $0x178] sm:$0xff] %v783
    %832 = vst [vmem:[#allocation3] sm:$0xff] 0.0
    %833 = vst [vmem:[#allocation3 + $0x8] sm:$0xff] 0.0
    %834 = vst [vmem:[#allocation4] sm:$0xff] 0.0
    %835 = vst [vmem:[#allocation4 + $0x8] sm:$0xff] 0.0
    %v836 = vld [vmem:[%s0] sm:$0xff]
    %v837 = vld [vmem:[%s0 + $0x8] sm:$0xff]
    %v838 = vld [vmem:[%s5] sm:$0x1]
    %v839 = vld [vmem:[%s7] sm:$0x1]
    %v840 = vld [vmem:[#allocation3] sm:$0xff]
    %v841 = vld [vmem:[#allocation3 + $0x8] sm:$0xff]
    %v842 = vpack.c.bf16 %v841, %v840
    %v843 = vld [vmem:[#allocation7] sm:$0xff]
    %v844 = vld [vmem:[#allocation7 + $0x8] sm:$0xf]
    %v845 = vld [vmem:[#allocation7 + $0xc] sm:$0xff]
    %v846 = vld [vmem:[#allocation7 + $0x14] sm:$0xf]
    %v847 = vld [vmem:[#allocation7 + $0x18] sm:$0xff]
    %v848 = vld [vmem:[#allocation7 + $0x20] sm:$0xf]
    %v849 = vld [vmem:[#allocation7 + $0x24] sm:$0xff]
    %v850 = vld [vmem:[#allocation7 + $0x2c] sm:$0xf]
    %v851 = vld [vmem:[#allocation7 + $0x30] sm:$0xff]
    %v852 = vld [vmem:[#allocation7 + $0x38] sm:$0xf]
    %v853 = vld [vmem:[#allocation7 + $0x3c] sm:$0xff]
    %v854 = vld [vmem:[#allocation7 + $0x44] sm:$0xf]
    %v855 = vld [vmem:[#allocation7 + $0x48] sm:$0xff]
    %v856 = vld [vmem:[#allocation7 + $0x50] sm:$0xf]
    %v857 = vld [vmem:[#allocation7 + $0x54] sm:$0xff]
    %v858 = vld [vmem:[#allocation7 + $0x5c] sm:$0xf]
    %v859 = vld [vmem:[#allocation7 + $0x60] sm:$0xff]
    %v860 = vld [vmem:[#allocation7 + $0x68] sm:$0xf]
    %v861 = vld [vmem:[#allocation7 + $0x6c] sm:$0xff]
    %v862 = vld [vmem:[#allocation7 + $0x74] sm:$0xf]
    %v863 = vld [vmem:[#allocation7 + $0x78] sm:$0xff]
    %v864 = vld [vmem:[#allocation7 + $0x80] sm:$0xf]
    %v865 = vld [vmem:[#allocation7 + $0x84] sm:$0xff]
    %v866 = vld [vmem:[#allocation7 + $0x8c] sm:$0xf]
    %v867 = vld [vmem:[#allocation7 + $0x90] sm:$0xff]
    %v868 = vld [vmem:[#allocation7 + $0x98] sm:$0xf]
    %v869 = vld [vmem:[#allocation7 + $0x9c] sm:$0xff]
    %v870 = vld [vmem:[#allocation7 + $0xa4] sm:$0xf]
    %v871 = vld [vmem:[#allocation7 + $0xa8] sm:$0xff]
    %v872 = vld [vmem:[#allocation7 + $0xb0] sm:$0xf]
    %v873 = vld [vmem:[#allocation7 + $0xb4] sm:$0xff]
    %v874 = vld [vmem:[#allocation7 + $0xbc] sm:$0xf]
    %v907 = vunpack.c.l.b16 %v843
    %v908 = vunpack.c.h.b16 %v843
    %v909 = vunpack.c.l.b16 %v844
    %v910 = vunpack.c.l.b16 %v845
    %v911 = vunpack.c.h.b16 %v845
    %v912 = vunpack.c.l.b16 %v846
    %v913 = vunpack.c.l.b16 %v847
    %v914 = vunpack.c.h.b16 %v847
    %v915 = vunpack.c.l.b16 %v848
    %v916 = vunpack.c.l.b16 %v849
    %v917 = vunpack.c.h.b16 %v849
    %v918 = vunpack.c.l.b16 %v850
    %v919 = vunpack.c.l.b16 %v851
    %v920 = vunpack.c.h.b16 %v851
    %v921 = vunpack.c.l.b16 %v852
    %v922 = vunpack.c.l.b16 %v853
    %v923 = vunpack.c.h.b16 %v853
    %v924 = vunpack.c.l.b16 %v854
    %v925 = vunpack.c.l.b16 %v855
    %v926 = vunpack.c.h.b16 %v855
    %v927 = vunpack.c.l.b16 %v856
    %v928 = vunpack.c.l.b16 %v857
    %v929 = vunpack.c.h.b16 %v857
    %v930 = vunpack.c.l.b16 %v858
    %v931 = vunpack.c.l.b16 %v859
    %v932 = vunpack.c.h.b16 %v859
    %v933 = vunpack.c.l.b16 %v860
    %v934 = vunpack.c.l.b16 %v861
    %v935 = vunpack.c.h.b16 %v861
    %v936 = vunpack.c.l.b16 %v862
    %v937 = vunpack.c.l.b16 %v863
    %v938 = vunpack.c.h.b16 %v863
    %v939 = vunpack.c.l.b16 %v864
    %v940 = vunpack.c.l.b16 %v865
    %v941 = vunpack.c.h.b16 %v865
    %v942 = vunpack.c.l.b16 %v866
    %v943 = vunpack.c.l.b16 %v867
    %v944 = vunpack.c.h.b16 %v867
    %v945 = vunpack.c.l.b16 %v868
    %v946 = vunpack.c.l.b16 %v869
    %v947 = vunpack.c.h.b16 %v869
    %v948 = vunpack.c.l.b16 %v870
    %v949 = vunpack.c.l.b16 %v871
    %v950 = vunpack.c.h.b16 %v871
    %v951 = vunpack.c.l.b16 %v872
    %v952 = vunpack.c.l.b16 %v873
    %v953 = vunpack.c.h.b16 %v873
    %v954 = vunpack.c.l.b16 %v874
    %v955 = vpack.c.b16 %v910, %v907
    %v956 = vpack.c.b16 %v911, %v908
    %v957 = vpack.c.b16 %v912, %v909
    %v958 = vpack.c.b16 %v916, %v913
    %v959 = vpack.c.b16 %v917, %v914
    %v960 = vpack.c.b16 %v918, %v915
    %v961 = vpack.c.b16 %v922, %v919
    %v962 = vpack.c.b16 %v923, %v920
    %v963 = vpack.c.b16 %v924, %v921
    %v964 = vpack.c.b16 %v928, %v925
    %v965 = vpack.c.b16 %v929, %v926
    %v966 = vpack.c.b16 %v930, %v927
    %v967 = vpack.c.b16 %v934, %v931
    %v968 = vpack.c.b16 %v935, %v932
    %v969 = vpack.c.b16 %v936, %v933
    %v970 = vpack.c.b16 %v940, %v937
    %v971 = vpack.c.b16 %v941, %v938
    %v972 = vpack.c.b16 %v942, %v939
    %v973 = vpack.c.b16 %v946, %v943
    %v974 = vpack.c.b16 %v947, %v944
    %v975 = vpack.c.b16 %v948, %v945
    %v976 = vpack.c.b16 %v952, %v949
    %v977 = vpack.c.b16 %v953, %v950
    %v978 = vpack.c.b16 %v954, %v951
    %1003 = vmatpush.bf16.msra.mxu0 %v976
    %1004 = vmatpush.bf16.msra.mxu0 %v973
    %1005 = vmatpush.bf16.msra.mxu0 %v970
    %1006 = vmatpush.bf16.msra.mxu0 %v967
    %1007 = vmatpush.bf16.msra.mxu0 %v964
    %1008 = vmatpush.bf16.msra.mxu0 %v961
    %1009 = vmatpush.bf16.msra.mxu0 %v958
    %1010 = vmatpush.bf16.msra.mxu0 %v955
    %1011 = vmatmul.bf16.gmra.mxu0 %v842
    %v1012 = vpop.f32.mrf.mxu0
    %v1013 = vadd.f32 0.0, %v1012
    %v1014 = vpop.f32.mrf.mxu0
    %v1015 = vadd.f32 0.0, %v1014
    %1016 = vdwg.mxu0
    %1017 = vmatpush.bf16.msra.mxu0 %v977
    %1018 = vmatpush.bf16.msra.mxu0 %v974
    %1019 = vmatpush.bf16.msra.mxu0 %v971
    %1020 = vmatpush.bf16.msra.mxu0 %v968
    %1021 = vmatpush.bf16.msra.mxu0 %v965
    %1022 = vmatpush.bf16.msra.mxu0 %v962
    %1023 = vmatpush.bf16.msra.mxu0 %v959
    %1024 = vmatpush.bf16.msra.mxu0 %v956
    %1025 = vmatmul.bf16.gmra.mxu0 %v842
    %v1026 = vpop.f32.mrf.mxu0
    %v1027 = vadd.f32 0.0, %v1026
    %v1028 = vpop.f32.mrf.mxu0
    %v1029 = vadd.f32 0.0, %v1028
    %1030 = vdwg.mxu0
    %1031 = vmatpush.bf16.msra.mxu0 %v978
    %1032 = vmatpush.bf16.msra.mxu0 %v975
    %1033 = vmatpush.bf16.msra.mxu0 %v972
    %1034 = vmatpush.bf16.msra.mxu0 %v969
    %1035 = vmatpush.bf16.msra.mxu0 %v966
    %1036 = vmatpush.bf16.msra.mxu0 %v963
    %1037 = vmatpush.bf16.msra.mxu0 %v960
    %1038 = vmatpush.bf16.msra.mxu0 %v957
    %1039 = vmatmul.bf16.gmra.mxu0 %v842
    %v1040 = vpop.f32.mrf.mxu0
    %v1041 = vadd.f32 0.0, %v1040
    %v1042 = vpop.f32.mrf.mxu0
    %v1043 = vadd.f32 0.0, %v1042
    %1044 = vdwg.mxu0
    %s1045 = smul.u32 0, 6
    %s1046 = smul.addr %s1045, 4
    %s1047 = scalar_lea.vmem [#allocation2], %s1046
    %v1048 = vld [vmem:[%s1047] sm:$0xff]
    %v1049 = vld [vmem:[%s1047 + $0x8] sm:$0xf]
    %v1050 = vld [vmem:[%s1047 + $0x18] sm:$0xff]
    %v1051 = vld [vmem:[%s1047 + $0x20] sm:$0xf]
    %v1052 = vunpack.c.l.bf16 %v1048
    %v1053 = vunpack.c.h.bf16 %v1048
    %v1054 = vunpack.c.l.bf16 %v1049
    %v1055 = vunpack.c.l.bf16 %v1050
    %v1056 = vunpack.c.h.bf16 %v1050
    %v1057 = vunpack.c.l.bf16 %v1051
    %v1058 = vadd.f32 %v1052, %v1013
    %v1059 = vadd.f32 %v1055, %v1015
    %v1060 = vxor.u32 %v1058, 2147483648
    %v1061 = vxor.u32 %v1059, 2147483648
    %v1062 = vmul.f32 %v1060, 1.442695
    %v1063 = vpow.pop %v1062
    %v1064 = vmul.f32 %v1061, 1.442695
    %v1065 = vpow.pop %v1064
    %v1066 = vadd.f32 %v1063, 1.0
    %v1067 = vadd.f32 %v1065, 1.0
    %v1068 = vrcp.pop %v1066
    %v1069 = vmul.f32 %v1066, %v1068
    %v1070 = vsub.f32 1.0, %v1069
    %v1071 = vmul.f32 %v1068, %v1070
    %v1072 = vadd.f32 %v1068, %v1071
    %vm1073 = vweird.f32 %v1066
    %vm1074 = vweird.f32 %v1068
    %vm1075 = vmor %vm1073, %vm1074
    %v1076 = vsel %vm1075, %v1068, %v1072
    %v1077 = vand.u32 2147483647, %v1066
    %vm1078 = vcmp.eq.f32.partialorder %v1077, 8.507059e+37
    %v1079 = vand.u32 %v1066, 2147483648
    %v1080 = vor.u32 1.1754944e-38, %v1079
    %v1081 = vsel %vm1078, %v1080, %v1076
    %v1082 = vmul.f32 1.0, %v1081
    %v1083 = vrcp.pop %v1067
    %v1084 = vmul.f32 %v1067, %v1083
    %v1085 = vsub.f32 1.0, %v1084
    %v1086 = vmul.f32 %v1083, %v1085
    %v1087 = vadd.f32 %v1083, %v1086
    %vm1088 = vweird.f32 %v1067
    %vm1089 = vweird.f32 %v1083
    %vm1090 = vmor %vm1088, %vm1089
    %v1091 = vsel %vm1090, %v1083, %v1087
    %v1092 = vand.u32 2147483647, %v1067
    %vm1093 = vcmp.eq.f32.partialorder %v1092, 8.507059e+37
    %v1094 = vand.u32 %v1067, 2147483648
    %v1095 = vor.u32 1.1754944e-38, %v1094
    %v1096 = vsel %vm1093, %v1095, %v1091
    %v1097 = vmul.f32 1.0, %v1096
    %v1098 = vadd.f32 %v1053, %v1027
    %v1099 = vadd.f32 %v1056, %v1029
    %v1100 = vxor.u32 %v1098, 2147483648
    %v1101 = vxor.u32 %v1099, 2147483648
    %v1102 = vmul.f32 %v1100, 1.442695
    %v1103 = vpow.pop %v1102
    %v1104 = vmul.f32 %v1101, 1.442695
    %v1105 = vpow.pop %v1104
    %v1106 = vadd.f32 %v1103, 1.0
    %v1107 = vadd.f32 %v1105, 1.0
    %v1108 = vrcp.pop %v1106
    %v1109 = vmul.f32 %v1106, %v1108
    %v1110 = vsub.f32 1.0, %v1109
    %v1111 = vmul.f32 %v1108, %v1110
    %v1112 = vadd.f32 %v1108, %v1111
    %vm1113 = vweird.f32 %v1106
    %vm1114 = vweird.f32 %v1108
    %vm1115 = vmor %vm1113, %vm1114
    %v1116 = vsel %vm1115, %v1108, %v1112
    %v1117 = vand.u32 2147483647, %v1106
    %vm1118 = vcmp.eq.f32.partialorder %v1117, 8.507059e+37
    %v1119 = vand.u32 %v1106, 2147483648
    %v1120 = vor.u32 1.1754944e-38, %v1119
    %v1121 = vsel %vm1118, %v1120, %v1116
    %v1122 = vmul.f32 1.0, %v1121
    %v1123 = vrcp.pop %v1107
    %v1124 = vmul.f32 %v1107, %v1123
    %v1125 = vsub.f32 1.0, %v1124
    %v1126 = vmul.f32 %v1123, %v1125
    %v1127 = vadd.f32 %v1123, %v1126
    %vm1128 = vweird.f32 %v1107
    %vm1129 = vweird.f32 %v1123
    %vm1130 = vmor %vm1128, %vm1129
    %v1131 = vsel %vm1130, %v1123, %v1127
    %v1132 = vand.u32 2147483647, %v1107
    %vm1133 = vcmp.eq.f32.partialorder %v1132, 8.507059e+37
    %v1134 = vand.u32 %v1107, 2147483648
    %v1135 = vor.u32 1.1754944e-38, %v1134
    %v1136 = vsel %vm1133, %v1135, %v1131
    %v1137 = vmul.f32 1.0, %v1136
    %v1139 = vperm.slane %v838, 0
    %v1141 = vadd.f32 %v1041, %v1139
    %v1142 = vadd.f32 %v1043, %v1139
    %v1143 = vmul.f32 %v1082, %v1141
    %v1144 = vmul.f32 %v1097, %v1142
    %v1145 = vadd.f32 %v1054, %v1143
    %v1146 = vadd.f32 %v1057, %v1144
    %v1147 = vtanh.pop %v1145
    %v1148 = vtanh.pop %v1146
    %v1149 = vsub.f32 1.0, %v1122
    %v1150 = vsub.f32 1.0, %v1137
    %v1151 = vmul.f32 %v1149, %v1147
    %v1152 = vmul.f32 %v1150, %v1148
    %v1153 = vmul.f32 %v1122, %v840
    %v1154 = vmul.f32 %v1137, %v841
    %v1155 = vadd.f32 %v1151, %v1153
    %v1156 = vadd.f32 %v1152, %v1154
    %vm1157 = vcmp.gt.s32.totalorder %v836, 0
    %vm1158 = vcmp.gt.s32.totalorder %v837, 0
    %v1159 = vsel %vm1157, 1, 0
    %v1160 = vsel %vm1158, 1, 0
    %1161 = vset.pattern.permute.xlu0 0
    %1162 = vperm.xlu0 %1161, %v1159
    %v1163 = vpop.permute.xlu0 %1162
    %1164 = vset.pattern.permute.xlu0 0
    %1165 = vperm.xlu0 %1164, %v1160
    %v1166 = vpop.permute.xlu0 %1165
    %vm1167 = vcmp.eq.s32.totalorder %v1163, 1
    %vm1168 = vcmp.eq.s32.totalorder %v1166, 1
    %v1169 = vsel %vm1167, %v1155, %v840
    %v1170 = vsel %vm1168, %v1156, %v841
    %1171 = vst [vmem:[#allocation3] sm:$0xff] %v1169
    %1172 = vst [vmem:[#allocation3 + $0x8] sm:$0xff] %v1170
    %v1173 = vpack.c.bf16 %v1169, %v1169
    %v1174 = vpack.c.bf16 %v1170, %v1170
    %1175 = vst [vmem:[%s8] sm:$0xf] %v1173
    %1176 = vst [vmem:[%s8 + $0x8] sm:$0xf] %v1174
    %v1177 = vld [vmem:[#allocation4] sm:$0xff]
    %v1178 = vld [vmem:[#allocation4 + $0x8] sm:$0xff]
    %v1179 = vpack.c.bf16 %v1178, %v1177
    %v1180 = vld [vmem:[#allocation9] sm:$0xff]
    %v1181 = vld [vmem:[#allocation9 + $0x8] sm:$0xf]
    %v1182 = vld [vmem:[#allocation9 + $0xc] sm:$0xff]
    %v1183 = vld [vmem:[#allocation9 + $0x14] sm:$0xf]
    %v1184 = vld [vmem:[#allocation9 + $0x18] sm:$0xff]
    %v1185 = vld [vmem:[#allocation9 + $0x20] sm:$0xf]
    %v1186 = vld [vmem:[#allocation9 + $0x24] sm:$0xff]
    %v1187 = vld [vmem:[#allocation9 + $0x2c] sm:$0xf]
    %v1188 = vld [vmem:[#allocation9 + $0x30] sm:$0xff]
    %v1189 = vld [vmem:[#allocation9 + $0x38] sm:$0xf]
    %v1190 = vld [vmem:[#allocation9 + $0x3c] sm:$0xff]
    %v1191 = vld [vmem:[#allocation9 + $0x44] sm:$0xf]
    %v1192 = vld [vmem:[#allocation9 + $0x48] sm:$0xff]
    %v1193 = vld [vmem:[#allocation9 + $0x50] sm:$0xf]
    %v1194 = vld [vmem:[#allocation9 + $0x54] sm:$0xff]
    %v1195 = vld [vmem:[#allocation9 + $0x5c] sm:$0xf]
    %v1196 = vld [vmem:[#allocation9 + $0x60] sm:$0xff]
    %v1197 = vld [vmem:[#allocation9 + $0x68] sm:$0xf]
    %v1198 = vld [vmem:[#allocation9 + $0x6c] sm:$0xff]
    %v1199 = vld [vmem:[#allocation9 + $0x74] sm:$0xf]
    %v1200 = vld [vmem:[#allocation9 + $0x78] sm:$0xff]
    %v1201 = vld [vmem:[#allocation9 + $0x80] sm:$0xf]
    %v1202 = vld [vmem:[#allocation9 + $0x84] sm:$0xff]
    %v1203 = vld [vmem:[#allocation9 + $0x8c] sm:$0xf]
    %v1204 = vld [vmem:[#allocation9 + $0x90] sm:$0xff]
    %v1205 = vld [vmem:[#allocation9 + $0x98] sm:$0xf]
    %v1206 = vld [vmem:[#allocation9 + $0x9c] sm:$0xff]
    %v1207 = vld [vmem:[#allocation9 + $0xa4] sm:$0xf]
    %v1208 = vld [vmem:[#allocation9 + $0xa8] sm:$0xff]
    %v1209 = vld [vmem:[#allocation9 + $0xb0] sm:$0xf]
    %v1210 = vld [vmem:[#allocation9 + $0xb4] sm:$0xff]
    %v1211 = vld [vmem:[#allocation9 + $0xbc] sm:$0xf]
    %v1244 = vunpack.c.l.b16 %v1180
    %v1245 = vunpack.c.h.b16 %v1180
    %v1246 = vunpack.c.l.b16 %v1181
    %v1247 = vunpack.c.l.b16 %v1182
    %v1248 = vunpack.c.h.b16 %v1182
    %v1249 = vunpack.c.l.b16 %v1183
    %v1250 = vunpack.c.l.b16 %v1184
    %v1251 = vunpack.c.h.b16 %v1184
    %v1252 = vunpack.c.l.b16 %v1185
    %v1253 = vunpack.c.l.b16 %v1186
    %v1254 = vunpack.c.h.b16 %v1186
    %v1255 = vunpack.c.l.b16 %v1187
    %v1256 = vunpack.c.l.b16 %v1188
    %v1257 = vunpack.c.h.b16 %v1188
    %v1258 = vunpack.c.l.b16 %v1189
    %v1259 = vunpack.c.l.b16 %v1190
    %v1260 = vunpack.c.h.b16 %v1190
    %v1261 = vunpack.c.l.b16 %v1191
    %v1262 = vunpack.c.l.b16 %v1192
    %v1263 = vunpack.c.h.b16 %v1192
    %v1264 = vunpack.c.l.b16 %v1193
    %v1265 = vunpack.c.l.b16 %v1194
    %v1266 = vunpack.c.h.b16 %v1194
    %v1267 = vunpack.c.l.b16 %v1195
    %v1268 = vunpack.c.l.b16 %v1196
    %v1269 = vunpack.c.h.b16 %v1196
    %v1270 = vunpack.c.l.b16 %v1197
    %v1271 = vunpack.c.l.b16 %v1198
    %v1272 = vunpack.c.h.b16 %v1198
    %v1273 = vunpack.c.l.b16 %v1199
    %v1274 = vunpack.c.l.b16 %v1200
    %v1275 = vunpack.c.h.b16 %v1200
    %v1276 = vunpack.c.l.b16 %v1201
    %v1277 = vunpack.c.l.b16 %v1202
    %v1278 = vunpack.c.h.b16 %v1202
    %v1279 = vunpack.c.l.b16 %v1203
    %v1280 = vunpack.c.l.b16 %v1204
    %v1281 = vunpack.c.h.b16 %v1204
    %v1282 = vunpack.c.l.b16 %v1205
    %v1283 = vunpack.c.l.b16 %v1206
    %v1284 = vunpack.c.h.b16 %v1206
    %v1285 = vunpack.c.l.b16 %v1207
    %v1286 = vunpack.c.l.b16 %v1208
    %v1287 = vunpack.c.h.b16 %v1208
    %v1288 = vunpack.c.l.b16 %v1209
    %v1289 = vunpack.c.l.b16 %v1210
    %v1290 = vunpack.c.h.b16 %v1210
    %v1291 = vunpack.c.l.b16 %v1211
    %v1292 = vpack.c.b16 %v1247, %v1244
    %v1293 = vpack.c.b16 %v1248, %v1245
    %v1294 = vpack.c.b16 %v1249, %v1246
    %v1295 = vpack.c.b16 %v1253, %v1250
    %v1296 = vpack.c.b16 %v1254, %v1251
    %v1297 = vpack.c.b16 %v1255, %v1252
    %v1298 = vpack.c.b16 %v1259, %v1256
    %v1299 = vpack.c.b16 %v1260, %v1257
    %v1300 = vpack.c.b16 %v1261, %v1258
    %v1301 = vpack.c.b16 %v1265, %v1262
    %v1302 = vpack.c.b16 %v1266, %v1263
    %v1303 = vpack.c.b16 %v1267, %v1264
    %v1304 = vpack.c.b16 %v1271, %v1268
    %v1305 = vpack.c.b16 %v1272, %v1269
    %v1306 = vpack.c.b16 %v1273, %v1270
    %v1307 = vpack.c.b16 %v1277, %v1274
    %v1308 = vpack.c.b16 %v1278, %v1275
    %v1309 = vpack.c.b16 %v1279, %v1276
    %v1310 = vpack.c.b16 %v1283, %v1280
    %v1311 = vpack.c.b16 %v1284, %v1281
    %v1312 = vpack.c.b16 %v1285, %v1282
    %v1313 = vpack.c.b16 %v1289, %v1286
    %v1314 = vpack.c.b16 %v1290, %v1287
    %v1315 = vpack.c.b16 %v1291, %v1288
    %1340 = vmatpush.bf16.msra.mxu0 %v1313
    %1341 = vmatpush.bf16.msra.mxu0 %v1310
    %1342 = vmatpush.bf16.msra.mxu0 %v1307
    %1343 = vmatpush.bf16.msra.mxu0 %v1304
    %1344 = vmatpush.bf16.msra.mxu0 %v1301
    %1345 = vmatpush.bf16.msra.mxu0 %v1298
    %1346 = vmatpush.bf16.msra.mxu0 %v1295
    %1347 = vmatpush.bf16.msra.mxu0 %v1292
    %1348 = vmatmul.bf16.gmra.mxu0 %v1179
    %v1349 = vpop.f32.mrf.mxu0
    %v1350 = vadd.f32 0.0, %v1349
    %v1351 = vpop.f32.mrf.mxu0
    %v1352 = vadd.f32 0.0, %v1351
    %1353 = vdwg.mxu0
    %1354 = vmatpush.bf16.msra.mxu0 %v1314
    %1355 = vmatpush.bf16.msra.mxu0 %v1311
    %1356 = vmatpush.bf16.msra.mxu0 %v1308
    %1357 = vmatpush.bf16.msra.mxu0 %v1305
    %1358 = vmatpush.bf16.msra.mxu0 %v1302
    %1359 = vmatpush.bf16.msra.mxu0 %v1299
    %1360 = vmatpush.bf16.msra.mxu0 %v1296
    %1361 = vmatpush.bf16.msra.mxu0 %v1293
    %1362 = vmatmul.bf16.gmra.mxu0 %v1179
    %v1363 = vpop.f32.mrf.mxu0
    %v1364 = vadd.f32 0.0, %v1363
    %v1365 = vpop.f32.mrf.mxu0
    %v1366 = vadd.f32 0.0, %v1365
    %1367 = vdwg.mxu0
    %1368 = vmatpush.bf16.msra.mxu0 %v1315
    %1369 = vmatpush.bf16.msra.mxu0 %v1312
    %1370 = vmatpush.bf16.msra.mxu0 %v1309
    %1371 = vmatpush.bf16.msra.mxu0 %v1306
    %1372 = vmatpush.bf16.msra.mxu0 %v1303
    %1373 = vmatpush.bf16.msra.mxu0 %v1300
    %1374 = vmatpush.bf16.msra.mxu0 %v1297
    %1375 = vmatpush.bf16.msra.mxu0 %v1294
    %1376 = vmatmul.bf16.gmra.mxu0 %v1179
    %v1377 = vpop.f32.mrf.mxu0
    %v1378 = vadd.f32 0.0, %v1377
    %v1379 = vpop.f32.mrf.mxu0
    %v1380 = vadd.f32 0.0, %v1379
    %1381 = vdwg.mxu0
    %s1382 = smul.u32 14, 6
    %s1383 = smul.addr %s1382, 4
    %s1384 = scalar_lea.vmem [#allocation2], %s1383
    %v1385 = vld [vmem:[%s1384 + $0xc] sm:$0xff]
    %v1386 = vld [vmem:[%s1384 + $0x14] sm:$0xf]
    %v1387 = vld [vmem:[%s1384 + $0x24] sm:$0xff]
    %v1388 = vld [vmem:[%s1384 + $0x2c] sm:$0xf]
    %v1389 = vunpack.c.l.bf16 %v1385
    %v1390 = vunpack.c.h.bf16 %v1385
    %v1391 = vunpack.c.l.bf16 %v1386
    %v1392 = vunpack.c.l.bf16 %v1387
    %v1393 = vunpack.c.h.bf16 %v1387
    %v1394 = vunpack.c.l.bf16 %v1388
    %v1395 = vadd.f32 %v1389, %v1350
    %v1396 = vadd.f32 %v1392, %v1352
    %v1397 = vxor.u32 %v1395, 2147483648
    %v1398 = vxor.u32 %v1396, 2147483648
    %v1399 = vmul.f32 %v1397, 1.442695
    %v1400 = vpow.pop %v1399
    %v1401 = vmul.f32 %v1398, 1.442695
    %v1402 = vpow.pop %v1401
    %v1403 = vadd.f32 %v1400, 1.0
    %v1404 = vadd.f32 %v1402, 1.0
    %v1405 = vrcp.pop %v1403
    %v1406 = vmul.f32 %v1403, %v1405
    %v1407 = vsub.f32 1.0, %v1406
    %v1408 = vmul.f32 %v1405, %v1407
    %v1409 = vadd.f32 %v1405, %v1408
    %vm1410 = vweird.f32 %v1403
    %vm1411 = vweird.f32 %v1405
    %vm1412 = vmor %vm1410, %vm1411
    %v1413 = vsel %vm1412, %v1405, %v1409
    %v1414 = vand.u32 2147483647, %v1403
    %vm1415 = vcmp.eq.f32.partialorder %v1414, 8.507059e+37
    %v1416 = vand.u32 %v1403, 2147483648
    %v1417 = vor.u32 1.1754944e-38, %v1416
    %v1418 = vsel %vm1415, %v1417, %v1413
    %v1419 = vmul.f32 1.0, %v1418
    %v1420 = vrcp.pop %v1404
    %v1421 = vmul.f32 %v1404, %v1420
    %v1422 = vsub.f32 1.0, %v1421
    %v1423 = vmul.f32 %v1420, %v1422
    %v1424 = vadd.f32 %v1420, %v1423
    %vm1425 = vweird.f32 %v1404
    %vm1426 = vweird.f32 %v1420
    %vm1427 = vmor %vm1425, %vm1426
    %v1428 = vsel %vm1427, %v1420, %v1424
    %v1429 = vand.u32 2147483647, %v1404
    %vm1430 = vcmp.eq.f32.partialorder %v1429, 8.507059e+37
    %v1431 = vand.u32 %v1404, 2147483648
    %v1432 = vor.u32 1.1754944e-38, %v1431
    %v1433 = vsel %vm1430, %v1432, %v1428
    %v1434 = vmul.f32 1.0, %v1433
    %v1435 = vadd.f32 %v1390, %v1364
    %v1436 = vadd.f32 %v1393, %v1366
    %v1437 = vxor.u32 %v1435, 2147483648
    %v1438 = vxor.u32 %v1436, 2147483648
    %v1439 = vmul.f32 %v1437, 1.442695
    %v1440 = vpow.pop %v1439
    %v1441 = vmul.f32 %v1438, 1.442695
    %v1442 = vpow.pop %v1441
    %v1443 = vadd.f32 %v1440, 1.0
    %v1444 = vadd.f32 %v1442, 1.0
    %v1445 = vrcp.pop %v1443
    %v1446 = vmul.f32 %v1443, %v1445
    %v1447 = vsub.f32 1.0, %v1446
    %v1448 = vmul.f32 %v1445, %v1447
    %v1449 = vadd.f32 %v1445, %v1448
    %vm1450 = vweird.f32 %v1443
    %vm1451 = vweird.f32 %v1445
    %vm1452 = vmor %vm1450, %vm1451
    %v1453 = vsel %vm1452, %v1445, %v1449
    %v1454 = vand.u32 2147483647, %v1443
    %vm1455 = vcmp.eq.f32.partialorder %v1454, 8.507059e+37
    %v1456 = vand.u32 %v1443, 2147483648
    %v1457 = vor.u32 1.1754944e-38, %v1456
    %v1458 = vsel %vm1455, %v1457, %v1453
    %v1459 = vmul.f32 1.0, %v1458
    %v1460 = vrcp.pop %v1444
    %v1461 = vmul.f32 %v1444, %v1460
    %v1462 = vsub.f32 1.0, %v1461
    %v1463 = vmul.f32 %v1460, %v1462
    %v1464 = vadd.f32 %v1460, %v1463
    %vm1465 = vweird.f32 %v1444
    %vm1466 = vweird.f32 %v1460
    %vm1467 = vmor %vm1465, %vm1466
    %v1468 = vsel %vm1467, %v1460, %v1464
    %v1469 = vand.u32 2147483647, %v1444
    %vm1470 = vcmp.eq.f32.partialorder %v1469, 8.507059e+37
    %v1471 = vand.u32 %v1444, 2147483648
    %v1472 = vor.u32 1.1754944e-38, %v1471
    %v1473 = vsel %vm1470, %v1472, %v1468
    %v1474 = vmul.f32 1.0, %v1473
    %v1476 = vperm.slane %v839, 0
    %v1478 = vadd.f32 %v1378, %v1476
    %v1479 = vadd.f32 %v1380, %v1476
    %v1480 = vmul.f32 %v1419, %v1478
    %v1481 = vmul.f32 %v1434, %v1479
    %v1482 = vadd.f32 %v1391, %v1480
    %v1483 = vadd.f32 %v1394, %v1481
    %v1484 = vtanh.pop %v1482
    %v1485 = vtanh.pop %v1483
    %v1486 = vsub.f32 1.0, %v1459
    %v1487 = vsub.f32 1.0, %v1474
    %v1488 = vmul.f32 %v1486, %v1484
    %v1489 = vmul.f32 %v1487, %v1485
    %v1490 = vmul.f32 %v1459, %v1177
    %v1491 = vmul.f32 %v1474, %v1178
    %v1492 = vadd.f32 %v1488, %v1490
    %v1493 = vadd.f32 %v1489, %v1491
    %vm1494 = vcmp.gt.s32.totalorder %v836, 7
    %vm1495 = vcmp.gt.s32.totalorder %v837, 7
    %v1496 = vsel %vm1494, 1, 0
    %v1497 = vsel %vm1495, 1, 0
    %1498 = vset.pattern.permute.xlu0 0
    %1499 = vperm.xlu0 %1498, %v1496
    %v1500 = vpop.permute.xlu0 %1499
    %1501 = vset.pattern.permute.xlu0 0
    %1502 = vperm.xlu0 %1501, %v1497
    %v1503 = vpop.permute.xlu0 %1502
    %vm1504 = vcmp.eq.s32.totalorder %v1500, 1
    %vm1505 = vcmp.eq.s32.totalorder %v1503, 1
    %v1506 = vsel %vm1504, %v1492, %v1177
    %v1507 = vsel %vm1505, %v1493, %v1178
    %1508 = vst [vmem:[#allocation4] sm:$0xff] %v1506
    %1509 = vst [vmem:[#allocation4 + $0x8] sm:$0xff] %v1507
    %v1510 = vpack.c.bf16 %v1506, %v1506
    %v1511 = vpack.c.bf16 %v1507, %v1507
    %s1512 = scalar_lea.vmem %s8, 112
    %1513 = vst [vmem:[%s1512 + $0x4] sm:$0xf] %v1510
    %1514 = vst [vmem:[%s1512 + $0xc] sm:$0xf] %v1511
    %v1515 = vld [vmem:[#allocation3] sm:$0xff]
    %v1516 = vld [vmem:[#allocation3 + $0x8] sm:$0xff]
    %v1517 = vpack.c.bf16 %v1516, %v1515
    %v1518 = vld [vmem:[#allocation7] sm:$0xff]
    %v1519 = vld [vmem:[#allocation7 + $0x8] sm:$0xf]
    %v1520 = vld [vmem:[#allocation7 + $0xc] sm:$0xff]
    %v1521 = vld [vmem:[#allocation7 + $0x14] sm:$0xf]
    %v1522 = vld [vmem:[#allocation7 + $0x18] sm:$0xff]
    %v1523 = vld [vmem:[#allocation7 + $0x20] sm:$0xf]
    %v1524 = vld [vmem:[#allocation7 + $0x24] sm:$0xff]
    %v1525 = vld [vmem:[#allocation7 + $0x2c] sm:$0xf]
    %v1526 = vld [vmem:[#allocation7 + $0x30] sm:$0xff]
    %v1527 = vld [vmem:[#allocation7 + $0x38] sm:$0xf]
    %v1528 = vld [vmem:[#allocation7 + $0x3c] sm:$0xff]
    %v1529 = vld [vmem:[#allocation7 + $0x44] sm:$0xf]
    %v1530 = vld [vmem:[#allocation7 + $0x48] sm:$0xff]
    %v1531 = vld [vmem:[#allocation7 + $0x50] sm:$0xf]
    %v1532 = vld [vmem:[#allocation7 + $0x54] sm:$0xff]
    %v1533 = vld [vmem:[#allocation7 + $0x5c] sm:$0xf]
    %v1534 = vld [vmem:[#allocation7 + $0x60] sm:$0xff]
    %v1535 = vld [vmem:[#allocation7 + $0x68] sm:$0xf]
    %v1536 = vld [vmem:[#allocation7 + $0x6c] sm:$0xff]
    %v1537 = vld [vmem:[#allocation7 + $0x74] sm:$0xf]
    %v1538 = vld [vmem:[#allocation7 + $0x78] sm:$0xff]
    %v1539 = vld [vmem:[#allocation7 + $0x80] sm:$0xf]
    %v1540 = vld [vmem:[#allocation7 + $0x84] sm:$0xff]
    %v1541 = vld [vmem:[#allocation7 + $0x8c] sm:$0xf]
    %v1542 = vld [vmem:[#allocation7 + $0x90] sm:$0xff]
    %v1543 = vld [vmem:[#allocation7 + $0x98] sm:$0xf]
    %v1544 = vld [vmem:[#allocation7 + $0x9c] sm:$0xff]
    %v1545 = vld [vmem:[#allocation7 + $0xa4] sm:$0xf]
    %v1546 = vld [vmem:[#allocation7 + $0xa8] sm:$0xff]
    %v1547 = vld [vmem:[#allocation7 + $0xb0] sm:$0xf]
    %v1548 = vld [vmem:[#allocation7 + $0xb4] sm:$0xff]
    %v1549 = vld [vmem:[#allocation7 + $0xbc] sm:$0xf]
    %v1582 = vunpack.c.l.b16 %v1518
    %v1583 = vunpack.c.h.b16 %v1518
    %v1584 = vunpack.c.l.b16 %v1519
    %v1585 = vunpack.c.l.b16 %v1520
    %v1586 = vunpack.c.h.b16 %v1520
    %v1587 = vunpack.c.l.b16 %v1521
    %v1588 = vunpack.c.l.b16 %v1522
    %v1589 = vunpack.c.h.b16 %v1522
    %v1590 = vunpack.c.l.b16 %v1523
    %v1591 = vunpack.c.l.b16 %v1524
    %v1592 = vunpack.c.h.b16 %v1524
    %v1593 = vunpack.c.l.b16 %v1525
    %v1594 = vunpack.c.l.b16 %v1526
    %v1595 = vunpack.c.h.b16 %v1526
    %v1596 = vunpack.c.l.b16 %v1527
    %v1597 = vunpack.c.l.b16 %v1528
    %v1598 = vunpack.c.h.b16 %v1528
    %v1599 = vunpack.c.l.b16 %v1529
    %v1600 = vunpack.c.l.b16 %v1530
    %v1601 = vunpack.c.h.b16 %v1530
    %v1602 = vunpack.c.l.b16 %v1531
    %v1603 = vunpack.c.l.b16 %v1532
    %v1604 = vunpack.c.h.b16 %v1532
    %v1605 = vunpack.c.l.b16 %v1533
    %v1606 = vunpack.c.l.b16 %v1534
    %v1607 = vunpack.c.h.b16 %v1534
    %v1608 = vunpack.c.l.b16 %v1535
    %v1609 = vunpack.c.l.b16 %v1536
    %v1610 = vunpack.c.h.b16 %v1536
    %v1611 = vunpack.c.l.b16 %v1537
    %v1612 = vunpack.c.l.b16 %v1538
    %v1613 = vunpack.c.h.b16 %v1538
    %v1614 = vunpack.c.l.b16 %v1539
    %v1615 = vunpack.c.l.b16 %v1540
    %v1616 = vunpack.c.h.b16 %v1540
    %v1617 = vunpack.c.l.b16 %v1541
    %v1618 = vunpack.c.l.b16 %v1542
    %v1619 = vunpack.c.h.b16 %v1542
    %v1620 = vunpack.c.l.b16 %v1543
    %v1621 = vunpack.c.l.b16 %v1544
    %v1622 = vunpack.c.h.b16 %v1544
    %v1623 = vunpack.c.l.b16 %v1545
    %v1624 = vunpack.c.l.b16 %v1546
    %v1625 = vunpack.c.h.b16 %v1546
    %v1626 = vunpack.c.l.b16 %v1547
    %v1627 = vunpack.c.l.b16 %v1548
    %v1628 = vunpack.c.h.b16 %v1548
    %v1629 = vunpack.c.l.b16 %v1549
    %v1630 = vpack.c.b16 %v1585, %v1582
    %v1631 = vpack.c.b16 %v1586, %v1583
    %v1632 = vpack.c.b16 %v1587, %v1584
    %v1633 = vpack.c.b16 %v1591, %v1588
    %v1634 = vpack.c.b16 %v1592, %v1589
    %v1635 = vpack.c.b16 %v1593, %v1590
    %v1636 = vpack.c.b16 %v1597, %v1594
    %v1637 = vpack.c.b16 %v1598, %v1595
    %v1638 = vpack.c.b16 %v1599, %v1596
    %v1639 = vpack.c.b16 %v1603, %v1600
    %v1640 = vpack.c.b16 %v1604, %v1601
    %v1641 = vpack.c.b16 %v1605, %v1602
    %v1642 = vpack.c.b16 %v1609, %v1606
    %v1643 = vpack.c.b16 %v1610, %v1607
    %v1644 = vpack.c.b16 %v1611, %v1608
    %v1645 = vpack.c.b16 %v1615, %v1612
    %v1646 = vpack.c.b16 %v1616, %v1613
    %v1647 = vpack.c.b16 %v1617, %v1614
    %v1648 = vpack.c.b16 %v1621, %v1618
    %v1649 = vpack.c.b16 %v1622, %v1619
    %v1650 = vpack.c.b16 %v1623, %v1620
    %v1651 = vpack.c.b16 %v1627, %v1624
    %v1652 = vpack.c.b16 %v1628, %v1625
    %v1653 = vpack.c.b16 %v1629, %v1626
    %1678 = vmatpush.bf16.msra.mxu0 %v1651
    %1679 = vmatpush.bf16.msra.mxu0 %v1648
    %1680 = vmatpush.bf16.msra.mxu0 %v1645
    %1681 = vmatpush.bf16.msra.mxu0 %v1642
    %1682 = vmatpush.bf16.msra.mxu0 %v1639
    %1683 = vmatpush.bf16.msra.mxu0 %v1636
    %1684 = vmatpush.bf16.msra.mxu0 %v1633
    %1685 = vmatpush.bf16.msra.mxu0 %v1630
    %1686 = vmatmul.bf16.gmra.mxu0 %v1517
    %v1687 = vpop.f32.mrf.mxu0
    %v1688 = vadd.f32 0.0, %v1687
    %v1689 = vpop.f32.mrf.mxu0
    %v1690 = vadd.f32 0.0, %v1689
    %1691 = vdwg.mxu0
    %1692 = vmatpush.bf16.msra.mxu0 %v1652
    %1693 = vmatpush.bf16.msra.mxu0 %v1649
    %1694 = vmatpush.bf16.msra.mxu0 %v1646
    %1695 = vmatpush.bf16.msra.mxu0 %v1643
    %1696 = vmatpush.bf16.msra.mxu0 %v1640
    %1697 = vmatpush.bf16.msra.mxu0 %v1637
    %1698 = vmatpush.bf16.msra.mxu0 %v1634
    %1699 = vmatpush.bf16.msra.mxu0 %v1631
    %1700 = vmatmul.bf16.gmra.mxu0 %v1517
    %v1701 = vpop.f32.mrf.mxu0
    %v1702 = vadd.f32 0.0, %v1701
    %v1703 = vpop.f32.mrf.mxu0
    %v1704 = vadd.f32 0.0, %v1703
    %1705 = vdwg.mxu0
    %1706 = vmatpush.bf16.msra.mxu0 %v1653
    %1707 = vmatpush.bf16.msra.mxu0 %v1650
    %1708 = vmatpush.bf16.msra.mxu0 %v1647
    %1709 = vmatpush.bf16.msra.mxu0 %v1644
    %1710 = vmatpush.bf16.msra.mxu0 %v1641
    %1711 = vmatpush.bf16.msra.mxu0 %v1638
    %1712 = vmatpush.bf16.msra.mxu0 %v1635
    %1713 = vmatpush.bf16.msra.mxu0 %v1632
    %1714 = vmatmul.bf16.gmra.mxu0 %v1517
    %v1715 = vpop.f32.mrf.mxu0
    %v1716 = vadd.f32 0.0, %v1715
    %v1717 = vpop.f32.mrf.mxu0
    %v1718 = vadd.f32 0.0, %v1717
    %1719 = vdwg.mxu0
    %s1720 = smul.u32 2, 6
    %s1721 = smul.addr %s1720, 4
    %s1722 = scalar_lea.vmem [#allocation2], %s1721
    %v1723 = vld [vmem:[%s1722] sm:$0xff]
    %v1724 = vld [vmem:[%s1722 + $0x8] sm:$0xf]
    %v1725 = vld [vmem:[%s1722 + $0x18] sm:$0xff]
    %v1726 = vld [vmem:[%s1722 + $0x20] sm:$0xf]
    %v1727 = vunpack.c.l.bf16 %v1723
    %v1728 = vunpack.c.h.bf16 %v1723
    %v1729 = vunpack.c.l.bf16 %v1724
    %v1730 = vunpack.c.l.bf16 %v1725
    %v1731 = vunpack.c.h.bf16 %v1725
    %v1732 = vunpack.c.l.bf16 %v1726
    %v1733 = vadd.f32 %v1727, %v1688
    %v1734 = vadd.f32 %v1730, %v1690
    %v1735 = vxor.u32 %v1733, 2147483648
    %v1736 = vxor.u32 %v1734, 2147483648
    %v1737 = vmul.f32 %v1735, 1.442695
    %v1738 = vpow.pop %v1737
    %v1739 = vmul.f32 %v1736, 1.442695
    %v1740 = vpow.pop %v1739
    %v1741 = vadd.f32 %v1738, 1.0
    %v1742 = vadd.f32 %v1740, 1.0
    %v1743 = vrcp.pop %v1741
    %v1744 = vmul.f32 %v1741, %v1743
    %v1745 = vsub.f32 1.0, %v1744
    %v1746 = vmul.f32 %v1743, %v1745
    %v1747 = vadd.f32 %v1743, %v1746
    %vm1748 = vweird.f32 %v1741
    %vm1749 = vweird.f32 %v1743
    %vm1750 = vmor %vm1748, %vm1749
    %v1751 = vsel %vm1750, %v1743, %v1747
    %v1752 = vand.u32 2147483647, %v1741
    %vm1753 = vcmp.eq.f32.partialorder %v1752, 8.507059e+37
    %v1754 = vand.u32 %v1741, 2147483648
    %v1755 = vor.u32 1.1754944e-38, %v1754
    %v1756 = vsel %vm1753, %v1755, %v1751
    %v1757 = vmul.f32 1.0, %v1756
    %v1758 = vrcp.pop %v1742
    %v1759 = vmul.f32 %v1742, %v1758
    %v1760 = vsub.f32 1.0, %v1759
    %v1761 = vmul.f32 %v1758, %v1760
    %v1762 = vadd.f32 %v1758, %v1761
    %vm1763 = vweird.f32 %v1742
    %vm1764 = vweird.f32 %v1758
    %vm1765 = vmor %vm1763, %vm1764
    %v1766 = vsel %vm1765, %v1758, %v1762
    %v1767 = vand.u32 2147483647, %v1742
    %vm1768 = vcmp.eq.f32.partialorder %v1767, 8.507059e+37
    %v1769 = vand.u32 %v1742, 2147483648
    %v1770 = vor.u32 1.1754944e-38, %v1769
    %v1771 = vsel %vm1768, %v1770, %v1766
    %v1772 = vmul.f32 1.0, %v1771
    %v1773 = vadd.f32 %v1728, %v1702
    %v1774 = vadd.f32 %v1731, %v1704
    %v1775 = vxor.u32 %v1773, 2147483648
    %v1776 = vxor.u32 %v1774, 2147483648
    %v1777 = vmul.f32 %v1775, 1.442695
    %v1778 = vpow.pop %v1777
    %v1779 = vmul.f32 %v1776, 1.442695
    %v1780 = vpow.pop %v1779
    %v1781 = vadd.f32 %v1778, 1.0
    %v1782 = vadd.f32 %v1780, 1.0
    %v1783 = vrcp.pop %v1781
    %v1784 = vmul.f32 %v1781, %v1783
    %v1785 = vsub.f32 1.0, %v1784
    %v1786 = vmul.f32 %v1783, %v1785
    %v1787 = vadd.f32 %v1783, %v1786
    %vm1788 = vweird.f32 %v1781
    %vm1789 = vweird.f32 %v1783
    %vm1790 = vmor %vm1788, %vm1789
    %v1791 = vsel %vm1790, %v1783, %v1787
    %v1792 = vand.u32 2147483647, %v1781
    %vm1793 = vcmp.eq.f32.partialorder %v1792, 8.507059e+37
    %v1794 = vand.u32 %v1781, 2147483648
    %v1795 = vor.u32 1.1754944e-38, %v1794
    %v1796 = vsel %vm1793, %v1795, %v1791
    %v1797 = vmul.f32 1.0, %v1796
    %v1798 = vrcp.pop %v1782
    %v1799 = vmul.f32 %v1782, %v1798
    %v1800 = vsub.f32 1.0, %v1799
    %v1801 = vmul.f32 %v1798, %v1800
    %v1802 = vadd.f32 %v1798, %v1801
    %vm1803 = vweird.f32 %v1782
    %vm1804 = vweird.f32 %v1798
    %vm1805 = vmor %vm1803, %vm1804
    %v1806 = vsel %vm1805, %v1798, %v1802
    %v1807 = vand.u32 2147483647, %v1782
    %vm1808 = vcmp.eq.f32.partialorder %v1807, 8.507059e+37
    %v1809 = vand.u32 %v1782, 2147483648
    %v1810 = vor.u32 1.1754944e-38, %v1809
    %v1811 = vsel %vm1808, %v1810, %v1806
    %v1812 = vmul.f32 1.0, %v1811
    %v1813 = vadd.f32 %v1716, %v1139
    %v1814 = vadd.f32 %v1718, %v1139
    %v1815 = vmul.f32 %v1757, %v1813
    %v1816 = vmul.f32 %v1772, %v1814
    %v1817 = vadd.f32 %v1729, %v1815
    %v1818 = vadd.f32 %v1732, %v1816
    %v1819 = vtanh.pop %v1817
    %v1820 = vtanh.pop %v1818
    %v1821 = vsub.f32 1.0, %v1797
    %v1822 = vsub.f32 1.0, %v1812
    %v1823 = vmul.f32 %v1821, %v1819
    %v1824 = vmul.f32 %v1822, %v1820
    %v1825 = vmul.f32 %v1797, %v1515
    %v1826 = vmul.f32 %v1812, %v1516
    %v1827 = vadd.f32 %v1823, %v1825
    %v1828 = vadd.f32 %v1824, %v1826
    %vm1829 = vcmp.gt.s32.totalorder %v836, 1
    %vm1830 = vcmp.gt.s32.totalorder %v837, 1
    %v1831 = vsel %vm1829, 1, 0
    %v1832 = vsel %vm1830, 1, 0
    %1833 = vset.pattern.permute.xlu0 0
    %1834 = vperm.xlu0 %1833, %v1831
    %v1835 = vpop.permute.xlu0 %1834
    %1836 = vset.pattern.permute.xlu0 0
    %1837 = vperm.xlu0 %1836, %v1832
    %v1838 = vpop.permute.xlu0 %1837
    %vm1839 = vcmp.eq.s32.totalorder %v1835, 1
    %vm1840 = vcmp.eq.s32.totalorder %v1838, 1
    %v1841 = vsel %vm1839, %v1827, %v1515
    %v1842 = vsel %vm1840, %v1828, %v1516
    %1843 = vst [vmem:[#allocation3] sm:$0xff] %v1841
    %1844 = vst [vmem:[#allocation3 + $0x8] sm:$0xff] %v1842
    %v1845 = vpack.c.bf16 %v1841, %v1841
    %v1846 = vpack.c.bf16 %v1842, %v1842
    %s1847 = scalar_lea.vmem %s8, 16
    %1848 = vst [vmem:[%s1847] sm:$0xf] %v1845
    %1849 = vst [vmem:[%s1847 + $0x8] sm:$0xf] %v1846
    %v1850 = vld [vmem:[#allocation4] sm:$0xff]
    %v1851 = vld [vmem:[#allocation4 + $0x8] sm:$0xff]
    %v1852 = vpack.c.bf16 %v1851, %v1850
    %v1853 = vld [vmem:[#allocation9] sm:$0xff]
    %v1854 = vld [vmem:[#allocation9 + $0x8] sm:$0xf]
    %v1855 = vld [vmem:[#allocation9 + $0xc] sm:$0xff]
    %v1856 = vld [vmem:[#allocation9 + $0x14] sm:$0xf]
    %v1857 = vld [vmem:[#allocation9 + $0x18] sm:$0xff]
    %v1858 = vld [vmem:[#allocation9 + $0x20] sm:$0xf]
    %v1859 = vld [vmem:[#allocation9 + $0x24] sm:$0xff]
    %v1860 = vld [vmem:[#allocation9 + $0x2c] sm:$0xf]
    %v1861 = vld [vmem:[#allocation9 + $0x30] sm:$0xff]
    %v1862 = vld [vmem:[#allocation9 + $0x38] sm:$0xf]
    %v1863 = vld [vmem:[#allocation9 + $0x3c] sm:$0xff]
    %v1864 = vld [vmem:[#allocation9 + $0x44] sm:$0xf]
    %v1865 = vld [vmem:[#allocation9 + $0x48] sm:$0xff]
    %v1866 = vld [vmem:[#allocation9 + $0x50] sm:$0xf]
    %v1867 = vld [vmem:[#allocation9 + $0x54] sm:$0xff]
    %v1868 = vld [vmem:[#allocation9 + $0x5c] sm:$0xf]
    %v1869 = vld [vmem:[#allocation9 + $0x60] sm:$0xff]
    %v1870 = vld [vmem:[#allocation9 + $0x68] sm:$0xf]
    %v1871 = vld [vmem:[#allocation9 + $0x6c] sm:$0xff]
    %v1872 = vld [vmem:[#allocation9 + $0x74] sm:$0xf]
    %v1873 = vld [vmem:[#allocation9 + $0x78] sm:$0xff]
    %v1874 = vld [vmem:[#allocation9 + $0x80] sm:$0xf]
    %v1875 = vld [vmem:[#allocation9 + $0x84] sm:$0xff]
    %v1876 = vld [vmem:[#allocation9 + $0x8c] sm:$0xf]
    %v1877 = vld [vmem:[#allocation9 + $0x90] sm:$0xff]
    %v1878 = vld [vmem:[#allocation9 + $0x98] sm:$0xf]
    %v1879 = vld [vmem:[#allocation9 + $0x9c] sm:$0xff]
    %v1880 = vld [vmem:[#allocation9 + $0xa4] sm:$0xf]
    %v1881 = vld [vmem:[#allocation9 + $0xa8] sm:$0xff]
    %v1882 = vld [vmem:[#allocation9 + $0xb0] sm:$0xf]
    %v1883 = vld [vmem:[#allocation9 + $0xb4] sm:$0xff]
    %v1884 = vld [vmem:[#allocation9 + $0xbc] sm:$0xf]
    %v1917 = vunpack.c.l.b16 %v1853
    %v1918 = vunpack.c.h.b16 %v1853
    %v1919 = vunpack.c.l.b16 %v1854
    %v1920 = vunpack.c.l.b16 %v1855
    %v1921 = vunpack.c.h.b16 %v1855
    %v1922 = vunpack.c.l.b16 %v1856
    %v1923 = vunpack.c.l.b16 %v1857
    %v1924 = vunpack.c.h.b16 %v1857
    %v1925 = vunpack.c.l.b16 %v1858
    %v1926 = vunpack.c.l.b16 %v1859
    %v1927 = vunpack.c.h.b16 %v1859
    %v1928 = vunpack.c.l.b16 %v1860
    %v1929 = vunpack.c.l.b16 %v1861
    %v1930 = vunpack.c.h.b16 %v1861
    %v1931 = vunpack.c.l.b16 %v1862
    %v1932 = vunpack.c.l.b16 %v1863
    %v1933 = vunpack.c.h.b16 %v1863
    %v1934 = vunpack.c.l.b16 %v1864
    %v1935 = vunpack.c.l.b16 %v1865
    %v1936 = vunpack.c.h.b16 %v1865
    %v1937 = vunpack.c.l.b16 %v1866
    %v1938 = vunpack.c.l.b16 %v1867
    %v1939 = vunpack.c.h.b16 %v1867
    %v1940 = vunpack.c.l.b16 %v1868
    %v1941 = vunpack.c.l.b16 %v1869
    %v1942 = vunpack.c.h.b16 %v1869
    %v1943 = vunpack.c.l.b16 %v1870
    %v1944 = vunpack.c.l.b16 %v1871
    %v1945 = vunpack.c.h.b16 %v1871
    %v1946 = vunpack.c.l.b16 %v1872
    %v1947 = vunpack.c.l.b16 %v1873
    %v1948 = vunpack.c.h.b16 %v1873
    %v1949 = vunpack.c.l.b16 %v1874
    %v1950 = vunpack.c.l.b16 %v1875
    %v1951 = vunpack.c.h.b16 %v1875
    %v1952 = vunpack.c.l.b16 %v1876
    %v1953 = vunpack.c.l.b16 %v1877
    %v1954 = vunpack.c.h.b16 %v1877
    %v1955 = vunpack.c.l.b16 %v1878
    %v1956 = vunpack.c.l.b16 %v1879
    %v1957 = vunpack.c.h.b16 %v1879
    %v1958 = vunpack.c.l.b16 %v1880
    %v1959 = vunpack.c.l.b16 %v1881
    %v1960 = vunpack.c.h.b16 %v1881
    %v1961 = vunpack.c.l.b16 %v1882
    %v1962 = vunpack.c.l.b16 %v1883
    %v1963 = vunpack.c.h.b16 %v1883
    %v1964 = vunpack.c.l.b16 %v1884
    %v1965 = vpack.c.b16 %v1920, %v1917
    %v1966 = vpack.c.b16 %v1921, %v1918
    %v1967 = vpack.c.b16 %v1922, %v1919
    %v1968 = vpack.c.b16 %v1926, %v1923
    %v1969 = vpack.c.b16 %v1927, %v1924
    %v1970 = vpack.c.b16 %v1928, %v1925
    %v1971 = vpack.c.b16 %v1932, %v1929
    %v1972 = vpack.c.b16 %v1933, %v1930
    %v1973 = vpack.c.b16 %v1934, %v1931
    %v1974 = vpack.c.b16 %v1938, %v1935
    %v1975 = vpack.c.b16 %v1939, %v1936
    %v1976 = vpack.c.b16 %v1940, %v1937
    %v1977 = vpack.c.b16 %v1944, %v1941
    %v1978 = vpack.c.b16 %v1945, %v1942
    %v1979 = vpack.c.b16 %v1946, %v1943
    %v1980 = vpack.c.b16 %v1950, %v1947
    %v1981 = vpack.c.b16 %v1951, %v1948
    %v1982 = vpack.c.b16 %v1952, %v1949
    %v1983 = vpack.c.b16 %v1956, %v1953
    %v1984 = vpack.c.b16 %v1957, %v1954
    %v1985 = vpack.c.b16 %v1958, %v1955
    %v1986 = vpack.c.b16 %v1962, %v1959
    %v1987 = vpack.c.b16 %v1963, %v1960
    %v1988 = vpack.c.b16 %v1964, %v1961
    %2013 = vmatpush.bf16.msra.mxu0 %v1986
    %2014 = vmatpush.bf16.msra.mxu0 %v1983
    %2015 = vmatpush.bf16.msra.mxu0 %v1980
    %2016 = vmatpush.bf16.msra.mxu0 %v1977
    %2017 = vmatpush.bf16.msra.mxu0 %v1974
    %2018 = vmatpush.bf16.msra.mxu0 %v1971
    %2019 = vmatpush.bf16.msra.mxu0 %v1968
    %2020 = vmatpush.bf16.msra.mxu0 %v1965
    %2021 = vmatmul.bf16.gmra.mxu0 %v1852
    %v2022 = vpop.f32.mrf.mxu0
    %v2023 = vadd.f32 0.0, %v2022
    %v2024 = vpop.f32.mrf.mxu0
    %v2025 = vadd.f32 0.0, %v2024
    %2026 = vdwg.mxu0
    %2027 = vmatpush.bf16.msra.mxu0 %v1987
    %2028 = vmatpush.bf16.msra.mxu0 %v1984
    %2029 = vmatpush.bf16.msra.mxu0 %v1981
    %2030 = vmatpush.bf16.msra.mxu0 %v1978
    %2031 = vmatpush.bf16.msra.mxu0 %v1975
    %2032 = vmatpush.bf16.msra.mxu0 %v1972
    %2033 = vmatpush.bf16.msra.mxu0 %v1969
    %2034 = vmatpush.bf16.msra.mxu0 %v1966
    %2035 = vmatmul.bf16.gmra.mxu0 %v1852
    %v2036 = vpop.f32.mrf.mxu0
    %v2037 = vadd.f32 0.0, %v2036
    %v2038 = vpop.f32.mrf.mxu0
    %v2039 = vadd.f32 0.0, %v2038
    %2040 = vdwg.mxu0
    %2041 = vmatpush.bf16.msra.mxu0 %v1988
    %2042 = vmatpush.bf16.msra.mxu0 %v1985
    %2043 = vmatpush.bf16.msra.mxu0 %v1982
    %2044 = vmatpush.bf16.msra.mxu0 %v1979
    %2045 = vmatpush.bf16.msra.mxu0 %v1976
    %2046 = vmatpush.bf16.msra.mxu0 %v1973
    %2047 = vmatpush.bf16.msra.mxu0 %v1970
    %2048 = vmatpush.bf16.msra.mxu0 %v1967
    %2049 = vmatmul.bf16.gmra.mxu0 %v1852
    %v2050 = vpop.f32.mrf.mxu0
    %v2051 = vadd.f32 0.0, %v2050
    %v2052 = vpop.f32.mrf.mxu0
    %v2053 = vadd.f32 0.0, %v2052
    %2054 = vdwg.mxu0
    %s2055 = smul.u32 12, 6
    %s2056 = smul.addr %s2055, 4
    %s2057 = scalar_lea.vmem [#allocation2], %s2056
    %v2058 = vld [vmem:[%s2057 + $0xc] sm:$0xff]
    %v2059 = vld [vmem:[%s2057 + $0x14] sm:$0xf]
    %v2060 = vld [vmem:[%s2057 + $0x24] sm:$0xff]
    %v2061 = vld [vmem:[%s2057 + $0x2c] sm:$0xf]
    %v2062 = vunpack.c.l.bf16 %v2058
    %v2063 = vunpack.c.h.bf16 %v2058
    %v2064 = vunpack.c.l.bf16 %v2059
    %v2065 = vunpack.c.l.bf16 %v2060
    %v2066 = vunpack.c.h.bf16 %v2060
    %v2067 = vunpack.c.l.bf16 %v2061
    %v2068 = vadd.f32 %v2062, %v2023
    %v2069 = vadd.f32 %v2065, %v2025
    %v2070 = vxor.u32 %v2068, 2147483648
    %v2071 = vxor.u32 %v2069, 2147483648
    %v2072 = vmul.f32 %v2070, 1.442695
    %v2073 = vpow.pop %v2072
    %v2074 = vmul.f32 %v2071, 1.442695
    %v2075 = vpow.pop %v2074
    %v2076 = vadd.f32 %v2073, 1.0
    %v2077 = vadd.f32 %v2075, 1.0
    %v2078 = vrcp.pop %v2076
    %v2079 = vmul.f32 %v2076, %v2078
    %v2080 = vsub.f32 1.0, %v2079
    %v2081 = vmul.f32 %v2078, %v2080
    %v2082 = vadd.f32 %v2078, %v2081
    %vm2083 = vweird.f32 %v2076
    %vm2084 = vweird.f32 %v2078
    %vm2085 = vmor %vm2083, %vm2084
    %v2086 = vsel %vm2085, %v2078, %v2082
    %v2087 = vand.u32 2147483647, %v2076
    %vm2088 = vcmp.eq.f32.partialorder %v2087, 8.507059e+37
    %v2089 = vand.u32 %v2076, 2147483648
    %v2090 = vor.u32 1.1754944e-38, %v2089
    %v2091 = vsel %vm2088, %v2090, %v2086
    %v2092 = vmul.f32 1.0, %v2091
    %v2093 = vrcp.pop %v2077
    %v2094 = vmul.f32 %v2077, %v2093
    %v2095 = vsub.f32 1.0, %v2094
    %v2096 = vmul.f32 %v2093, %v2095
    %v2097 = vadd.f32 %v2093, %v2096
    %vm2098 = vweird.f32 %v2077
    %vm2099 = vweird.f32 %v2093
    %vm2100 = vmor %vm2098, %vm2099
    %v2101 = vsel %vm2100, %v2093, %v2097
    %v2102 = vand.u32 2147483647, %v2077
    %vm2103 = vcmp.eq.f32.partialorder %v2102, 8.507059e+37
    %v2104 = vand.u32 %v2077, 2147483648
    %v2105 = vor.u32 1.1754944e-38, %v2104
    %v2106 = vsel %vm2103, %v2105, %v2101
    %v2107 = vmul.f32 1.0, %v2106
    %v2108 = vadd.f32 %v2063, %v2037
    %v2109 = vadd.f32 %v2066, %v2039
    %v2110 = vxor.u32 %v2108, 2147483648
    %v2111 = vxor.u32 %v2109, 2147483648
    %v2112 = vmul.f32 %v2110, 1.442695
    %v2113 = vpow.pop %v2112
    %v2114 = vmul.f32 %v2111, 1.442695
    %v2115 = vpow.pop %v2114
    %v2116 = vadd.f32 %v2113, 1.0
    %v2117 = vadd.f32 %v2115, 1.0
    %v2118 = vrcp.pop %v2116
    %v2119 = vmul.f32 %v2116, %v2118
    %v2120 = vsub.f32 1.0, %v2119
    %v2121 = vmul.f32 %v2118, %v2120
    %v2122 = vadd.f32 %v2118, %v2121
    %vm2123 = vweird.f32 %v2116
    %vm2124 = vweird.f32 %v2118
    %vm2125 = vmor %vm2123, %vm2124
    %v2126 = vsel %vm2125, %v2118, %v2122
    %v2127 = vand.u32 2147483647, %v2116
    %vm2128 = vcmp.eq.f32.partialorder %v2127, 8.507059e+37
    %v2129 = vand.u32 %v2116, 2147483648
    %v2130 = vor.u32 1.1754944e-38, %v2129
    %v2131 = vsel %vm2128, %v2130, %v2126
    %v2132 = vmul.f32 1.0, %v2131
    %v2133 = vrcp.pop %v2117
    %v2134 = vmul.f32 %v2117, %v2133
    %v2135 = vsub.f32 1.0, %v2134
    %v2136 = vmul.f32 %v2133, %v2135
    %v2137 = vadd.f32 %v2133, %v2136
    %vm2138 = vweird.f32 %v2117
    %vm2139 = vweird.f32 %v2133
    %vm2140 = vmor %vm2138, %vm2139
    %v2141 = vsel %vm2140, %v2133, %v2137
    %v2142 = vand.u32 2147483647, %v2117
    %vm2143 = vcmp.eq.f32.partialorder %v2142, 8.507059e+37
    %v2144 = vand.u32 %v2117, 2147483648
    %v2145 = vor.u32 1.1754944e-38, %v2144
    %v2146 = vsel %vm2143, %v2145, %v2141
    %v2147 = vmul.f32 1.0, %v2146
    %v2148 = vadd.f32 %v2051, %v1476
    %v2149 = vadd.f32 %v2053, %v1476
    %v2150 = vmul.f32 %v2092, %v2148
    %v2151 = vmul.f32 %v2107, %v2149
    %v2152 = vadd.f32 %v2064, %v2150
    %v2153 = vadd.f32 %v2067, %v2151
    %v2154 = vtanh.pop %v2152
    %v2155 = vtanh.pop %v2153
    %v2156 = vsub.f32 1.0, %v2132
    %v2157 = vsub.f32 1.0, %v2147
    %v2158 = vmul.f32 %v2156, %v2154
    %v2159 = vmul.f32 %v2157, %v2155
    %v2160 = vmul.f32 %v2132, %v1850
    %v2161 = vmul.f32 %v2147, %v1851
    %v2162 = vadd.f32 %v2158, %v2160
    %v2163 = vadd.f32 %v2159, %v2161
    %vm2164 = vcmp.gt.s32.totalorder %v836, 6
    %vm2165 = vcmp.gt.s32.totalorder %v837, 6
    %v2166 = vsel %vm2164, 1, 0
    %v2167 = vsel %vm2165, 1, 0
    %2168 = vset.pattern.permute.xlu0 0
    %2169 = vperm.xlu0 %2168, %v2166
    %v2170 = vpop.permute.xlu0 %2169
    %2171 = vset.pattern.permute.xlu0 0
    %2172 = vperm.xlu0 %2171, %v2167
    %v2173 = vpop.permute.xlu0 %2172
    %vm2174 = vcmp.eq.s32.totalorder %v2170, 1
    %vm2175 = vcmp.eq.s32.totalorder %v2173, 1
    %v2176 = vsel %vm2174, %v2162, %v1850
    %v2177 = vsel %vm2175, %v2163, %v1851
    %2178 = vst [vmem:[#allocation4] sm:$0xff] %v2176
    %2179 = vst [vmem:[#allocation4 + $0x8] sm:$0xff] %v2177
    %v2180 = vpack.c.bf16 %v2176, %v2176
    %v2181 = vpack.c.bf16 %v2177, %v2177
    %s2182 = scalar_lea.vmem %s8, 96
    %2183 = vst [vmem:[%s2182 + $0x4] sm:$0xf] %v2180
    %2184 = vst [vmem:[%s2182 + $0xc] sm:$0xf] %v2181
    %v2185 = vld [vmem:[#allocation3] sm:$0xff]
    %v2186 = vld [vmem:[#allocation3 + $0x8] sm:$0xff]
    %v2187 = vpack.c.bf16 %v2186, %v2185
    %v2188 = vld [vmem:[#allocation7] sm:$0xff]
    %v2189 = vld [vmem:[#allocation7 + $0x8] sm:$0xf]
    %v2190 = vld [vmem:[#allocation7 + $0xc] sm:$0xff]
    %v2191 = vld [vmem:[#allocation7 + $0x14] sm:$0xf]
    %v2192 = vld [vmem:[#allocation7 + $0x18] sm:$0xff]
    %v2193 = vld [vmem:[#allocation7 + $0x20] sm:$0xf]
    %v2194 = vld [vmem:[#allocation7 + $0x24] sm:$0xff]
    %v2195 = vld [vmem:[#allocation7 + $0x2c] sm:$0xf]
    %v2196 = vld [vmem:[#allocation7 + $0x30] sm:$0xff]
    %v2197 = vld [vmem:[#allocation7 + $0x38] sm:$0xf]
    %v2198 = vld [vmem:[#allocation7 + $0x3c] sm:$0xff]
    %v2199 = vld [vmem:[#allocation7 + $0x44] sm:$0xf]
    %v2200 = vld [vmem:[#allocation7 + $0x48] sm:$0xff]
    %v2201 = vld [vmem:[#allocation7 + $0x50] sm:$0xf]
    %v2202 = vld [vmem:[#allocation7 + $0x54] sm:$0xff]
    %v2203 = vld [vmem:[#allocation7 + $0x5c] sm:$0xf]
    %v2204 = vld [vmem:[#allocation7 + $0x60] sm:$0xff]
    %v2205 = vld [vmem:[#allocation7 + $0x68] sm:$0xf]
    %v2206 = vld [vmem:[#allocation7 + $0x6c] sm:$0xff]
    %v2207 = vld [vmem:[#allocation7 + $0x74] sm:$0xf]
    %v2208 = vld [vmem:[#allocation7 + $0x78] sm:$0xff]
    %v2209 = vld [vmem:[#allocation7 + $0x80] sm:$0xf]
    %v2210 = vld [vmem:[#allocation7 + $0x84] sm:$0xff]
    %v2211 = vld [vmem:[#allocation7 + $0x8c] sm:$0xf]
    %v2212 = vld [vmem:[#allocation7 + $0x90] sm:$0xff]
    %v2213 = vld [vmem:[#allocation7 + $0x98] sm:$0xf]
    %v2214 = vld [vmem:[#allocation7 + $0x9c] sm:$0xff]
    %v2215 = vld [vmem:[#allocation7 + $0xa4] sm:$0xf]
    %v2216 = vld [vmem:[#allocation7 + $0xa8] sm:$0xff]
    %v2217 = vld [vmem:[#allocation7 + $0xb0] sm:$0xf]
    %v2218 = vld [vmem:[#allocation7 + $0xb4] sm:$0xff]
    %v2219 = vld [vmem:[#allocation7 + $0xbc] sm:$0xf]
    %v2252 = vunpack.c.l.b16 %v2188
    %v2253 = vunpack.c.h.b16 %v2188
    %v2254 = vunpack.c.l.b16 %v2189
    %v2255 = vunpack.c.l.b16 %v2190
    %v2256 = vunpack.c.h.b16 %v2190
    %v2257 = vunpack.c.l.b16 %v2191
    %v2258 = vunpack.c.l.b16 %v2192
    %v2259 = vunpack.c.h.b16 %v2192
    %v2260 = vunpack.c.l.b16 %v2193
    %v2261 = vunpack.c.l.b16 %v2194
    %v2262 = vunpack.c.h.b16 %v2194
    %v2263 = vunpack.c.l.b16 %v2195
    %v2264 = vunpack.c.l.b16 %v2196
    %v2265 = vunpack.c.h.b16 %v2196
    %v2266 = vunpack.c.l.b16 %v2197
    %v2267 = vunpack.c.l.b16 %v2198
    %v2268 = vunpack.c.h.b16 %v2198
    %v2269 = vunpack.c.l.b16 %v2199
    %v2270 = vunpack.c.l.b16 %v2200
    %v2271 = vunpack.c.h.b16 %v2200
    %v2272 = vunpack.c.l.b16 %v2201
    %v2273 = vunpack.c.l.b16 %v2202
    %v2274 = vunpack.c.h.b16 %v2202
    %v2275 = vunpack.c.l.b16 %v2203
    %v2276 = vunpack.c.l.b16 %v2204
    %v2277 = vunpack.c.h.b16 %v2204
    %v2278 = vunpack.c.l.b16 %v2205
    %v2279 = vunpack.c.l.b16 %v2206
    %v2280 = vunpack.c.h.b16 %v2206
    %v2281 = vunpack.c.l.b16 %v2207
    %v2282 = vunpack.c.l.b16 %v2208
    %v2283 = vunpack.c.h.b16 %v2208
    %v2284 = vunpack.c.l.b16 %v2209
    %v2285 = vunpack.c.l.b16 %v2210
    %v2286 = vunpack.c.h.b16 %v2210
    %v2287 = vunpack.c.l.b16 %v2211
    %v2288 = vunpack.c.l.b16 %v2212
    %v2289 = vunpack.c.h.b16 %v2212
    %v2290 = vunpack.c.l.b16 %v2213
    %v2291 = vunpack.c.l.b16 %v2214
    %v2292 = vunpack.c.h.b16 %v2214
    %v2293 = vunpack.c.l.b16 %v2215
    %v2294 = vunpack.c.l.b16 %v2216
    %v2295 = vunpack.c.h.b16 %v2216
    %v2296 = vunpack.c.l.b16 %v2217
    %v2297 = vunpack.c.l.b16 %v2218
    %v2298 = vunpack.c.h.b16 %v2218
    %v2299 = vunpack.c.l.b16 %v2219
    %v2300 = vpack.c.b16 %v2255, %v2252
    %v2301 = vpack.c.b16 %v2256, %v2253
    %v2302 = vpack.c.b16 %v2257, %v2254
    %v2303 = vpack.c.b16 %v2261, %v2258
    %v2304 = vpack.c.b16 %v2262, %v2259
    %v2305 = vpack.c.b16 %v2263, %v2260
    %v2306 = vpack.c.b16 %v2267, %v2264
    %v2307 = vpack.c.b16 %v2268, %v2265
    %v2308 = vpack.c.b16 %v2269, %v2266
    %v2309 = vpack.c.b16 %v2273, %v2270
    %v2310 = vpack.c.b16 %v2274, %v2271
    %v2311 = vpack.c.b16 %v2275, %v2272
    %v2312 = vpack.c.b16 %v2279, %v2276
    %v2313 = vpack.c.b16 %v2280, %v2277
    %v2314 = vpack.c.b16 %v2281, %v2278
    %v2315 = vpack.c.b16 %v2285, %v2282
    %v2316 = vpack.c.b16 %v2286, %v2283
    %v2317 = vpack.c.b16 %v2287, %v2284
    %v2318 = vpack.c.b16 %v2291, %v2288
    %v2319 = vpack.c.b16 %v2292, %v2289
    %v2320 = vpack.c.b16 %v2293, %v2290
    %v2321 = vpack.c.b16 %v2297, %v2294
    %v2322 = vpack.c.b16 %v2298, %v2295
    %v2323 = vpack.c.b16 %v2299, %v2296
    %2348 = vmatpush.bf16.msra.mxu0 %v2321
    %2349 = vmatpush.bf16.msra.mxu0 %v2318
    %2350 = vmatpush.bf16.msra.mxu0 %v2315
    %2351 = vmatpush.bf16.msra.mxu0 %v2312
    %2352 = vmatpush.bf16.msra.mxu0 %v2309
    %2353 = vmatpush.bf16.msra.mxu0 %v2306
    %2354 = vmatpush.bf16.msra.mxu0 %v2303
    %2355 = vmatpush.bf16.msra.mxu0 %v2300
    %2356 = vmatmul.bf16.gmra.mxu0 %v2187
    %v2357 = vpop.f32.mrf.mxu0
    %v2358 = vadd.f32 0.0, %v2357
    %v2359 = vpop.f32.mrf.mxu0
    %v2360 = vadd.f32 0.0, %v2359
    %2361 = vdwg.mxu0
    %2362 = vmatpush.bf16.msra.mxu0 %v2322
    %2363 = vmatpush.bf16.msra.mxu0 %v2319
    %2364 = vmatpush.bf16.msra.mxu0 %v2316
    %2365 = vmatpush.bf16.msra.mxu0 %v2313
    %2366 = vmatpush.bf16.msra.mxu0 %v2310
    %2367 = vmatpush.bf16.msra.mxu0 %v2307
    %2368 = vmatpush.bf16.msra.mxu0 %v2304
    %2369 = vmatpush.bf16.msra.mxu0 %v2301
    %2370 = vmatmul.bf16.gmra.mxu0 %v2187
    %v2371 = vpop.f32.mrf.mxu0
    %v2372 = vadd.f32 0.0, %v2371
    %v2373 = vpop.f32.mrf.mxu0
    %v2374 = vadd.f32 0.0, %v2373
    %2375 = vdwg.mxu0
    %2376 = vmatpush.bf16.msra.mxu0 %v2323
    %2377 = vmatpush.bf16.msra.mxu0 %v2320
    %2378 = vmatpush.bf16.msra.mxu0 %v2317
    %2379 = vmatpush.bf16.msra.mxu0 %v2314
    %2380 = vmatpush.bf16.msra.mxu0 %v2311
    %2381 = vmatpush.bf16.msra.mxu0 %v2308
    %2382 = vmatpush.bf16.msra.mxu0 %v2305
    %2383 = vmatpush.bf16.msra.mxu0 %v2302
    %2384 = vmatmul.bf16.gmra.mxu0 %v2187
    %v2385 = vpop.f32.mrf.mxu0
    %v2386 = vadd.f32 0.0, %v2385
    %v2387 = vpop.f32.mrf.mxu0
    %v2388 = vadd.f32 0.0, %v2387
    %2389 = vdwg.mxu0
    %s2390 = smul.u32 4, 6
    %s2391 = smul.addr %s2390, 4
    %s2392 = scalar_lea.vmem [#allocation2], %s2391
    %v2393 = vld [vmem:[%s2392] sm:$0xff]
    %v2394 = vld [vmem:[%s2392 + $0x8] sm:$0xf]
    %v2395 = vld [vmem:[%s2392 + $0x18] sm:$0xff]
    %v2396 = vld [vmem:[%s2392 + $0x20] sm:$0xf]
    %v2397 = vunpack.c.l.bf16 %v2393
    %v2398 = vunpack.c.h.bf16 %v2393
    %v2399 = vunpack.c.l.bf16 %v2394
    %v2400 = vunpack.c.l.bf16 %v2395
    %v2401 = vunpack.c.h.bf16 %v2395
    %v2402 = vunpack.c.l.bf16 %v2396
    %v2403 = vadd.f32 %v2397, %v2358
    %v2404 = vadd.f32 %v2400, %v2360
    %v2405 = vxor.u32 %v2403, 2147483648
    %v2406 = vxor.u32 %v2404, 2147483648
    %v2407 = vmul.f32 %v2405, 1.442695
    %v2408 = vpow.pop %v2407
    %v2409 = vmul.f32 %v2406, 1.442695
    %v2410 = vpow.pop %v2409
    %v2411 = vadd.f32 %v2408, 1.0
    %v2412 = vadd.f32 %v2410, 1.0
    %v2413 = vrcp.pop %v2411
    %v2414 = vmul.f32 %v2411, %v2413
    %v2415 = vsub.f32 1.0, %v2414
    %v2416 = vmul.f32 %v2413, %v2415
    %v2417 = vadd.f32 %v2413, %v2416
    %vm2418 = vweird.f32 %v2411
    %vm2419 = vweird.f32 %v2413
    %vm2420 = vmor %vm2418, %vm2419
    %v2421 = vsel %vm2420, %v2413, %v2417
    %v2422 = vand.u32 2147483647, %v2411
    %vm2423 = vcmp.eq.f32.partialorder %v2422, 8.507059e+37
    %v2424 = vand.u32 %v2411, 2147483648
    %v2425 = vor.u32 1.1754944e-38, %v2424
    %v2426 = vsel %vm2423, %v2425, %v2421
    %v2427 = vmul.f32 1.0, %v2426
    %v2428 = vrcp.pop %v2412
    %v2429 = vmul.f32 %v2412, %v2428
    %v2430 = vsub.f32 1.0, %v2429
    %v2431 = vmul.f32 %v2428, %v2430
    %v2432 = vadd.f32 %v2428, %v2431
    %vm2433 = vweird.f32 %v2412
    %vm2434 = vweird.f32 %v2428
    %vm2435 = vmor %vm2433, %vm2434
    %v2436 = vsel %vm2435, %v2428, %v2432
    %v2437 = vand.u32 2147483647, %v2412
    %vm2438 = vcmp.eq.f32.partialorder %v2437, 8.507059e+37
    %v2439 = vand.u32 %v2412, 2147483648
    %v2440 = vor.u32 1.1754944e-38, %v2439
    %v2441 = vsel %vm2438, %v2440, %v2436
    %v2442 = vmul.f32 1.0, %v2441
    %v2443 = vadd.f32 %v2398, %v2372
    %v2444 = vadd.f32 %v2401, %v2374
    %v2445 = vxor.u32 %v2443, 2147483648
    %v2446 = vxor.u32 %v2444, 2147483648
    %v2447 = vmul.f32 %v2445, 1.442695
    %v2448 = vpow.pop %v2447
    %v2449 = vmul.f32 %v2446, 1.442695
    %v2450 = vpow.pop %v2449
    %v2451 = vadd.f32 %v2448, 1.0
    %v2452 = vadd.f32 %v2450, 1.0
    %v2453 = vrcp.pop %v2451
    %v2454 = vmul.f32 %v2451, %v2453
    %v2455 = vsub.f32 1.0, %v2454
    %v2456 = vmul.f32 %v2453, %v2455
    %v2457 = vadd.f32 %v2453, %v2456
    %vm2458 = vweird.f32 %v2451
    %vm2459 = vweird.f32 %v2453
    %vm2460 = vmor %vm2458, %vm2459
    %v2461 = vsel %vm2460, %v2453, %v2457
    %v2462 = vand.u32 2147483647, %v2451
    %vm2463 = vcmp.eq.f32.partialorder %v2462, 8.507059e+37
    %v2464 = vand.u32 %v2451, 2147483648
    %v2465 = vor.u32 1.1754944e-38, %v2464
    %v2466 = vsel %vm2463, %v2465, %v2461
    %v2467 = vmul.f32 1.0, %v2466
    %v2468 = vrcp.pop %v2452
    %v2469 = vmul.f32 %v2452, %v2468
    %v2470 = vsub.f32 1.0, %v2469
    %v2471 = vmul.f32 %v2468, %v2470
    %v2472 = vadd.f32 %v2468, %v2471
    %vm2473 = vweird.f32 %v2452
    %vm2474 = vweird.f32 %v2468
    %vm2475 = vmor %vm2473, %vm2474
    %v2476 = vsel %vm2475, %v2468, %v2472
    %v2477 = vand.u32 2147483647, %v2452
    %vm2478 = vcmp.eq.f32.partialorder %v2477, 8.507059e+37
    %v2479 = vand.u32 %v2452, 2147483648
    %v2480 = vor.u32 1.1754944e-38, %v2479
    %v2481 = vsel %vm2478, %v2480, %v2476
    %v2482 = vmul.f32 1.0, %v2481
    %v2483 = vadd.f32 %v2386, %v1139
    %v2484 = vadd.f32 %v2388, %v1139
    %v2485 = vmul.f32 %v2427, %v2483
    %v2486 = vmul.f32 %v2442, %v2484
    %v2487 = vadd.f32 %v2399, %v2485
    %v2488 = vadd.f32 %v2402, %v2486
    %v2489 = vtanh.pop %v2487
    %v2490 = vtanh.pop %v2488
    %v2491 = vsub.f32 1.0, %v2467
    %v2492 = vsub.f32 1.0, %v2482
    %v2493 = vmul.f32 %v2491, %v2489
    %v2494 = vmul.f32 %v2492, %v2490
    %v2495 = vmul.f32 %v2467, %v2185
    %v2496 = vmul.f32 %v2482, %v2186
    %v2497 = vadd.f32 %v2493, %v2495
    %v2498 = vadd.f32 %v2494, %v2496
    %vm2499 = vcmp.gt.s32.totalorder %v836, 2
    %vm2500 = vcmp.gt.s32.totalorder %v837, 2
    %v2501 = vsel %vm2499, 1, 0
    %v2502 = vsel %vm2500, 1, 0
    %2503 = vset.pattern.permute.xlu0 0
    %2504 = vperm.xlu0 %2503, %v2501
    %v2505 = vpop.permute.xlu0 %2504
    %2506 = vset.pattern.permute.xlu0 0
    %2507 = vperm.xlu0 %2506, %v2502
    %v2508 = vpop.permute.xlu0 %2507
    %vm2509 = vcmp.eq.s32.totalorder %v2505, 1
    %vm2510 = vcmp.eq.s32.totalorder %v2508, 1
    %v2511 = vsel %vm2509, %v2497, %v2185
    %v2512 = vsel %vm2510, %v2498, %v2186
    %2513 = vst [vmem:[#allocation3] sm:$0xff] %v2511
    %2514 = vst [vmem:[#allocation3 + $0x8] sm:$0xff] %v2512
    %v2515 = vpack.c.bf16 %v2511, %v2511
    %v2516 = vpack.c.bf16 %v2512, %v2512
    %s2517 = scalar_lea.vmem %s8, 32
    %2518 = vst [vmem:[%s2517] sm:$0xf] %v2515
    %2519 = vst [vmem:[%s2517 + $0x8] sm:$0xf] %v2516
    %v2520 = vld [vmem:[#allocation4] sm:$0xff]
    %v2521 = vld [vmem:[#allocation4 + $0x8] sm:$0xff]
    %v2522 = vpack.c.bf16 %v2521, %v2520
    %v2523 = vld [vmem:[#allocation9] sm:$0xff]
    %v2524 = vld [vmem:[#allocation9 + $0x8] sm:$0xf]
    %v2525 = vld [vmem:[#allocation9 + $0xc] sm:$0xff]
    %v2526 = vld [vmem:[#allocation9 + $0x14] sm:$0xf]
    %v2527 = vld [vmem:[#allocation9 + $0x18] sm:$0xff]
    %v2528 = vld [vmem:[#allocation9 + $0x20] sm:$0xf]
    %v2529 = vld [vmem:[#allocation9 + $0x24] sm:$0xff]
    %v2530 = vld [vmem:[#allocation9 + $0x2c] sm:$0xf]
    %v2531 = vld [vmem:[#allocation9 + $0x30] sm:$0xff]
    %v2532 = vld [vmem:[#allocation9 + $0x38] sm:$0xf]
    %v2533 = vld [vmem:[#allocation9 + $0x3c] sm:$0xff]
    %v2534 = vld [vmem:[#allocation9 + $0x44] sm:$0xf]
    %v2535 = vld [vmem:[#allocation9 + $0x48] sm:$0xff]
    %v2536 = vld [vmem:[#allocation9 + $0x50] sm:$0xf]
    %v2537 = vld [vmem:[#allocation9 + $0x54] sm:$0xff]
    %v2538 = vld [vmem:[#allocation9 + $0x5c] sm:$0xf]
    %v2539 = vld [vmem:[#allocation9 + $0x60] sm:$0xff]
    %v2540 = vld [vmem:[#allocation9 + $0x68] sm:$0xf]
    %v2541 = vld [vmem:[#allocation9 + $0x6c] sm:$0xff]
    %v2542 = vld [vmem:[#allocation9 + $0x74] sm:$0xf]
    %v2543 = vld [vmem:[#allocation9 + $0x78] sm:$0xff]
    %v2544 = vld [vmem:[#allocation9 + $0x80] sm:$0xf]
    %v2545 = vld [vmem:[#allocation9 + $0x84] sm:$0xff]
    %v2546 = vld [vmem:[#allocation9 + $0x8c] sm:$0xf]
    %v2547 = vld [vmem:[#allocation9 + $0x90] sm:$0xff]
    %v2548 = vld [vmem:[#allocation9 + $0x98] sm:$0xf]
    %v2549 = vld [vmem:[#allocation9 + $0x9c] sm:$0xff]
    %v2550 = vld [vmem:[#allocation9 + $0xa4] sm:$0xf]
    %v2551 = vld [vmem:[#allocation9 + $0xa8] sm:$0xff]
    %v2552 = vld [vmem:[#allocation9 + $0xb0] sm:$0xf]
    %v2553 = vld [vmem:[#allocation9 + $0xb4] sm:$0xff]
    %v2554 = vld [vmem:[#allocation9 + $0xbc] sm:$0xf]
    %v2587 = vunpack.c.l.b16 %v2523
    %v2588 = vunpack.c.h.b16 %v2523
    %v2589 = vunpack.c.l.b16 %v2524
    %v2590 = vunpack.c.l.b16 %v2525
    %v2591 = vunpack.c.h.b16 %v2525
    %v2592 = vunpack.c.l.b16 %v2526
    %v2593 = vunpack.c.l.b16 %v2527
    %v2594 = vunpack.c.h.b16 %v2527
    %v2595 = vunpack.c.l.b16 %v2528
    %v2596 = vunpack.c.l.b16 %v2529
    %v2597 = vunpack.c.h.b16 %v2529
    %v2598 = vunpack.c.l.b16 %v2530
    %v2599 = vunpack.c.l.b16 %v2531
    %v2600 = vunpack.c.h.b16 %v2531
    %v2601 = vunpack.c.l.b16 %v2532
    %v2602 = vunpack.c.l.b16 %v2533
    %v2603 = vunpack.c.h.b16 %v2533
    %v2604 = vunpack.c.l.b16 %v2534
    %v2605 = vunpack.c.l.b16 %v2535
    %v2606 = vunpack.c.h.b16 %v2535
    %v2607 = vunpack.c.l.b16 %v2536
    %v2608 = vunpack.c.l.b16 %v2537
    %v2609 = vunpack.c.h.b16 %v2537
    %v2610 = vunpack.c.l.b16 %v2538
    %v2611 = vunpack.c.l.b16 %v2539
    %v2612 = vunpack.c.h.b16 %v2539
    %v2613 = vunpack.c.l.b16 %v2540
    %v2614 = vunpack.c.l.b16 %v2541
    %v2615 = vunpack.c.h.b16 %v2541
    %v2616 = vunpack.c.l.b16 %v2542
    %v2617 = vunpack.c.l.b16 %v2543
    %v2618 = vunpack.c.h.b16 %v2543
    %v2619 = vunpack.c.l.b16 %v2544
    %v2620 = vunpack.c.l.b16 %v2545
    %v2621 = vunpack.c.h.b16 %v2545
    %v2622 = vunpack.c.l.b16 %v2546
    %v2623 = vunpack.c.l.b16 %v2547
    %v2624 = vunpack.c.h.b16 %v2547
    %v2625 = vunpack.c.l.b16 %v2548
    %v2626 = vunpack.c.l.b16 %v2549
    %v2627 = vunpack.c.h.b16 %v2549
    %v2628 = vunpack.c.l.b16 %v2550
    %v2629 = vunpack.c.l.b16 %v2551
    %v2630 = vunpack.c.h.b16 %v2551
    %v2631 = vunpack.c.l.b16 %v2552
    %v2632 = vunpack.c.l.b16 %v2553
    %v2633 = vunpack.c.h.b16 %v2553
    %v2634 = vunpack.c.l.b16 %v2554
    %v2635 = vpack.c.b16 %v2590, %v2587
    %v2636 = vpack.c.b16 %v2591, %v2588
    %v2637 = vpack.c.b16 %v2592, %v2589
    %v2638 = vpack.c.b16 %v2596, %v2593
    %v2639 = vpack.c.b16 %v2597, %v2594
    %v2640 = vpack.c.b16 %v2598, %v2595
    %v2641 = vpack.c.b16 %v2602, %v2599
    %v2642 = vpack.c.b16 %v2603, %v2600
    %v2643 = vpack.c.b16 %v2604, %v2601
    %v2644 = vpack.c.b16 %v2608, %v2605
    %v2645 = vpack.c.b16 %v2609, %v2606
    %v2646 = vpack.c.b16 %v2610, %v2607
    %v2647 = vpack.c.b16 %v2614, %v2611
    %v2648 = vpack.c.b16 %v2615, %v2612
    %v2649 = vpack.c.b16 %v2616, %v2613
    %v2650 = vpack.c.b16 %v2620, %v2617
    %v2651 = vpack.c.b16 %v2621, %v2618
    %v2652 = vpack.c.b16 %v2622, %v2619
    %v2653 = vpack.c.b16 %v2626, %v2623
    %v2654 = vpack.c.b16 %v2627, %v2624
    %v2655 = vpack.c.b16 %v2628, %v2625
    %v2656 = vpack.c.b16 %v2632, %v2629
    %v2657 = vpack.c.b16 %v2633, %v2630
    %v2658 = vpack.c.b16 %v2634, %v2631
    %2683 = vmatpush.bf16.msra.mxu0 %v2656
    %2684 = vmatpush.bf16.msra.mxu0 %v2653
    %2685 = vmatpush.bf16.msra.mxu0 %v2650
    %2686 = vmatpush.bf16.msra.mxu0 %v2647
    %2687 = vmatpush.bf16.msra.mxu0 %v2644
    %2688 = vmatpush.bf16.msra.mxu0 %v2641
    %2689 = vmatpush.bf16.msra.mxu0 %v2638
    %2690 = vmatpush.bf16.msra.mxu0 %v2635
    %2691 = vmatmul.bf16.gmra.mxu0 %v2522
    %v2692 = vpop.f32.mrf.mxu0
    %v2693 = vadd.f32 0.0, %v2692
    %v2694 = vpop.f32.mrf.mxu0
    %v2695 = vadd.f32 0.0, %v2694
    %2696 = vdwg.mxu0
    %2697 = vmatpush.bf16.msra.mxu0 %v2657
    %2698 = vmatpush.bf16.msra.mxu0 %v2654
    %2699 = vmatpush.bf16.msra.mxu0 %v2651
    %2700 = vmatpush.bf16.msra.mxu0 %v2648
    %2701 = vmatpush.bf16.msra.mxu0 %v2645
    %2702 = vmatpush.bf16.msra.mxu0 %v2642
    %2703 = vmatpush.bf16.msra.mxu0 %v2639
    %2704 = vmatpush.bf16.msra.mxu0 %v2636
    %2705 = vmatmul.bf16.gmra.mxu0 %v2522
    %v2706 = vpop.f32.mrf.mxu0
    %v2707 = vadd.f32 0.0, %v2706
    %v2708 = vpop.f32.mrf.mxu0
    %v2709 = vadd.f32 0.0, %v2708
    %2710 = vdwg.mxu0
    %2711 = vmatpush.bf16.msra.mxu0 %v2658
    %2712 = vmatpush.bf16.msra.mxu0 %v2655
    %2713 = vmatpush.bf16.msra.mxu0 %v2652
    %2714 = vmatpush.bf16.msra.mxu0 %v2649
    %2715 = vmatpush.bf16.msra.mxu0 %v2646
    %2716 = vmatpush.bf16.msra.mxu0 %v2643
    %2717 = vmatpush.bf16.msra.mxu0 %v2640
    %2718 = vmatpush.bf16.msra.mxu0 %v2637
    %2719 = vmatmul.bf16.gmra.mxu0 %v2522
    %v2720 = vpop.f32.mrf.mxu0
    %v2721 = vadd.f32 0.0, %v2720
    %v2722 = vpop.f32.mrf.mxu0
    %v2723 = vadd.f32 0.0, %v2722
    %2724 = vdwg.mxu0
    %s2725 = smul.u32 10, 6
    %s2726 = smul.addr %s2725, 4
    %s2727 = scalar_lea.vmem [#allocation2], %s2726
    %v2728 = vld [vmem:[%s2727 + $0xc] sm:$0xff]
    %v2729 = vld [vmem:[%s2727 + $0x14] sm:$0xf]
    %v2730 = vld [vmem:[%s2727 + $0x24] sm:$0xff]
    %v2731 = vld [vmem:[%s2727 + $0x2c] sm:$0xf]
    %v2732 = vunpack.c.l.bf16 %v2728
    %v2733 = vunpack.c.h.bf16 %v2728
    %v2734 = vunpack.c.l.bf16 %v2729
    %v2735 = vunpack.c.l.bf16 %v2730
    %v2736 = vunpack.c.h.bf16 %v2730
    %v2737 = vunpack.c.l.bf16 %v2731
    %v2738 = vadd.f32 %v2732, %v2693
    %v2739 = vadd.f32 %v2735, %v2695
    %v2740 = vxor.u32 %v2738, 2147483648
    %v2741 = vxor.u32 %v2739, 2147483648
    %v2742 = vmul.f32 %v2740, 1.442695
    %v2743 = vpow.pop %v2742
    %v2744 = vmul.f32 %v2741, 1.442695
    %v2745 = vpow.pop %v2744
    %v2746 = vadd.f32 %v2743, 1.0
    %v2747 = vadd.f32 %v2745, 1.0
    %v2748 = vrcp.pop %v2746
    %v2749 = vmul.f32 %v2746, %v2748
    %v2750 = vsub.f32 1.0, %v2749
    %v2751 = vmul.f32 %v2748, %v2750
    %v2752 = vadd.f32 %v2748, %v2751
    %vm2753 = vweird.f32 %v2746
    %vm2754 = vweird.f32 %v2748
    %vm2755 = vmor %vm2753, %vm2754
    %v2756 = vsel %vm2755, %v2748, %v2752
    %v2757 = vand.u32 2147483647, %v2746
    %vm2758 = vcmp.eq.f32.partialorder %v2757, 8.507059e+37
    %v2759 = vand.u32 %v2746, 2147483648
    %v2760 = vor.u32 1.1754944e-38, %v2759
    %v2761 = vsel %vm2758, %v2760, %v2756
    %v2762 = vmul.f32 1.0, %v2761
    %v2763 = vrcp.pop %v2747
    %v2764 = vmul.f32 %v2747, %v2763
    %v2765 = vsub.f32 1.0, %v2764
    %v2766 = vmul.f32 %v2763, %v2765
    %v2767 = vadd.f32 %v2763, %v2766
    %vm2768 = vweird.f32 %v2747
    %vm2769 = vweird.f32 %v2763
    %vm2770 = vmor %vm2768, %vm2769
    %v2771 = vsel %vm2770, %v2763, %v2767
    %v2772 = vand.u32 2147483647, %v2747
    %vm2773 = vcmp.eq.f32.partialorder %v2772, 8.507059e+37
    %v2774 = vand.u32 %v2747, 2147483648
    %v2775 = vor.u32 1.1754944e-38, %v2774
    %v2776 = vsel %vm2773, %v2775, %v2771
    %v2777 = vmul.f32 1.0, %v2776
    %v2778 = vadd.f32 %v2733, %v2707
    %v2779 = vadd.f32 %v2736, %v2709
    %v2780 = vxor.u32 %v2778, 2147483648
    %v2781 = vxor.u32 %v2779, 2147483648
    %v2782 = vmul.f32 %v2780, 1.442695
    %v2783 = vpow.pop %v2782
    %v2784 = vmul.f32 %v2781, 1.442695
    %v2785 = vpow.pop %v2784
    %v2786 = vadd.f32 %v2783, 1.0
    %v2787 = vadd.f32 %v2785, 1.0
    %v2788 = vrcp.pop %v2786
    %v2789 = vmul.f32 %v2786, %v2788
    %v2790 = vsub.f32 1.0, %v2789
    %v2791 = vmul.f32 %v2788, %v2790
    %v2792 = vadd.f32 %v2788, %v2791
    %vm2793 = vweird.f32 %v2786
    %vm2794 = vweird.f32 %v2788
    %vm2795 = vmor %vm2793, %vm2794
    %v2796 = vsel %vm2795, %v2788, %v2792
    %v2797 = vand.u32 2147483647, %v2786
    %vm2798 = vcmp.eq.f32.partialorder %v2797, 8.507059e+37
    %v2799 = vand.u32 %v2786, 2147483648
    %v2800 = vor.u32 1.1754944e-38, %v2799
    %v2801 = vsel %vm2798, %v2800, %v2796
    %v2802 = vmul.f32 1.0, %v2801
    %v2803 = vrcp.pop %v2787
    %v2804 = vmul.f32 %v2787, %v2803
    %v2805 = vsub.f32 1.0, %v2804
    %v2806 = vmul.f32 %v2803, %v2805
    %v2807 = vadd.f32 %v2803, %v2806
    %vm2808 = vweird.f32 %v2787
    %vm2809 = vweird.f32 %v2803
    %vm2810 = vmor %vm2808, %vm2809
    %v2811 = vsel %vm2810, %v2803, %v2807
    %v2812 = vand.u32 2147483647, %v2787
    %vm2813 = vcmp.eq.f32.partialorder %v2812, 8.507059e+37
    %v2814 = vand.u32 %v2787, 2147483648
    %v2815 = vor.u32 1.1754944e-38, %v2814
    %v2816 = vsel %vm2813, %v2815, %v2811
    %v2817 = vmul.f32 1.0, %v2816
    %v2818 = vadd.f32 %v2721, %v1476
    %v2819 = vadd.f32 %v2723, %v1476
    %v2820 = vmul.f32 %v2762, %v2818
    %v2821 = vmul.f32 %v2777, %v2819
    %v2822 = vadd.f32 %v2734, %v2820
    %v2823 = vadd.f32 %v2737, %v2821
    %v2824 = vtanh.pop %v2822
    %v2825 = vtanh.pop %v2823
    %v2826 = vsub.f32 1.0, %v2802
    %v2827 = vsub.f32 1.0, %v2817
    %v2828 = vmul.f32 %v2826, %v2824
    %v2829 = vmul.f32 %v2827, %v2825
    %v2830 = vmul.f32 %v2802, %v2520
    %v2831 = vmul.f32 %v2817, %v2521
    %v2832 = vadd.f32 %v2828, %v2830
    %v2833 = vadd.f32 %v2829, %v2831
    %vm2834 = vcmp.gt.s32.totalorder %v836, 5
    %vm2835 = vcmp.gt.s32.totalorder %v837, 5
    %v2836 = vsel %vm2834, 1, 0
    %v2837 = vsel %vm2835, 1, 0
    %2838 = vset.pattern.permute.xlu0 0
    %2839 = vperm.xlu0 %2838, %v2836
    %v2840 = vpop.permute.xlu0 %2839
    %2841 = vset.pattern.permute.xlu0 0
    %2842 = vperm.xlu0 %2841, %v2837
    %v2843 = vpop.permute.xlu0 %2842
    %vm2844 = vcmp.eq.s32.totalorder %v2840, 1
    %vm2845 = vcmp.eq.s32.totalorder %v2843, 1
    %v2846 = vsel %vm2844, %v2832, %v2520
    %v2847 = vsel %vm2845, %v2833, %v2521
    %2848 = vst [vmem:[#allocation4] sm:$0xff] %v2846
    %2849 = vst [vmem:[#allocation4 + $0x8] sm:$0xff] %v2847
    %v2850 = vpack.c.bf16 %v2846, %v2846
    %v2851 = vpack.c.bf16 %v2847, %v2847
    %s2852 = scalar_lea.vmem %s8, 80
    %2853 = vst [vmem:[%s2852 + $0x4] sm:$0xf] %v2850
    %2854 = vst [vmem:[%s2852 + $0xc] sm:$0xf] %v2851
    %v2855 = vld [vmem:[#allocation3] sm:$0xff]
    %v2856 = vld [vmem:[#allocation3 + $0x8] sm:$0xff]
    %v2857 = vpack.c.bf16 %v2856, %v2855
    %v2858 = vld [vmem:[#allocation7] sm:$0xff]
    %v2859 = vld [vmem:[#allocation7 + $0x8] sm:$0xf]
    %v2860 = vld [vmem:[#allocation7 + $0xc] sm:$0xff]
    %v2861 = vld [vmem:[#allocation7 + $0x14] sm:$0xf]
    %v2862 = vld [vmem:[#allocation7 + $0x18] sm:$0xff]
    %v2863 = vld [vmem:[#allocation7 + $0x20] sm:$0xf]
    %v2864 = vld [vmem:[#allocation7 + $0x24] sm:$0xff]
    %v2865 = vld [vmem:[#allocation7 + $0x2c] sm:$0xf]
    %v2866 = vld [vmem:[#allocation7 + $0x30] sm:$0xff]
    %v2867 = vld [vmem:[#allocation7 + $0x38] sm:$0xf]
    %v2868 = vld [vmem:[#allocation7 + $0x3c] sm:$0xff]
    %v2869 = vld [vmem:[#allocation7 + $0x44] sm:$0xf]
    %v2870 = vld [vmem:[#allocation7 + $0x48] sm:$0xff]
    %v2871 = vld [vmem:[#allocation7 + $0x50] sm:$0xf]
    %v2872 = vld [vmem:[#allocation7 + $0x54] sm:$0xff]
    %v2873 = vld [vmem:[#allocation7 + $0x5c] sm:$0xf]
    %v2874 = vld [vmem:[#allocation7 + $0x60] sm:$0xff]
    %v2875 = vld [vmem:[#allocation7 + $0x68] sm:$0xf]
    %v2876 = vld [vmem:[#allocation7 + $0x6c] sm:$0xff]
    %v2877 = vld [vmem:[#allocation7 + $0x74] sm:$0xf]
    %v2878 = vld [vmem:[#allocation7 + $0x78] sm:$0xff]
    %v2879 = vld [vmem:[#allocation7 + $0x80] sm:$0xf]
    %v2880 = vld [vmem:[#allocation7 + $0x84] sm:$0xff]
    %v2881 = vld [vmem:[#allocation7 + $0x8c] sm:$0xf]
    %v2882 = vld [vmem:[#allocation7 + $0x90] sm:$0xff]
    %v2883 = vld [vmem:[#allocation7 + $0x98] sm:$0xf]
    %v2884 = vld [vmem:[#allocation7 + $0x9c] sm:$0xff]
    %v2885 = vld [vmem:[#allocation7 + $0xa4] sm:$0xf]
    %v2886 = vld [vmem:[#allocation7 + $0xa8] sm:$0xff]
    %v2887 = vld [vmem:[#allocation7 + $0xb0] sm:$0xf]
    %v2888 = vld [vmem:[#allocation7 + $0xb4] sm:$0xff]
    %v2889 = vld [vmem:[#allocation7 + $0xbc] sm:$0xf]
    %v2922 = vunpack.c.l.b16 %v2858
    %v2923 = vunpack.c.h.b16 %v2858
    %v2924 = vunpack.c.l.b16 %v2859
    %v2925 = vunpack.c.l.b16 %v2860
    %v2926 = vunpack.c.h.b16 %v2860
    %v2927 = vunpack.c.l.b16 %v2861
    %v2928 = vunpack.c.l.b16 %v2862
    %v2929 = vunpack.c.h.b16 %v2862
    %v2930 = vunpack.c.l.b16 %v2863
    %v2931 = vunpack.c.l.b16 %v2864
    %v2932 = vunpack.c.h.b16 %v2864
    %v2933 = vunpack.c.l.b16 %v2865
    %v2934 = vunpack.c.l.b16 %v2866
    %v2935 = vunpack.c.h.b16 %v2866
    %v2936 = vunpack.c.l.b16 %v2867
    %v2937 = vunpack.c.l.b16 %v2868
    %v2938 = vunpack.c.h.b16 %v2868
    %v2939 = vunpack.c.l.b16 %v2869
    %v2940 = vunpack.c.l.b16 %v2870
    %v2941 = vunpack.c.h.b16 %v2870
    %v2942 = vunpack.c.l.b16 %v2871
    %v2943 = vunpack.c.l.b16 %v2872
    %v2944 = vunpack.c.h.b16 %v2872
    %v2945 = vunpack.c.l.b16 %v2873
    %v2946 = vunpack.c.l.b16 %v2874
    %v2947 = vunpack.c.h.b16 %v2874
    %v2948 = vunpack.c.l.b16 %v2875
    %v2949 = vunpack.c.l.b16 %v2876
    %v2950 = vunpack.c.h.b16 %v2876
    %v2951 = vunpack.c.l.b16 %v2877
    %v2952 = vunpack.c.l.b16 %v2878
    %v2953 = vunpack.c.h.b16 %v2878
    %v2954 = vunpack.c.l.b16 %v2879
    %v2955 = vunpack.c.l.b16 %v2880
    %v2956 = vunpack.c.h.b16 %v2880
    %v2957 = vunpack.c.l.b16 %v2881
    %v2958 = vunpack.c.l.b16 %v2882
    %v2959 = vunpack.c.h.b16 %v2882
    %v2960 = vunpack.c.l.b16 %v2883
    %v2961 = vunpack.c.l.b16 %v2884
    %v2962 = vunpack.c.h.b16 %v2884
    %v2963 = vunpack.c.l.b16 %v2885
    %v2964 = vunpack.c.l.b16 %v2886
    %v2965 = vunpack.c.h.b16 %v2886
    %v2966 = vunpack.c.l.b16 %v2887
    %v2967 = vunpack.c.l.b16 %v2888
    %v2968 = vunpack.c.h.b16 %v2888
    %v2969 = vunpack.c.l.b16 %v2889
    %v2970 = vpack.c.b16 %v2925, %v2922
    %v2971 = vpack.c.b16 %v2926, %v2923
    %v2972 = vpack.c.b16 %v2927, %v2924
    %v2973 = vpack.c.b16 %v2931, %v2928
    %v2974 = vpack.c.b16 %v2932, %v2929
    %v2975 = vpack.c.b16 %v2933, %v2930
    %v2976 = vpack.c.b16 %v2937, %v2934
    %v2977 = vpack.c.b16 %v2938, %v2935
    %v2978 = vpack.c.b16 %v2939, %v2936
    %v2979 = vpack.c.b16 %v2943, %v2940
    %v2980 = vpack.c.b16 %v2944, %v2941
    %v2981 = vpack.c.b16 %v2945, %v2942
    %v2982 = vpack.c.b16 %v2949, %v2946
    %v2983 = vpack.c.b16 %v2950, %v2947
    %v2984 = vpack.c.b16 %v2951, %v2948
    %v2985 = vpack.c.b16 %v2955, %v2952
    %v2986 = vpack.c.b16 %v2956, %v2953
    %v2987 = vpack.c.b16 %v2957, %v2954
    %v2988 = vpack.c.b16 %v2961, %v2958
    %v2989 = vpack.c.b16 %v2962, %v2959
    %v2990 = vpack.c.b16 %v2963, %v2960
    %v2991 = vpack.c.b16 %v2967, %v2964
    %v2992 = vpack.c.b16 %v2968, %v2965
    %v2993 = vpack.c.b16 %v2969, %v2966
    %3018 = vmatpush.bf16.msra.mxu0 %v2991
    %3019 = vmatpush.bf16.msra.mxu0 %v2988
    %3020 = vmatpush.bf16.msra.mxu0 %v2985
    %3021 = vmatpush.bf16.msra.mxu0 %v2982
    %3022 = vmatpush.bf16.msra.mxu0 %v2979
    %3023 = vmatpush.bf16.msra.mxu0 %v2976
    %3024 = vmatpush.bf16.msra.mxu0 %v2973
    %3025 = vmatpush.bf16.msra.mxu0 %v2970
    %3026 = vmatmul.bf16.gmra.mxu0 %v2857
    %v3027 = vpop.f32.mrf.mxu0
    %v3028 = vadd.f32 0.0, %v3027
    %v3029 = vpop.f32.mrf.mxu0
    %v3030 = vadd.f32 0.0, %v3029
    %3031 = vdwg.mxu0
    %3032 = vmatpush.bf16.msra.mxu0 %v2992
    %3033 = vmatpush.bf16.msra.mxu0 %v2989
    %3034 = vmatpush.bf16.msra.mxu0 %v2986
    %3035 = vmatpush.bf16.msra.mxu0 %v2983
    %3036 = vmatpush.bf16.msra.mxu0 %v2980
    %3037 = vmatpush.bf16.msra.mxu0 %v2977
    %3038 = vmatpush.bf16.msra.mxu0 %v2974
    %3039 = vmatpush.bf16.msra.mxu0 %v2971
    %3040 = vmatmul.bf16.gmra.mxu0 %v2857
    %v3041 = vpop.f32.mrf.mxu0
    %v3042 = vadd.f32 0.0, %v3041
    %v3043 = vpop.f32.mrf.mxu0
    %v3044 = vadd.f32 0.0, %v3043
    %3045 = vdwg.mxu0
    %3046 = vmatpush.bf16.msra.mxu0 %v2993
    %3047 = vmatpush.bf16.msra.mxu0 %v2990
    %3048 = vmatpush.bf16.msra.mxu0 %v2987
    %3049 = vmatpush.bf16.msra.mxu0 %v2984
    %3050 = vmatpush.bf16.msra.mxu0 %v2981
    %3051 = vmatpush.bf16.msra.mxu0 %v2978
    %3052 = vmatpush.bf16.msra.mxu0 %v2975
    %3053 = vmatpush.bf16.msra.mxu0 %v2972
    %3054 = vmatmul.bf16.gmra.mxu0 %v2857
    %v3055 = vpop.f32.mrf.mxu0
    %v3056 = vadd.f32 0.0, %v3055
    %v3057 = vpop.f32.mrf.mxu0
    %v3058 = vadd.f32 0.0, %v3057
    %3059 = vdwg.mxu0
    %s3060 = smul.u32 6, 6
    %s3061 = smul.addr %s3060, 4
    %s3062 = scalar_lea.vmem [#allocation2], %s3061
    %v3063 = vld [vmem:[%s3062] sm:$0xff]
    %v3064 = vld [vmem:[%s3062 + $0x8] sm:$0xf]
    %v3065 = vld [vmem:[%s3062 + $0x18] sm:$0xff]
    %v3066 = vld [vmem:[%s3062 + $0x20] sm:$0xf]
    %v3067 = vunpack.c.l.bf16 %v3063
    %v3068 = vunpack.c.h.bf16 %v3063
    %v3069 = vunpack.c.l.bf16 %v3064
    %v3070 = vunpack.c.l.bf16 %v3065
    %v3071 = vunpack.c.h.bf16 %v3065
    %v3072 = vunpack.c.l.bf16 %v3066
    %v3073 = vadd.f32 %v3067, %v3028
    %v3074 = vadd.f32 %v3070, %v3030
    %v3075 = vxor.u32 %v3073, 2147483648
    %v3076 = vxor.u32 %v3074, 2147483648
    %v3077 = vmul.f32 %v3075, 1.442695
    %v3078 = vpow.pop %v3077
    %v3079 = vmul.f32 %v3076, 1.442695
    %v3080 = vpow.pop %v3079
    %v3081 = vadd.f32 %v3078, 1.0
    %v3082 = vadd.f32 %v3080, 1.0
    %v3083 = vrcp.pop %v3081
    %v3084 = vmul.f32 %v3081, %v3083
    %v3085 = vsub.f32 1.0, %v3084
    %v3086 = vmul.f32 %v3083, %v3085
    %v3087 = vadd.f32 %v3083, %v3086
    %vm3088 = vweird.f32 %v3081
    %vm3089 = vweird.f32 %v3083
    %vm3090 = vmor %vm3088, %vm3089
    %v3091 = vsel %vm3090, %v3083, %v3087
    %v3092 = vand.u32 2147483647, %v3081
    %vm3093 = vcmp.eq.f32.partialorder %v3092, 8.507059e+37
    %v3094 = vand.u32 %v3081, 2147483648
    %v3095 = vor.u32 1.1754944e-38, %v3094
    %v3096 = vsel %vm3093, %v3095, %v3091
    %v3097 = vmul.f32 1.0, %v3096
    %v3098 = vrcp.pop %v3082
    %v3099 = vmul.f32 %v3082, %v3098
    %v3100 = vsub.f32 1.0, %v3099
    %v3101 = vmul.f32 %v3098, %v3100
    %v3102 = vadd.f32 %v3098, %v3101
    %vm3103 = vweird.f32 %v3082
    %vm3104 = vweird.f32 %v3098
    %vm3105 = vmor %vm3103, %vm3104
    %v3106 = vsel %vm3105, %v3098, %v3102
    %v3107 = vand.u32 2147483647, %v3082
    %vm3108 = vcmp.eq.f32.partialorder %v3107, 8.507059e+37
    %v3109 = vand.u32 %v3082, 2147483648
    %v3110 = vor.u32 1.1754944e-38, %v3109
    %v3111 = vsel %vm3108, %v3110, %v3106
    %v3112 = vmul.f32 1.0, %v3111
    %v3113 = vadd.f32 %v3068, %v3042
    %v3114 = vadd.f32 %v3071, %v3044
    %v3115 = vxor.u32 %v3113, 2147483648
    %v3116 = vxor.u32 %v3114, 2147483648
    %v3117 = vmul.f32 %v3115, 1.442695
    %v3118 = vpow.pop %v3117
    %v3119 = vmul.f32 %v3116, 1.442695
    %v3120 = vpow.pop %v3119
    %v3121 = vadd.f32 %v3118, 1.0
    %v3122 = vadd.f32 %v3120, 1.0
    %v3123 = vrcp.pop %v3121
    %v3124 = vmul.f32 %v3121, %v3123
    %v3125 = vsub.f32 1.0, %v3124
    %v3126 = vmul.f32 %v3123, %v3125
    %v3127 = vadd.f32 %v3123, %v3126
    %vm3128 = vweird.f32 %v3121
    %vm3129 = vweird.f32 %v3123
    %vm3130 = vmor %vm3128, %vm3129
    %v3131 = vsel %vm3130, %v3123, %v3127
    %v3132 = vand.u32 2147483647, %v3121
    %vm3133 = vcmp.eq.f32.partialorder %v3132, 8.507059e+37
    %v3134 = vand.u32 %v3121, 2147483648
    %v3135 = vor.u32 1.1754944e-38, %v3134
    %v3136 = vsel %vm3133, %v3135, %v3131
    %v3137 = vmul.f32 1.0, %v3136
    %v3138 = vrcp.pop %v3122
    %v3139 = vmul.f32 %v3122, %v3138
    %v3140 = vsub.f32 1.0, %v3139
    %v3141 = vmul.f32 %v3138, %v3140
    %v3142 = vadd.f32 %v3138, %v3141
    %vm3143 = vweird.f32 %v3122
    %vm3144 = vweird.f32 %v3138
    %vm3145 = vmor %vm3143, %vm3144
    %v3146 = vsel %vm3145, %v3138, %v3142
    %v3147 = vand.u32 2147483647, %v3122
    %vm3148 = vcmp.eq.f32.partialorder %v3147, 8.507059e+37
    %v3149 = vand.u32 %v3122, 2147483648
    %v3150 = vor.u32 1.1754944e-38, %v3149
    %v3151 = vsel %vm3148, %v3150, %v3146
    %v3152 = vmul.f32 1.0, %v3151
    %v3153 = vadd.f32 %v3056, %v1139
    %v3154 = vadd.f32 %v3058, %v1139
    %v3155 = vmul.f32 %v3097, %v3153
    %v3156 = vmul.f32 %v3112, %v3154
    %v3157 = vadd.f32 %v3069, %v3155
    %v3158 = vadd.f32 %v3072, %v3156
    %v3159 = vtanh.pop %v3157
    %v3160 = vtanh.pop %v3158
    %v3161 = vsub.f32 1.0, %v3137
    %v3162 = vsub.f32 1.0, %v3152
    %v3163 = vmul.f32 %v3161, %v3159
    %v3164 = vmul.f32 %v3162, %v3160
    %v3165 = vmul.f32 %v3137, %v2855
    %v3166 = vmul.f32 %v3152, %v2856
    %v3167 = vadd.f32 %v3163, %v3165
    %v3168 = vadd.f32 %v3164, %v3166
    %vm3169 = vcmp.gt.s32.totalorder %v836, 3
    %vm3170 = vcmp.gt.s32.totalorder %v837, 3
    %v3171 = vsel %vm3169, 1, 0
    %v3172 = vsel %vm3170, 1, 0
    %3173 = vset.pattern.permute.xlu0 0
    %3174 = vperm.xlu0 %3173, %v3171
    %v3175 = vpop.permute.xlu0 %3174
    %3176 = vset.pattern.permute.xlu0 0
    %3177 = vperm.xlu0 %3176, %v3172
    %v3178 = vpop.permute.xlu0 %3177
    %vm3179 = vcmp.eq.s32.totalorder %v3175, 1
    %vm3180 = vcmp.eq.s32.totalorder %v3178, 1
    %v3181 = vsel %vm3179, %v3167, %v2855
    %v3182 = vsel %vm3180, %v3168, %v2856
    %3183 = vst [vmem:[#allocation3] sm:$0xff] %v3181
    %3184 = vst [vmem:[#allocation3 + $0x8] sm:$0xff] %v3182
    %v3185 = vpack.c.bf16 %v3181, %v3181
    %v3186 = vpack.c.bf16 %v3182, %v3182
    %s3187 = scalar_lea.vmem %s8, 48
    %3188 = vst [vmem:[%s3187] sm:$0xf] %v3185
    %3189 = vst [vmem:[%s3187 + $0x8] sm:$0xf] %v3186
    %v3190 = vld [vmem:[#allocation4] sm:$0xff]
    %v3191 = vld [vmem:[#allocation4 + $0x8] sm:$0xff]
    %v3192 = vpack.c.bf16 %v3191, %v3190
    %v3193 = vld [vmem:[#allocation9] sm:$0xff]
    %v3194 = vld [vmem:[#allocation9 + $0x8] sm:$0xf]
    %v3195 = vld [vmem:[#allocation9 + $0xc] sm:$0xff]
    %v3196 = vld [vmem:[#allocation9 + $0x14] sm:$0xf]
    %v3197 = vld [vmem:[#allocation9 + $0x18] sm:$0xff]
    %v3198 = vld [vmem:[#allocation9 + $0x20] sm:$0xf]
    %v3199 = vld [vmem:[#allocation9 + $0x24] sm:$0xff]
    %v3200 = vld [vmem:[#allocation9 + $0x2c] sm:$0xf]
    %v3201 = vld [vmem:[#allocation9 + $0x30] sm:$0xff]
    %v3202 = vld [vmem:[#allocation9 + $0x38] sm:$0xf]
    %v3203 = vld [vmem:[#allocation9 + $0x3c] sm:$0xff]
    %v3204 = vld [vmem:[#allocation9 + $0x44] sm:$0xf]
    %v3205 = vld [vmem:[#allocation9 + $0x48] sm:$0xff]
    %v3206 = vld [vmem:[#allocation9 + $0x50] sm:$0xf]
    %v3207 = vld [vmem:[#allocation9 + $0x54] sm:$0xff]
    %v3208 = vld [vmem:[#allocation9 + $0x5c] sm:$0xf]
    %v3209 = vld [vmem:[#allocation9 + $0x60] sm:$0xff]
    %v3210 = vld [vmem:[#allocation9 + $0x68] sm:$0xf]
    %v3211 = vld [vmem:[#allocation9 + $0x6c] sm:$0xff]
    %v3212 = vld [vmem:[#allocation9 + $0x74] sm:$0xf]
    %v3213 = vld [vmem:[#allocation9 + $0x78] sm:$0xff]
    %v3214 = vld [vmem:[#allocation9 + $0x80] sm:$0xf]
    %v3215 = vld [vmem:[#allocation9 + $0x84] sm:$0xff]
    %v3216 = vld [vmem:[#allocation9 + $0x8c] sm:$0xf]
    %v3217 = vld [vmem:[#allocation9 + $0x90] sm:$0xff]
    %v3218 = vld [vmem:[#allocation9 + $0x98] sm:$0xf]
    %v3219 = vld [vmem:[#allocation9 + $0x9c] sm:$0xff]
    %v3220 = vld [vmem:[#allocation9 + $0xa4] sm:$0xf]
    %v3221 = vld [vmem:[#allocation9 + $0xa8] sm:$0xff]
    %v3222 = vld [vmem:[#allocation9 + $0xb0] sm:$0xf]
    %v3223 = vld [vmem:[#allocation9 + $0xb4] sm:$0xff]
    %v3224 = vld [vmem:[#allocation9 + $0xbc] sm:$0xf]
    %v3257 = vunpack.c.l.b16 %v3193
    %v3258 = vunpack.c.h.b16 %v3193
    %v3259 = vunpack.c.l.b16 %v3194
    %v3260 = vunpack.c.l.b16 %v3195
    %v3261 = vunpack.c.h.b16 %v3195
    %v3262 = vunpack.c.l.b16 %v3196
    %v3263 = vunpack.c.l.b16 %v3197
    %v3264 = vunpack.c.h.b16 %v3197
    %v3265 = vunpack.c.l.b16 %v3198
    %v3266 = vunpack.c.l.b16 %v3199
    %v3267 = vunpack.c.h.b16 %v3199
    %v3268 = vunpack.c.l.b16 %v3200
    %v3269 = vunpack.c.l.b16 %v3201
    %v3270 = vunpack.c.h.b16 %v3201
    %v3271 = vunpack.c.l.b16 %v3202
    %v3272 = vunpack.c.l.b16 %v3203
    %v3273 = vunpack.c.h.b16 %v3203
    %v3274 = vunpack.c.l.b16 %v3204
    %v3275 = vunpack.c.l.b16 %v3205
    %v3276 = vunpack.c.h.b16 %v3205
    %v3277 = vunpack.c.l.b16 %v3206
    %v3278 = vunpack.c.l.b16 %v3207
    %v3279 = vunpack.c.h.b16 %v3207
    %v3280 = vunpack.c.l.b16 %v3208
    %v3281 = vunpack.c.l.b16 %v3209
    %v3282 = vunpack.c.h.b16 %v3209
    %v3283 = vunpack.c.l.b16 %v3210
    %v3284 = vunpack.c.l.b16 %v3211
    %v3285 = vunpack.c.h.b16 %v3211
    %v3286 = vunpack.c.l.b16 %v3212
    %v3287 = vunpack.c.l.b16 %v3213
    %v3288 = vunpack.c.h.b16 %v3213
    %v3289 = vunpack.c.l.b16 %v3214
    %v3290 = vunpack.c.l.b16 %v3215
    %v3291 = vunpack.c.h.b16 %v3215
    %v3292 = vunpack.c.l.b16 %v3216
    %v3293 = vunpack.c.l.b16 %v3217
    %v3294 = vunpack.c.h.b16 %v3217
    %v3295 = vunpack.c.l.b16 %v3218
    %v3296 = vunpack.c.l.b16 %v3219
    %v3297 = vunpack.c.h.b16 %v3219
    %v3298 = vunpack.c.l.b16 %v3220
    %v3299 = vunpack.c.l.b16 %v3221
    %v3300 = vunpack.c.h.b16 %v3221
    %v3301 = vunpack.c.l.b16 %v3222
    %v3302 = vunpack.c.l.b16 %v3223
    %v3303 = vunpack.c.h.b16 %v3223
    %v3304 = vunpack.c.l.b16 %v3224
    %v3305 = vpack.c.b16 %v3260, %v3257
    %v3306 = vpack.c.b16 %v3261, %v3258
    %v3307 = vpack.c.b16 %v3262, %v3259
    %v3308 = vpack.c.b16 %v3266, %v3263
    %v3309 = vpack.c.b16 %v3267, %v3264
    %v3310 = vpack.c.b16 %v3268, %v3265
    %v3311 = vpack.c.b16 %v3272, %v3269
    %v3312 = vpack.c.b16 %v3273, %v3270
    %v3313 = vpack.c.b16 %v3274, %v3271
    %v3314 = vpack.c.b16 %v3278, %v3275
    %v3315 = vpack.c.b16 %v3279, %v3276
    %v3316 = vpack.c.b16 %v3280, %v3277
    %v3317 = vpack.c.b16 %v3284, %v3281
    %v3318 = vpack.c.b16 %v3285, %v3282
    %v3319 = vpack.c.b16 %v3286, %v3283
    %v3320 = vpack.c.b16 %v3290, %v3287
    %v3321 = vpack.c.b16 %v3291, %v3288
    %v3322 = vpack.c.b16 %v3292, %v3289
    %v3323 = vpack.c.b16 %v3296, %v3293
    %v3324 = vpack.c.b16 %v3297, %v3294
    %v3325 = vpack.c.b16 %v3298, %v3295
    %v3326 = vpack.c.b16 %v3302, %v3299
    %v3327 = vpack.c.b16 %v3303, %v3300
    %v3328 = vpack.c.b16 %v3304, %v3301
    %3353 = vmatpush.bf16.msra.mxu0 %v3326
    %3354 = vmatpush.bf16.msra.mxu0 %v3323
    %3355 = vmatpush.bf16.msra.mxu0 %v3320
    %3356 = vmatpush.bf16.msra.mxu0 %v3317
    %3357 = vmatpush.bf16.msra.mxu0 %v3314
    %3358 = vmatpush.bf16.msra.mxu0 %v3311
    %3359 = vmatpush.bf16.msra.mxu0 %v3308
    %3360 = vmatpush.bf16.msra.mxu0 %v3305
    %3361 = vmatmul.bf16.gmra.mxu0 %v3192
    %v3362 = vpop.f32.mrf.mxu0
    %v3363 = vadd.f32 0.0, %v3362
    %v3364 = vpop.f32.mrf.mxu0
    %v3365 = vadd.f32 0.0, %v3364
    %3366 = vdwg.mxu0
    %3367 = vmatpush.bf16.msra.mxu0 %v3327
    %3368 = vmatpush.bf16.msra.mxu0 %v3324
    %3369 = vmatpush.bf16.msra.mxu0 %v3321
    %3370 = vmatpush.bf16.msra.mxu0 %v3318
    %3371 = vmatpush.bf16.msra.mxu0 %v3315
    %3372 = vmatpush.bf16.msra.mxu0 %v3312
    %3373 = vmatpush.bf16.msra.mxu0 %v3309
    %3374 = vmatpush.bf16.msra.mxu0 %v3306
    %3375 = vmatmul.bf16.gmra.mxu0 %v3192
    %v3376 = vpop.f32.mrf.mxu0
    %v3377 = vadd.f32 0.0, %v3376
    %v3378 = vpop.f32.mrf.mxu0
    %v3379 = vadd.f32 0.0, %v3378
    %3380 = vdwg.mxu0
    %3381 = vmatpush.bf16.msra.mxu0 %v3328
    %3382 = vmatpush.bf16.msra.mxu0 %v3325
    %3383 = vmatpush.bf16.msra.mxu0 %v3322
    %3384 = vmatpush.bf16.msra.mxu0 %v3319
    %3385 = vmatpush.bf16.msra.mxu0 %v3316
    %3386 = vmatpush.bf16.msra.mxu0 %v3313
    %3387 = vmatpush.bf16.msra.mxu0 %v3310
    %3388 = vmatpush.bf16.msra.mxu0 %v3307
    %3389 = vmatmul.bf16.gmra.mxu0 %v3192
    %v3390 = vpop.f32.mrf.mxu0
    %v3391 = vadd.f32 0.0, %v3390
    %v3392 = vpop.f32.mrf.mxu0
    %v3393 = vadd.f32 0.0, %v3392
    %3394 = vdwg.mxu0
    %s3395 = smul.u32 8, 6
    %s3396 = smul.addr %s3395, 4
    %s3397 = scalar_lea.vmem [#allocation2], %s3396
    %v3398 = vld [vmem:[%s3397 + $0xc] sm:$0xff]
    %v3399 = vld [vmem:[%s3397 + $0x14] sm:$0xf]
    %v3400 = vld [vmem:[%s3397 + $0x24] sm:$0xff]
    %v3401 = vld [vmem:[%s3397 + $0x2c] sm:$0xf]
    %v3402 = vunpack.c.l.bf16 %v3398
    %v3403 = vunpack.c.h.bf16 %v3398
    %v3404 = vunpack.c.l.bf16 %v3399
    %v3405 = vunpack.c.l.bf16 %v3400
    %v3406 = vunpack.c.h.bf16 %v3400
    %v3407 = vunpack.c.l.bf16 %v3401
    %v3408 = vadd.f32 %v3402, %v3363
    %v3409 = vadd.f32 %v3405, %v3365
    %v3410 = vxor.u32 %v3408, 2147483648
    %v3411 = vxor.u32 %v3409, 2147483648
    %v3412 = vmul.f32 %v3410, 1.442695
    %v3413 = vpow.pop %v3412
    %v3414 = vmul.f32 %v3411, 1.442695
    %v3415 = vpow.pop %v3414
    %v3416 = vadd.f32 %v3413, 1.0
    %v3417 = vadd.f32 %v3415, 1.0
    %v3418 = vrcp.pop %v3416
    %v3419 = vmul.f32 %v3416, %v3418
    %v3420 = vsub.f32 1.0, %v3419
    %v3421 = vmul.f32 %v3418, %v3420
    %v3422 = vadd.f32 %v3418, %v3421
    %vm3423 = vweird.f32 %v3416
    %vm3424 = vweird.f32 %v3418
    %vm3425 = vmor %vm3423, %vm3424
    %v3426 = vsel %vm3425, %v3418, %v3422
    %v3427 = vand.u32 2147483647, %v3416
    %vm3428 = vcmp.eq.f32.partialorder %v3427, 8.507059e+37
    %v3429 = vand.u32 %v3416, 2147483648
    %v3430 = vor.u32 1.1754944e-38, %v3429
    %v3431 = vsel %vm3428, %v3430, %v3426
    %v3432 = vmul.f32 1.0, %v3431
    %v3433 = vrcp.pop %v3417
    %v3434 = vmul.f32 %v3417, %v3433
    %v3435 = vsub.f32 1.0, %v3434
    %v3436 = vmul.f32 %v3433, %v3435
    %v3437 = vadd.f32 %v3433, %v3436
    %vm3438 = vweird.f32 %v3417
    %vm3439 = vweird.f32 %v3433
    %vm3440 = vmor %vm3438, %vm3439
    %v3441 = vsel %vm3440, %v3433, %v3437
    %v3442 = vand.u32 2147483647, %v3417
    %vm3443 = vcmp.eq.f32.partialorder %v3442, 8.507059e+37
    %v3444 = vand.u32 %v3417, 2147483648
    %v3445 = vor.u32 1.1754944e-38, %v3444
    %v3446 = vsel %vm3443, %v3445, %v3441
    %v3447 = vmul.f32 1.0, %v3446
    %v3448 = vadd.f32 %v3403, %v3377
    %v3449 = vadd.f32 %v3406, %v3379
    %v3450 = vxor.u32 %v3448, 2147483648
    %v3451 = vxor.u32 %v3449, 2147483648
    %v3452 = vmul.f32 %v3450, 1.442695
    %v3453 = vpow.pop %v3452
    %v3454 = vmul.f32 %v3451, 1.442695
    %v3455 = vpow.pop %v3454
    %v3456 = vadd.f32 %v3453, 1.0
    %v3457 = vadd.f32 %v3455, 1.0
    %v3458 = vrcp.pop %v3456
    %v3459 = vmul.f32 %v3456, %v3458
    %v3460 = vsub.f32 1.0, %v3459
    %v3461 = vmul.f32 %v3458, %v3460
    %v3462 = vadd.f32 %v3458, %v3461
    %vm3463 = vweird.f32 %v3456
    %vm3464 = vweird.f32 %v3458
    %vm3465 = vmor %vm3463, %vm3464
    %v3466 = vsel %vm3465, %v3458, %v3462
    %v3467 = vand.u32 2147483647, %v3456
    %vm3468 = vcmp.eq.f32.partialorder %v3467, 8.507059e+37
    %v3469 = vand.u32 %v3456, 2147483648
    %v3470 = vor.u32 1.1754944e-38, %v3469
    %v3471 = vsel %vm3468, %v3470, %v3466
    %v3472 = vmul.f32 1.0, %v3471
    %v3473 = vrcp.pop %v3457
    %v3474 = vmul.f32 %v3457, %v3473
    %v3475 = vsub.f32 1.0, %v3474
    %v3476 = vmul.f32 %v3473, %v3475
    %v3477 = vadd.f32 %v3473, %v3476
    %vm3478 = vweird.f32 %v3457
    %vm3479 = vweird.f32 %v3473
    %vm3480 = vmor %vm3478, %vm3479
    %v3481 = vsel %vm3480, %v3473, %v3477
    %v3482 = vand.u32 2147483647, %v3457
    %vm3483 = vcmp.eq.f32.partialorder %v3482, 8.507059e+37
    %v3484 = vand.u32 %v3457, 2147483648
    %v3485 = vor.u32 1.1754944e-38, %v3484
    %v3486 = vsel %vm3483, %v3485, %v3481
    %v3487 = vmul.f32 1.0, %v3486
    %v3488 = vadd.f32 %v3391, %v1476
    %v3489 = vadd.f32 %v3393, %v1476
    %v3490 = vmul.f32 %v3432, %v3488
    %v3491 = vmul.f32 %v3447, %v3489
    %v3492 = vadd.f32 %v3404, %v3490
    %v3493 = vadd.f32 %v3407, %v3491
    %v3494 = vtanh.pop %v3492
    %v3495 = vtanh.pop %v3493
    %v3496 = vsub.f32 1.0, %v3472
    %v3497 = vsub.f32 1.0, %v3487
    %v3498 = vmul.f32 %v3496, %v3494
    %v3499 = vmul.f32 %v3497, %v3495
    %v3500 = vmul.f32 %v3472, %v3190
    %v3501 = vmul.f32 %v3487, %v3191
    %v3502 = vadd.f32 %v3498, %v3500
    %v3503 = vadd.f32 %v3499, %v3501
    %vm3504 = vcmp.gt.s32.totalorder %v836, 4
    %vm3505 = vcmp.gt.s32.totalorder %v837, 4
    %v3506 = vsel %vm3504, 1, 0
    %v3507 = vsel %vm3505, 1, 0
    %3508 = vset.pattern.permute.xlu0 0
    %3509 = vperm.xlu0 %3508, %v3506
    %v3510 = vpop.permute.xlu0 %3509
    %3511 = vset.pattern.permute.xlu0 0
    %3512 = vperm.xlu0 %3511, %v3507
    %v3513 = vpop.permute.xlu0 %3512
    %vm3514 = vcmp.eq.s32.totalorder %v3510, 1
    %vm3515 = vcmp.eq.s32.totalorder %v3513, 1
    %v3516 = vsel %vm3514, %v3502, %v3190
    %v3517 = vsel %vm3515, %v3503, %v3191
    %3518 = vst [vmem:[#allocation4] sm:$0xff] %v3516
    %3519 = vst [vmem:[#allocation4 + $0x8] sm:$0xff] %v3517
    %v3520 = vpack.c.bf16 %v3516, %v3516
    %v3521 = vpack.c.bf16 %v3517, %v3517
    %s3522 = scalar_lea.vmem %s8, 64
    %3523 = vst [vmem:[%s3522 + $0x4] sm:$0xf] %v3520
    %3524 = vst [vmem:[%s3522 + $0xc] sm:$0xf] %v3521
    %v3525 = vld [vmem:[#allocation3] sm:$0xff]
    %v3526 = vld [vmem:[#allocation3 + $0x8] sm:$0xff]
    %v3527 = vpack.c.bf16 %v3526, %v3525
    %v3528 = vld [vmem:[#allocation7] sm:$0xff]
    %v3529 = vld [vmem:[#allocation7 + $0x8] sm:$0xf]
    %v3530 = vld [vmem:[#allocation7 + $0xc] sm:$0xff]
    %v3531 = vld [vmem:[#allocation7 + $0x14] sm:$0xf]
    %v3532 = vld [vmem:[#allocation7 + $0x18] sm:$0xff]
    %v3533 = vld [vmem:[#allocation7 + $0x20] sm:$0xf]
    %v3534 = vld [vmem:[#allocation7 + $0x24] sm:$0xff]
    %v3535 = vld [vmem:[#allocation7 + $0x2c] sm:$0xf]
    %v3536 = vld [vmem:[#allocation7 + $0x30] sm:$0xff]
    %v3537 = vld [vmem:[#allocation7 + $0x38] sm:$0xf]
    %v3538 = vld [vmem:[#allocation7 + $0x3c] sm:$0xff]
    %v3539 = vld [vmem:[#allocation7 + $0x44] sm:$0xf]
    %v3540 = vld [vmem:[#allocation7 + $0x48] sm:$0xff]
    %v3541 = vld [vmem:[#allocation7 + $0x50] sm:$0xf]
    %v3542 = vld [vmem:[#allocation7 + $0x54] sm:$0xff]
    %v3543 = vld [vmem:[#allocation7 + $0x5c] sm:$0xf]
    %v3544 = vld [vmem:[#allocation7 + $0x60] sm:$0xff]
    %v3545 = vld [vmem:[#allocation7 + $0x68] sm:$0xf]
    %v3546 = vld [vmem:[#allocation7 + $0x6c] sm:$0xff]
    %v3547 = vld [vmem:[#allocation7 + $0x74] sm:$0xf]
    %v3548 = vld [vmem:[#allocation7 + $0x78] sm:$0xff]
    %v3549 = vld [vmem:[#allocation7 + $0x80] sm:$0xf]
    %v3550 = vld [vmem:[#allocation7 + $0x84] sm:$0xff]
    %v3551 = vld [vmem:[#allocation7 + $0x8c] sm:$0xf]
    %v3552 = vld [vmem:[#allocation7 + $0x90] sm:$0xff]
    %v3553 = vld [vmem:[#allocation7 + $0x98] sm:$0xf]
    %v3554 = vld [vmem:[#allocation7 + $0x9c] sm:$0xff]
    %v3555 = vld [vmem:[#allocation7 + $0xa4] sm:$0xf]
    %v3556 = vld [vmem:[#allocation7 + $0xa8] sm:$0xff]
    %v3557 = vld [vmem:[#allocation7 + $0xb0] sm:$0xf]
    %v3558 = vld [vmem:[#allocation7 + $0xb4] sm:$0xff]
    %v3559 = vld [vmem:[#allocation7 + $0xbc] sm:$0xf]
    %v3592 = vunpack.c.l.b16 %v3528
    %v3593 = vunpack.c.h.b16 %v3528
    %v3594 = vunpack.c.l.b16 %v3529
    %v3595 = vunpack.c.l.b16 %v3530
    %v3596 = vunpack.c.h.b16 %v3530
    %v3597 = vunpack.c.l.b16 %v3531
    %v3598 = vunpack.c.l.b16 %v3532
    %v3599 = vunpack.c.h.b16 %v3532
    %v3600 = vunpack.c.l.b16 %v3533
    %v3601 = vunpack.c.l.b16 %v3534
    %v3602 = vunpack.c.h.b16 %v3534
    %v3603 = vunpack.c.l.b16 %v3535
    %v3604 = vunpack.c.l.b16 %v3536
    %v3605 = vunpack.c.h.b16 %v3536
    %v3606 = vunpack.c.l.b16 %v3537
    %v3607 = vunpack.c.l.b16 %v3538
    %v3608 = vunpack.c.h.b16 %v3538
    %v3609 = vunpack.c.l.b16 %v3539
    %v3610 = vunpack.c.l.b16 %v3540
    %v3611 = vunpack.c.h.b16 %v3540
    %v3612 = vunpack.c.l.b16 %v3541
    %v3613 = vunpack.c.l.b16 %v3542
    %v3614 = vunpack.c.h.b16 %v3542
    %v3615 = vunpack.c.l.b16 %v3543
    %v3616 = vunpack.c.l.b16 %v3544
    %v3617 = vunpack.c.h.b16 %v3544
    %v3618 = vunpack.c.l.b16 %v3545
    %v3619 = vunpack.c.l.b16 %v3546
    %v3620 = vunpack.c.h.b16 %v3546
    %v3621 = vunpack.c.l.b16 %v3547
    %v3622 = vunpack.c.l.b16 %v3548
    %v3623 = vunpack.c.h.b16 %v3548
    %v3624 = vunpack.c.l.b16 %v3549
    %v3625 = vunpack.c.l.b16 %v3550
    %v3626 = vunpack.c.h.b16 %v3550
    %v3627 = vunpack.c.l.b16 %v3551
    %v3628 = vunpack.c.l.b16 %v3552
    %v3629 = vunpack.c.h.b16 %v3552
    %v3630 = vunpack.c.l.b16 %v3553
    %v3631 = vunpack.c.l.b16 %v3554
    %v3632 = vunpack.c.h.b16 %v3554
    %v3633 = vunpack.c.l.b16 %v3555
    %v3634 = vunpack.c.l.b16 %v3556
    %v3635 = vunpack.c.h.b16 %v3556
    %v3636 = vunpack.c.l.b16 %v3557
    %v3637 = vunpack.c.l.b16 %v3558
    %v3638 = vunpack.c.h.b16 %v3558
    %v3639 = vunpack.c.l.b16 %v3559
    %v3640 = vpack.c.b16 %v3595, %v3592
    %v3641 = vpack.c.b16 %v3596, %v3593
    %v3642 = vpack.c.b16 %v3597, %v3594
    %v3643 = vpack.c.b16 %v3601, %v3598
    %v3644 = vpack.c.b16 %v3602, %v3599
    %v3645 = vpack.c.b16 %v3603, %v3600
    %v3646 = vpack.c.b16 %v3607, %v3604
    %v3647 = vpack.c.b16 %v3608, %v3605
    %v3648 = vpack.c.b16 %v3609, %v3606
    %v3649 = vpack.c.b16 %v3613, %v3610
    %v3650 = vpack.c.b16 %v3614, %v3611
    %v3651 = vpack.c.b16 %v3615, %v3612
    %v3652 = vpack.c.b16 %v3619, %v3616
    %v3653 = vpack.c.b16 %v3620, %v3617
    %v3654 = vpack.c.b16 %v3621, %v3618
    %v3655 = vpack.c.b16 %v3625, %v3622
    %v3656 = vpack.c.b16 %v3626, %v3623
    %v3657 = vpack.c.b16 %v3627, %v3624
    %v3658 = vpack.c.b16 %v3631, %v3628
    %v3659 = vpack.c.b16 %v3632, %v3629
    %v3660 = vpack.c.b16 %v3633, %v3630
    %v3661 = vpack.c.b16 %v3637, %v3634
    %v3662 = vpack.c.b16 %v3638, %v3635
    %v3663 = vpack.c.b16 %v3639, %v3636
    %3688 = vmatpush.bf16.msra.mxu0 %v3661
    %3689 = vmatpush.bf16.msra.mxu0 %v3658
    %3690 = vmatpush.bf16.msra.mxu0 %v3655
    %3691 = vmatpush.bf16.msra.mxu0 %v3652
    %3692 = vmatpush.bf16.msra.mxu0 %v3649
    %3693 = vmatpush.bf16.msra.mxu0 %v3646
    %3694 = vmatpush.bf16.msra.mxu0 %v3643
    %3695 = vmatpush.bf16.msra.mxu0 %v3640
    %3696 = vmatmul.bf16.gmra.mxu0 %v3527
    %v3697 = vpop.f32.mrf.mxu0
    %v3698 = vadd.f32 0.0, %v3697
    %v3699 = vpop.f32.mrf.mxu0
    %v3700 = vadd.f32 0.0, %v3699
    %3701 = vdwg.mxu0
    %3702 = vmatpush.bf16.msra.mxu0 %v3662
    %3703 = vmatpush.bf16.msra.mxu0 %v3659
    %3704 = vmatpush.bf16.msra.mxu0 %v3656
    %3705 = vmatpush.bf16.msra.mxu0 %v3653
    %3706 = vmatpush.bf16.msra.mxu0 %v3650
    %3707 = vmatpush.bf16.msra.mxu0 %v3647
    %3708 = vmatpush.bf16.msra.mxu0 %v3644
    %3709 = vmatpush.bf16.msra.mxu0 %v3641
    %3710 = vmatmul.bf16.gmra.mxu0 %v3527
    %v3711 = vpop.f32.mrf.mxu0
    %v3712 = vadd.f32 0.0, %v3711
    %v3713 = vpop.f32.mrf.mxu0
    %v3714 = vadd.f32 0.0, %v3713
    %3715 = vdwg.mxu0
    %3716 = vmatpush.bf16.msra.mxu0 %v3663
    %3717 = vmatpush.bf16.msra.mxu0 %v3660
    %3718 = vmatpush.bf16.msra.mxu0 %v3657
    %3719 = vmatpush.bf16.msra.mxu0 %v3654
    %3720 = vmatpush.bf16.msra.mxu0 %v3651
    %3721 = vmatpush.bf16.msra.mxu0 %v3648
    %3722 = vmatpush.bf16.msra.mxu0 %v3645
    %3723 = vmatpush.bf16.msra.mxu0 %v3642
    %3724 = vmatmul.bf16.gmra.mxu0 %v3527
    %v3725 = vpop.f32.mrf.mxu0
    %v3726 = vadd.f32 0.0, %v3725
    %v3727 = vpop.f32.mrf.mxu0
    %v3728 = vadd.f32 0.0, %v3727
    %3729 = vdwg.mxu0
    %v3730 = vld [vmem:[%s3397] sm:$0xff]
    %v3731 = vld [vmem:[%s3397 + $0x8] sm:$0xf]
    %v3732 = vld [vmem:[%s3397 + $0x18] sm:$0xff]
    %v3733 = vld [vmem:[%s3397 + $0x20] sm:$0xf]
    %v3734 = vunpack.c.l.bf16 %v3730
    %v3735 = vunpack.c.h.bf16 %v3730
    %v3736 = vunpack.c.l.bf16 %v3731
    %v3737 = vunpack.c.l.bf16 %v3732
    %v3738 = vunpack.c.h.bf16 %v3732
    %v3739 = vunpack.c.l.bf16 %v3733
    %v3740 = vadd.f32 %v3734, %v3698
    %v3741 = vadd.f32 %v3737, %v3700
    %v3742 = vxor.u32 %v3740, 2147483648
    %v3743 = vxor.u32 %v3741, 2147483648
    %v3744 = vmul.f32 %v3742, 1.442695
    %v3745 = vpow.pop %v3744
    %v3746 = vmul.f32 %v3743, 1.442695
    %v3747 = vpow.pop %v3746
    %v3748 = vadd.f32 %v3745, 1.0
    %v3749 = vadd.f32 %v3747, 1.0
    %v3750 = vrcp.pop %v3748
    %v3751 = vmul.f32 %v3748, %v3750
    %v3752 = vsub.f32 1.0, %v3751
    %v3753 = vmul.f32 %v3750, %v3752
    %v3754 = vadd.f32 %v3750, %v3753
    %vm3755 = vweird.f32 %v3748
    %vm3756 = vweird.f32 %v3750
    %vm3757 = vmor %vm3755, %vm3756
    %v3758 = vsel %vm3757, %v3750, %v3754
    %v3759 = vand.u32 2147483647, %v3748
    %vm3760 = vcmp.eq.f32.partialorder %v3759, 8.507059e+37
    %v3761 = vand.u32 %v3748, 2147483648
    %v3762 = vor.u32 1.1754944e-38, %v3761
    %v3763 = vsel %vm3760, %v3762, %v3758
    %v3764 = vmul.f32 1.0, %v3763
    %v3765 = vrcp.pop %v3749
    %v3766 = vmul.f32 %v3749, %v3765
    %v3767 = vsub.f32 1.0, %v3766
    %v3768 = vmul.f32 %v3765, %v3767
    %v3769 = vadd.f32 %v3765, %v3768
    %vm3770 = vweird.f32 %v3749
    %vm3771 = vweird.f32 %v3765
    %vm3772 = vmor %vm3770, %vm3771
    %v3773 = vsel %vm3772, %v3765, %v3769
    %v3774 = vand.u32 2147483647, %v3749
    %vm3775 = vcmp.eq.f32.partialorder %v3774, 8.507059e+37
    %v3776 = vand.u32 %v3749, 2147483648
    %v3777 = vor.u32 1.1754944e-38, %v3776
    %v3778 = vsel %vm3775, %v3777, %v3773
    %v3779 = vmul.f32 1.0, %v3778
    %v3780 = vadd.f32 %v3735, %v3712
    %v3781 = vadd.f32 %v3738, %v3714
    %v3782 = vxor.u32 %v3780, 2147483648
    %v3783 = vxor.u32 %v3781, 2147483648
    %v3784 = vmul.f32 %v3782, 1.442695
    %v3785 = vpow.pop %v3784
    %v3786 = vmul.f32 %v3783, 1.442695
    %v3787 = vpow.pop %v3786
    %v3788 = vadd.f32 %v3785, 1.0
    %v3789 = vadd.f32 %v3787, 1.0
    %v3790 = vrcp.pop %v3788
    %v3791 = vmul.f32 %v3788, %v3790
    %v3792 = vsub.f32 1.0, %v3791
    %v3793 = vmul.f32 %v3790, %v3792
    %v3794 = vadd.f32 %v3790, %v3793
    %vm3795 = vweird.f32 %v3788
    %vm3796 = vweird.f32 %v3790
    %vm3797 = vmor %vm3795, %vm3796
    %v3798 = vsel %vm3797, %v3790, %v3794
    %v3799 = vand.u32 2147483647, %v3788
    %vm3800 = vcmp.eq.f32.partialorder %v3799, 8.507059e+37
    %v3801 = vand.u32 %v3788, 2147483648
    %v3802 = vor.u32 1.1754944e-38, %v3801
    %v3803 = vsel %vm3800, %v3802, %v3798
    %v3804 = vmul.f32 1.0, %v3803
    %v3805 = vrcp.pop %v3789
    %v3806 = vmul.f32 %v3789, %v3805
    %v3807 = vsub.f32 1.0, %v3806
    %v3808 = vmul.f32 %v3805, %v3807
    %v3809 = vadd.f32 %v3805, %v3808
    %vm3810 = vweird.f32 %v3789
    %vm3811 = vweird.f32 %v3805
    %vm3812 = vmor %vm3810, %vm3811
    %v3813 = vsel %vm3812, %v3805, %v3809
    %v3814 = vand.u32 2147483647, %v3789
    %vm3815 = vcmp.eq.f32.partialorder %v3814, 8.507059e+37
    %v3816 = vand.u32 %v3789, 2147483648
    %v3817 = vor.u32 1.1754944e-38, %v3816
    %v3818 = vsel %vm3815, %v3817, %v3813
    %v3819 = vmul.f32 1.0, %v3818
    %v3820 = vadd.f32 %v3726, %v1139
    %v3821 = vadd.f32 %v3728, %v1139
    %v3822 = vmul.f32 %v3764, %v3820
    %v3823 = vmul.f32 %v3779, %v3821
    %v3824 = vadd.f32 %v3736, %v3822
    %v3825 = vadd.f32 %v3739, %v3823
    %v3826 = vtanh.pop %v3824
    %v3827 = vtanh.pop %v3825
    %v3828 = vsub.f32 1.0, %v3804
    %v3829 = vsub.f32 1.0, %v3819
    %v3830 = vmul.f32 %v3828, %v3826
    %v3831 = vmul.f32 %v3829, %v3827
    %v3832 = vmul.f32 %v3804, %v3525
    %v3833 = vmul.f32 %v3819, %v3526
    %v3834 = vadd.f32 %v3830, %v3832
    %v3835 = vadd.f32 %v3831, %v3833
    %v3836 = vsel %vm3514, %v3834, %v3525
    %v3837 = vsel %vm3515, %v3835, %v3526
    %3838 = vst [vmem:[#allocation3] sm:$0xff] %v3836
    %3839 = vst [vmem:[#allocation3 + $0x8] sm:$0xff] %v3837
    %v3840 = vpack.c.bf16 %v3836, %v3836
    %v3841 = vpack.c.bf16 %v3837, %v3837
    %3842 = vst [vmem:[%s3522] sm:$0xf] %v3840
    %3843 = vst [vmem:[%s3522 + $0x8] sm:$0xf] %v3841
    %v3844 = vld [vmem:[#allocation4] sm:$0xff]
    %v3845 = vld [vmem:[#allocation4 + $0x8] sm:$0xff]
    %v3846 = vpack.c.bf16 %v3845, %v3844
    %v3847 = vld [vmem:[#allocation9] sm:$0xff]
    %v3848 = vld [vmem:[#allocation9 + $0x8] sm:$0xf]
    %v3849 = vld [vmem:[#allocation9 + $0xc] sm:$0xff]
    %v3850 = vld [vmem:[#allocation9 + $0x14] sm:$0xf]
    %v3851 = vld [vmem:[#allocation9 + $0x18] sm:$0xff]
    %v3852 = vld [vmem:[#allocation9 + $0x20] sm:$0xf]
    %v3853 = vld [vmem:[#allocation9 + $0x24] sm:$0xff]
    %v3854 = vld [vmem:[#allocation9 + $0x2c] sm:$0xf]
    %v3855 = vld [vmem:[#allocation9 + $0x30] sm:$0xff]
    %v3856 = vld [vmem:[#allocation9 + $0x38] sm:$0xf]
    %v3857 = vld [vmem:[#allocation9 + $0x3c] sm:$0xff]
    %v3858 = vld [vmem:[#allocation9 + $0x44] sm:$0xf]
    %v3859 = vld [vmem:[#allocation9 + $0x48] sm:$0xff]
    %v3860 = vld [vmem:[#allocation9 + $0x50] sm:$0xf]
    %v3861 = vld [vmem:[#allocation9 + $0x54] sm:$0xff]
    %v3862 = vld [vmem:[#allocation9 + $0x5c] sm:$0xf]
    %v3863 = vld [vmem:[#allocation9 + $0x60] sm:$0xff]
    %v3864 = vld [vmem:[#allocation9 + $0x68] sm:$0xf]
    %v3865 = vld [vmem:[#allocation9 + $0x6c] sm:$0xff]
    %v3866 = vld [vmem:[#allocation9 + $0x74] sm:$0xf]
    %v3867 = vld [vmem:[#allocation9 + $0x78] sm:$0xff]
    %v3868 = vld [vmem:[#allocation9 + $0x80] sm:$0xf]
    %v3869 = vld [vmem:[#allocation9 + $0x84] sm:$0xff]
    %v3870 = vld [vmem:[#allocation9 + $0x8c] sm:$0xf]
    %v3871 = vld [vmem:[#allocation9 + $0x90] sm:$0xff]
    %v3872 = vld [vmem:[#allocation9 + $0x98] sm:$0xf]
    %v3873 = vld [vmem:[#allocation9 + $0x9c] sm:$0xff]
    %v3874 = vld [vmem:[#allocation9 + $0xa4] sm:$0xf]
    %v3875 = vld [vmem:[#allocation9 + $0xa8] sm:$0xff]
    %v3876 = vld [vmem:[#allocation9 + $0xb0] sm:$0xf]
    %v3877 = vld [vmem:[#allocation9 + $0xb4] sm:$0xff]
    %v3878 = vld [vmem:[#allocation9 + $0xbc] sm:$0xf]
    %v3911 = vunpack.c.l.b16 %v3847
    %v3912 = vunpack.c.h.b16 %v3847
    %v3913 = vunpack.c.l.b16 %v3848
    %v3914 = vunpack.c.l.b16 %v3849
    %v3915 = vunpack.c.h.b16 %v3849
    %v3916 = vunpack.c.l.b16 %v3850
    %v3917 = vunpack.c.l.b16 %v3851
    %v3918 = vunpack.c.h.b16 %v3851
    %v3919 = vunpack.c.l.b16 %v3852
    %v3920 = vunpack.c.l.b16 %v3853
    %v3921 = vunpack.c.h.b16 %v3853
    %v3922 = vunpack.c.l.b16 %v3854
    %v3923 = vunpack.c.l.b16 %v3855
    %v3924 = vunpack.c.h.b16 %v3855
    %v3925 = vunpack.c.l.b16 %v3856
    %v3926 = vunpack.c.l.b16 %v3857
    %v3927 = vunpack.c.h.b16 %v3857
    %v3928 = vunpack.c.l.b16 %v3858
    %v3929 = vunpack.c.l.b16 %v3859
    %v3930 = vunpack.c.h.b16 %v3859
    %v3931 = vunpack.c.l.b16 %v3860
    %v3932 = vunpack.c.l.b16 %v3861
    %v3933 = vunpack.c.h.b16 %v3861
    %v3934 = vunpack.c.l.b16 %v3862
    %v3935 = vunpack.c.l.b16 %v3863
    %v3936 = vunpack.c.h.b16 %v3863
    %v3937 = vunpack.c.l.b16 %v3864
    %v3938 = vunpack.c.l.b16 %v3865
    %v3939 = vunpack.c.h.b16 %v3865
    %v3940 = vunpack.c.l.b16 %v3866
    %v3941 = vunpack.c.l.b16 %v3867
    %v3942 = vunpack.c.h.b16 %v3867
    %v3943 = vunpack.c.l.b16 %v3868
    %v3944 = vunpack.c.l.b16 %v3869
    %v3945 = vunpack.c.h.b16 %v3869
    %v3946 = vunpack.c.l.b16 %v3870
    %v3947 = vunpack.c.l.b16 %v3871
    %v3948 = vunpack.c.h.b16 %v3871
    %v3949 = vunpack.c.l.b16 %v3872
    %v3950 = vunpack.c.l.b16 %v3873
    %v3951 = vunpack.c.h.b16 %v3873
    %v3952 = vunpack.c.l.b16 %v3874
    %v3953 = vunpack.c.l.b16 %v3875
    %v3954 = vunpack.c.h.b16 %v3875
    %v3955 = vunpack.c.l.b16 %v3876
    %v3956 = vunpack.c.l.b16 %v3877
    %v3957 = vunpack.c.h.b16 %v3877
    %v3958 = vunpack.c.l.b16 %v3878
    %v3959 = vpack.c.b16 %v3914, %v3911
    %v3960 = vpack.c.b16 %v3915, %v3912
    %v3961 = vpack.c.b16 %v3916, %v3913
    %v3962 = vpack.c.b16 %v3920, %v3917
    %v3963 = vpack.c.b16 %v3921, %v3918
    %v3964 = vpack.c.b16 %v3922, %v3919
    %v3965 = vpack.c.b16 %v3926, %v3923
    %v3966 = vpack.c.b16 %v3927, %v3924
    %v3967 = vpack.c.b16 %v3928, %v3925
    %v3968 = vpack.c.b16 %v3932, %v3929
    %v3969 = vpack.c.b16 %v3933, %v3930
    %v3970 = vpack.c.b16 %v3934, %v3931
    %v3971 = vpack.c.b16 %v3938, %v3935
    %v3972 = vpack.c.b16 %v3939, %v3936
    %v3973 = vpack.c.b16 %v3940, %v3937
    %v3974 = vpack.c.b16 %v3944, %v3941
    %v3975 = vpack.c.b16 %v3945, %v3942
    %v3976 = vpack.c.b16 %v3946, %v3943
    %v3977 = vpack.c.b16 %v3950, %v3947
    %v3978 = vpack.c.b16 %v3951, %v3948
    %v3979 = vpack.c.b16 %v3952, %v3949
    %v3980 = vpack.c.b16 %v3956, %v3953
    %v3981 = vpack.c.b16 %v3957, %v3954
    %v3982 = vpack.c.b16 %v3958, %v3955
    %4007 = vmatpush.bf16.msra.mxu0 %v3980
    %4008 = vmatpush.bf16.msra.mxu0 %v3977
    %4009 = vmatpush.bf16.msra.mxu0 %v3974
    %4010 = vmatpush.bf16.msra.mxu0 %v3971
    %4011 = vmatpush.bf16.msra.mxu0 %v3968
    %4012 = vmatpush.bf16.msra.mxu0 %v3965
    %4013 = vmatpush.bf16.msra.mxu0 %v3962
    %4014 = vmatpush.bf16.msra.mxu0 %v3959
    %4015 = vmatmul.bf16.gmra.mxu0 %v3846
    %v4016 = vpop.f32.mrf.mxu0
    %v4017 = vadd.f32 0.0, %v4016
    %v4018 = vpop.f32.mrf.mxu0
    %v4019 = vadd.f32 0.0, %v4018
    %4020 = vdwg.mxu0
    %4021 = vmatpush.bf16.msra.mxu0 %v3981
    %4022 = vmatpush.bf16.msra.mxu0 %v3978
    %4023 = vmatpush.bf16.msra.mxu0 %v3975
    %4024 = vmatpush.bf16.msra.mxu0 %v3972
    %4025 = vmatpush.bf16.msra.mxu0 %v3969
    %4026 = vmatpush.bf16.msra.mxu0 %v3966
    %4027 = vmatpush.bf16.msra.mxu0 %v3963
    %4028 = vmatpush.bf16.msra.mxu0 %v3960
    %4029 = vmatmul.bf16.gmra.mxu0 %v3846
    %v4030 = vpop.f32.mrf.mxu0
    %v4031 = vadd.f32 0.0, %v4030
    %v4032 = vpop.f32.mrf.mxu0
    %v4033 = vadd.f32 0.0, %v4032
    %4034 = vdwg.mxu0
    %4035 = vmatpush.bf16.msra.mxu0 %v3982
    %4036 = vmatpush.bf16.msra.mxu0 %v3979
    %4037 = vmatpush.bf16.msra.mxu0 %v3976
    %4038 = vmatpush.bf16.msra.mxu0 %v3973
    %4039 = vmatpush.bf16.msra.mxu0 %v3970
    %4040 = vmatpush.bf16.msra.mxu0 %v3967
    %4041 = vmatpush.bf16.msra.mxu0 %v3964
    %4042 = vmatpush.bf16.msra.mxu0 %v3961
    %4043 = vmatmul.bf16.gmra.mxu0 %v3846
    %v4044 = vpop.f32.mrf.mxu0
    %v4045 = vadd.f32 0.0, %v4044
    %v4046 = vpop.f32.mrf.mxu0
    %v4047 = vadd.f32 0.0, %v4046
    %4048 = vdwg.mxu0
    %v4049 = vld [vmem:[%s3062 + $0xc] sm:$0xff]
    %v4050 = vld [vmem:[%s3062 + $0x14] sm:$0xf]
    %v4051 = vld [vmem:[%s3062 + $0x24] sm:$0xff]
    %v4052 = vld [vmem:[%s3062 + $0x2c] sm:$0xf]
    %v4053 = vunpack.c.l.bf16 %v4049
    %v4054 = vunpack.c.h.bf16 %v4049
    %v4055 = vunpack.c.l.bf16 %v4050
    %v4056 = vunpack.c.l.bf16 %v4051
    %v4057 = vunpack.c.h.bf16 %v4051
    %v4058 = vunpack.c.l.bf16 %v4052
    %v4059 = vadd.f32 %v4053, %v4017
    %v4060 = vadd.f32 %v4056, %v4019
    %v4061 = vxor.u32 %v4059, 2147483648
    %v4062 = vxor.u32 %v4060, 2147483648
    %v4063 = vmul.f32 %v4061, 1.442695
    %v4064 = vpow.pop %v4063
    %v4065 = vmul.f32 %v4062, 1.442695
    %v4066 = vpow.pop %v4065
    %v4067 = vadd.f32 %v4064, 1.0
    %v4068 = vadd.f32 %v4066, 1.0
    %v4069 = vrcp.pop %v4067
    %v4070 = vmul.f32 %v4067, %v4069
    %v4071 = vsub.f32 1.0, %v4070
    %v4072 = vmul.f32 %v4069, %v4071
    %v4073 = vadd.f32 %v4069, %v4072
    %vm4074 = vweird.f32 %v4067
    %vm4075 = vweird.f32 %v4069
    %vm4076 = vmor %vm4074, %vm4075
    %v4077 = vsel %vm4076, %v4069, %v4073
    %v4078 = vand.u32 2147483647, %v4067
    %vm4079 = vcmp.eq.f32.partialorder %v4078, 8.507059e+37
    %v4080 = vand.u32 %v4067, 2147483648
    %v4081 = vor.u32 1.1754944e-38, %v4080
    %v4082 = vsel %vm4079, %v4081, %v4077
    %v4083 = vmul.f32 1.0, %v4082
    %v4084 = vrcp.pop %v4068
    %v4085 = vmul.f32 %v4068, %v4084
    %v4086 = vsub.f32 1.0, %v4085
    %v4087 = vmul.f32 %v4084, %v4086
    %v4088 = vadd.f32 %v4084, %v4087
    %vm4089 = vweird.f32 %v4068
    %vm4090 = vweird.f32 %v4084
    %vm4091 = vmor %vm4089, %vm4090
    %v4092 = vsel %vm4091, %v4084, %v4088
    %v4093 = vand.u32 2147483647, %v4068
    %vm4094 = vcmp.eq.f32.partialorder %v4093, 8.507059e+37
    %v4095 = vand.u32 %v4068, 2147483648
    %v4096 = vor.u32 1.1754944e-38, %v4095
    %v4097 = vsel %vm4094, %v4096, %v4092
    %v4098 = vmul.f32 1.0, %v4097
    %v4099 = vadd.f32 %v4054, %v4031
    %v4100 = vadd.f32 %v4057, %v4033
    %v4101 = vxor.u32 %v4099, 2147483648
    %v4102 = vxor.u32 %v4100, 2147483648
    %v4103 = vmul.f32 %v4101, 1.442695
    %v4104 = vpow.pop %v4103
    %v4105 = vmul.f32 %v4102, 1.442695
    %v4106 = vpow.pop %v4105
    %v4107 = vadd.f32 %v4104, 1.0
    %v4108 = vadd.f32 %v4106, 1.0
    %v4109 = vrcp.pop %v4107
    %v4110 = vmul.f32 %v4107, %v4109
    %v4111 = vsub.f32 1.0, %v4110
    %v4112 = vmul.f32 %v4109, %v4111
    %v4113 = vadd.f32 %v4109, %v4112
    %vm4114 = vweird.f32 %v4107
    %vm4115 = vweird.f32 %v4109
    %vm4116 = vmor %vm4114, %vm4115
    %v4117 = vsel %vm4116, %v4109, %v4113
    %v4118 = vand.u32 2147483647, %v4107
    %vm4119 = vcmp.eq.f32.partialorder %v4118, 8.507059e+37
    %v4120 = vand.u32 %v4107, 2147483648
    %v4121 = vor.u32 1.1754944e-38, %v4120
    %v4122 = vsel %vm4119, %v4121, %v4117
    %v4123 = vmul.f32 1.0, %v4122
    %v4124 = vrcp.pop %v4108
    %v4125 = vmul.f32 %v4108, %v4124
    %v4126 = vsub.f32 1.0, %v4125
    %v4127 = vmul.f32 %v4124, %v4126
    %v4128 = vadd.f32 %v4124, %v4127
    %vm4129 = vweird.f32 %v4108
    %vm4130 = vweird.f32 %v4124
    %vm4131 = vmor %vm4129, %vm4130
    %v4132 = vsel %vm4131, %v4124, %v4128
    %v4133 = vand.u32 2147483647, %v4108
    %vm4134 = vcmp.eq.f32.partialorder %v4133, 8.507059e+37
    %v4135 = vand.u32 %v4108, 2147483648
    %v4136 = vor.u32 1.1754944e-38, %v4135
    %v4137 = vsel %vm4134, %v4136, %v4132
    %v4138 = vmul.f32 1.0, %v4137
    %v4139 = vadd.f32 %v4045, %v1476
    %v4140 = vadd.f32 %v4047, %v1476
    %v4141 = vmul.f32 %v4083, %v4139
    %v4142 = vmul.f32 %v4098, %v4140
    %v4143 = vadd.f32 %v4055, %v4141
    %v4144 = vadd.f32 %v4058, %v4142
    %v4145 = vtanh.pop %v4143
    %v4146 = vtanh.pop %v4144
    %v4147 = vsub.f32 1.0, %v4123
    %v4148 = vsub.f32 1.0, %v4138
    %v4149 = vmul.f32 %v4147, %v4145
    %v4150 = vmul.f32 %v4148, %v4146
    %v4151 = vmul.f32 %v4123, %v3844
    %v4152 = vmul.f32 %v4138, %v3845
    %v4153 = vadd.f32 %v4149, %v4151
    %v4154 = vadd.f32 %v4150, %v4152
    %v4155 = vsel %vm3179, %v4153, %v3844
    %v4156 = vsel %vm3180, %v4154, %v3845
    %4157 = vst [vmem:[#allocation4] sm:$0xff] %v4155
    %4158 = vst [vmem:[#allocation4 + $0x8] sm:$0xff] %v4156
    %v4159 = vpack.c.bf16 %v4155, %v4155
    %v4160 = vpack.c.bf16 %v4156, %v4156
    %4161 = vst [vmem:[%s3187 + $0x4] sm:$0xf] %v4159
    %4162 = vst [vmem:[%s3187 + $0xc] sm:$0xf] %v4160
    %v4163 = vld [vmem:[#allocation3] sm:$0xff]
    %v4164 = vld [vmem:[#allocation3 + $0x8] sm:$0xff]
    %v4165 = vpack.c.bf16 %v4164, %v4163
    %v4166 = vld [vmem:[#allocation7] sm:$0xff]
    %v4167 = vld [vmem:[#allocation7 + $0x8] sm:$0xf]
    %v4168 = vld [vmem:[#allocation7 + $0xc] sm:$0xff]
    %v4169 = vld [vmem:[#allocation7 + $0x14] sm:$0xf]
    %v4170 = vld [vmem:[#allocation7 + $0x18] sm:$0xff]
    %v4171 = vld [vmem:[#allocation7 + $0x20] sm:$0xf]
    %v4172 = vld [vmem:[#allocation7 + $0x24] sm:$0xff]
    %v4173 = vld [vmem:[#allocation7 + $0x2c] sm:$0xf]
    %v4174 = vld [vmem:[#allocation7 + $0x30] sm:$0xff]
    %v4175 = vld [vmem:[#allocation7 + $0x38] sm:$0xf]
    %v4176 = vld [vmem:[#allocation7 + $0x3c] sm:$0xff]
    %v4177 = vld [vmem:[#allocation7 + $0x44] sm:$0xf]
    %v4178 = vld [vmem:[#allocation7 + $0x48] sm:$0xff]
    %v4179 = vld [vmem:[#allocation7 + $0x50] sm:$0xf]
    %v4180 = vld [vmem:[#allocation7 + $0x54] sm:$0xff]
    %v4181 = vld [vmem:[#allocation7 + $0x5c] sm:$0xf]
    %v4182 = vld [vmem:[#allocation7 + $0x60] sm:$0xff]
    %v4183 = vld [vmem:[#allocation7 + $0x68] sm:$0xf]
    %v4184 = vld [vmem:[#allocation7 + $0x6c] sm:$0xff]
    %v4185 = vld [vmem:[#allocation7 + $0x74] sm:$0xf]
    %v4186 = vld [vmem:[#allocation7 + $0x78] sm:$0xff]
    %v4187 = vld [vmem:[#allocation7 + $0x80] sm:$0xf]
    %v4188 = vld [vmem:[#allocation7 + $0x84] sm:$0xff]
    %v4189 = vld [vmem:[#allocation7 + $0x8c] sm:$0xf]
    %v4190 = vld [vmem:[#allocation7 + $0x90] sm:$0xff]
    %v4191 = vld [vmem:[#allocation7 + $0x98] sm:$0xf]
    %v4192 = vld [vmem:[#allocation7 + $0x9c] sm:$0xff]
    %v4193 = vld [vmem:[#allocation7 + $0xa4] sm:$0xf]
    %v4194 = vld [vmem:[#allocation7 + $0xa8] sm:$0xff]
    %v4195 = vld [vmem:[#allocation7 + $0xb0] sm:$0xf]
    %v4196 = vld [vmem:[#allocation7 + $0xb4] sm:$0xff]
    %v4197 = vld [vmem:[#allocation7 + $0xbc] sm:$0xf]
    %v4230 = vunpack.c.l.b16 %v4166
    %v4231 = vunpack.c.h.b16 %v4166
    %v4232 = vunpack.c.l.b16 %v4167
    %v4233 = vunpack.c.l.b16 %v4168
    %v4234 = vunpack.c.h.b16 %v4168
    %v4235 = vunpack.c.l.b16 %v4169
    %v4236 = vunpack.c.l.b16 %v4170
    %v4237 = vunpack.c.h.b16 %v4170
    %v4238 = vunpack.c.l.b16 %v4171
    %v4239 = vunpack.c.l.b16 %v4172
    %v4240 = vunpack.c.h.b16 %v4172
    %v4241 = vunpack.c.l.b16 %v4173
    %v4242 = vunpack.c.l.b16 %v4174
    %v4243 = vunpack.c.h.b16 %v4174
    %v4244 = vunpack.c.l.b16 %v4175
    %v4245 = vunpack.c.l.b16 %v4176
    %v4246 = vunpack.c.h.b16 %v4176
    %v4247 = vunpack.c.l.b16 %v4177
    %v4248 = vunpack.c.l.b16 %v4178
    %v4249 = vunpack.c.h.b16 %v4178
    %v4250 = vunpack.c.l.b16 %v4179
    %v4251 = vunpack.c.l.b16 %v4180
    %v4252 = vunpack.c.h.b16 %v4180
    %v4253 = vunpack.c.l.b16 %v4181
    %v4254 = vunpack.c.l.b16 %v4182
    %v4255 = vunpack.c.h.b16 %v4182
    %v4256 = vunpack.c.l.b16 %v4183
    %v4257 = vunpack.c.l.b16 %v4184
    %v4258 = vunpack.c.h.b16 %v4184
    %v4259 = vunpack.c.l.b16 %v4185
    %v4260 = vunpack.c.l.b16 %v4186
    %v4261 = vunpack.c.h.b16 %v4186
    %v4262 = vunpack.c.l.b16 %v4187
    %v4263 = vunpack.c.l.b16 %v4188
    %v4264 = vunpack.c.h.b16 %v4188
    %v4265 = vunpack.c.l.b16 %v4189
    %v4266 = vunpack.c.l.b16 %v4190
    %v4267 = vunpack.c.h.b16 %v4190
    %v4268 = vunpack.c.l.b16 %v4191
    %v4269 = vunpack.c.l.b16 %v4192
    %v4270 = vunpack.c.h.b16 %v4192
    %v4271 = vunpack.c.l.b16 %v4193
    %v4272 = vunpack.c.l.b16 %v4194
    %v4273 = vunpack.c.h.b16 %v4194
    %v4274 = vunpack.c.l.b16 %v4195
    %v4275 = vunpack.c.l.b16 %v4196
    %v4276 = vunpack.c.h.b16 %v4196
    %v4277 = vunpack.c.l.b16 %v4197
    %v4278 = vpack.c.b16 %v4233, %v4230
    %v4279 = vpack.c.b16 %v4234, %v4231
    %v4280 = vpack.c.b16 %v4235, %v4232
    %v4281 = vpack.c.b16 %v4239, %v4236
    %v4282 = vpack.c.b16 %v4240, %v4237
    %v4283 = vpack.c.b16 %v4241, %v4238
    %v4284 = vpack.c.b16 %v4245, %v4242
    %v4285 = vpack.c.b16 %v4246, %v4243
    %v4286 = vpack.c.b16 %v4247, %v4244
    %v4287 = vpack.c.b16 %v4251, %v4248
    %v4288 = vpack.c.b16 %v4252, %v4249
    %v4289 = vpack.c.b16 %v4253, %v4250
    %v4290 = vpack.c.b16 %v4257, %v4254
    %v4291 = vpack.c.b16 %v4258, %v4255
    %v4292 = vpack.c.b16 %v4259, %v4256
    %v4293 = vpack.c.b16 %v4263, %v4260
    %v4294 = vpack.c.b16 %v4264, %v4261
    %v4295 = vpack.c.b16 %v4265, %v4262
    %v4296 = vpack.c.b16 %v4269, %v4266
    %v4297 = vpack.c.b16 %v4270, %v4267
    %v4298 = vpack.c.b16 %v4271, %v4268
    %v4299 = vpack.c.b16 %v4275, %v4272
    %v4300 = vpack.c.b16 %v4276, %v4273
    %v4301 = vpack.c.b16 %v4277, %v4274
    %4326 = vmatpush.bf16.msra.mxu0 %v4299
    %4327 = vmatpush.bf16.msra.mxu0 %v4296
    %4328 = vmatpush.bf16.msra.mxu0 %v4293
    %4329 = vmatpush.bf16.msra.mxu0 %v4290
    %4330 = vmatpush.bf16.msra.mxu0 %v4287
    %4331 = vmatpush.bf16.msra.mxu0 %v4284
    %4332 = vmatpush.bf16.msra.mxu0 %v4281
    %4333 = vmatpush.bf16.msra.mxu0 %v4278
    %4334 = vmatmul.bf16.gmra.mxu0 %v4165
    %v4335 = vpop.f32.mrf.mxu0
    %v4336 = vadd.f32 0.0, %v4335
    %v4337 = vpop.f32.mrf.mxu0
    %v4338 = vadd.f32 0.0, %v4337
    %4339 = vdwg.mxu0
    %4340 = vmatpush.bf16.msra.mxu0 %v4300
    %4341 = vmatpush.bf16.msra.mxu0 %v4297
    %4342 = vmatpush.bf16.msra.mxu0 %v4294
    %4343 = vmatpush.bf16.msra.mxu0 %v4291
    %4344 = vmatpush.bf16.msra.mxu0 %v4288
    %4345 = vmatpush.bf16.msra.mxu0 %v4285
    %4346 = vmatpush.bf16.msra.mxu0 %v4282
    %4347 = vmatpush.bf16.msra.mxu0 %v4279
    %4348 = vmatmul.bf16.gmra.mxu0 %v4165
    %v4349 = vpop.f32.mrf.mxu0
    %v4350 = vadd.f32 0.0, %v4349
    %v4351 = vpop.f32.mrf.mxu0
    %v4352 = vadd.f32 0.0, %v4351
    %4353 = vdwg.mxu0
    %4354 = vmatpush.bf16.msra.mxu0 %v4301
    %4355 = vmatpush.bf16.msra.mxu0 %v4298
    %4356 = vmatpush.bf16.msra.mxu0 %v4295
    %4357 = vmatpush.bf16.msra.mxu0 %v4292
    %4358 = vmatpush.bf16.msra.mxu0 %v4289
    %4359 = vmatpush.bf16.msra.mxu0 %v4286
    %4360 = vmatpush.bf16.msra.mxu0 %v4283
    %4361 = vmatpush.bf16.msra.mxu0 %v4280
    %4362 = vmatmul.bf16.gmra.mxu0 %v4165
    %v4363 = vpop.f32.mrf.mxu0
    %v4364 = vadd.f32 0.0, %v4363
    %v4365 = vpop.f32.mrf.mxu0
    %v4366 = vadd.f32 0.0, %v4365
    %4367 = vdwg.mxu0
    %v4368 = vld [vmem:[%s2727] sm:$0xff]
    %v4369 = vld [vmem:[%s2727 + $0x8] sm:$0xf]
    %v4370 = vld [vmem:[%s2727 + $0x18] sm:$0xff]
    %v4371 = vld [vmem:[%s2727 + $0x20] sm:$0xf]
    %v4372 = vunpack.c.l.bf16 %v4368
    %v4373 = vunpack.c.h.bf16 %v4368
    %v4374 = vunpack.c.l.bf16 %v4369
    %v4375 = vunpack.c.l.bf16 %v4370
    %v4376 = vunpack.c.h.bf16 %v4370
    %v4377 = vunpack.c.l.bf16 %v4371
    %v4378 = vadd.f32 %v4372, %v4336
    %v4379 = vadd.f32 %v4375, %v4338
    %v4380 = vxor.u32 %v4378, 2147483648
    %v4381 = vxor.u32 %v4379, 2147483648
    %v4382 = vmul.f32 %v4380, 1.442695
    %v4383 = vpow.pop %v4382
    %v4384 = vmul.f32 %v4381, 1.442695
    %v4385 = vpow.pop %v4384
    %v4386 = vadd.f32 %v4383, 1.0
    %v4387 = vadd.f32 %v4385, 1.0
    %v4388 = vrcp.pop %v4386
    %v4389 = vmul.f32 %v4386, %v4388
    %v4390 = vsub.f32 1.0, %v4389
    %v4391 = vmul.f32 %v4388, %v4390
    %v4392 = vadd.f32 %v4388, %v4391
    %vm4393 = vweird.f32 %v4386
    %vm4394 = vweird.f32 %v4388
    %vm4395 = vmor %vm4393, %vm4394
    %v4396 = vsel %vm4395, %v4388, %v4392
    %v4397 = vand.u32 2147483647, %v4386
    %vm4398 = vcmp.eq.f32.partialorder %v4397, 8.507059e+37
    %v4399 = vand.u32 %v4386, 2147483648
    %v4400 = vor.u32 1.1754944e-38, %v4399
    %v4401 = vsel %vm4398, %v4400, %v4396
    %v4402 = vmul.f32 1.0, %v4401
    %v4403 = vrcp.pop %v4387
    %v4404 = vmul.f32 %v4387, %v4403
    %v4405 = vsub.f32 1.0, %v4404
    %v4406 = vmul.f32 %v4403, %v4405
    %v4407 = vadd.f32 %v4403, %v4406
    %vm4408 = vweird.f32 %v4387
    %vm4409 = vweird.f32 %v4403
    %vm4410 = vmor %vm4408, %vm4409
    %v4411 = vsel %vm4410, %v4403, %v4407
    %v4412 = vand.u32 2147483647, %v4387
    %vm4413 = vcmp.eq.f32.partialorder %v4412, 8.507059e+37
    %v4414 = vand.u32 %v4387, 2147483648
    %v4415 = vor.u32 1.1754944e-38, %v4414
    %v4416 = vsel %vm4413, %v4415, %v4411
    %v4417 = vmul.f32 1.0, %v4416
    %v4418 = vadd.f32 %v4373, %v4350
    %v4419 = vadd.f32 %v4376, %v4352
    %v4420 = vxor.u32 %v4418, 2147483648
    %v4421 = vxor.u32 %v4419, 2147483648
    %v4422 = vmul.f32 %v4420, 1.442695
    %v4423 = vpow.pop %v4422
    %v4424 = vmul.f32 %v4421, 1.442695
    %v4425 = vpow.pop %v4424
    %v4426 = vadd.f32 %v4423, 1.0
    %v4427 = vadd.f32 %v4425, 1.0
    %v4428 = vrcp.pop %v4426
    %v4429 = vmul.f32 %v4426, %v4428
    %v4430 = vsub.f32 1.0, %v4429
    %v4431 = vmul.f32 %v4428, %v4430
    %v4432 = vadd.f32 %v4428, %v4431
    %vm4433 = vweird.f32 %v4426
    %vm4434 = vweird.f32 %v4428
    %vm4435 = vmor %vm4433, %vm4434
    %v4436 = vsel %vm4435, %v4428, %v4432
    %v4437 = vand.u32 2147483647, %v4426
    %vm4438 = vcmp.eq.f32.partialorder %v4437, 8.507059e+37
    %v4439 = vand.u32 %v4426, 2147483648
    %v4440 = vor.u32 1.1754944e-38, %v4439
    %v4441 = vsel %vm4438, %v4440, %v4436
    %v4442 = vmul.f32 1.0, %v4441
    %v4443 = vrcp.pop %v4427
    %v4444 = vmul.f32 %v4427, %v4443
    %v4445 = vsub.f32 1.0, %v4444
    %v4446 = vmul.f32 %v4443, %v4445
    %v4447 = vadd.f32 %v4443, %v4446
    %vm4448 = vweird.f32 %v4427
    %vm4449 = vweird.f32 %v4443
    %vm4450 = vmor %vm4448, %vm4449
    %v4451 = vsel %vm4450, %v4443, %v4447
    %v4452 = vand.u32 2147483647, %v4427
    %vm4453 = vcmp.eq.f32.partialorder %v4452, 8.507059e+37
    %v4454 = vand.u32 %v4427, 2147483648
    %v4455 = vor.u32 1.1754944e-38, %v4454
    %v4456 = vsel %vm4453, %v4455, %v4451
    %v4457 = vmul.f32 1.0, %v4456
    %v4458 = vadd.f32 %v4364, %v1139
    %v4459 = vadd.f32 %v4366, %v1139
    %v4460 = vmul.f32 %v4402, %v4458
    %v4461 = vmul.f32 %v4417, %v4459
    %v4462 = vadd.f32 %v4374, %v4460
    %v4463 = vadd.f32 %v4377, %v4461
    %v4464 = vtanh.pop %v4462
    %v4465 = vtanh.pop %v4463
    %v4466 = vsub.f32 1.0, %v4442
    %v4467 = vsub.f32 1.0, %v4457
    %v4468 = vmul.f32 %v4466, %v4464
    %v4469 = vmul.f32 %v4467, %v4465
    %v4470 = vmul.f32 %v4442, %v4163
    %v4471 = vmul.f32 %v4457, %v4164
    %v4472 = vadd.f32 %v4468, %v4470
    %v4473 = vadd.f32 %v4469, %v4471
    %v4474 = vsel %vm2844, %v4472, %v4163
    %v4475 = vsel %vm2845, %v4473, %v4164
    %4476 = vst [vmem:[#allocation3] sm:$0xff] %v4474
    %4477 = vst [vmem:[#allocation3 + $0x8] sm:$0xff] %v4475
    %v4478 = vpack.c.bf16 %v4474, %v4474
    %v4479 = vpack.c.bf16 %v4475, %v4475
    %4480 = vst [vmem:[%s2852] sm:$0xf] %v4478
    %4481 = vst [vmem:[%s2852 + $0x8] sm:$0xf] %v4479
    %v4482 = vld [vmem:[#allocation4] sm:$0xff]
    %v4483 = vld [vmem:[#allocation4 + $0x8] sm:$0xff]
    %v4484 = vpack.c.bf16 %v4483, %v4482
    %v4485 = vld [vmem:[#allocation9] sm:$0xff]
    %v4486 = vld [vmem:[#allocation9 + $0x8] sm:$0xf]
    %v4487 = vld [vmem:[#allocation9 + $0xc] sm:$0xff]
    %v4488 = vld [vmem:[#allocation9 + $0x14] sm:$0xf]
    %v4489 = vld [vmem:[#allocation9 + $0x18] sm:$0xff]
    %v4490 = vld [vmem:[#allocation9 + $0x20] sm:$0xf]
    %v4491 = vld [vmem:[#allocation9 + $0x24] sm:$0xff]
    %v4492 = vld [vmem:[#allocation9 + $0x2c] sm:$0xf]
    %v4493 = vld [vmem:[#allocation9 + $0x30] sm:$0xff]
    %v4494 = vld [vmem:[#allocation9 + $0x38] sm:$0xf]
    %v4495 = vld [vmem:[#allocation9 + $0x3c] sm:$0xff]
    %v4496 = vld [vmem:[#allocation9 + $0x44] sm:$0xf]
    %v4497 = vld [vmem:[#allocation9 + $0x48] sm:$0xff]
    %v4498 = vld [vmem:[#allocation9 + $0x50] sm:$0xf]
    %v4499 = vld [vmem:[#allocation9 + $0x54] sm:$0xff]
    %v4500 = vld [vmem:[#allocation9 + $0x5c] sm:$0xf]
    %v4501 = vld [vmem:[#allocation9 + $0x60] sm:$0xff]
    %v4502 = vld [vmem:[#allocation9 + $0x68] sm:$0xf]
    %v4503 = vld [vmem:[#allocation9 + $0x6c] sm:$0xff]
    %v4504 = vld [vmem:[#allocation9 + $0x74] sm:$0xf]
    %v4505 = vld [vmem:[#allocation9 + $0x78] sm:$0xff]
    %v4506 = vld [vmem:[#allocation9 + $0x80] sm:$0xf]
    %v4507 = vld [vmem:[#allocation9 + $0x84] sm:$0xff]
    %v4508 = vld [vmem:[#allocation9 + $0x8c] sm:$0xf]
    %v4509 = vld [vmem:[#allocation9 + $0x90] sm:$0xff]
    %v4510 = vld [vmem:[#allocation9 + $0x98] sm:$0xf]
    %v4511 = vld [vmem:[#allocation9 + $0x9c] sm:$0xff]
    %v4512 = vld [vmem:[#allocation9 + $0xa4] sm:$0xf]
    %v4513 = vld [vmem:[#allocation9 + $0xa8] sm:$0xff]
    %v4514 = vld [vmem:[#allocation9 + $0xb0] sm:$0xf]
    %v4515 = vld [vmem:[#allocation9 + $0xb4] sm:$0xff]
    %v4516 = vld [vmem:[#allocation9 + $0xbc] sm:$0xf]
    %v4549 = vunpack.c.l.b16 %v4485
    %v4550 = vunpack.c.h.b16 %v4485
    %v4551 = vunpack.c.l.b16 %v4486
    %v4552 = vunpack.c.l.b16 %v4487
    %v4553 = vunpack.c.h.b16 %v4487
    %v4554 = vunpack.c.l.b16 %v4488
    %v4555 = vunpack.c.l.b16 %v4489
    %v4556 = vunpack.c.h.b16 %v4489
    %v4557 = vunpack.c.l.b16 %v4490
    %v4558 = vunpack.c.l.b16 %v4491
    %v4559 = vunpack.c.h.b16 %v4491
    %v4560 = vunpack.c.l.b16 %v4492
    %v4561 = vunpack.c.l.b16 %v4493
    %v4562 = vunpack.c.h.b16 %v4493
    %v4563 = vunpack.c.l.b16 %v4494
    %v4564 = vunpack.c.l.b16 %v4495
    %v4565 = vunpack.c.h.b16 %v4495
    %v4566 = vunpack.c.l.b16 %v4496
    %v4567 = vunpack.c.l.b16 %v4497
    %v4568 = vunpack.c.h.b16 %v4497
    %v4569 = vunpack.c.l.b16 %v4498
    %v4570 = vunpack.c.l.b16 %v4499
    %v4571 = vunpack.c.h.b16 %v4499
    %v4572 = vunpack.c.l.b16 %v4500
    %v4573 = vunpack.c.l.b16 %v4501
    %v4574 = vunpack.c.h.b16 %v4501
    %v4575 = vunpack.c.l.b16 %v4502
    %v4576 = vunpack.c.l.b16 %v4503
    %v4577 = vunpack.c.h.b16 %v4503
    %v4578 = vunpack.c.l.b16 %v4504
    %v4579 = vunpack.c.l.b16 %v4505
    %v4580 = vunpack.c.h.b16 %v4505
    %v4581 = vunpack.c.l.b16 %v4506
    %v4582 = vunpack.c.l.b16 %v4507
    %v4583 = vunpack.c.h.b16 %v4507
    %v4584 = vunpack.c.l.b16 %v4508
    %v4585 = vunpack.c.l.b16 %v4509
    %v4586 = vunpack.c.h.b16 %v4509
    %v4587 = vunpack.c.l.b16 %v4510
    %v4588 = vunpack.c.l.b16 %v4511
    %v4589 = vunpack.c.h.b16 %v4511
    %v4590 = vunpack.c.l.b16 %v4512
    %v4591 = vunpack.c.l.b16 %v4513
    %v4592 = vunpack.c.h.b16 %v4513
    %v4593 = vunpack.c.l.b16 %v4514
    %v4594 = vunpack.c.l.b16 %v4515
    %v4595 = vunpack.c.h.b16 %v4515
    %v4596 = vunpack.c.l.b16 %v4516
    %v4597 = vpack.c.b16 %v4552, %v4549
    %v4598 = vpack.c.b16 %v4553, %v4550
    %v4599 = vpack.c.b16 %v4554, %v4551
    %v4600 = vpack.c.b16 %v4558, %v4555
    %v4601 = vpack.c.b16 %v4559, %v4556
    %v4602 = vpack.c.b16 %v4560, %v4557
    %v4603 = vpack.c.b16 %v4564, %v4561
    %v4604 = vpack.c.b16 %v4565, %v4562
    %v4605 = vpack.c.b16 %v4566, %v4563
    %v4606 = vpack.c.b16 %v4570, %v4567
    %v4607 = vpack.c.b16 %v4571, %v4568
    %v4608 = vpack.c.b16 %v4572, %v4569
    %v4609 = vpack.c.b16 %v4576, %v4573
    %v4610 = vpack.c.b16 %v4577, %v4574
    %v4611 = vpack.c.b16 %v4578, %v4575
    %v4612 = vpack.c.b16 %v4582, %v4579
    %v4613 = vpack.c.b16 %v4583, %v4580
    %v4614 = vpack.c.b16 %v4584, %v4581
    %v4615 = vpack.c.b16 %v4588, %v4585
    %v4616 = vpack.c.b16 %v4589, %v4586
    %v4617 = vpack.c.b16 %v4590, %v4587
    %v4618 = vpack.c.b16 %v4594, %v4591
    %v4619 = vpack.c.b16 %v4595, %v4592
    %v4620 = vpack.c.b16 %v4596, %v4593
    %4645 = vmatpush.bf16.msra.mxu0 %v4618
    %4646 = vmatpush.bf16.msra.mxu0 %v4615
    %4647 = vmatpush.bf16.msra.mxu0 %v4612
    %4648 = vmatpush.bf16.msra.mxu0 %v4609
    %4649 = vmatpush.bf16.msra.mxu0 %v4606
    %4650 = vmatpush.bf16.msra.mxu0 %v4603
    %4651 = vmatpush.bf16.msra.mxu0 %v4600
    %4652 = vmatpush.bf16.msra.mxu0 %v4597
    %4653 = vmatmul.bf16.gmra.mxu0 %v4484
    %v4654 = vpop.f32.mrf.mxu0
    %v4655 = vadd.f32 0.0, %v4654
    %v4656 = vpop.f32.mrf.mxu0
    %v4657 = vadd.f32 0.0, %v4656
    %4658 = vdwg.mxu0
    %4659 = vmatpush.bf16.msra.mxu0 %v4619
    %4660 = vmatpush.bf16.msra.mxu0 %v4616
    %4661 = vmatpush.bf16.msra.mxu0 %v4613
    %4662 = vmatpush.bf16.msra.mxu0 %v4610
    %4663 = vmatpush.bf16.msra.mxu0 %v4607
    %4664 = vmatpush.bf16.msra.mxu0 %v4604
    %4665 = vmatpush.bf16.msra.mxu0 %v4601
    %4666 = vmatpush.bf16.msra.mxu0 %v4598
    %4667 = vmatmul.bf16.gmra.mxu0 %v4484
    %v4668 = vpop.f32.mrf.mxu0
    %v4669 = vadd.f32 0.0, %v4668
    %v4670 = vpop.f32.mrf.mxu0
    %v4671 = vadd.f32 0.0, %v4670
    %4672 = vdwg.mxu0
    %4673 = vmatpush.bf16.msra.mxu0 %v4620
    %4674 = vmatpush.bf16.msra.mxu0 %v4617
    %4675 = vmatpush.bf16.msra.mxu0 %v4614
    %4676 = vmatpush.bf16.msra.mxu0 %v4611
    %4677 = vmatpush.bf16.msra.mxu0 %v4608
    %4678 = vmatpush.bf16.msra.mxu0 %v4605
    %4679 = vmatpush.bf16.msra.mxu0 %v4602
    %4680 = vmatpush.bf16.msra.mxu0 %v4599
    %4681 = vmatmul.bf16.gmra.mxu0 %v4484
    %v4682 = vpop.f32.mrf.mxu0
    %v4683 = vadd.f32 0.0, %v4682
    %v4684 = vpop.f32.mrf.mxu0
    %v4685 = vadd.f32 0.0, %v4684
    %4686 = vdwg.mxu0
    %v4687 = vld [vmem:[%s2392 + $0xc] sm:$0xff]
    %v4688 = vld [vmem:[%s2392 + $0x14] sm:$0xf]
    %v4689 = vld [vmem:[%s2392 + $0x24] sm:$0xff]
    %v4690 = vld [vmem:[%s2392 + $0x2c] sm:$0xf]
    %v4691 = vunpack.c.l.bf16 %v4687
    %v4692 = vunpack.c.h.bf16 %v4687
    %v4693 = vunpack.c.l.bf16 %v4688
    %v4694 = vunpack.c.l.bf16 %v4689
    %v4695 = vunpack.c.h.bf16 %v4689
    %v4696 = vunpack.c.l.bf16 %v4690
    %v4697 = vadd.f32 %v4691, %v4655
    %v4698 = vadd.f32 %v4694, %v4657
    %v4699 = vxor.u32 %v4697, 2147483648
    %v4700 = vxor.u32 %v4698, 2147483648
    %v4701 = vmul.f32 %v4699, 1.442695
    %v4702 = vpow.pop %v4701
    %v4703 = vmul.f32 %v4700, 1.442695
    %v4704 = vpow.pop %v4703
    %v4705 = vadd.f32 %v4702, 1.0
    %v4706 = vadd.f32 %v4704, 1.0
    %v4707 = vrcp.pop %v4705
    %v4708 = vmul.f32 %v4705, %v4707
    %v4709 = vsub.f32 1.0, %v4708
    %v4710 = vmul.f32 %v4707, %v4709
    %v4711 = vadd.f32 %v4707, %v4710
    %vm4712 = vweird.f32 %v4705
    %vm4713 = vweird.f32 %v4707
    %vm4714 = vmor %vm4712, %vm4713
    %v4715 = vsel %vm4714, %v4707, %v4711
    %v4716 = vand.u32 2147483647, %v4705
    %vm4717 = vcmp.eq.f32.partialorder %v4716, 8.507059e+37
    %v4718 = vand.u32 %v4705, 2147483648
    %v4719 = vor.u32 1.1754944e-38, %v4718
    %v4720 = vsel %vm4717, %v4719, %v4715
    %v4721 = vmul.f32 1.0, %v4720
    %v4722 = vrcp.pop %v4706
    %v4723 = vmul.f32 %v4706, %v4722
    %v4724 = vsub.f32 1.0, %v4723
    %v4725 = vmul.f32 %v4722, %v4724
    %v4726 = vadd.f32 %v4722, %v4725
    %vm4727 = vweird.f32 %v4706
    %vm4728 = vweird.f32 %v4722
    %vm4729 = vmor %vm4727, %vm4728
    %v4730 = vsel %vm4729, %v4722, %v4726
    %v4731 = vand.u32 2147483647, %v4706
    %vm4732 = vcmp.eq.f32.partialorder %v4731, 8.507059e+37
    %v4733 = vand.u32 %v4706, 2147483648
    %v4734 = vor.u32 1.1754944e-38, %v4733
    %v4735 = vsel %vm4732, %v4734, %v4730
    %v4736 = vmul.f32 1.0, %v4735
    %v4737 = vadd.f32 %v4692, %v4669
    %v4738 = vadd.f32 %v4695, %v4671
    %v4739 = vxor.u32 %v4737, 2147483648
    %v4740 = vxor.u32 %v4738, 2147483648
    %v4741 = vmul.f32 %v4739, 1.442695
    %v4742 = vpow.pop %v4741
    %v4743 = vmul.f32 %v4740, 1.442695
    %v4744 = vpow.pop %v4743
    %v4745 = vadd.f32 %v4742, 1.0
    %v4746 = vadd.f32 %v4744, 1.0
    %v4747 = vrcp.pop %v4745
    %v4748 = vmul.f32 %v4745, %v4747
    %v4749 = vsub.f32 1.0, %v4748
    %v4750 = vmul.f32 %v4747, %v4749
    %v4751 = vadd.f32 %v4747, %v4750
    %vm4752 = vweird.f32 %v4745
    %vm4753 = vweird.f32 %v4747
    %vm4754 = vmor %vm4752, %vm4753
    %v4755 = vsel %vm4754, %v4747, %v4751
    %v4756 = vand.u32 2147483647, %v4745
    %vm4757 = vcmp.eq.f32.partialorder %v4756, 8.507059e+37
    %v4758 = vand.u32 %v4745, 2147483648
    %v4759 = vor.u32 1.1754944e-38, %v4758
    %v4760 = vsel %vm4757, %v4759, %v4755
    %v4761 = vmul.f32 1.0, %v4760
    %v4762 = vrcp.pop %v4746
    %v4763 = vmul.f32 %v4746, %v4762
    %v4764 = vsub.f32 1.0, %v4763
    %v4765 = vmul.f32 %v4762, %v4764
    %v4766 = vadd.f32 %v4762, %v4765
    %vm4767 = vweird.f32 %v4746
    %vm4768 = vweird.f32 %v4762
    %vm4769 = vmor %vm4767, %vm4768
    %v4770 = vsel %vm4769, %v4762, %v4766
    %v4771 = vand.u32 2147483647, %v4746
    %vm4772 = vcmp.eq.f32.partialorder %v4771, 8.507059e+37
    %v4773 = vand.u32 %v4746, 2147483648
    %v4774 = vor.u32 1.1754944e-38, %v4773
    %v4775 = vsel %vm4772, %v4774, %v4770
    %v4776 = vmul.f32 1.0, %v4775
    %v4777 = vadd.f32 %v4683, %v1476
    %v4778 = vadd.f32 %v4685, %v1476
    %v4779 = vmul.f32 %v4721, %v4777
    %v4780 = vmul.f32 %v4736, %v4778
    %v4781 = vadd.f32 %v4693, %v4779
    %v4782 = vadd.f32 %v4696, %v4780
    %v4783 = vtanh.pop %v4781
    %v4784 = vtanh.pop %v4782
    %v4785 = vsub.f32 1.0, %v4761
    %v4786 = vsub.f32 1.0, %v4776
    %v4787 = vmul.f32 %v4785, %v4783
    %v4788 = vmul.f32 %v4786, %v4784
    %v4789 = vmul.f32 %v4761, %v4482
    %v4790 = vmul.f32 %v4776, %v4483
    %v4791 = vadd.f32 %v4787, %v4789
    %v4792 = vadd.f32 %v4788, %v4790
    %v4793 = vsel %vm2509, %v4791, %v4482
    %v4794 = vsel %vm2510, %v4792, %v4483
    %4795 = vst [vmem:[#allocation4] sm:$0xff] %v4793
    %4796 = vst [vmem:[#allocation4 + $0x8] sm:$0xff] %v4794
    %v4797 = vpack.c.bf16 %v4793, %v4793
    %v4798 = vpack.c.bf16 %v4794, %v4794
    %4799 = vst [vmem:[%s2517 + $0x4] sm:$0xf] %v4797
    %4800 = vst [vmem:[%s2517 + $0xc] sm:$0xf] %v4798
    %v4801 = vld [vmem:[#allocation3] sm:$0xff]
    %v4802 = vld [vmem:[#allocation3 + $0x8] sm:$0xff]
    %v4803 = vpack.c.bf16 %v4802, %v4801
    %v4804 = vld [vmem:[#allocation7] sm:$0xff]
    %v4805 = vld [vmem:[#allocation7 + $0x8] sm:$0xf]
    %v4806 = vld [vmem:[#allocation7 + $0xc] sm:$0xff]
    %v4807 = vld [vmem:[#allocation7 + $0x14] sm:$0xf]
    %v4808 = vld [vmem:[#allocation7 + $0x18] sm:$0xff]
    %v4809 = vld [vmem:[#allocation7 + $0x20] sm:$0xf]
    %v4810 = vld [vmem:[#allocation7 + $0x24] sm:$0xff]
    %v4811 = vld [vmem:[#allocation7 + $0x2c] sm:$0xf]
    %v4812 = vld [vmem:[#allocation7 + $0x30] sm:$0xff]
    %v4813 = vld [vmem:[#allocation7 + $0x38] sm:$0xf]
    %v4814 = vld [vmem:[#allocation7 + $0x3c] sm:$0xff]
    %v4815 = vld [vmem:[#allocation7 + $0x44] sm:$0xf]
    %v4816 = vld [vmem:[#allocation7 + $0x48] sm:$0xff]
    %v4817 = vld [vmem:[#allocation7 + $0x50] sm:$0xf]
    %v4818 = vld [vmem:[#allocation7 + $0x54] sm:$0xff]
    %v4819 = vld [vmem:[#allocation7 + $0x5c] sm:$0xf]
    %v4820 = vld [vmem:[#allocation7 + $0x60] sm:$0xff]
    %v4821 = vld [vmem:[#allocation7 + $0x68] sm:$0xf]
    %v4822 = vld [vmem:[#allocation7 + $0x6c] sm:$0xff]
    %v4823 = vld [vmem:[#allocation7 + $0x74] sm:$0xf]
    %v4824 = vld [vmem:[#allocation7 + $0x78] sm:$0xff]
    %v4825 = vld [vmem:[#allocation7 + $0x80] sm:$0xf]
    %v4826 = vld [vmem:[#allocation7 + $0x84] sm:$0xff]
    %v4827 = vld [vmem:[#allocation7 + $0x8c] sm:$0xf]
    %v4828 = vld [vmem:[#allocation7 + $0x90] sm:$0xff]
    %v4829 = vld [vmem:[#allocation7 + $0x98] sm:$0xf]
    %v4830 = vld [vmem:[#allocation7 + $0x9c] sm:$0xff]
    %v4831 = vld [vmem:[#allocation7 + $0xa4] sm:$0xf]
    %v4832 = vld [vmem:[#allocation7 + $0xa8] sm:$0xff]
    %v4833 = vld [vmem:[#allocation7 + $0xb0] sm:$0xf]
    %v4834 = vld [vmem:[#allocation7 + $0xb4] sm:$0xff]
    %v4835 = vld [vmem:[#allocation7 + $0xbc] sm:$0xf]
    %v4868 = vunpack.c.l.b16 %v4804
    %v4869 = vunpack.c.h.b16 %v4804
    %v4870 = vunpack.c.l.b16 %v4805
    %v4871 = vunpack.c.l.b16 %v4806
    %v4872 = vunpack.c.h.b16 %v4806
    %v4873 = vunpack.c.l.b16 %v4807
    %v4874 = vunpack.c.l.b16 %v4808
    %v4875 = vunpack.c.h.b16 %v4808
    %v4876 = vunpack.c.l.b16 %v4809
    %v4877 = vunpack.c.l.b16 %v4810
    %v4878 = vunpack.c.h.b16 %v4810
    %v4879 = vunpack.c.l.b16 %v4811
    %v4880 = vunpack.c.l.b16 %v4812
    %v4881 = vunpack.c.h.b16 %v4812
    %v4882 = vunpack.c.l.b16 %v4813
    %v4883 = vunpack.c.l.b16 %v4814
    %v4884 = vunpack.c.h.b16 %v4814
    %v4885 = vunpack.c.l.b16 %v4815
    %v4886 = vunpack.c.l.b16 %v4816
    %v4887 = vunpack.c.h.b16 %v4816
    %v4888 = vunpack.c.l.b16 %v4817
    %v4889 = vunpack.c.l.b16 %v4818
    %v4890 = vunpack.c.h.b16 %v4818
    %v4891 = vunpack.c.l.b16 %v4819
    %v4892 = vunpack.c.l.b16 %v4820
    %v4893 = vunpack.c.h.b16 %v4820
    %v4894 = vunpack.c.l.b16 %v4821
    %v4895 = vunpack.c.l.b16 %v4822
    %v4896 = vunpack.c.h.b16 %v4822
    %v4897 = vunpack.c.l.b16 %v4823
    %v4898 = vunpack.c.l.b16 %v4824
    %v4899 = vunpack.c.h.b16 %v4824
    %v4900 = vunpack.c.l.b16 %v4825
    %v4901 = vunpack.c.l.b16 %v4826
    %v4902 = vunpack.c.h.b16 %v4826
    %v4903 = vunpack.c.l.b16 %v4827
    %v4904 = vunpack.c.l.b16 %v4828
    %v4905 = vunpack.c.h.b16 %v4828
    %v4906 = vunpack.c.l.b16 %v4829
    %v4907 = vunpack.c.l.b16 %v4830
    %v4908 = vunpack.c.h.b16 %v4830
    %v4909 = vunpack.c.l.b16 %v4831
    %v4910 = vunpack.c.l.b16 %v4832
    %v4911 = vunpack.c.h.b16 %v4832
    %v4912 = vunpack.c.l.b16 %v4833
    %v4913 = vunpack.c.l.b16 %v4834
    %v4914 = vunpack.c.h.b16 %v4834
    %v4915 = vunpack.c.l.b16 %v4835
    %v4916 = vpack.c.b16 %v4871, %v4868
    %v4917 = vpack.c.b16 %v4872, %v4869
    %v4918 = vpack.c.b16 %v4873, %v4870
    %v4919 = vpack.c.b16 %v4877, %v4874
    %v4920 = vpack.c.b16 %v4878, %v4875
    %v4921 = vpack.c.b16 %v4879, %v4876
    %v4922 = vpack.c.b16 %v4883, %v4880
    %v4923 = vpack.c.b16 %v4884, %v4881
    %v4924 = vpack.c.b16 %v4885, %v4882
    %v4925 = vpack.c.b16 %v4889, %v4886
    %v4926 = vpack.c.b16 %v4890, %v4887
    %v4927 = vpack.c.b16 %v4891, %v4888
    %v4928 = vpack.c.b16 %v4895, %v4892
    %v4929 = vpack.c.b16 %v4896, %v4893
    %v4930 = vpack.c.b16 %v4897, %v4894
    %v4931 = vpack.c.b16 %v4901, %v4898
    %v4932 = vpack.c.b16 %v4902, %v4899
    %v4933 = vpack.c.b16 %v4903, %v4900
    %v4934 = vpack.c.b16 %v4907, %v4904
    %v4935 = vpack.c.b16 %v4908, %v4905
    %v4936 = vpack.c.b16 %v4909, %v4906
    %v4937 = vpack.c.b16 %v4913, %v4910
    %v4938 = vpack.c.b16 %v4914, %v4911
    %v4939 = vpack.c.b16 %v4915, %v4912
    %4964 = vmatpush.bf16.msra.mxu0 %v4937
    %4965 = vmatpush.bf16.msra.mxu0 %v4934
    %4966 = vmatpush.bf16.msra.mxu0 %v4931
    %4967 = vmatpush.bf16.msra.mxu0 %v4928
    %4968 = vmatpush.bf16.msra.mxu0 %v4925
    %4969 = vmatpush.bf16.msra.mxu0 %v4922
    %4970 = vmatpush.bf16.msra.mxu0 %v4919
    %4971 = vmatpush.bf16.msra.mxu0 %v4916
    %4972 = vmatmul.bf16.gmra.mxu0 %v4803
    %v4973 = vpop.f32.mrf.mxu0
    %v4974 = vadd.f32 0.0, %v4973
    %v4975 = vpop.f32.mrf.mxu0
    %v4976 = vadd.f32 0.0, %v4975
    %4977 = vdwg.mxu0
    %4978 = vmatpush.bf16.msra.mxu0 %v4938
    %4979 = vmatpush.bf16.msra.mxu0 %v4935
    %4980 = vmatpush.bf16.msra.mxu0 %v4932
    %4981 = vmatpush.bf16.msra.mxu0 %v4929
    %4982 = vmatpush.bf16.msra.mxu0 %v4926
    %4983 = vmatpush.bf16.msra.mxu0 %v4923
    %4984 = vmatpush.bf16.msra.mxu0 %v4920
    %4985 = vmatpush.bf16.msra.mxu0 %v4917
    %4986 = vmatmul.bf16.gmra.mxu0 %v4803
    %v4987 = vpop.f32.mrf.mxu0
    %v4988 = vadd.f32 0.0, %v4987
    %v4989 = vpop.f32.mrf.mxu0
    %v4990 = vadd.f32 0.0, %v4989
    %4991 = vdwg.mxu0
    %4992 = vmatpush.bf16.msra.mxu0 %v4939
    %4993 = vmatpush.bf16.msra.mxu0 %v4936
    %4994 = vmatpush.bf16.msra.mxu0 %v4933
    %4995 = vmatpush.bf16.msra.mxu0 %v4930
    %4996 = vmatpush.bf16.msra.mxu0 %v4927
    %4997 = vmatpush.bf16.msra.mxu0 %v4924
    %4998 = vmatpush.bf16.msra.mxu0 %v4921
    %4999 = vmatpush.bf16.msra.mxu0 %v4918
    %5000 = vmatmul.bf16.gmra.mxu0 %v4803
    %v5001 = vpop.f32.mrf.mxu0
    %v5002 = vadd.f32 0.0, %v5001
    %v5003 = vpop.f32.mrf.mxu0
    %v5004 = vadd.f32 0.0, %v5003
    %5005 = vdwg.mxu0
    %v5006 = vld [vmem:[%s2057] sm:$0xff]
    %v5007 = vld [vmem:[%s2057 + $0x8] sm:$0xf]
    %v5008 = vld [vmem:[%s2057 + $0x18] sm:$0xff]
    %v5009 = vld [vmem:[%s2057 + $0x20] sm:$0xf]
    %v5010 = vunpack.c.l.bf16 %v5006
    %v5011 = vunpack.c.h.bf16 %v5006
    %v5012 = vunpack.c.l.bf16 %v5007
    %v5013 = vunpack.c.l.bf16 %v5008
    %v5014 = vunpack.c.h.bf16 %v5008
    %v5015 = vunpack.c.l.bf16 %v5009
    %v5016 = vadd.f32 %v5010, %v4974
    %v5017 = vadd.f32 %v5013, %v4976
    %v5018 = vxor.u32 %v5016, 2147483648
    %v5019 = vxor.u32 %v5017, 2147483648
    %v5020 = vmul.f32 %v5018, 1.442695
    %v5021 = vpow.pop %v5020
    %v5022 = vmul.f32 %v5019, 1.442695
    %v5023 = vpow.pop %v5022
    %v5024 = vadd.f32 %v5021, 1.0
    %v5025 = vadd.f32 %v5023, 1.0
    %v5026 = vrcp.pop %v5024
    %v5027 = vmul.f32 %v5024, %v5026
    %v5028 = vsub.f32 1.0, %v5027
    %v5029 = vmul.f32 %v5026, %v5028
    %v5030 = vadd.f32 %v5026, %v5029
    %vm5031 = vweird.f32 %v5024
    %vm5032 = vweird.f32 %v5026
    %vm5033 = vmor %vm5031, %vm5032
    %v5034 = vsel %vm5033, %v5026, %v5030
    %v5035 = vand.u32 2147483647, %v5024
    %vm5036 = vcmp.eq.f32.partialorder %v5035, 8.507059e+37
    %v5037 = vand.u32 %v5024, 2147483648
    %v5038 = vor.u32 1.1754944e-38, %v5037
    %v5039 = vsel %vm5036, %v5038, %v5034
    %v5040 = vmul.f32 1.0, %v5039
    %v5041 = vrcp.pop %v5025
    %v5042 = vmul.f32 %v5025, %v5041
    %v5043 = vsub.f32 1.0, %v5042
    %v5044 = vmul.f32 %v5041, %v5043
    %v5045 = vadd.f32 %v5041, %v5044
    %vm5046 = vweird.f32 %v5025
    %vm5047 = vweird.f32 %v5041
    %vm5048 = vmor %vm5046, %vm5047
    %v5049 = vsel %vm5048, %v5041, %v5045
    %v5050 = vand.u32 2147483647, %v5025
    %vm5051 = vcmp.eq.f32.partialorder %v5050, 8.507059e+37
    %v5052 = vand.u32 %v5025, 2147483648
    %v5053 = vor.u32 1.1754944e-38, %v5052
    %v5054 = vsel %vm5051, %v5053, %v5049
    %v5055 = vmul.f32 1.0, %v5054
    %v5056 = vadd.f32 %v5011, %v4988
    %v5057 = vadd.f32 %v5014, %v4990
    %v5058 = vxor.u32 %v5056, 2147483648
    %v5059 = vxor.u32 %v5057, 2147483648
    %v5060 = vmul.f32 %v5058, 1.442695
    %v5061 = vpow.pop %v5060
    %v5062 = vmul.f32 %v5059, 1.442695
    %v5063 = vpow.pop %v5062
    %v5064 = vadd.f32 %v5061, 1.0
    %v5065 = vadd.f32 %v5063, 1.0
    %v5066 = vrcp.pop %v5064
    %v5067 = vmul.f32 %v5064, %v5066
    %v5068 = vsub.f32 1.0, %v5067
    %v5069 = vmul.f32 %v5066, %v5068
    %v5070 = vadd.f32 %v5066, %v5069
    %vm5071 = vweird.f32 %v5064
    %vm5072 = vweird.f32 %v5066
    %vm5073 = vmor %vm5071, %vm5072
    %v5074 = vsel %vm5073, %v5066, %v5070
    %v5075 = vand.u32 2147483647, %v5064
    %vm5076 = vcmp.eq.f32.partialorder %v5075, 8.507059e+37
    %v5077 = vand.u32 %v5064, 2147483648
    %v5078 = vor.u32 1.1754944e-38, %v5077
    %v5079 = vsel %vm5076, %v5078, %v5074
    %v5080 = vmul.f32 1.0, %v5079
    %v5081 = vrcp.pop %v5065
    %v5082 = vmul.f32 %v5065, %v5081
    %v5083 = vsub.f32 1.0, %v5082
    %v5084 = vmul.f32 %v5081, %v5083
    %v5085 = vadd.f32 %v5081, %v5084
    %vm5086 = vweird.f32 %v5065
    %vm5087 = vweird.f32 %v5081
    %vm5088 = vmor %vm5086, %vm5087
    %v5089 = vsel %vm5088, %v5081, %v5085
    %v5090 = vand.u32 2147483647, %v5065
    %vm5091 = vcmp.eq.f32.partialorder %v5090, 8.507059e+37
    %v5092 = vand.u32 %v5065, 2147483648
    %v5093 = vor.u32 1.1754944e-38, %v5092
    %v5094 = vsel %vm5091, %v5093, %v5089
    %v5095 = vmul.f32 1.0, %v5094
    %v5096 = vadd.f32 %v5002, %v1139
    %v5097 = vadd.f32 %v5004, %v1139
    %v5098 = vmul.f32 %v5040, %v5096
    %v5099 = vmul.f32 %v5055, %v5097
    %v5100 = vadd.f32 %v5012, %v5098
    %v5101 = vadd.f32 %v5015, %v5099
    %v5102 = vtanh.pop %v5100
    %v5103 = vtanh.pop %v5101
    %v5104 = vsub.f32 1.0, %v5080
    %v5105 = vsub.f32 1.0, %v5095
    %v5106 = vmul.f32 %v5104, %v5102
    %v5107 = vmul.f32 %v5105, %v5103
    %v5108 = vmul.f32 %v5080, %v4801
    %v5109 = vmul.f32 %v5095, %v4802
    %v5110 = vadd.f32 %v5106, %v5108
    %v5111 = vadd.f32 %v5107, %v5109
    %v5112 = vsel %vm2174, %v5110, %v4801
    %v5113 = vsel %vm2175, %v5111, %v4802
    %5114 = vst [vmem:[#allocation3] sm:$0xff] %v5112
    %5115 = vst [vmem:[#allocation3 + $0x8] sm:$0xff] %v5113
    %v5116 = vpack.c.bf16 %v5112, %v5112
    %v5117 = vpack.c.bf16 %v5113, %v5113
    %5118 = vst [vmem:[%s2182] sm:$0xf] %v5116
    %5119 = vst [vmem:[%s2182 + $0x8] sm:$0xf] %v5117
    %v5120 = vld [vmem:[#allocation4] sm:$0xff]
    %v5121 = vld [vmem:[#allocation4 + $0x8] sm:$0xff]
    %v5122 = vpack.c.bf16 %v5121, %v5120
    %v5123 = vld [vmem:[#allocation9] sm:$0xff]
    %v5124 = vld [vmem:[#allocation9 + $0x8] sm:$0xf]
    %v5125 = vld [vmem:[#allocation9 + $0xc] sm:$0xff]
    %v5126 = vld [vmem:[#allocation9 + $0x14] sm:$0xf]
    %v5127 = vld [vmem:[#allocation9 + $0x18] sm:$0xff]
    %v5128 = vld [vmem:[#allocation9 + $0x20] sm:$0xf]
    %v5129 = vld [vmem:[#allocation9 + $0x24] sm:$0xff]
    %v5130 = vld [vmem:[#allocation9 + $0x2c] sm:$0xf]
    %v5131 = vld [vmem:[#allocation9 + $0x30] sm:$0xff]
    %v5132 = vld [vmem:[#allocation9 + $0x38] sm:$0xf]
    %v5133 = vld [vmem:[#allocation9 + $0x3c] sm:$0xff]
    %v5134 = vld [vmem:[#allocation9 + $0x44] sm:$0xf]
    %v5135 = vld [vmem:[#allocation9 + $0x48] sm:$0xff]
    %v5136 = vld [vmem:[#allocation9 + $0x50] sm:$0xf]
    %v5137 = vld [vmem:[#allocation9 + $0x54] sm:$0xff]
    %v5138 = vld [vmem:[#allocation9 + $0x5c] sm:$0xf]
    %v5139 = vld [vmem:[#allocation9 + $0x60] sm:$0xff]
    %v5140 = vld [vmem:[#allocation9 + $0x68] sm:$0xf]
    %v5141 = vld [vmem:[#allocation9 + $0x6c] sm:$0xff]
    %v5142 = vld [vmem:[#allocation9 + $0x74] sm:$0xf]
    %v5143 = vld [vmem:[#allocation9 + $0x78] sm:$0xff]
    %v5144 = vld [vmem:[#allocation9 + $0x80] sm:$0xf]
    %v5145 = vld [vmem:[#allocation9 + $0x84] sm:$0xff]
    %v5146 = vld [vmem:[#allocation9 + $0x8c] sm:$0xf]
    %v5147 = vld [vmem:[#allocation9 + $0x90] sm:$0xff]
    %v5148 = vld [vmem:[#allocation9 + $0x98] sm:$0xf]
    %v5149 = vld [vmem:[#allocation9 + $0x9c] sm:$0xff]
    %v5150 = vld [vmem:[#allocation9 + $0xa4] sm:$0xf]
    %v5151 = vld [vmem:[#allocation9 + $0xa8] sm:$0xff]
    %v5152 = vld [vmem:[#allocation9 + $0xb0] sm:$0xf]
    %v5153 = vld [vmem:[#allocation9 + $0xb4] sm:$0xff]
    %v5154 = vld [vmem:[#allocation9 + $0xbc] sm:$0xf]
    %v5187 = vunpack.c.l.b16 %v5123
    %v5188 = vunpack.c.h.b16 %v5123
    %v5189 = vunpack.c.l.b16 %v5124
    %v5190 = vunpack.c.l.b16 %v5125
    %v5191 = vunpack.c.h.b16 %v5125
    %v5192 = vunpack.c.l.b16 %v5126
    %v5193 = vunpack.c.l.b16 %v5127
    %v5194 = vunpack.c.h.b16 %v5127
    %v5195 = vunpack.c.l.b16 %v5128
    %v5196 = vunpack.c.l.b16 %v5129
    %v5197 = vunpack.c.h.b16 %v5129
    %v5198 = vunpack.c.l.b16 %v5130
    %v5199 = vunpack.c.l.b16 %v5131
    %v5200 = vunpack.c.h.b16 %v5131
    %v5201 = vunpack.c.l.b16 %v5132
    %v5202 = vunpack.c.l.b16 %v5133
    %v5203 = vunpack.c.h.b16 %v5133
    %v5204 = vunpack.c.l.b16 %v5134
    %v5205 = vunpack.c.l.b16 %v5135
    %v5206 = vunpack.c.h.b16 %v5135
    %v5207 = vunpack.c.l.b16 %v5136
    %v5208 = vunpack.c.l.b16 %v5137
    %v5209 = vunpack.c.h.b16 %v5137
    %v5210 = vunpack.c.l.b16 %v5138
    %v5211 = vunpack.c.l.b16 %v5139
    %v5212 = vunpack.c.h.b16 %v5139
    %v5213 = vunpack.c.l.b16 %v5140
    %v5214 = vunpack.c.l.b16 %v5141
    %v5215 = vunpack.c.h.b16 %v5141
    %v5216 = vunpack.c.l.b16 %v5142
    %v5217 = vunpack.c.l.b16 %v5143
    %v5218 = vunpack.c.h.b16 %v5143
    %v5219 = vunpack.c.l.b16 %v5144
    %v5220 = vunpack.c.l.b16 %v5145
    %v5221 = vunpack.c.h.b16 %v5145
    %v5222 = vunpack.c.l.b16 %v5146
    %v5223 = vunpack.c.l.b16 %v5147
    %v5224 = vunpack.c.h.b16 %v5147
    %v5225 = vunpack.c.l.b16 %v5148
    %v5226 = vunpack.c.l.b16 %v5149
    %v5227 = vunpack.c.h.b16 %v5149
    %v5228 = vunpack.c.l.b16 %v5150
    %v5229 = vunpack.c.l.b16 %v5151
    %v5230 = vunpack.c.h.b16 %v5151
    %v5231 = vunpack.c.l.b16 %v5152
    %v5232 = vunpack.c.l.b16 %v5153
    %v5233 = vunpack.c.h.b16 %v5153
    %v5234 = vunpack.c.l.b16 %v5154
    %v5235 = vpack.c.b16 %v5190, %v5187
    %v5236 = vpack.c.b16 %v5191, %v5188
    %v5237 = vpack.c.b16 %v5192, %v5189
    %v5238 = vpack.c.b16 %v5196, %v5193
    %v5239 = vpack.c.b16 %v5197, %v5194
    %v5240 = vpack.c.b16 %v5198, %v5195
    %v5241 = vpack.c.b16 %v5202, %v5199
    %v5242 = vpack.c.b16 %v5203, %v5200
    %v5243 = vpack.c.b16 %v5204, %v5201
    %v5244 = vpack.c.b16 %v5208, %v5205
    %v5245 = vpack.c.b16 %v5209, %v5206
    %v5246 = vpack.c.b16 %v5210, %v5207
    %v5247 = vpack.c.b16 %v5214, %v5211
    %v5248 = vpack.c.b16 %v5215, %v5212
    %v5249 = vpack.c.b16 %v5216, %v5213
    %v5250 = vpack.c.b16 %v5220, %v5217
    %v5251 = vpack.c.b16 %v5221, %v5218
    %v5252 = vpack.c.b16 %v5222, %v5219
    %v5253 = vpack.c.b16 %v5226, %v5223
    %v5254 = vpack.c.b16 %v5227, %v5224
    %v5255 = vpack.c.b16 %v5228, %v5225
    %v5256 = vpack.c.b16 %v5232, %v5229
    %v5257 = vpack.c.b16 %v5233, %v5230
    %v5258 = vpack.c.b16 %v5234, %v5231
    %5283 = vmatpush.bf16.msra.mxu0 %v5256
    %5284 = vmatpush.bf16.msra.mxu0 %v5253
    %5285 = vmatpush.bf16.msra.mxu0 %v5250
    %5286 = vmatpush.bf16.msra.mxu0 %v5247
    %5287 = vmatpush.bf16.msra.mxu0 %v5244
    %5288 = vmatpush.bf16.msra.mxu0 %v5241
    %5289 = vmatpush.bf16.msra.mxu0 %v5238
    %5290 = vmatpush.bf16.msra.mxu0 %v5235
    %5291 = vmatmul.bf16.gmra.mxu0 %v5122
    %v5292 = vpop.f32.mrf.mxu0
    %v5293 = vadd.f32 0.0, %v5292
    %v5294 = vpop.f32.mrf.mxu0
    %v5295 = vadd.f32 0.0, %v5294
    %5296 = vdwg.mxu0
    %5297 = vmatpush.bf16.msra.mxu0 %v5257
    %5298 = vmatpush.bf16.msra.mxu0 %v5254
    %5299 = vmatpush.bf16.msra.mxu0 %v5251
    %5300 = vmatpush.bf16.msra.mxu0 %v5248
    %5301 = vmatpush.bf16.msra.mxu0 %v5245
    %5302 = vmatpush.bf16.msra.mxu0 %v5242
    %5303 = vmatpush.bf16.msra.mxu0 %v5239
    %5304 = vmatpush.bf16.msra.mxu0 %v5236
    %5305 = vmatmul.bf16.gmra.mxu0 %v5122
    %v5306 = vpop.f32.mrf.mxu0
    %v5307 = vadd.f32 0.0, %v5306
    %v5308 = vpop.f32.mrf.mxu0
    %v5309 = vadd.f32 0.0, %v5308
    %5310 = vdwg.mxu0
    %5311 = vmatpush.bf16.msra.mxu0 %v5258
    %5312 = vmatpush.bf16.msra.mxu0 %v5255
    %5313 = vmatpush.bf16.msra.mxu0 %v5252
    %5314 = vmatpush.bf16.msra.mxu0 %v5249
    %5315 = vmatpush.bf16.msra.mxu0 %v5246
    %5316 = vmatpush.bf16.msra.mxu0 %v5243
    %5317 = vmatpush.bf16.msra.mxu0 %v5240
    %5318 = vmatpush.bf16.msra.mxu0 %v5237
    %5319 = vmatmul.bf16.gmra.mxu0 %v5122
    %v5320 = vpop.f32.mrf.mxu0
    %v5321 = vadd.f32 0.0, %v5320
    %v5322 = vpop.f32.mrf.mxu0
    %v5323 = vadd.f32 0.0, %v5322
    %5324 = vdwg.mxu0
    %v5325 = vld [vmem:[%s1722 + $0xc] sm:$0xff]
    %v5326 = vld [vmem:[%s1722 + $0x14] sm:$0xf]
    %v5327 = vld [vmem:[%s1722 + $0x24] sm:$0xff]
    %v5328 = vld [vmem:[%s1722 + $0x2c] sm:$0xf]
    %v5329 = vunpack.c.l.bf16 %v5325
    %v5330 = vunpack.c.h.bf16 %v5325
    %v5331 = vunpack.c.l.bf16 %v5326
    %v5332 = vunpack.c.l.bf16 %v5327
    %v5333 = vunpack.c.h.bf16 %v5327
    %v5334 = vunpack.c.l.bf16 %v5328
    %v5335 = vadd.f32 %v5329, %v5293
    %v5336 = vadd.f32 %v5332, %v5295
    %v5337 = vxor.u32 %v5335, 2147483648
    %v5338 = vxor.u32 %v5336, 2147483648
    %v5339 = vmul.f32 %v5337, 1.442695
    %v5340 = vpow.pop %v5339
    %v5341 = vmul.f32 %v5338, 1.442695
    %v5342 = vpow.pop %v5341
    %v5343 = vadd.f32 %v5340, 1.0
    %v5344 = vadd.f32 %v5342, 1.0
    %v5345 = vrcp.pop %v5343
    %v5346 = vmul.f32 %v5343, %v5345
    %v5347 = vsub.f32 1.0, %v5346
    %v5348 = vmul.f32 %v5345, %v5347
    %v5349 = vadd.f32 %v5345, %v5348
    %vm5350 = vweird.f32 %v5343
    %vm5351 = vweird.f32 %v5345
    %vm5352 = vmor %vm5350, %vm5351
    %v5353 = vsel %vm5352, %v5345, %v5349
    %v5354 = vand.u32 2147483647, %v5343
    %vm5355 = vcmp.eq.f32.partialorder %v5354, 8.507059e+37
    %v5356 = vand.u32 %v5343, 2147483648
    %v5357 = vor.u32 1.1754944e-38, %v5356
    %v5358 = vsel %vm5355, %v5357, %v5353
    %v5359 = vmul.f32 1.0, %v5358
    %v5360 = vrcp.pop %v5344
    %v5361 = vmul.f32 %v5344, %v5360
    %v5362 = vsub.f32 1.0, %v5361
    %v5363 = vmul.f32 %v5360, %v5362
    %v5364 = vadd.f32 %v5360, %v5363
    %vm5365 = vweird.f32 %v5344
    %vm5366 = vweird.f32 %v5360
    %vm5367 = vmor %vm5365, %vm5366
    %v5368 = vsel %vm5367, %v5360, %v5364
    %v5369 = vand.u32 2147483647, %v5344
    %vm5370 = vcmp.eq.f32.partialorder %v5369, 8.507059e+37
    %v5371 = vand.u32 %v5344, 2147483648
    %v5372 = vor.u32 1.1754944e-38, %v5371
    %v5373 = vsel %vm5370, %v5372, %v5368
    %v5374 = vmul.f32 1.0, %v5373
    %v5375 = vadd.f32 %v5330, %v5307
    %v5376 = vadd.f32 %v5333, %v5309
    %v5377 = vxor.u32 %v5375, 2147483648
    %v5378 = vxor.u32 %v5376, 2147483648
    %v5379 = vmul.f32 %v5377, 1.442695
    %v5380 = vpow.pop %v5379
    %v5381 = vmul.f32 %v5378, 1.442695
    %v5382 = vpow.pop %v5381
    %v5383 = vadd.f32 %v5380, 1.0
    %v5384 = vadd.f32 %v5382, 1.0
    %v5385 = vrcp.pop %v5383
    %v5386 = vmul.f32 %v5383, %v5385
    %v5387 = vsub.f32 1.0, %v5386
    %v5388 = vmul.f32 %v5385, %v5387
    %v5389 = vadd.f32 %v5385, %v5388
    %vm5390 = vweird.f32 %v5383
    %vm5391 = vweird.f32 %v5385
    %vm5392 = vmor %vm5390, %vm5391
    %v5393 = vsel %vm5392, %v5385, %v5389
    %v5394 = vand.u32 2147483647, %v5383
    %vm5395 = vcmp.eq.f32.partialorder %v5394, 8.507059e+37
    %v5396 = vand.u32 %v5383, 2147483648
    %v5397 = vor.u32 1.1754944e-38, %v5396
    %v5398 = vsel %vm5395, %v5397, %v5393
    %v5399 = vmul.f32 1.0, %v5398
    %v5400 = vrcp.pop %v5384
    %v5401 = vmul.f32 %v5384, %v5400
    %v5402 = vsub.f32 1.0, %v5401
    %v5403 = vmul.f32 %v5400, %v5402
    %v5404 = vadd.f32 %v5400, %v5403
    %vm5405 = vweird.f32 %v5384
    %vm5406 = vweird.f32 %v5400
    %vm5407 = vmor %vm5405, %vm5406
    %v5408 = vsel %vm5407, %v5400, %v5404
    %v5409 = vand.u32 2147483647, %v5384
    %vm5410 = vcmp.eq.f32.partialorder %v5409, 8.507059e+37
    %v5411 = vand.u32 %v5384, 2147483648
    %v5412 = vor.u32 1.1754944e-38, %v5411
    %v5413 = vsel %vm5410, %v5412, %v5408
    %v5414 = vmul.f32 1.0, %v5413
    %v5415 = vadd.f32 %v5321, %v1476
    %v5416 = vadd.f32 %v5323, %v1476
    %v5417 = vmul.f32 %v5359, %v5415
    %v5418 = vmul.f32 %v5374, %v5416
    %v5419 = vadd.f32 %v5331, %v5417
    %v5420 = vadd.f32 %v5334, %v5418
    %v5421 = vtanh.pop %v5419
    %v5422 = vtanh.pop %v5420
    %v5423 = vsub.f32 1.0, %v5399
    %v5424 = vsub.f32 1.0, %v5414
    %v5425 = vmul.f32 %v5423, %v5421
    %v5426 = vmul.f32 %v5424, %v5422
    %v5427 = vmul.f32 %v5399, %v5120
    %v5428 = vmul.f32 %v5414, %v5121
    %v5429 = vadd.f32 %v5425, %v5427
    %v5430 = vadd.f32 %v5426, %v5428
    %v5431 = vsel %vm1839, %v5429, %v5120
    %v5432 = vsel %vm1840, %v5430, %v5121
    %5433 = vst [vmem:[#allocation4] sm:$0xff] %v5431
    %5434 = vst [vmem:[#allocation4 + $0x8] sm:$0xff] %v5432
    %v5435 = vpack.c.bf16 %v5431, %v5431
    %v5436 = vpack.c.bf16 %v5432, %v5432
    %5437 = vst [vmem:[%s1847 + $0x4] sm:$0xf] %v5435
    %5438 = vst [vmem:[%s1847 + $0xc] sm:$0xf] %v5436
    %v5439 = vld [vmem:[#allocation3] sm:$0xff]
    %v5440 = vld [vmem:[#allocation3 + $0x8] sm:$0xff]
    %v5441 = vpack.c.bf16 %v5440, %v5439
    %v5442 = vld [vmem:[#allocation7] sm:$0xff]
    %v5443 = vld [vmem:[#allocation7 + $0x8] sm:$0xf]
    %v5444 = vld [vmem:[#allocation7 + $0xc] sm:$0xff]
    %v5445 = vld [vmem:[#allocation7 + $0x14] sm:$0xf]
    %v5446 = vld [vmem:[#allocation7 + $0x18] sm:$0xff]
    %v5447 = vld [vmem:[#allocation7 + $0x20] sm:$0xf]
    %v5448 = vld [vmem:[#allocation7 + $0x24] sm:$0xff]
    %v5449 = vld [vmem:[#allocation7 + $0x2c] sm:$0xf]
    %v5450 = vld [vmem:[#allocation7 + $0x30] sm:$0xff]
    %v5451 = vld [vmem:[#allocation7 + $0x38] sm:$0xf]
    %v5452 = vld [vmem:[#allocation7 + $0x3c] sm:$0xff]
    %v5453 = vld [vmem:[#allocation7 + $0x44] sm:$0xf]
    %v5454 = vld [vmem:[#allocation7 + $0x48] sm:$0xff]
    %v5455 = vld [vmem:[#allocation7 + $0x50] sm:$0xf]
    %v5456 = vld [vmem:[#allocation7 + $0x54] sm:$0xff]
    %v5457 = vld [vmem:[#allocation7 + $0x5c] sm:$0xf]
    %v5458 = vld [vmem:[#allocation7 + $0x60] sm:$0xff]
    %v5459 = vld [vmem:[#allocation7 + $0x68] sm:$0xf]
    %v5460 = vld [vmem:[#allocation7 + $0x6c] sm:$0xff]
    %v5461 = vld [vmem:[#allocation7 + $0x74] sm:$0xf]
    %v5462 = vld [vmem:[#allocation7 + $0x78] sm:$0xff]
    %v5463 = vld [vmem:[#allocation7 + $0x80] sm:$0xf]
    %v5464 = vld [vmem:[#allocation7 + $0x84] sm:$0xff]
    %v5465 = vld [vmem:[#allocation7 + $0x8c] sm:$0xf]
    %v5466 = vld [vmem:[#allocation7 + $0x90] sm:$0xff]
    %v5467 = vld [vmem:[#allocation7 + $0x98] sm:$0xf]
    %v5468 = vld [vmem:[#allocation7 + $0x9c] sm:$0xff]
    %v5469 = vld [vmem:[#allocation7 + $0xa4] sm:$0xf]
    %v5470 = vld [vmem:[#allocation7 + $0xa8] sm:$0xff]
    %v5471 = vld [vmem:[#allocation7 + $0xb0] sm:$0xf]
    %v5472 = vld [vmem:[#allocation7 + $0xb4] sm:$0xff]
    %v5473 = vld [vmem:[#allocation7 + $0xbc] sm:$0xf]
    %v5506 = vunpack.c.l.b16 %v5442
    %v5507 = vunpack.c.h.b16 %v5442
    %v5508 = vunpack.c.l.b16 %v5443
    %v5509 = vunpack.c.l.b16 %v5444
    %v5510 = vunpack.c.h.b16 %v5444
    %v5511 = vunpack.c.l.b16 %v5445
    %v5512 = vunpack.c.l.b16 %v5446
    %v5513 = vunpack.c.h.b16 %v5446
    %v5514 = vunpack.c.l.b16 %v5447
    %v5515 = vunpack.c.l.b16 %v5448
    %v5516 = vunpack.c.h.b16 %v5448
    %v5517 = vunpack.c.l.b16 %v5449
    %v5518 = vunpack.c.l.b16 %v5450
    %v5519 = vunpack.c.h.b16 %v5450
    %v5520 = vunpack.c.l.b16 %v5451
    %v5521 = vunpack.c.l.b16 %v5452
    %v5522 = vunpack.c.h.b16 %v5452
    %v5523 = vunpack.c.l.b16 %v5453
    %v5524 = vunpack.c.l.b16 %v5454
    %v5525 = vunpack.c.h.b16 %v5454
    %v5526 = vunpack.c.l.b16 %v5455
    %v5527 = vunpack.c.l.b16 %v5456
    %v5528 = vunpack.c.h.b16 %v5456
    %v5529 = vunpack.c.l.b16 %v5457
    %v5530 = vunpack.c.l.b16 %v5458
    %v5531 = vunpack.c.h.b16 %v5458
    %v5532 = vunpack.c.l.b16 %v5459
    %v5533 = vunpack.c.l.b16 %v5460
    %v5534 = vunpack.c.h.b16 %v5460
    %v5535 = vunpack.c.l.b16 %v5461
    %v5536 = vunpack.c.l.b16 %v5462
    %v5537 = vunpack.c.h.b16 %v5462
    %v5538 = vunpack.c.l.b16 %v5463
    %v5539 = vunpack.c.l.b16 %v5464
    %v5540 = vunpack.c.h.b16 %v5464
    %v5541 = vunpack.c.l.b16 %v5465
    %v5542 = vunpack.c.l.b16 %v5466
    %v5543 = vunpack.c.h.b16 %v5466
    %v5544 = vunpack.c.l.b16 %v5467
    %v5545 = vunpack.c.l.b16 %v5468
    %v5546 = vunpack.c.h.b16 %v5468
    %v5547 = vunpack.c.l.b16 %v5469
    %v5548 = vunpack.c.l.b16 %v5470
    %v5549 = vunpack.c.h.b16 %v5470
    %v5550 = vunpack.c.l.b16 %v5471
    %v5551 = vunpack.c.l.b16 %v5472
    %v5552 = vunpack.c.h.b16 %v5472
    %v5553 = vunpack.c.l.b16 %v5473
    %v5554 = vpack.c.b16 %v5509, %v5506
    %v5555 = vpack.c.b16 %v5510, %v5507
    %v5556 = vpack.c.b16 %v5511, %v5508
    %v5557 = vpack.c.b16 %v5515, %v5512
    %v5558 = vpack.c.b16 %v5516, %v5513
    %v5559 = vpack.c.b16 %v5517, %v5514
    %v5560 = vpack.c.b16 %v5521, %v5518
    %v5561 = vpack.c.b16 %v5522, %v5519
    %v5562 = vpack.c.b16 %v5523, %v5520
    %v5563 = vpack.c.b16 %v5527, %v5524
    %v5564 = vpack.c.b16 %v5528, %v5525
    %v5565 = vpack.c.b16 %v5529, %v5526
    %v5566 = vpack.c.b16 %v5533, %v5530
    %v5567 = vpack.c.b16 %v5534, %v5531
    %v5568 = vpack.c.b16 %v5535, %v5532
    %v5569 = vpack.c.b16 %v5539, %v5536
    %v5570 = vpack.c.b16 %v5540, %v5537
    %v5571 = vpack.c.b16 %v5541, %v5538
    %v5572 = vpack.c.b16 %v5545, %v5542
    %v5573 = vpack.c.b16 %v5546, %v5543
    %v5574 = vpack.c.b16 %v5547, %v5544
    %v5575 = vpack.c.b16 %v5551, %v5548
    %v5576 = vpack.c.b16 %v5552, %v5549
    %v5577 = vpack.c.b16 %v5553, %v5550
    %5602 = vmatpush.bf16.msra.mxu0 %v5575
    %5603 = vmatpush.bf16.msra.mxu0 %v5572
    %5604 = vmatpush.bf16.msra.mxu0 %v5569
    %5605 = vmatpush.bf16.msra.mxu0 %v5566
    %5606 = vmatpush.bf16.msra.mxu0 %v5563
    %5607 = vmatpush.bf16.msra.mxu0 %v5560
    %5608 = vmatpush.bf16.msra.mxu0 %v5557
    %5609 = vmatpush.bf16.msra.mxu0 %v5554
    %5610 = vmatmul.bf16.gmra.mxu0 %v5441
    %v5611 = vpop.f32.mrf.mxu0
    %v5612 = vadd.f32 0.0, %v5611
    %v5613 = vpop.f32.mrf.mxu0
    %v5614 = vadd.f32 0.0, %v5613
    %5615 = vdwg.mxu0
    %5616 = vmatpush.bf16.msra.mxu0 %v5576
    %5617 = vmatpush.bf16.msra.mxu0 %v5573
    %5618 = vmatpush.bf16.msra.mxu0 %v5570
    %5619 = vmatpush.bf16.msra.mxu0 %v5567
    %5620 = vmatpush.bf16.msra.mxu0 %v5564
    %5621 = vmatpush.bf16.msra.mxu0 %v5561
    %5622 = vmatpush.bf16.msra.mxu0 %v5558
    %5623 = vmatpush.bf16.msra.mxu0 %v5555
    %5624 = vmatmul.bf16.gmra.mxu0 %v5441
    %v5625 = vpop.f32.mrf.mxu0
    %v5626 = vadd.f32 0.0, %v5625
    %v5627 = vpop.f32.mrf.mxu0
    %v5628 = vadd.f32 0.0, %v5627
    %5629 = vdwg.mxu0
    %5630 = vmatpush.bf16.msra.mxu0 %v5577
    %5631 = vmatpush.bf16.msra.mxu0 %v5574
    %5632 = vmatpush.bf16.msra.mxu0 %v5571
    %5633 = vmatpush.bf16.msra.mxu0 %v5568
    %5634 = vmatpush.bf16.msra.mxu0 %v5565
    %5635 = vmatpush.bf16.msra.mxu0 %v5562
    %5636 = vmatpush.bf16.msra.mxu0 %v5559
    %5637 = vmatpush.bf16.msra.mxu0 %v5556
    %5638 = vmatmul.bf16.gmra.mxu0 %v5441
    %v5639 = vpop.f32.mrf.mxu0
    %v5640 = vadd.f32 0.0, %v5639
    %v5641 = vpop.f32.mrf.mxu0
    %v5642 = vadd.f32 0.0, %v5641
    %5643 = vdwg.mxu0
    %v5644 = vld [vmem:[%s1384] sm:$0xff]
    %v5645 = vld [vmem:[%s1384 + $0x8] sm:$0xf]
    %v5646 = vld [vmem:[%s1384 + $0x18] sm:$0xff]
    %v5647 = vld [vmem:[%s1384 + $0x20] sm:$0xf]
    %v5648 = vunpack.c.l.bf16 %v5644
    %v5649 = vunpack.c.h.bf16 %v5644
    %v5650 = vunpack.c.l.bf16 %v5645
    %v5651 = vunpack.c.l.bf16 %v5646
    %v5652 = vunpack.c.h.bf16 %v5646
    %v5653 = vunpack.c.l.bf16 %v5647
    %v5654 = vadd.f32 %v5648, %v5612
    %v5655 = vadd.f32 %v5651, %v5614
    %v5656 = vxor.u32 %v5654, 2147483648
    %v5657 = vxor.u32 %v5655, 2147483648
    %v5658 = vmul.f32 %v5656, 1.442695
    %v5659 = vpow.pop %v5658
    %v5660 = vmul.f32 %v5657, 1.442695
    %v5661 = vpow.pop %v5660
    %v5662 = vadd.f32 %v5659, 1.0
    %v5663 = vadd.f32 %v5661, 1.0
    %v5664 = vrcp.pop %v5662
    %v5665 = vmul.f32 %v5662, %v5664
    %v5666 = vsub.f32 1.0, %v5665
    %v5667 = vmul.f32 %v5664, %v5666
    %v5668 = vadd.f32 %v5664, %v5667
    %vm5669 = vweird.f32 %v5662
    %vm5670 = vweird.f32 %v5664
    %vm5671 = vmor %vm5669, %vm5670
    %v5672 = vsel %vm5671, %v5664, %v5668
    %v5673 = vand.u32 2147483647, %v5662
    %vm5674 = vcmp.eq.f32.partialorder %v5673, 8.507059e+37
    %v5675 = vand.u32 %v5662, 2147483648
    %v5676 = vor.u32 1.1754944e-38, %v5675
    %v5677 = vsel %vm5674, %v5676, %v5672
    %v5678 = vmul.f32 1.0, %v5677
    %v5679 = vrcp.pop %v5663
    %v5680 = vmul.f32 %v5663, %v5679
    %v5681 = vsub.f32 1.0, %v5680
    %v5682 = vmul.f32 %v5679, %v5681
    %v5683 = vadd.f32 %v5679, %v5682
    %vm5684 = vweird.f32 %v5663
    %vm5685 = vweird.f32 %v5679
    %vm5686 = vmor %vm5684, %vm5685
    %v5687 = vsel %vm5686, %v5679, %v5683
    %v5688 = vand.u32 2147483647, %v5663
    %vm5689 = vcmp.eq.f32.partialorder %v5688, 8.507059e+37
    %v5690 = vand.u32 %v5663, 2147483648
    %v5691 = vor.u32 1.1754944e-38, %v5690
    %v5692 = vsel %vm5689, %v5691, %v5687
    %v5693 = vmul.f32 1.0, %v5692
    %v5694 = vadd.f32 %v5649, %v5626
    %v5695 = vadd.f32 %v5652, %v5628
    %v5696 = vxor.u32 %v5694, 2147483648
    %v5697 = vxor.u32 %v5695, 2147483648
    %v5698 = vmul.f32 %v5696, 1.442695
    %v5699 = vpow.pop %v5698
    %v5700 = vmul.f32 %v5697, 1.442695
    %v5701 = vpow.pop %v5700
    %v5702 = vadd.f32 %v5699, 1.0
    %v5703 = vadd.f32 %v5701, 1.0
    %v5704 = vrcp.pop %v5702
    %v5705 = vmul.f32 %v5702, %v5704
    %v5706 = vsub.f32 1.0, %v5705
    %v5707 = vmul.f32 %v5704, %v5706
    %v5708 = vadd.f32 %v5704, %v5707
    %vm5709 = vweird.f32 %v5702
    %vm5710 = vweird.f32 %v5704
    %vm5711 = vmor %vm5709, %vm5710
    %v5712 = vsel %vm5711, %v5704, %v5708
    %v5713 = vand.u32 2147483647, %v5702
    %vm5714 = vcmp.eq.f32.partialorder %v5713, 8.507059e+37
    %v5715 = vand.u32 %v5702, 2147483648
    %v5716 = vor.u32 1.1754944e-38, %v5715
    %v5717 = vsel %vm5714, %v5716, %v5712
    %v5718 = vmul.f32 1.0, %v5717
    %v5719 = vrcp.pop %v5703
    %v5720 = vmul.f32 %v5703, %v5719
    %v5721 = vsub.f32 1.0, %v5720
    %v5722 = vmul.f32 %v5719, %v5721
    %v5723 = vadd.f32 %v5719, %v5722
    %vm5724 = vweird.f32 %v5703
    %vm5725 = vweird.f32 %v5719
    %vm5726 = vmor %vm5724, %vm5725
    %v5727 = vsel %vm5726, %v5719, %v5723
    %v5728 = vand.u32 2147483647, %v5703
    %vm5729 = vcmp.eq.f32.partialorder %v5728, 8.507059e+37
    %v5730 = vand.u32 %v5703, 2147483648
    %v5731 = vor.u32 1.1754944e-38, %v5730
    %v5732 = vsel %vm5729, %v5731, %v5727
    %v5733 = vmul.f32 1.0, %v5732
    %v5734 = vadd.f32 %v5640, %v1139
    %v5735 = vadd.f32 %v5642, %v1139
    %v5736 = vmul.f32 %v5678, %v5734
    %v5737 = vmul.f32 %v5693, %v5735
    %v5738 = vadd.f32 %v5650, %v5736
    %v5739 = vadd.f32 %v5653, %v5737
    %v5740 = vtanh.pop %v5738
    %v5741 = vtanh.pop %v5739
    %v5742 = vsub.f32 1.0, %v5718
    %v5743 = vsub.f32 1.0, %v5733
    %v5744 = vmul.f32 %v5742, %v5740
    %v5745 = vmul.f32 %v5743, %v5741
    %v5746 = vmul.f32 %v5718, %v5439
    %v5747 = vmul.f32 %v5733, %v5440
    %v5748 = vadd.f32 %v5744, %v5746
    %v5749 = vadd.f32 %v5745, %v5747
    %v5750 = vsel %vm1504, %v5748, %v5439
    %v5751 = vsel %vm1505, %v5749, %v5440
    %5752 = vst [vmem:[#allocation3] sm:$0xff] %v5750
    %5753 = vst [vmem:[#allocation3 + $0x8] sm:$0xff] %v5751
    %v5754 = vpack.c.bf16 %v5750, %v5750
    %v5755 = vpack.c.bf16 %v5751, %v5751
    %5756 = vst [vmem:[%s1512] sm:$0xf] %v5754
    %5757 = vst [vmem:[%s1512 + $0x8] sm:$0xf] %v5755
    %v5758 = vld [vmem:[#allocation4] sm:$0xff]
    %v5759 = vld [vmem:[#allocation4 + $0x8] sm:$0xff]
    %v5760 = vpack.c.bf16 %v5759, %v5758
    %v5761 = vld [vmem:[#allocation9] sm:$0xff]
    %v5762 = vld [vmem:[#allocation9 + $0x8] sm:$0xf]
    %v5763 = vld [vmem:[#allocation9 + $0xc] sm:$0xff]
    %v5764 = vld [vmem:[#allocation9 + $0x14] sm:$0xf]
    %v5765 = vld [vmem:[#allocation9 + $0x18] sm:$0xff]
    %v5766 = vld [vmem:[#allocation9 + $0x20] sm:$0xf]
    %v5767 = vld [vmem:[#allocation9 + $0x24] sm:$0xff]
    %v5768 = vld [vmem:[#allocation9 + $0x2c] sm:$0xf]
    %v5769 = vld [vmem:[#allocation9 + $0x30] sm:$0xff]
    %v5770 = vld [vmem:[#allocation9 + $0x38] sm:$0xf]
    %v5771 = vld [vmem:[#allocation9 + $0x3c] sm:$0xff]
    %v5772 = vld [vmem:[#allocation9 + $0x44] sm:$0xf]
    %v5773 = vld [vmem:[#allocation9 + $0x48] sm:$0xff]
    %v5774 = vld [vmem:[#allocation9 + $0x50] sm:$0xf]
    %v5775 = vld [vmem:[#allocation9 + $0x54] sm:$0xff]
    %v5776 = vld [vmem:[#allocation9 + $0x5c] sm:$0xf]
    %v5777 = vld [vmem:[#allocation9 + $0x60] sm:$0xff]
    %v5778 = vld [vmem:[#allocation9 + $0x68] sm:$0xf]
    %v5779 = vld [vmem:[#allocation9 + $0x6c] sm:$0xff]
    %v5780 = vld [vmem:[#allocation9 + $0x74] sm:$0xf]
    %v5781 = vld [vmem:[#allocation9 + $0x78] sm:$0xff]
    %v5782 = vld [vmem:[#allocation9 + $0x80] sm:$0xf]
    %v5783 = vld [vmem:[#allocation9 + $0x84] sm:$0xff]
    %v5784 = vld [vmem:[#allocation9 + $0x8c] sm:$0xf]
    %v5785 = vld [vmem:[#allocation9 + $0x90] sm:$0xff]
    %v5786 = vld [vmem:[#allocation9 + $0x98] sm:$0xf]
    %v5787 = vld [vmem:[#allocation9 + $0x9c] sm:$0xff]
    %v5788 = vld [vmem:[#allocation9 + $0xa4] sm:$0xf]
    %v5789 = vld [vmem:[#allocation9 + $0xa8] sm:$0xff]
    %v5790 = vld [vmem:[#allocation9 + $0xb0] sm:$0xf]
    %v5791 = vld [vmem:[#allocation9 + $0xb4] sm:$0xff]
    %v5792 = vld [vmem:[#allocation9 + $0xbc] sm:$0xf]
    %v5825 = vunpack.c.l.b16 %v5761
    %v5826 = vunpack.c.h.b16 %v5761
    %v5827 = vunpack.c.l.b16 %v5762
    %v5828 = vunpack.c.l.b16 %v5763
    %v5829 = vunpack.c.h.b16 %v5763
    %v5830 = vunpack.c.l.b16 %v5764
    %v5831 = vunpack.c.l.b16 %v5765
    %v5832 = vunpack.c.h.b16 %v5765
    %v5833 = vunpack.c.l.b16 %v5766
    %v5834 = vunpack.c.l.b16 %v5767
    %v5835 = vunpack.c.h.b16 %v5767
    %v5836 = vunpack.c.l.b16 %v5768
    %v5837 = vunpack.c.l.b16 %v5769
    %v5838 = vunpack.c.h.b16 %v5769
    %v5839 = vunpack.c.l.b16 %v5770
    %v5840 = vunpack.c.l.b16 %v5771
    %v5841 = vunpack.c.h.b16 %v5771
    %v5842 = vunpack.c.l.b16 %v5772
    %v5843 = vunpack.c.l.b16 %v5773
    %v5844 = vunpack.c.h.b16 %v5773
    %v5845 = vunpack.c.l.b16 %v5774
    %v5846 = vunpack.c.l.b16 %v5775
    %v5847 = vunpack.c.h.b16 %v5775
    %v5848 = vunpack.c.l.b16 %v5776
    %v5849 = vunpack.c.l.b16 %v5777
    %v5850 = vunpack.c.h.b16 %v5777
    %v5851 = vunpack.c.l.b16 %v5778
    %v5852 = vunpack.c.l.b16 %v5779
    %v5853 = vunpack.c.h.b16 %v5779
    %v5854 = vunpack.c.l.b16 %v5780
    %v5855 = vunpack.c.l.b16 %v5781
    %v5856 = vunpack.c.h.b16 %v5781
    %v5857 = vunpack.c.l.b16 %v5782
    %v5858 = vunpack.c.l.b16 %v5783
    %v5859 = vunpack.c.h.b16 %v5783
    %v5860 = vunpack.c.l.b16 %v5784
    %v5861 = vunpack.c.l.b16 %v5785
    %v5862 = vunpack.c.h.b16 %v5785
    %v5863 = vunpack.c.l.b16 %v5786
    %v5864 = vunpack.c.l.b16 %v5787
    %v5865 = vunpack.c.h.b16 %v5787
    %v5866 = vunpack.c.l.b16 %v5788
    %v5867 = vunpack.c.l.b16 %v5789
    %v5868 = vunpack.c.h.b16 %v5789
    %v5869 = vunpack.c.l.b16 %v5790
    %v5870 = vunpack.c.l.b16 %v5791
    %v5871 = vunpack.c.h.b16 %v5791
    %v5872 = vunpack.c.l.b16 %v5792
    %v5873 = vpack.c.b16 %v5828, %v5825
    %v5874 = vpack.c.b16 %v5829, %v5826
    %v5875 = vpack.c.b16 %v5830, %v5827
    %v5876 = vpack.c.b16 %v5834, %v5831
    %v5877 = vpack.c.b16 %v5835, %v5832
    %v5878 = vpack.c.b16 %v5836, %v5833
    %v5879 = vpack.c.b16 %v5840, %v5837
    %v5880 = vpack.c.b16 %v5841, %v5838
    %v5881 = vpack.c.b16 %v5842, %v5839
    %v5882 = vpack.c.b16 %v5846, %v5843
    %v5883 = vpack.c.b16 %v5847, %v5844
    %v5884 = vpack.c.b16 %v5848, %v5845
    %v5885 = vpack.c.b16 %v5852, %v5849
    %v5886 = vpack.c.b16 %v5853, %v5850
    %v5887 = vpack.c.b16 %v5854, %v5851
    %v5888 = vpack.c.b16 %v5858, %v5855
    %v5889 = vpack.c.b16 %v5859, %v5856
    %v5890 = vpack.c.b16 %v5860, %v5857
    %v5891 = vpack.c.b16 %v5864, %v5861
    %v5892 = vpack.c.b16 %v5865, %v5862
    %v5893 = vpack.c.b16 %v5866, %v5863
    %v5894 = vpack.c.b16 %v5870, %v5867
    %v5895 = vpack.c.b16 %v5871, %v5868
    %v5896 = vpack.c.b16 %v5872, %v5869
    %5921 = vmatpush.bf16.msra.mxu0 %v5894
    %5922 = vmatpush.bf16.msra.mxu0 %v5891
    %5923 = vmatpush.bf16.msra.mxu0 %v5888
    %5924 = vmatpush.bf16.msra.mxu0 %v5885
    %5925 = vmatpush.bf16.msra.mxu0 %v5882
    %5926 = vmatpush.bf16.msra.mxu0 %v5879
    %5927 = vmatpush.bf16.msra.mxu0 %v5876
    %5928 = vmatpush.bf16.msra.mxu0 %v5873
    %5929 = vmatmul.bf16.gmra.mxu0 %v5760
    %v5930 = vpop.f32.mrf.mxu0
    %v5931 = vadd.f32 0.0, %v5930
    %v5932 = vpop.f32.mrf.mxu0
    %v5933 = vadd.f32 0.0, %v5932
    %5934 = vdwg.mxu0
    %5935 = vmatpush.bf16.msra.mxu0 %v5895
    %5936 = vmatpush.bf16.msra.mxu0 %v5892
    %5937 = vmatpush.bf16.msra.mxu0 %v5889
    %5938 = vmatpush.bf16.msra.mxu0 %v5886
    %5939 = vmatpush.bf16.msra.mxu0 %v5883
    %5940 = vmatpush.bf16.msra.mxu0 %v5880
    %5941 = vmatpush.bf16.msra.mxu0 %v5877
    %5942 = vmatpush.bf16.msra.mxu0 %v5874
    %5943 = vmatmul.bf16.gmra.mxu0 %v5760
    %v5944 = vpop.f32.mrf.mxu0
    %v5945 = vadd.f32 0.0, %v5944
    %v5946 = vpop.f32.mrf.mxu0
    %v5947 = vadd.f32 0.0, %v5946
    %5948 = vdwg.mxu0
    %5949 = vmatpush.bf16.msra.mxu0 %v5896
    %5950 = vmatpush.bf16.msra.mxu0 %v5893
    %5951 = vmatpush.bf16.msra.mxu0 %v5890
    %5952 = vmatpush.bf16.msra.mxu0 %v5887
    %5953 = vmatpush.bf16.msra.mxu0 %v5884
    %5954 = vmatpush.bf16.msra.mxu0 %v5881
    %5955 = vmatpush.bf16.msra.mxu0 %v5878
    %5956 = vmatpush.bf16.msra.mxu0 %v5875
    %5957 = vmatmul.bf16.gmra.mxu0 %v5760
    %v5958 = vpop.f32.mrf.mxu0
    %v5959 = vadd.f32 0.0, %v5958
    %v5960 = vpop.f32.mrf.mxu0
    %v5961 = vadd.f32 0.0, %v5960
    %5962 = vdwg.mxu0
    %v5963 = vld [vmem:[%s1047 + $0xc] sm:$0xff]
    %v5964 = vld [vmem:[%s1047 + $0x14] sm:$0xf]
    %v5965 = vld [vmem:[%s1047 + $0x24] sm:$0xff]
    %v5966 = vld [vmem:[%s1047 + $0x2c] sm:$0xf]
    %v5967 = vunpack.c.l.bf16 %v5963
    %v5968 = vunpack.c.h.bf16 %v5963
    %v5969 = vunpack.c.l.bf16 %v5964
    %v5970 = vunpack.c.l.bf16 %v5965
    %v5971 = vunpack.c.h.bf16 %v5965
    %v5972 = vunpack.c.l.bf16 %v5966
    %v5973 = vadd.f32 %v5967, %v5931
    %v5974 = vadd.f32 %v5970, %v5933
    %v5975 = vxor.u32 %v5973, 2147483648
    %v5976 = vxor.u32 %v5974, 2147483648
    %v5977 = vmul.f32 %v5975, 1.442695
    %v5978 = vpow.pop %v5977
    %v5979 = vmul.f32 %v5976, 1.442695
    %v5980 = vpow.pop %v5979
    %v5981 = vadd.f32 %v5978, 1.0
    %v5982 = vadd.f32 %v5980, 1.0
    %v5983 = vrcp.pop %v5981
    %v5984 = vmul.f32 %v5981, %v5983
    %v5985 = vsub.f32 1.0, %v5984
    %v5986 = vmul.f32 %v5983, %v5985
    %v5987 = vadd.f32 %v5983, %v5986
    %vm5988 = vweird.f32 %v5981
    %vm5989 = vweird.f32 %v5983
    %vm5990 = vmor %vm5988, %vm5989
    %v5991 = vsel %vm5990, %v5983, %v5987
    %v5992 = vand.u32 2147483647, %v5981
    %vm5993 = vcmp.eq.f32.partialorder %v5992, 8.507059e+37
    %v5994 = vand.u32 %v5981, 2147483648
    %v5995 = vor.u32 1.1754944e-38, %v5994
    %v5996 = vsel %vm5993, %v5995, %v5991
    %v5997 = vmul.f32 1.0, %v5996
    %v5998 = vrcp.pop %v5982
    %v5999 = vmul.f32 %v5982, %v5998
    %v6000 = vsub.f32 1.0, %v5999
    %v6001 = vmul.f32 %v5998, %v6000
    %v6002 = vadd.f32 %v5998, %v6001
    %vm6003 = vweird.f32 %v5982
    %vm6004 = vweird.f32 %v5998
    %vm6005 = vmor %vm6003, %vm6004
    %v6006 = vsel %vm6005, %v5998, %v6002
    %v6007 = vand.u32 2147483647, %v5982
    %vm6008 = vcmp.eq.f32.partialorder %v6007, 8.507059e+37
    %v6009 = vand.u32 %v5982, 2147483648
    %v6010 = vor.u32 1.1754944e-38, %v6009
    %v6011 = vsel %vm6008, %v6010, %v6006
    %v6012 = vmul.f32 1.0, %v6011
    %v6013 = vadd.f32 %v5968, %v5945
    %v6014 = vadd.f32 %v5971, %v5947
    %v6015 = vxor.u32 %v6013, 2147483648
    %v6016 = vxor.u32 %v6014, 2147483648
    %v6017 = vmul.f32 %v6015, 1.442695
    %v6018 = vpow.pop %v6017
    %v6019 = vmul.f32 %v6016, 1.442695
    %v6020 = vpow.pop %v6019
    %v6021 = vadd.f32 %v6018, 1.0
    %v6022 = vadd.f32 %v6020, 1.0
    %v6023 = vrcp.pop %v6021
    %v6024 = vmul.f32 %v6021, %v6023
    %v6025 = vsub.f32 1.0, %v6024
    %v6026 = vmul.f32 %v6023, %v6025
    %v6027 = vadd.f32 %v6023, %v6026
    %vm6028 = vweird.f32 %v6021
    %vm6029 = vweird.f32 %v6023
    %vm6030 = vmor %vm6028, %vm6029
    %v6031 = vsel %vm6030, %v6023, %v6027
    %v6032 = vand.u32 2147483647, %v6021
    %vm6033 = vcmp.eq.f32.partialorder %v6032, 8.507059e+37
    %v6034 = vand.u32 %v6021, 2147483648
    %v6035 = vor.u32 1.1754944e-38, %v6034
    %v6036 = vsel %vm6033, %v6035, %v6031
    %v6037 = vmul.f32 1.0, %v6036
    %v6038 = vrcp.pop %v6022
    %v6039 = vmul.f32 %v6022, %v6038
    %v6040 = vsub.f32 1.0, %v6039
    %v6041 = vmul.f32 %v6038, %v6040
    %v6042 = vadd.f32 %v6038, %v6041
    %vm6043 = vweird.f32 %v6022
    %vm6044 = vweird.f32 %v6038
    %vm6045 = vmor %vm6043, %vm6044
    %v6046 = vsel %vm6045, %v6038, %v6042
    %v6047 = vand.u32 2147483647, %v6022
    %vm6048 = vcmp.eq.f32.partialorder %v6047, 8.507059e+37
    %v6049 = vand.u32 %v6022, 2147483648
    %v6050 = vor.u32 1.1754944e-38, %v6049
    %v6051 = vsel %vm6048, %v6050, %v6046
    %v6052 = vmul.f32 1.0, %v6051
    %v6053 = vadd.f32 %v5959, %v1476
    %v6054 = vadd.f32 %v5961, %v1476
    %v6055 = vmul.f32 %v5997, %v6053
    %v6056 = vmul.f32 %v6012, %v6054
    %v6057 = vadd.f32 %v5969, %v6055
    %v6058 = vadd.f32 %v5972, %v6056
    %v6059 = vtanh.pop %v6057
    %v6060 = vtanh.pop %v6058
    %v6061 = vsub.f32 1.0, %v6037
    %v6062 = vsub.f32 1.0, %v6052
    %v6063 = vmul.f32 %v6061, %v6059
    %v6064 = vmul.f32 %v6062, %v6060
    %v6065 = vmul.f32 %v6037, %v5758
    %v6066 = vmul.f32 %v6052, %v5759
    %v6067 = vadd.f32 %v6063, %v6065
    %v6068 = vadd.f32 %v6064, %v6066
    %v6069 = vsel %vm1167, %v6067, %v5758
    %v6070 = vsel %vm1168, %v6068, %v5759
    %6071 = vst [vmem:[#allocation4] sm:$0xff] %v6069
    %6072 = vst [vmem:[#allocation4 + $0x8] sm:$0xff] %v6070
    %v6073 = vpack.c.bf16 %v6069, %v6069
    %v6074 = vpack.c.bf16 %v6070, %v6070
    %6075 = vst [vmem:[%s8 + $0x4] sm:$0xf] %v6073
    %6076 = vst [vmem:[%s8 + $0xc] sm:$0xf] %v6074
    // Predicated region
    $region46: #{_lambda_.2} parent=1 // pred_check
      _
    $region47: #{_lambda_.2} parent=1 // pred_check_branch
      %6078 = sbr.rel (0) target = $region49
    $region48: #{_lambda_.2} parent=1 // pred_region
      _
    $region49: #{_lambda_.2} parent=1 // pred_fallthru
      _
    // Predicated region
    $region50: #{_lambda_.2} parent=1 // pred_check
      _
    $region51: #{_lambda_.2} parent=1 // pred_check_branch
      %6080 = sbr.rel (0) target = $region53
    $region52: #{_lambda_.2} parent=1 // pred_region
      _
    $region53: #{_lambda_.2} parent=1 // pred_fallthru
      _
    %6081 = vsyncpa [#allocation6], 1
    %6082 = vsyncpa [#allocation8], 1

</llo_original>
